<compile_context>
chip_gen: v5e
topology: v5e:2x2
jax: 0.10.0
libtpu: 0.0.40
codegen_flags: <defaults>
</compile_context>

<pallas_src>
import math
import functools

import jax
import jax.numpy as jnp
from jax import lax
from jax.experimental import pallas as pl
from jax.experimental.pallas import tpu as pltpu

NEG_INF = -1e9

ENC_KEYS = ("ln1_g", "ln1_b", "wqkv", "bqkv", "wo", "bo",
            "ln2_g", "ln2_b", "w1", "b1", "w2", "b2")
DEC_KEYS = ("ln1_g", "ln1_b", "wqkv", "bqkv", "wo1", "bo1",
            "ln2_g", "ln2_b", "wq", "bq", "wkv", "bkv", "wo2", "bo2",
            "ln3_g", "ln3_b", "w1", "b1", "w2", "b2")


def _vmem_limit_bytes():
    # Generation-aware scoped-VMEM limit (v7x: 64 MiB total; v5e/v6e: 128 MiB).
    try:
        cap = int(pltpu.get_tpu_info().vmem_capacity_bytes)
    except Exception:
        cap = 64 * 1024 * 1024
    return max(16 * 1024 * 1024, min(cap // 2, 64 * 1024 * 1024))


# --------------------------------------------------------------------------
# In-kernel helpers (traced inside the single fused Pallas kernel)
# --------------------------------------------------------------------------

def _layernorm(x, g, b, eps):
    # Annotated-Transformer LayerNorm: unbiased std, eps added to std.
    # The divide is routed through the EUP approx-reciprocal path.
    d = x.shape[-1]
    mean = jnp.mean(x, axis=-1, keepdims=True)
    xc = x - mean
    var = jnp.sum(xc * xc, axis=-1, keepdims=True) * (1.0 / (d - 1))
    inv = pl.reciprocal(jnp.sqrt(var) + eps, approx=True)
    return g * (xc * inv) + b


def _linear(x, w_bf16, b):
    # x: (N, Din) f32, w: (Din, Dout) bf16, b: (1, Dout) f32 -> (N, Dout) f32
    return jnp.dot(x.astype(jnp.bfloat16), w_bf16,
                   preferred_element_type=jnp.float32) + b


def _mha(q_all, k_all, v_all, wo, keep_per_batch, B, Sq, Sk, n_heads, scale):
    """Multi-head attention fused with the output projection.

    q_all: (B*Sq, D) f32; k_all/v_all: (B*Sk, D) f32; wo: (D, D) bf16.
    keep_per_batch[b]: bool mask broadcastable to (Sq, Sk) (True = attend).
    Returns (B*Sq, D) f32 == concat_h(softmax(q_h k_h^T) v_h) @ wo, computed as
    sum_h (head_h @ wo[h*dk:(h+1)*dk, :]) so no lane-concat of heads is needed.
    """
    D = q_all.shape[-1]
    dk = D // n_heads
    outs = []
    for b in range(B):                       # static, sublane-aligned row slices
        q = q_all[b * Sq:(b + 1) * Sq, :]
        k = k_all[b * Sk:(b + 1) * Sk, :]
        v = v_all[b * Sk:(b + 1) * Sk, :]
        keep = keep_per_batch[b]
        acc = None
        for h in range(n_heads):
            lo = h * dk
            qh = q[:, lo:lo + dk].astype(jnp.bfloat16)
            kh = k[:, lo:lo + dk].astype(jnp.bfloat16)
            vh = v[:, lo:lo + dk].astype(jnp.bfloat16)
            # Contract last dims of both operands: no explicit k.T relayout.
            s = lax.dot_general(qh, kh, (((1,), (1,)), ((), ())),
                                preferred_element_type=jnp.float32) * scale
            s = jnp.where(keep, s, NEG_INF)
            s = s - jnp.max(s, axis=-1, keepdims=True)
            p = jnp.exp(s)
            p = p * pl.reciprocal(jnp.sum(p, axis=-1, keepdims=True), approx=True)
            oh = jnp.dot(p.astype(jnp.bfloat16), vh,
                         preferred_element_type=jnp.float32)        # (Sq, dk)
            contrib = jnp.dot(oh.astype(jnp.bfloat16), wo[lo:lo + dk, :],
                              preferred_element_type=jnp.float32)   # (Sq, D)
            acc = contrib if acc is None else acc + contrib
        outs.append(acc)
    return outs[0] if B == 1 else jnp.concatenate(outs, axis=0)


# --------------------------------------------------------------------------
# Fused whole-model kernel (encoder stack + decoder stack + final LayerNorms)
# --------------------------------------------------------------------------

def _encdec_kernel(src_ref, tgt_ref, smask_ref, *refs, n_heads, eps):
    ne, nd = len(ENC_KEYS), len(DEC_KEYS)
    enc = dict(zip(ENC_KEYS, refs[:ne]))
    e_ng_ref, e_nb_ref = refs[ne], refs[ne + 1]
    dec = dict(zip(DEC_KEYS, refs[ne + 2:ne + 2 + nd]))
    d_ng_ref, d_nb_ref = refs[ne + 2 + nd], refs[ne + 3 + nd]
    out_ref = refs[-1]

    B, S_src = smask_ref.shape
    D = src_ref.shape[-1]
    S_tgt = tgt_ref.shape[0] // B
    n_enc = enc["wqkv"].shape[0]
    n_dec = dec["wqkv"].shape[0]
    scale = 1.0 / math.sqrt(D // n_heads)

    # Source padding mask: int8 DMA'd once, compared in-kernel.
    smask = smask_ref[...].astype(jnp.int32)                 # (B, S_src)
    src_keep = [smask[b:b + 1, :] != 0 for b in range(B)]    # each (1, S_src) bool

    # Causal mask built in-kernel (two iota compares, no (B,St,St) f32 DMA).
    rows = lax.broadcasted_iota(jnp.int32, (S_tgt, S_tgt), 0)
    cols = lax.broadcasted_iota(jnp.int32, (S_tgt, S_tgt), 1)
    causal_keep = cols <= rows                                # (St, St) bool

    # ---------------- encoder stack (x resident, batch folded into rows) ----
    x = src_ref[...]                                          # (B*Ss, D) f32
    for l in range(n_enc):
        y = _layernorm(x, enc["ln1_g"][l], enc["ln1_b"][l], eps)
        qkv = _linear(y, enc["wqkv"][l], enc["bqkv"][l])      # (B*Ss, 3D)
        attn = _mha(qkv[:, :D], qkv[:, D:2 * D], qkv[:, 2 * D:],
                    enc["wo"][l], src_keep, B, S_src, S_src, n_heads, scale)
        x = x + attn + enc["bo"][l]
        y = _layernorm(x, enc["ln2_g"][l], enc["ln2_b"][l], eps)
        h = jnp.maximum(_linear(y, enc["w1"][l], enc["b1"][l]), 0.0)
        x = x + _linear(h, enc["w2"][l], enc["b2"][l])
    mem = _layernorm(x, e_ng_ref[...], e_nb_ref[...], eps)    # encoder memory

    # ---------------- decoder stack (memory never leaves VMEM) --------------
    x = tgt_ref[...]                                          # (B*St, D) f32
    for l in range(n_dec):
        # sublayer 1: masked self-attention + residual
        y = _layernorm(x, dec["ln1_g"][l], dec["ln1_b"][l], eps)
        qkv = _linear(y, dec["wqkv"][l], dec["bqkv"][l])
        attn = _mha(qkv[:, :D], qkv[:, D:2 * D], qkv[:, 2 * D:],
                    dec["wo1"][l], [causal_keep] * B, B, S_tgt, S_tgt,
                    n_heads, scale)
        x = x + attn + dec["bo1"][l]
        # sublayer 2: cross-attention over encoder memory + residual
        y = _layernorm(x, dec["ln2_g"][l], dec["ln2_b"][l], eps)
        q = _linear(y, dec["wq"][l], dec["bq"][l])            # (B*St, D)
        kv = _linear(mem, dec["wkv"][l], dec["bkv"][l])       # (B*Ss, 2D)
        attn = _mha(q, kv[:, :D], kv[:, D:], dec["wo2"][l],
                    src_keep, B, S_tgt, S_src, n_heads, scale)
        x = x + attn + dec["bo2"][l]
        # sublayer 3: feed-forward + residual
        y = _layernorm(x, dec["ln3_g"][l], dec["ln3_b"][l], eps)
        h = jnp.maximum(_linear(y, dec["w1"][l], dec["b1"][l]), 0.0)
        x = x + _linear(h, dec["w2"][l], dec["b2"][l])

    out_ref[...] = _layernorm(x, d_ng_ref[...], d_nb_ref[...], eps)


# --------------------------------------------------------------------------
# Model glue (embeddings + the single pallas_call)
# --------------------------------------------------------------------------

def positional_encoding(d_model, max_len):
    pos = jnp.arange(max_len, dtype=jnp.float32)[:, None]
    div = jnp.exp(jnp.arange(0, d_model, 2, dtype=jnp.float32)
                  * (-math.log(10000.0) / d_model))
    pe = jnp.zeros((max_len, d_model), jnp.float32)
    pe = pe.at[:, 0::2].set(jnp.sin(pos * div))
    pe = pe.at[:, 1::2].set(jnp.cos(pos * div))
    return pe


def embed(tokens, table, pe, d_model):
    # TODO(synk): vocab gather + PE stay in plain JAX (no clean Pallas gather win here).
    x = jnp.take(table, tokens, axis=0) * math.sqrt(d_model)
    return x + pe[None, :tokens.shape[1], :]


def _stack_layers(layers, keys):
    return [jnp.stack([lp[k] for lp in layers], axis=0) for k in keys]


def encoder_decoder_forward(params, src, tgt, src_mask, tgt_mask, n_heads):
    # Matches EncoderDecoder.forward:
    #   decode(encode(src, src_mask), src_mask, tgt, tgt_mask)
    # (the generator is a member but is NOT applied in forward)
    d_model = params["d_model"]
    B, S_src = src.shape
    S_tgt = tgt.shape[1]

    src_x = embed(src, params["src_emb"], params["pe"], d_model).reshape(B * S_src, d_model)
    tgt_x = embed(tgt, params["tgt_emb"], params["pe"], d_model).reshape(B * S_tgt, d_model)
    smask = (src_mask.reshape(B, S_src) != 0).astype(jnp.int8)
    # TODO(synk): tgt_mask is assumed to be the standard causal (subsequent-position)
    # mask and is rebuilt in-kernel via broadcasted_iota; an arbitrary tgt_mask would
    # need an extra int8 kernel input.
    del tgt_mask

    enc_w = _stack_layers(params["enc_layers"], ENC_KEYS)
    dec_w = _stack_layers(params["dec_layers"], DEC_KEYS)
    operands = ([src_x, tgt_x, smask]
                + enc_w + [params["enc_ng"], params["enc_nb"]]
                + dec_w + [params["dec_ng"], params["dec_nb"]])

    out = pl.pallas_call(
        functools.partial(_encdec_kernel, n_heads=n_heads, eps=1e-6),
        out_shape=jax.ShapeDtypeStruct((B * S_tgt, d_model), jnp.float32),
        compiler_params=pltpu.CompilerParams(
            vmem_limit_bytes=_vmem_limit_bytes()),
    )(*operands)
    return out.reshape(B, S_tgt, d_model)


# --------------------------------------------------------------------------
# Deterministic parameter init (MXU weights stored as bf16; layouts 2-D)
# --------------------------------------------------------------------------

def init_params(key, src_vocab, tgt_vocab, d_model, d_ff, n_heads, n_layers):
    keys = iter(jax.random.split(key, 512))

    def lin(fi, fo):
        k1, k2 = jax.random.split(next(keys))
        lim = 1.0 / math.sqrt(fi)
        w = jax.random.uniform(k1, (fi, fo), jnp.float32, -lim, lim)
        b = jax.random.uniform(k2, (fo,), jnp.float32, -lim, lim)
        return w, b

    def ln_pair():
        return (jnp.ones((1, d_model), jnp.float32),
                jnp.zeros((1, d_model), jnp.float32))

    def fused_qkv():
        wq, bq = lin(d_model, d_model)
        wk, bk = lin(d_model, d_model)
        wv, bv = lin(d_model, d_model)
        return (jnp.concatenate([wq, wk, wv], axis=1).astype(jnp.bfloat16),
                jnp.concatenate([bq, bk, bv])[None, :])

    def proj():
        w, b = lin(d_model, d_model)
        return w.astype(jnp.bfloat16), b[None, :]

    def ffn():
        w1, b1 = lin(d_model, d_ff)
        w2, b2 = lin(d_ff, d_model)
        return (w1.astype(jnp.bfloat16), b1[None, :],
                w2.astype(jnp.bfloat16), b2[None, :])

    enc_layers = []
    for _ in range(n_layers):
        ln1_g, ln1_b = ln_pair()
        ln2_g, ln2_b = ln_pair()
        wqkv, bqkv = fused_qkv()
        wo, bo = proj()
        w1, b1, w2, b2 = ffn()
        enc_layers.append(dict(ln1_g=ln1_g, ln1_b=ln1_b, wqkv=wqkv, bqkv=bqkv,
                               wo=wo, bo=bo, ln2_g=ln2_g, ln2_b=ln2_b,
                               w1=w1, b1=b1, w2=w2, b2=b2))

    dec_layers = []
    for _ in range(n_layers):
        ln1_g, ln1_b = ln_pair()
        ln2_g, ln2_b = ln_pair()
        ln3_g, ln3_b = ln_pair()
        wqkv, bqkv = fused_qkv()
        wo1, bo1 = proj()
        wq, bq = proj()
        wk_, bk_ = lin(d_model, d_model)
        wv_, bv_ = lin(d_model, d_model)
        wkv = jnp.concatenate([wk_, wv_], axis=1).astype(jnp.bfloat16)
        bkv = jnp.concatenate([bk_, bv_])[None, :]
        wo2, bo2 = proj()
        w1, b1, w2, b2 = ffn()
        dec_layers.append(dict(ln1_g=ln1_g, ln1_b=ln1_b, wqkv=wqkv, bqkv=bqkv,
                               wo1=wo1, bo1=bo1, ln2_g=ln2_g, ln2_b=ln2_b,
                               wq=wq, bq=bq, wkv=wkv, bkv=bkv, wo2=wo2, bo2=bo2,
                               ln3_g=ln3_g, ln3_b=ln3_b,
                               w1=w1, b1=b1, w2=w2, b2=b2))

    enc_ng, enc_nb = ln_pair()
    dec_ng, dec_nb = ln_pair()
    src_emb = jax.random.normal(next(keys), (src_vocab, d_model), jnp.float32)
    tgt_emb = jax.random.normal(next(keys), (tgt_vocab, d_model), jnp.float32)
    gen_w, gen_b = lin(d_model, tgt_vocab)   # generator: present, unused in forward()

    return {"d_model": d_model,
            "pe": positional_encoding(d_model, 64),
            "src_emb": src_emb, "tgt_emb": tgt_emb,
            "enc_layers": enc_layers, "dec_layers": dec_layers,
            "enc_ng": enc_ng, "enc_nb": enc_nb,
            "dec_ng": dec_ng, "dec_nb": dec_nb,
            "gen_w": gen_w, "gen_b": gen_b}


# --------------------------------------------------------------------------
# Main
# --------------------------------------------------------------------------

if __name__ == "__main__":
    B, S_src, S_tgt = 2, 8, 8
    d_model, d_ff, n_heads, n_layers, vocab = 32, 64, 4, 2, 16

    key = jax.random.PRNGKey(0)
    kp, ks, kt = jax.random.split(key, 3)

    params = init_params(kp, vocab, vocab, d_model, d_ff, n_heads, n_layers)

    src = jax.random.randint(ks, (B, S_src), 0, vocab, dtype=jnp.int32)
    tgt = jax.random.randint(kt, (B, S_tgt), 0, vocab, dtype=jnp.int32)
    src_mask = jnp.ones((B, 1, S_src), jnp.float32)
    tgt_mask = jnp.broadcast_to(
        jnp.tril(jnp.ones((S_tgt, S_tgt), jnp.float32))[None], (B, S_tgt, S_tgt))

    out = encoder_decoder_forward(params, src, tgt, src_mask, tgt_mask, n_heads)
    out = jax.block_until_ready(out)

    assert out.shape == (B, S_tgt, d_model)
    assert bool(jnp.all(jnp.isfinite(out)))
    print("KERNEL_OK")
</pallas_src>

<mosaic_0001>
module attributes {stable_mosaic.version = 11 : i64} {
  func.func @_encdec_kernel(%arg0: memref<16x32xf32, #tpu.memory_space<vmem>>, %arg1: memref<16x32xf32, #tpu.memory_space<vmem>>, %arg2: memref<2x8xi8, #tpu.memory_space<vmem>>, %arg3: memref<2x1x32xf32, #tpu.memory_space<vmem>>, %arg4: memref<2x1x32xf32, #tpu.memory_space<vmem>>, %arg5: memref<2x32x96xbf16, #tpu.memory_space<vmem>>, %arg6: memref<2x1x96xf32, #tpu.memory_space<vmem>>, %arg7: memref<2x32x32xbf16, #tpu.memory_space<vmem>>, %arg8: memref<2x1x32xf32, #tpu.memory_space<vmem>>, %arg9: memref<2x1x32xf32, #tpu.memory_space<vmem>>, %arg10: memref<2x1x32xf32, #tpu.memory_space<vmem>>, %arg11: memref<2x32x64xbf16, #tpu.memory_space<vmem>>, %arg12: memref<2x1x64xf32, #tpu.memory_space<vmem>>, %arg13: memref<2x64x32xbf16, #tpu.memory_space<vmem>>, %arg14: memref<2x1x32xf32, #tpu.memory_space<vmem>>, %arg15: memref<1x32xf32, #tpu.memory_space<vmem>>, %arg16: memref<1x32xf32, #tpu.memory_space<vmem>>, %arg17: memref<2x1x32xf32, #tpu.memory_space<vmem>>, %arg18: memref<2x1x32xf32, #tpu.memory_space<vmem>>, %arg19: memref<2x32x96xbf16, #tpu.memory_space<vmem>>, %arg20: memref<2x1x96xf32, #tpu.memory_space<vmem>>, %arg21: memref<2x32x32xbf16, #tpu.memory_space<vmem>>, %arg22: memref<2x1x32xf32, #tpu.memory_space<vmem>>, %arg23: memref<2x1x32xf32, #tpu.memory_space<vmem>>, %arg24: memref<2x1x32xf32, #tpu.memory_space<vmem>>, %arg25: memref<2x32x32xbf16, #tpu.memory_space<vmem>>, %arg26: memref<2x1x32xf32, #tpu.memory_space<vmem>>, %arg27: memref<2x32x64xbf16, #tpu.memory_space<vmem>>, %arg28: memref<2x1x64xf32, #tpu.memory_space<vmem>>, %arg29: memref<2x32x32xbf16, #tpu.memory_space<vmem>>, %arg30: memref<2x1x32xf32, #tpu.memory_space<vmem>>, %arg31: memref<2x1x32xf32, #tpu.memory_space<vmem>>, %arg32: memref<2x1x32xf32, #tpu.memory_space<vmem>>, %arg33: memref<2x32x64xbf16, #tpu.memory_space<vmem>>, %arg34: memref<2x1x64xf32, #tpu.memory_space<vmem>>, %arg35: memref<2x64x32xbf16, #tpu.memory_space<vmem>>, %arg36: memref<2x1x32xf32, #tpu.memory_space<vmem>>, %arg37: memref<1x32xf32, #tpu.memory_space<vmem>>, %arg38: memref<1x32xf32, #tpu.memory_space<vmem>>, %arg39: memref<16x32xf32, #tpu.memory_space<vmem>>) attributes {dimension_semantics = [], scalar_prefetch = 0 : i64, scratch_operands = 0 : i64, tpu.core_type = #tpu.core_type<tc>} {
    %c0 = arith.constant 0 : index
    %c0_0 = arith.constant 0 : index
    %0 = vector.load %arg2[%c0, %c0_0] : memref<2x8xi8, #tpu.memory_space<vmem>>, vector<2x8xi8>
    %1 = arith.extsi %0 : vector<2x8xi8> to vector<2x8xi32>
    %2 = vector.extract_strided_slice %1 {offsets = [0, 0], sizes = [1, 8], strides = [1, 1]} : vector<2x8xi32> to vector<1x8xi32>
    %c0_i32 = arith.constant 0 : i32
    %3 = vector.broadcast %c0_i32 : i32 to vector<1x8xi32>
    %4 = arith.cmpi ne, %2, %3 : vector<1x8xi32>
    %5 = vector.extract_strided_slice %1 {offsets = [1, 0], sizes = [1, 8], strides = [1, 1]} : vector<2x8xi32> to vector<1x8xi32>
    %c0_i32_1 = arith.constant 0 : i32
    %6 = vector.broadcast %c0_i32_1 : i32 to vector<1x8xi32>
    %7 = arith.cmpi ne, %5, %6 : vector<1x8xi32>
    %8 = tpu.iota {dimensions = array<i32: 0>} : vector<8x8xi32>
    %9 = tpu.iota {dimensions = array<i32: 1>} : vector<8x8xi32>
    %10 = arith.cmpi sle, %9, %8 : vector<8x8xi32>
    %c0_2 = arith.constant 0 : index
    %c0_3 = arith.constant 0 : index
    %11 = vector.load %arg0[%c0_2, %c0_3] : memref<16x32xf32, #tpu.memory_space<vmem>>, vector<16x32xf32>
    %c0_4 = arith.constant 0 : index
    %c0_5 = arith.constant 0 : index
    %c0_6 = arith.constant 0 : index
    %12 = vector.load %arg3[%c0_4, %c0_5, %c0_6] : memref<2x1x32xf32, #tpu.memory_space<vmem>>, vector<1x1x32xf32>
    %13 = vector.shape_cast %12 : vector<1x1x32xf32> to vector<1x32xf32>
    %c0_7 = arith.constant 0 : index
    %c0_8 = arith.constant 0 : index
    %c0_9 = arith.constant 0 : index
    %14 = vector.load %arg4[%c0_7, %c0_8, %c0_9] : memref<2x1x32xf32, #tpu.memory_space<vmem>>, vector<1x1x32xf32>
    %15 = vector.shape_cast %14 : vector<1x1x32xf32> to vector<1x32xf32>
    %cst = arith.constant dense<0.000000e+00> : vector<16xf32>
    %16 = vector.multi_reduction <add>, %11, %cst [1] : vector<16x32xf32> to vector<16xf32>
    %17 = vector.shape_cast %16 : vector<16xf32> to vector<16x1xf32>
    %cst_10 = arith.constant 3.200000e+01 : f32
    %18 = vector.broadcast %cst_10 : f32 to vector<16x1xf32>
    %19 = arith.divf %17, %18 : vector<16x1xf32>
    %20 = vector.broadcast %19 : vector<16x1xf32> to vector<16x32xf32>
    %21 = arith.subf %11, %20 : vector<16x32xf32>
    %22 = arith.mulf %21, %21 : vector<16x32xf32>
    %cst_11 = arith.constant dense<0.000000e+00> : vector<16xf32>
    %23 = vector.multi_reduction <add>, %22, %cst_11 [1] : vector<16x32xf32> to vector<16xf32>
    %24 = vector.shape_cast %23 : vector<16xf32> to vector<16x1xf32>
    %cst_12 = arith.constant 0.0322580636 : f32
    %25 = vector.broadcast %cst_12 : f32 to vector<16x1xf32>
    %26 = arith.mulf %24, %25 : vector<16x1xf32>
    %27 = math.sqrt %26 : vector<16x1xf32>
    %cst_13 = arith.constant 9.99999997E-7 : f32
    %28 = vector.broadcast %cst_13 : f32 to vector<16x1xf32>
    %29 = arith.addf %27, %28 : vector<16x1xf32>
    %30 = tpu.reciprocal %29 {approx = true} : vector<16x1xf32> -> vector<16x1xf32>
    %31 = vector.broadcast %30 : vector<16x1xf32> to vector<16x32xf32>
    %32 = arith.mulf %21, %31 : vector<16x32xf32>
    %33 = vector.broadcast %13 : vector<1x32xf32> to vector<16x32xf32>
    %34 = arith.mulf %33, %32 : vector<16x32xf32>
    %35 = vector.broadcast %15 : vector<1x32xf32> to vector<16x32xf32>
    %36 = arith.addf %34, %35 : vector<16x32xf32>
    %c0_14 = arith.constant 0 : index
    %c0_15 = arith.constant 0 : index
    %c0_16 = arith.constant 0 : index
    %37 = vector.load %arg5[%c0_14, %c0_15, %c0_16] : memref<2x32x96xbf16, #tpu.memory_space<vmem>>, vector<1x32x96xbf16>
    %38 = vector.shape_cast %37 : vector<1x32x96xbf16> to vector<32x96xbf16>
    %c0_17 = arith.constant 0 : index
    %c0_18 = arith.constant 0 : index
    %c0_19 = arith.constant 0 : index
    %39 = vector.load %arg6[%c0_17, %c0_18, %c0_19] : memref<2x1x96xf32, #tpu.memory_space<vmem>>, vector<1x1x96xf32>
    %40 = vector.shape_cast %39 : vector<1x1x96xf32> to vector<1x96xf32>
    %41 = arith.truncf %36 : vector<16x32xf32> to vector<16x32xbf16>
    %cst_20 = arith.constant dense<0.000000e+00> : vector<16x96xf32>
    %42 = tpu.matmul %41, %38, %cst_20 {dimension_numbers = #tpu.dot_dimension_numbers<[1], [0], [0], [1], [0, 0, 1, 1], [], []>} : vector<16x32xbf16>, vector<32x96xbf16>, vector<16x96xf32> -> vector<16x96xf32>
    %43 = vector.broadcast %40 : vector<1x96xf32> to vector<16x96xf32>
    %44 = arith.addf %42, %43 : vector<16x96xf32>
    %45 = vector.extract_strided_slice %44 {offsets = [0, 0], sizes = [16, 32], strides = [1, 1]} : vector<16x96xf32> to vector<16x32xf32>
    %46 = vector.extract_strided_slice %44 {offsets = [0, 32], sizes = [16, 32], strides = [1, 1]} : vector<16x96xf32> to vector<16x32xf32>
    %47 = vector.extract_strided_slice %44 {offsets = [0, 64], sizes = [16, 32], strides = [1, 1]} : vector<16x96xf32> to vector<16x32xf32>
    %c0_21 = arith.constant 0 : index
    %c0_22 = arith.constant 0 : index
    %c0_23 = arith.constant 0 : index
    %48 = vector.load %arg7[%c0_21, %c0_22, %c0_23] : memref<2x32x32xbf16, #tpu.memory_space<vmem>>, vector<1x32x32xbf16>
    %49 = vector.shape_cast %48 : vector<1x32x32xbf16> to vector<32x32xbf16>
    %50 = vector.extract_strided_slice %45 {offsets = [0, 0], sizes = [8, 32], strides = [1, 1]} : vector<16x32xf32> to vector<8x32xf32>
    %51 = vector.extract_strided_slice %46 {offsets = [0, 0], sizes = [8, 32], strides = [1, 1]} : vector<16x32xf32> to vector<8x32xf32>
    %52 = vector.extract_strided_slice %47 {offsets = [0, 0], sizes = [8, 32], strides = [1, 1]} : vector<16x32xf32> to vector<8x32xf32>
    %53 = vector.extract_strided_slice %50 {offsets = [0, 0], sizes = [8, 8], strides = [1, 1]} : vector<8x32xf32> to vector<8x8xf32>
    %54 = arith.truncf %53 : vector<8x8xf32> to vector<8x8xbf16>
    %55 = vector.extract_strided_slice %51 {offsets = [0, 0], sizes = [8, 8], strides = [1, 1]} : vector<8x32xf32> to vector<8x8xf32>
    %56 = arith.truncf %55 : vector<8x8xf32> to vector<8x8xbf16>
    %57 = vector.extract_strided_slice %52 {offsets = [0, 0], sizes = [8, 8], strides = [1, 1]} : vector<8x32xf32> to vector<8x8xf32>
    %58 = arith.truncf %57 : vector<8x8xf32> to vector<8x8xbf16>
    %cst_24 = arith.constant dense<0.000000e+00> : vector<8x8xf32>
    %59 = tpu.matmul %54, %56, %cst_24 {dimension_numbers = #tpu.dot_dimension_numbers<[1], [1], [0], [0], [0, 0, 1, 0], [], []>} : vector<8x8xbf16>, vector<8x8xbf16>, vector<8x8xf32> -> vector<8x8xf32>
    %cst_25 = arith.constant 0.353553385 : f32
    %60 = vector.broadcast %cst_25 : f32 to vector<8x8xf32>
    %61 = arith.mulf %59, %60 : vector<8x8xf32>
    %cst_26 = arith.constant -1.000000e+09 : f32
    %62 = vector.shape_cast %4 : vector<1x8xi1> to vector<1x8xi1>
    %63 = vector.broadcast %62 : vector<1x8xi1> to vector<8x8xi1>
    %64 = vector.broadcast %cst_26 : f32 to vector<8x8xf32>
    %65 = arith.select %63, %61, %64 : vector<8x8xi1>, vector<8x8xf32>
    %cst_27 = arith.constant dense<0xFF800000> : vector<8xf32>
    %66 = vector.multi_reduction <maximumf>, %65, %cst_27 [1] : vector<8x8xf32> to vector<8xf32>
    %67 = vector.shape_cast %66 : vector<8xf32> to vector<8x1xf32>
    %68 = vector.broadcast %67 : vector<8x1xf32> to vector<8x8xf32>
    %69 = arith.subf %65, %68 : vector<8x8xf32>
    %70 = math.exp %69 : vector<8x8xf32>
    %cst_28 = arith.constant dense<0.000000e+00> : vector<8xf32>
    %71 = vector.multi_reduction <add>, %70, %cst_28 [1] : vector<8x8xf32> to vector<8xf32>
    %72 = vector.shape_cast %71 : vector<8xf32> to vector<8x1xf32>
    %73 = tpu.reciprocal %72 {approx = true} : vector<8x1xf32> -> vector<8x1xf32>
    %74 = vector.broadcast %73 : vector<8x1xf32> to vector<8x8xf32>
    %75 = arith.mulf %70, %74 : vector<8x8xf32>
    %76 = arith.truncf %75 : vector<8x8xf32> to vector<8x8xbf16>
    %cst_29 = arith.constant dense<0.000000e+00> : vector<8x8xf32>
    %77 = tpu.matmul %76, %58, %cst_29 {dimension_numbers = #tpu.dot_dimension_numbers<[1], [0], [0], [1], [0, 0, 1, 1], [], []>} : vector<8x8xbf16>, vector<8x8xbf16>, vector<8x8xf32> -> vector<8x8xf32>
    %78 = arith.truncf %77 : vector<8x8xf32> to vector<8x8xbf16>
    %79 = vector.extract_strided_slice %49 {offsets = [0, 0], sizes = [8, 32], strides = [1, 1]} : vector<32x32xbf16> to vector<8x32xbf16>
    %cst_30 = arith.constant dense<0.000000e+00> : vector<8x32xf32>
    %80 = tpu.matmul %78, %79, %cst_30 {dimension_numbers = #tpu.dot_dimension_numbers<[1], [0], [0], [1], [0, 0, 1, 1], [], []>} : vector<8x8xbf16>, vector<8x32xbf16>, vector<8x32xf32> -> vector<8x32xf32>
    %81 = vector.extract_strided_slice %50 {offsets = [0, 8], sizes = [8, 8], strides = [1, 1]} : vector<8x32xf32> to vector<8x8xf32>
    %82 = arith.truncf %81 : vector<8x8xf32> to vector<8x8xbf16>
    %83 = vector.extract_strided_slice %51 {offsets = [0, 8], sizes = [8, 8], strides = [1, 1]} : vector<8x32xf32> to vector<8x8xf32>
    %84 = arith.truncf %83 : vector<8x8xf32> to vector<8x8xbf16>
    %85 = vector.extract_strided_slice %52 {offsets = [0, 8], sizes = [8, 8], strides = [1, 1]} : vector<8x32xf32> to vector<8x8xf32>
    %86 = arith.truncf %85 : vector<8x8xf32> to vector<8x8xbf16>
    %cst_31 = arith.constant dense<0.000000e+00> : vector<8x8xf32>
    %87 = tpu.matmul %82, %84, %cst_31 {dimension_numbers = #tpu.dot_dimension_numbers<[1], [1], [0], [0], [0, 0, 1, 0], [], []>} : vector<8x8xbf16>, vector<8x8xbf16>, vector<8x8xf32> -> vector<8x8xf32>
    %cst_32 = arith.constant 0.353553385 : f32
    %88 = vector.broadcast %cst_32 : f32 to vector<8x8xf32>
    %89 = arith.mulf %87, %88 : vector<8x8xf32>
    %cst_33 = arith.constant -1.000000e+09 : f32
    %90 = vector.shape_cast %4 : vector<1x8xi1> to vector<1x8xi1>
    %91 = vector.broadcast %90 : vector<1x8xi1> to vector<8x8xi1>
    %92 = vector.broadcast %cst_33 : f32 to vector<8x8xf32>
    %93 = arith.select %91, %89, %92 : vector<8x8xi1>, vector<8x8xf32>
    %cst_34 = arith.constant dense<0xFF800000> : vector<8xf32>
    %94 = vector.multi_reduction <maximumf>, %93, %cst_34 [1] : vector<8x8xf32> to vector<8xf32>
    %95 = vector.shape_cast %94 : vector<8xf32> to vector<8x1xf32>
    %96 = vector.broadcast %95 : vector<8x1xf32> to vector<8x8xf32>
    %97 = arith.subf %93, %96 : vector<8x8xf32>
    %98 = math.exp %97 : vector<8x8xf32>
    %cst_35 = arith.constant dense<0.000000e+00> : vector<8xf32>
    %99 = vector.multi_reduction <add>, %98, %cst_35 [1] : vector<8x8xf32> to vector<8xf32>
    %100 = vector.shape_cast %99 : vector<8xf32> to vector<8x1xf32>
    %101 = tpu.reciprocal %100 {approx = true} : vector<8x1xf32> -> vector<8x1xf32>
    %102 = vector.broadcast %101 : vector<8x1xf32> to vector<8x8xf32>
    %103 = arith.mulf %98, %102 : vector<8x8xf32>
    %104 = arith.truncf %103 : vector<8x8xf32> to vector<8x8xbf16>
    %cst_36 = arith.constant dense<0.000000e+00> : vector<8x8xf32>
    %105 = tpu.matmul %104, %86, %cst_36 {dimension_numbers = #tpu.dot_dimension_numbers<[1], [0], [0], [1], [0, 0, 1, 1], [], []>} : vector<8x8xbf16>, vector<8x8xbf16>, vector<8x8xf32> -> vector<8x8xf32>
    %106 = arith.truncf %105 : vector<8x8xf32> to vector<8x8xbf16>
    %107 = vector.extract_strided_slice %49 {offsets = [8, 0], sizes = [8, 32], strides = [1, 1]} : vector<32x32xbf16> to vector<8x32xbf16>
    %cst_37 = arith.constant dense<0.000000e+00> : vector<8x32xf32>
    %108 = tpu.matmul %106, %107, %cst_37 {dimension_numbers = #tpu.dot_dimension_numbers<[1], [0], [0], [1], [0, 0, 1, 1], [], []>} : vector<8x8xbf16>, vector<8x32xbf16>, vector<8x32xf32> -> vector<8x32xf32>
    %109 = arith.addf %80, %108 : vector<8x32xf32>
    %110 = vector.extract_strided_slice %50 {offsets = [0, 16], sizes = [8, 8], strides = [1, 1]} : vector<8x32xf32> to vector<8x8xf32>
    %111 = arith.truncf %110 : vector<8x8xf32> to vector<8x8xbf16>
    %112 = vector.extract_strided_slice %51 {offsets = [0, 16], sizes = [8, 8], strides = [1, 1]} : vector<8x32xf32> to vector<8x8xf32>
    %113 = arith.truncf %112 : vector<8x8xf32> to vector<8x8xbf16>
    %114 = vector.extract_strided_slice %52 {offsets = [0, 16], sizes = [8, 8], strides = [1, 1]} : vector<8x32xf32> to vector<8x8xf32>
    %115 = arith.truncf %114 : vector<8x8xf32> to vector<8x8xbf16>
    %cst_38 = arith.constant dense<0.000000e+00> : vector<8x8xf32>
    %116 = tpu.matmul %111, %113, %cst_38 {dimension_numbers = #tpu.dot_dimension_numbers<[1], [1], [0], [0], [0, 0, 1, 0], [], []>} : vector<8x8xbf16>, vector<8x8xbf16>, vector<8x8xf32> -> vector<8x8xf32>
    %cst_39 = arith.constant 0.353553385 : f32
    %117 = vector.broadcast %cst_39 : f32 to vector<8x8xf32>
    %118 = arith.mulf %116, %117 : vector<8x8xf32>
    %cst_40 = arith.constant -1.000000e+09 : f32
    %119 = vector.shape_cast %4 : vector<1x8xi1> to vector<1x8xi1>
    %120 = vector.broadcast %119 : vector<1x8xi1> to vector<8x8xi1>
    %121 = vector.broadcast %cst_40 : f32 to vector<8x8xf32>
    %122 = arith.select %120, %118, %121 : vector<8x8xi1>, vector<8x8xf32>
    %cst_41 = arith.constant dense<0xFF800000> : vector<8xf32>
    %123 = vector.multi_reduction <maximumf>, %122, %cst_41 [1] : vector<8x8xf32> to vector<8xf32>
    %124 = vector.shape_cast %123 : vector<8xf32> to vector<8x1xf32>
    %125 = vector.broadcast %124 : vector<8x1xf32> to vector<8x8xf32>
    %126 = arith.subf %122, %125 : vector<8x8xf32>
    %127 = math.exp %126 : vector<8x8xf32>
    %cst_42 = arith.constant dense<0.000000e+00> : vector<8xf32>
    %128 = vector.multi_reduction <add>, %127, %cst_42 [1] : vector<8x8xf32> to vector<8xf32>
    %129 = vector.shape_cast %128 : vector<8xf32> to vector<8x1xf32>
    %130 = tpu.reciprocal %129 {approx = true} : vector<8x1xf32> -> vector<8x1xf32>
    %131 = vector.broadcast %130 : vector<8x1xf32> to vector<8x8xf32>
    %132 = arith.mulf %127, %131 : vector<8x8xf32>
    %133 = arith.truncf %132 : vector<8x8xf32> to vector<8x8xbf16>
    %cst_43 = arith.constant dense<0.000000e+00> : vector<8x8xf32>
    %134 = tpu.matmul %133, %115, %cst_43 {dimension_numbers = #tpu.dot_dimension_numbers<[1], [0], [0], [1], [0, 0, 1, 1], [], []>} : vector<8x8xbf16>, vector<8x8xbf16>, vector<8x8xf32> -> vector<8x8xf32>
    %135 = arith.truncf %134 : vector<8x8xf32> to vector<8x8xbf16>
    %136 = vector.extract_strided_slice %49 {offsets = [16, 0], sizes = [8, 32], strides = [1, 1]} : vector<32x32xbf16> to vector<8x32xbf16>
    %cst_44 = arith.constant dense<0.000000e+00> : vector<8x32xf32>
    %137 = tpu.matmul %135, %136, %cst_44 {dimension_numbers = #tpu.dot_dimension_numbers<[1], [0], [0], [1], [0, 0, 1, 1], [], []>} : vector<8x8xbf16>, vector<8x32xbf16>, vector<8x32xf32> -> vector<8x32xf32>
    %138 = arith.addf %109, %137 : vector<8x32xf32>
    %139 = vector.extract_strided_slice %50 {offsets = [0, 24], sizes = [8, 8], strides = [1, 1]} : vector<8x32xf32> to vector<8x8xf32>
    %140 = arith.truncf %139 : vector<8x8xf32> to vector<8x8xbf16>
    %141 = vector.extract_strided_slice %51 {offsets = [0, 24], sizes = [8, 8], strides = [1, 1]} : vector<8x32xf32> to vector<8x8xf32>
    %142 = arith.truncf %141 : vector<8x8xf32> to vector<8x8xbf16>
    %143 = vector.extract_strided_slice %52 {offsets = [0, 24], sizes = [8, 8], strides = [1, 1]} : vector<8x32xf32> to vector<8x8xf32>
    %144 = arith.truncf %143 : vector<8x8xf32> to vector<8x8xbf16>
    %cst_45 = arith.constant dense<0.000000e+00> : vector<8x8xf32>
    %145 = tpu.matmul %140, %142, %cst_45 {dimension_numbers = #tpu.dot_dimension_numbers<[1], [1], [0], [0], [0, 0, 1, 0], [], []>} : vector<8x8xbf16>, vector<8x8xbf16>, vector<8x8xf32> -> vector<8x8xf32>
    %cst_46 = arith.constant 0.353553385 : f32
    %146 = vector.broadcast %cst_46 : f32 to vector<8x8xf32>
    %147 = arith.mulf %145, %146 : vector<8x8xf32>
    %cst_47 = arith.constant -1.000000e+09 : f32
    %148 = vector.shape_cast %4 : vector<1x8xi1> to vector<1x8xi1>
    %149 = vector.broadcast %148 : vector<1x8xi1> to vector<8x8xi1>
    %150 = vector.broadcast %cst_47 : f32 to vector<8x8xf32>
    %151 = arith.select %149, %147, %150 : vector<8x8xi1>, vector<8x8xf32>
    %cst_48 = arith.constant dense<0xFF800000> : vector<8xf32>
    %152 = vector.multi_reduction <maximumf>, %151, %cst_48 [1] : vector<8x8xf32> to vector<8xf32>
    %153 = vector.shape_cast %152 : vector<8xf32> to vector<8x1xf32>
    %154 = vector.broadcast %153 : vector<8x1xf32> to vector<8x8xf32>
    %155 = arith.subf %151, %154 : vector<8x8xf32>
    %156 = math.exp %155 : vector<8x8xf32>
    %cst_49 = arith.constant dense<0.000000e+00> : vector<8xf32>
    %157 = vector.multi_reduction <add>, %156, %cst_49 [1] : vector<8x8xf32> to vector<8xf32>
    %158 = vector.shape_cast %157 : vector<8xf32> to vector<8x1xf32>
    %159 = tpu.reciprocal %158 {approx = true} : vector<8x1xf32> -> vector<8x1xf32>
    %160 = vector.broadcast %159 : vector<8x1xf32> to vector<8x8xf32>
    %161 = arith.mulf %156, %160 : vector<8x8xf32>
    %162 = arith.truncf %161 : vector<8x8xf32> to vector<8x8xbf16>
    %cst_50 = arith.constant dense<0.000000e+00> : vector<8x8xf32>
    %163 = tpu.matmul %162, %144, %cst_50 {dimension_numbers = #tpu.dot_dimension_numbers<[1], [0], [0], [1], [0, 0, 1, 1], [], []>} : vector<8x8xbf16>, vector<8x8xbf16>, vector<8x8xf32> -> vector<8x8xf32>
    %164 = arith.truncf %163 : vector<8x8xf32> to vector<8x8xbf16>
    %165 = vector.extract_strided_slice %49 {offsets = [24, 0], sizes = [8, 32], strides = [1, 1]} : vector<32x32xbf16> to vector<8x32xbf16>
    %cst_51 = arith.constant dense<0.000000e+00> : vector<8x32xf32>
    %166 = tpu.matmul %164, %165, %cst_51 {dimension_numbers = #tpu.dot_dimension_numbers<[1], [0], [0], [1], [0, 0, 1, 1], [], []>} : vector<8x8xbf16>, vector<8x32xbf16>, vector<8x32xf32> -> vector<8x32xf32>
    %167 = arith.addf %138, %166 : vector<8x32xf32>
    %168 = vector.extract_strided_slice %45 {offsets = [8, 0], sizes = [8, 32], strides = [1, 1]} : vector<16x32xf32> to vector<8x32xf32>
    %169 = vector.extract_strided_slice %46 {offsets = [8, 0], sizes = [8, 32], strides = [1, 1]} : vector<16x32xf32> to vector<8x32xf32>
    %170 = vector.extract_strided_slice %47 {offsets = [8, 0], sizes = [8, 32], strides = [1, 1]} : vector<16x32xf32> to vector<8x32xf32>
    %171 = vector.extract_strided_slice %168 {offsets = [0, 0], sizes = [8, 8], strides = [1, 1]} : vector<8x32xf32> to vector<8x8xf32>
    %172 = arith.truncf %171 : vector<8x8xf32> to vector<8x8xbf16>
    %173 = vector.extract_strided_slice %169 {offsets = [0, 0], sizes = [8, 8], strides = [1, 1]} : vector<8x32xf32> to vector<8x8xf32>
    %174 = arith.truncf %173 : vector<8x8xf32> to vector<8x8xbf16>
    %175 = vector.extract_strided_slice %170 {offsets = [0, 0], sizes = [8, 8], strides = [1, 1]} : vector<8x32xf32> to vector<8x8xf32>
    %176 = arith.truncf %175 : vector<8x8xf32> to vector<8x8xbf16>
    %cst_52 = arith.constant dense<0.000000e+00> : vector<8x8xf32>
    %177 = tpu.matmul %172, %174, %cst_52 {dimension_numbers = #tpu.dot_dimension_numbers<[1], [1], [0], [0], [0, 0, 1, 0], [], []>} : vector<8x8xbf16>, vector<8x8xbf16>, vector<8x8xf32> -> vector<8x8xf32>
    %cst_53 = arith.constant 0.353553385 : f32
    %178 = vector.broadcast %cst_53 : f32 to vector<8x8xf32>
    %179 = arith.mulf %177, %178 : vector<8x8xf32>
    %cst_54 = arith.constant -1.000000e+09 : f32
    %180 = vector.shape_cast %7 : vector<1x8xi1> to vector<1x8xi1>
    %181 = vector.broadcast %180 : vector<1x8xi1> to vector<8x8xi1>
    %182 = vector.broadcast %cst_54 : f32 to vector<8x8xf32>
    %183 = arith.select %181, %179, %182 : vector<8x8xi1>, vector<8x8xf32>
    %cst_55 = arith.constant dense<0xFF800000> : vector<8xf32>
    %184 = vector.multi_reduction <maximumf>, %183, %cst_55 [1] : vector<8x8xf32> to vector<8xf32>
    %185 = vector.shape_cast %184 : vector<8xf32> to vector<8x1xf32>
    %186 = vector.broadcast %185 : vector<8x1xf32> to vector<8x8xf32>
    %187 = arith.subf %183, %186 : vector<8x8xf32>
    %188 = math.exp %187 : vector<8x8xf32>
    %cst_56 = arith.constant dense<0.000000e+00> : vector<8xf32>
    %189 = vector.multi_reduction <add>, %188, %cst_56 [1] : vector<8x8xf32> to vector<8xf32>
    %190 = vector.shape_cast %189 : vector<8xf32> to vector<8x1xf32>
    %191 = tpu.reciprocal %190 {approx = true} : vector<8x1xf32> -> vector<8x1xf32>
    %192 = vector.broadcast %191 : vector<8x1xf32> to vector<8x8xf32>
    %193 = arith.mulf %188, %192 : vector<8x8xf32>
    %194 = arith.truncf %193 : vector<8x8xf32> to vector<8x8xbf16>
    %cst_57 = arith.constant dense<0.000000e+00> : vector<8x8xf32>
    %195 = tpu.matmul %194, %176, %cst_57 {dimension_numbers = #tpu.dot_dimension_numbers<[1], [0], [0], [1], [0, 0, 1, 1], [], []>} : vector<8x8xbf16>, vector<8x8xbf16>, vector<8x8xf32> -> vector<8x8xf32>
    %196 = arith.truncf %195 : vector<8x8xf32> to vector<8x8xbf16>
    %197 = vector.extract_strided_slice %49 {offsets = [0, 0], sizes = [8, 32], strides = [1, 1]} : vector<32x32xbf16> to vector<8x32xbf16>
    %cst_58 = arith.constant dense<0.000000e+00> : vector<8x32xf32>
    %198 = tpu.matmul %196, %197, %cst_58 {dimension_numbers = #tpu.dot_dimension_numbers<[1], [0], [0], [1], [0, 0, 1, 1], [], []>} : vector<8x8xbf16>, vector<8x32xbf16>, vector<8x32xf32> -> vector<8x32xf32>
    %199 = vector.extract_strided_slice %168 {offsets = [0, 8], sizes = [8, 8], strides = [1, 1]} : vector<8x32xf32> to vector<8x8xf32>
    %200 = arith.truncf %199 : vector<8x8xf32> to vector<8x8xbf16>
    %201 = vector.extract_strided_slice %169 {offsets = [0, 8], sizes = [8, 8], strides = [1, 1]} : vector<8x32xf32> to vector<8x8xf32>
    %202 = arith.truncf %201 : vector<8x8xf32> to vector<8x8xbf16>
    %203 = vector.extract_strided_slice %170 {offsets = [0, 8], sizes = [8, 8], strides = [1, 1]} : vector<8x32xf32> to vector<8x8xf32>
    %204 = arith.truncf %203 : vector<8x8xf32> to vector<8x8xbf16>
    %cst_59 = arith.constant dense<0.000000e+00> : vector<8x8xf32>
    %205 = tpu.matmul %200, %202, %cst_59 {dimension_numbers = #tpu.dot_dimension_numbers<[1], [1], [0], [0], [0, 0, 1, 0], [], []>} : vector<8x8xbf16>, vector<8x8xbf16>, vector<8x8xf32> -> vector<8x8xf32>
    %cst_60 = arith.constant 0.353553385 : f32
    %206 = vector.broadcast %cst_60 : f32 to vector<8x8xf32>
    %207 = arith.mulf %205, %206 : vector<8x8xf32>
    %cst_61 = arith.constant -1.000000e+09 : f32
    %208 = vector.shape_cast %7 : vector<1x8xi1> to vector<1x8xi1>
    %209 = vector.broadcast %208 : vector<1x8xi1> to vector<8x8xi1>
    %210 = vector.broadcast %cst_61 : f32 to vector<8x8xf32>
    %211 = arith.select %209, %207, %210 : vector<8x8xi1>, vector<8x8xf32>
    %cst_62 = arith.constant dense<0xFF800000> : vector<8xf32>
    %212 = vector.multi_reduction <maximumf>, %211, %cst_62 [1] : vector<8x8xf32> to vector<8xf32>
    %213 = vector.shape_cast %212 : vector<8xf32> to vector<8x1xf32>
    %214 = vector.broadcast %213 : vector<8x1xf32> to vector<8x8xf32>
    %215 = arith.subf %211, %214 : vector<8x8xf32>
    %216 = math.exp %215 : vector<8x8xf32>
    %cst_63 = arith.constant dense<0.000000e+00> : vector<8xf32>
    %217 = vector.multi_reduction <add>, %216, %cst_63 [1] : vector<8x8xf32> to vector<8xf32>
    %218 = vector.shape_cast %217 : vector<8xf32> to vector<8x1xf32>
    %219 = tpu.reciprocal %218 {approx = true} : vector<8x1xf32> -> vector<8x1xf32>
    %220 = vector.broadcast %219 : vector<8x1xf32> to vector<8x8xf32>
    %221 = arith.mulf %216, %220 : vector<8x8xf32>
    %222 = arith.truncf %221 : vector<8x8xf32> to vector<8x8xbf16>
    %cst_64 = arith.constant dense<0.000000e+00> : vector<8x8xf32>
    %223 = tpu.matmul %222, %204, %cst_64 {dimension_numbers = #tpu.dot_dimension_numbers<[1], [0], [0], [1], [0, 0, 1, 1], [], []>} : vector<8x8xbf16>, vector<8x8xbf16>, vector<8x8xf32> -> vector<8x8xf32>
    %224 = arith.truncf %223 : vector<8x8xf32> to vector<8x8xbf16>
    %225 = vector.extract_strided_slice %49 {offsets = [8, 0], sizes = [8, 32], strides = [1, 1]} : vector<32x32xbf16> to vector<8x32xbf16>
    %cst_65 = arith.constant dense<0.000000e+00> : vector<8x32xf32>
    %226 = tpu.matmul %224, %225, %cst_65 {dimension_numbers = #tpu.dot_dimension_numbers<[1], [0], [0], [1], [0, 0, 1, 1], [], []>} : vector<8x8xbf16>, vector<8x32xbf16>, vector<8x32xf32> -> vector<8x32xf32>
    %227 = arith.addf %198, %226 : vector<8x32xf32>
    %228 = vector.extract_strided_slice %168 {offsets = [0, 16], sizes = [8, 8], strides = [1, 1]} : vector<8x32xf32> to vector<8x8xf32>
    %229 = arith.truncf %228 : vector<8x8xf32> to vector<8x8xbf16>
    %230 = vector.extract_strided_slice %169 {offsets = [0, 16], sizes = [8, 8], strides = [1, 1]} : vector<8x32xf32> to vector<8x8xf32>
    %231 = arith.truncf %230 : vector<8x8xf32> to vector<8x8xbf16>
    %232 = vector.extract_strided_slice %170 {offsets = [0, 16], sizes = [8, 8], strides = [1, 1]} : vector<8x32xf32> to vector<8x8xf32>
    %233 = arith.truncf %232 : vector<8x8xf32> to vector<8x8xbf16>
    %cst_66 = arith.constant dense<0.000000e+00> : vector<8x8xf32>
    %234 = tpu.matmul %229, %231, %cst_66 {dimension_numbers = #tpu.dot_dimension_numbers<[1], [1], [0], [0], [0, 0, 1, 0], [], []>} : vector<8x8xbf16>, vector<8x8xbf16>, vector<8x8xf32> -> vector<8x8xf32>
    %cst_67 = arith.constant 0.353553385 : f32
    %235 = vector.broadcast %cst_67 : f32 to vector<8x8xf32>
    %236 = arith.mulf %234, %235 : vector<8x8xf32>
    %cst_68 = arith.constant -1.000000e+09 : f32
    %237 = vector.shape_cast %7 : vector<1x8xi1> to vector<1x8xi1>
    %238 = vector.broadcast %237 : vector<1x8xi1> to vector<8x8xi1>
    %239 = vector.broadcast %cst_68 : f32 to vector<8x8xf32>
    %240 = arith.select %238, %236, %239 : vector<8x8xi1>, vector<8x8xf32>
    %cst_69 = arith.constant dense<0xFF800000> : vector<8xf32>
    %241 = vector.multi_reduction <maximumf>, %240, %cst_69 [1] : vector<8x8xf32> to vector<8xf32>
    %242 = vector.shape_cast %241 : vector<8xf32> to vector<8x1xf32>
    %243 = vector.broadcast %242 : vector<8x1xf32> to vector<8x8xf32>
    %244 = arith.subf %240, %243 : vector<8x8xf32>
    %245 = math.exp %244 : vector<8x8xf32>
    %cst_70 = arith.constant dense<0.000000e+00> : vector<8xf32>
    %246 = vector.multi_reduction <add>, %245, %cst_70 [1] : vector<8x8xf32> to vector<8xf32>
    %247 = vector.shape_cast %246 : vector<8xf32> to vector<8x1xf32>
    %248 = tpu.reciprocal %247 {approx = true} : vector<8x1xf32> -> vector<8x1xf32>
    %249 = vector.broadcast %248 : vector<8x1xf32> to vector<8x8xf32>
    %250 = arith.mulf %245, %249 : vector<8x8xf32>
    %251 = arith.truncf %250 : vector<8x8xf32> to vector<8x8xbf16>
    %cst_71 = arith.constant dense<0.000000e+00> : vector<8x8xf32>
    %252 = tpu.matmul %251, %233, %cst_71 {dimension_numbers = #tpu.dot_dimension_numbers<[1], [0], [0], [1], [0, 0, 1, 1], [], []>} : vector<8x8xbf16>, vector<8x8xbf16>, vector<8x8xf32> -> vector<8x8xf32>
    %253 = arith.truncf %252 : vector<8x8xf32> to vector<8x8xbf16>
    %254 = vector.extract_strided_slice %49 {offsets = [16, 0], sizes = [8, 32], strides = [1, 1]} : vector<32x32xbf16> to vector<8x32xbf16>
    %cst_72 = arith.constant dense<0.000000e+00> : vector<8x32xf32>
    %255 = tpu.matmul %253, %254, %cst_72 {dimension_numbers = #tpu.dot_dimension_numbers<[1], [0], [0], [1], [0, 0, 1, 1], [], []>} : vector<8x8xbf16>, vector<8x32xbf16>, vector<8x32xf32> -> vector<8x32xf32>
    %256 = arith.addf %227, %255 : vector<8x32xf32>
    %257 = vector.extract_strided_slice %168 {offsets = [0, 24], sizes = [8, 8], strides = [1, 1]} : vector<8x32xf32> to vector<8x8xf32>
    %258 = arith.truncf %257 : vector<8x8xf32> to vector<8x8xbf16>
    %259 = vector.extract_strided_slice %169 {offsets = [0, 24], sizes = [8, 8], strides = [1, 1]} : vector<8x32xf32> to vector<8x8xf32>
    %260 = arith.truncf %259 : vector<8x8xf32> to vector<8x8xbf16>
    %261 = vector.extract_strided_slice %170 {offsets = [0, 24], sizes = [8, 8], strides = [1, 1]} : vector<8x32xf32> to vector<8x8xf32>
    %262 = arith.truncf %261 : vector<8x8xf32> to vector<8x8xbf16>
    %cst_73 = arith.constant dense<0.000000e+00> : vector<8x8xf32>
    %263 = tpu.matmul %258, %260, %cst_73 {dimension_numbers = #tpu.dot_dimension_numbers<[1], [1], [0], [0], [0, 0, 1, 0], [], []>} : vector<8x8xbf16>, vector<8x8xbf16>, vector<8x8xf32> -> vector<8x8xf32>
    %cst_74 = arith.constant 0.353553385 : f32
    %264 = vector.broadcast %cst_74 : f32 to vector<8x8xf32>
    %265 = arith.mulf %263, %264 : vector<8x8xf32>
    %cst_75 = arith.constant -1.000000e+09 : f32
    %266 = vector.shape_cast %7 : vector<1x8xi1> to vector<1x8xi1>
    %267 = vector.broadcast %266 : vector<1x8xi1> to vector<8x8xi1>
    %268 = vector.broadcast %cst_75 : f32 to vector<8x8xf32>
    %269 = arith.select %267, %265, %268 : vector<8x8xi1>, vector<8x8xf32>
    %cst_76 = arith.constant dense<0xFF800000> : vector<8xf32>
    %270 = vector.multi_reduction <maximumf>, %269, %cst_76 [1] : vector<8x8xf32> to vector<8xf32>
    %271 = vector.shape_cast %270 : vector<8xf32> to vector<8x1xf32>
    %272 = vector.broadcast %271 : vector<8x1xf32> to vector<8x8xf32>
    %273 = arith.subf %269, %272 : vector<8x8xf32>
    %274 = math.exp %273 : vector<8x8xf32>
    %cst_77 = arith.constant dense<0.000000e+00> : vector<8xf32>
    %275 = vector.multi_reduction <add>, %274, %cst_77 [1] : vector<8x8xf32> to vector<8xf32>
    %276 = vector.shape_cast %275 : vector<8xf32> to vector<8x1xf32>
    %277 = tpu.reciprocal %276 {approx = true} : vector<8x1xf32> -> vector<8x1xf32>
    %278 = vector.broadcast %277 : vector<8x1xf32> to vector<8x8xf32>
    %279 = arith.mulf %274, %278 : vector<8x8xf32>
    %280 = arith.truncf %279 : vector<8x8xf32> to vector<8x8xbf16>
    %cst_78 = arith.constant dense<0.000000e+00> : vector<8x8xf32>
    %281 = tpu.matmul %280, %262, %cst_78 {dimension_numbers = #tpu.dot_dimension_numbers<[1], [0], [0], [1], [0, 0, 1, 1], [], []>} : vector<8x8xbf16>, vector<8x8xbf16>, vector<8x8xf32> -> vector<8x8xf32>
    %282 = arith.truncf %281 : vector<8x8xf32> to vector<8x8xbf16>
    %283 = vector.extract_strided_slice %49 {offsets = [24, 0], sizes = [8, 32], strides = [1, 1]} : vector<32x32xbf16> to vector<8x32xbf16>
    %cst_79 = arith.constant dense<0.000000e+00> : vector<8x32xf32>
    %284 = tpu.matmul %282, %283, %cst_79 {dimension_numbers = #tpu.dot_dimension_numbers<[1], [0], [0], [1], [0, 0, 1, 1], [], []>} : vector<8x8xbf16>, vector<8x32xbf16>, vector<8x32xf32> -> vector<8x32xf32>
    %285 = arith.addf %256, %284 : vector<8x32xf32>
    %286 = tpu.concatenate %167, %285 in 0 : vector<8x32xf32>, vector<8x32xf32> -> vector<16x32xf32>
    %287 = arith.addf %11, %286 : vector<16x32xf32>
    %c0_80 = arith.constant 0 : index
    %c0_81 = arith.constant 0 : index
    %c0_82 = arith.constant 0 : index
    %288 = vector.load %arg8[%c0_80, %c0_81, %c0_82] : memref<2x1x32xf32, #tpu.memory_space<vmem>>, vector<1x1x32xf32>
    %289 = vector.shape_cast %288 : vector<1x1x32xf32> to vector<1x32xf32>
    %290 = vector.broadcast %289 : vector<1x32xf32> to vector<16x32xf32>
    %291 = arith.addf %287, %290 : vector<16x32xf32>
    %c0_83 = arith.constant 0 : index
    %c0_84 = arith.constant 0 : index
    %c0_85 = arith.constant 0 : index
    %292 = vector.load %arg9[%c0_83, %c0_84, %c0_85] : memref<2x1x32xf32, #tpu.memory_space<vmem>>, vector<1x1x32xf32>
    %293 = vector.shape_cast %292 : vector<1x1x32xf32> to vector<1x32xf32>
    %c0_86 = arith.constant 0 : index
    %c0_87 = arith.constant 0 : index
    %c0_88 = arith.constant 0 : index
    %294 = vector.load %arg10[%c0_86, %c0_87, %c0_88] : memref<2x1x32xf32, #tpu.memory_space<vmem>>, vector<1x1x32xf32>
    %295 = vector.shape_cast %294 : vector<1x1x32xf32> to vector<1x32xf32>
    %cst_89 = arith.constant dense<0.000000e+00> : vector<16xf32>
    %296 = vector.multi_reduction <add>, %291, %cst_89 [1] : vector<16x32xf32> to vector<16xf32>
    %297 = vector.shape_cast %296 : vector<16xf32> to vector<16x1xf32>
    %cst_90 = arith.constant 3.200000e+01 : f32
    %298 = vector.broadcast %cst_90 : f32 to vector<16x1xf32>
    %299 = arith.divf %297, %298 : vector<16x1xf32>
    %300 = vector.broadcast %299 : vector<16x1xf32> to vector<16x32xf32>
    %301 = arith.subf %291, %300 : vector<16x32xf32>
    %302 = arith.mulf %301, %301 : vector<16x32xf32>
    %cst_91 = arith.constant dense<0.000000e+00> : vector<16xf32>
    %303 = vector.multi_reduction <add>, %302, %cst_91 [1] : vector<16x32xf32> to vector<16xf32>
    %304 = vector.shape_cast %303 : vector<16xf32> to vector<16x1xf32>
    %cst_92 = arith.constant 0.0322580636 : f32
    %305 = vector.broadcast %cst_92 : f32 to vector<16x1xf32>
    %306 = arith.mulf %304, %305 : vector<16x1xf32>
    %307 = math.sqrt %306 : vector<16x1xf32>
    %cst_93 = arith.constant 9.99999997E-7 : f32
    %308 = vector.broadcast %cst_93 : f32 to vector<16x1xf32>
    %309 = arith.addf %307, %308 : vector<16x1xf32>
    %310 = tpu.reciprocal %309 {approx = true} : vector<16x1xf32> -> vector<16x1xf32>
    %311 = vector.broadcast %310 : vector<16x1xf32> to vector<16x32xf32>
    %312 = arith.mulf %301, %311 : vector<16x32xf32>
    %313 = vector.broadcast %293 : vector<1x32xf32> to vector<16x32xf32>
    %314 = arith.mulf %313, %312 : vector<16x32xf32>
    %315 = vector.broadcast %295 : vector<1x32xf32> to vector<16x32xf32>
    %316 = arith.addf %314, %315 : vector<16x32xf32>
    %c0_94 = arith.constant 0 : index
    %c0_95 = arith.constant 0 : index
    %c0_96 = arith.constant 0 : index
    %317 = vector.load %arg11[%c0_94, %c0_95, %c0_96] : memref<2x32x64xbf16, #tpu.memory_space<vmem>>, vector<1x32x64xbf16>
    %318 = vector.shape_cast %317 : vector<1x32x64xbf16> to vector<32x64xbf16>
    %c0_97 = arith.constant 0 : index
    %c0_98 = arith.constant 0 : index
    %c0_99 = arith.constant 0 : index
    %319 = vector.load %arg12[%c0_97, %c0_98, %c0_99] : memref<2x1x64xf32, #tpu.memory_space<vmem>>, vector<1x1x64xf32>
    %320 = vector.shape_cast %319 : vector<1x1x64xf32> to vector<1x64xf32>
    %321 = arith.truncf %316 : vector<16x32xf32> to vector<16x32xbf16>
    %cst_100 = arith.constant dense<0.000000e+00> : vector<16x64xf32>
    %322 = tpu.matmul %321, %318, %cst_100 {dimension_numbers = #tpu.dot_dimension_numbers<[1], [0], [0], [1], [0, 0, 1, 1], [], []>} : vector<16x32xbf16>, vector<32x64xbf16>, vector<16x64xf32> -> vector<16x64xf32>
    %323 = vector.broadcast %320 : vector<1x64xf32> to vector<16x64xf32>
    %324 = arith.addf %322, %323 : vector<16x64xf32>
    %cst_101 = arith.constant 0.000000e+00 : f32
    %325 = vector.broadcast %cst_101 : f32 to vector<16x64xf32>
    %326 = arith.maximumf %324, %325 : vector<16x64xf32>
    %c0_102 = arith.constant 0 : index
    %c0_103 = arith.constant 0 : index
    %c0_104 = arith.constant 0 : index
    %327 = vector.load %arg13[%c0_102, %c0_103, %c0_104] : memref<2x64x32xbf16, #tpu.memory_space<vmem>>, vector<1x64x32xbf16>
    %328 = vector.shape_cast %327 : vector<1x64x32xbf16> to vector<64x32xbf16>
    %c0_105 = arith.constant 0 : index
    %c0_106 = arith.constant 0 : index
    %c0_107 = arith.constant 0 : index
    %329 = vector.load %arg14[%c0_105, %c0_106, %c0_107] : memref<2x1x32xf32, #tpu.memory_space<vmem>>, vector<1x1x32xf32>
    %330 = vector.shape_cast %329 : vector<1x1x32xf32> to vector<1x32xf32>
    %331 = arith.truncf %326 : vector<16x64xf32> to vector<16x64xbf16>
    %cst_108 = arith.constant dense<0.000000e+00> : vector<16x32xf32>
    %332 = tpu.matmul %331, %328, %cst_108 {dimension_numbers = #tpu.dot_dimension_numbers<[1], [0], [0], [1], [0, 0, 1, 1], [], []>} : vector<16x64xbf16>, vector<64x32xbf16>, vector<16x32xf32> -> vector<16x32xf32>
    %333 = vector.broadcast %330 : vector<1x32xf32> to vector<16x32xf32>
    %334 = arith.addf %332, %333 : vector<16x32xf32>
    %335 = arith.addf %291, %334 : vector<16x32xf32>
    %c1 = arith.constant 1 : index
    %c0_109 = arith.constant 0 : index
    %c0_110 = arith.constant 0 : index
    %336 = vector.load %arg3[%c1, %c0_109, %c0_110] : memref<2x1x32xf32, #tpu.memory_space<vmem>>, vector<1x1x32xf32>
    %337 = vector.shape_cast %336 : vector<1x1x32xf32> to vector<1x32xf32>
    %c1_111 = arith.constant 1 : index
    %c0_112 = arith.constant 0 : index
    %c0_113 = arith.constant 0 : index
    %338 = vector.load %arg4[%c1_111, %c0_112, %c0_113] : memref<2x1x32xf32, #tpu.memory_space<vmem>>, vector<1x1x32xf32>
    %339 = vector.shape_cast %338 : vector<1x1x32xf32> to vector<1x32xf32>
    %cst_114 = arith.constant dense<0.000000e+00> : vector<16xf32>
    %340 = vector.multi_reduction <add>, %335, %cst_114 [1] : vector<16x32xf32> to vector<16xf32>
    %341 = vector.shape_cast %340 : vector<16xf32> to vector<16x1xf32>
    %cst_115 = arith.constant 3.200000e+01 : f32
    %342 = vector.broadcast %cst_115 : f32 to vector<16x1xf32>
    %343 = arith.divf %341, %342 : vector<16x1xf32>
    %344 = vector.broadcast %343 : vector<16x1xf32> to vector<16x32xf32>
    %345 = arith.subf %335, %344 : vector<16x32xf32>
    %346 = arith.mulf %345, %345 : vector<16x32xf32>
    %cst_116 = arith.constant dense<0.000000e+00> : vector<16xf32>
    %347 = vector.multi_reduction <add>, %346, %cst_116 [1] : vector<16x32xf32> to vector<16xf32>
    %348 = vector.shape_cast %347 : vector<16xf32> to vector<16x1xf32>
    %cst_117 = arith.constant 0.0322580636 : f32
    %349 = vector.broadcast %cst_117 : f32 to vector<16x1xf32>
    %350 = arith.mulf %348, %349 : vector<16x1xf32>
    %351 = math.sqrt %350 : vector<16x1xf32>
    %cst_118 = arith.constant 9.99999997E-7 : f32
    %352 = vector.broadcast %cst_118 : f32 to vector<16x1xf32>
    %353 = arith.addf %351, %352 : vector<16x1xf32>
    %354 = tpu.reciprocal %353 {approx = true} : vector<16x1xf32> -> vector<16x1xf32>
    %355 = vector.broadcast %354 : vector<16x1xf32> to vector<16x32xf32>
    %356 = arith.mulf %345, %355 : vector<16x32xf32>
    %357 = vector.broadcast %337 : vector<1x32xf32> to vector<16x32xf32>
    %358 = arith.mulf %357, %356 : vector<16x32xf32>
    %359 = vector.broadcast %339 : vector<1x32xf32> to vector<16x32xf32>
    %360 = arith.addf %358, %359 : vector<16x32xf32>
    %c1_119 = arith.constant 1 : index
    %c0_120 = arith.constant 0 : index
    %c0_121 = arith.constant 0 : index
    %361 = vector.load %arg5[%c1_119, %c0_120, %c0_121] : memref<2x32x96xbf16, #tpu.memory_space<vmem>>, vector<1x32x96xbf16>
    %362 = vector.shape_cast %361 : vector<1x32x96xbf16> to vector<32x96xbf16>
    %c1_122 = arith.constant 1 : index
    %c0_123 = arith.constant 0 : index
    %c0_124 = arith.constant 0 : index
    %363 = vector.load %arg6[%c1_122, %c0_123, %c0_124] : memref<2x1x96xf32, #tpu.memory_space<vmem>>, vector<1x1x96xf32>
    %364 = vector.shape_cast %363 : vector<1x1x96xf32> to vector<1x96xf32>
    %365 = arith.truncf %360 : vector<16x32xf32> to vector<16x32xbf16>
    %cst_125 = arith.constant dense<0.000000e+00> : vector<16x96xf32>
    %366 = tpu.matmul %365, %362, %cst_125 {dimension_numbers = #tpu.dot_dimension_numbers<[1], [0], [0], [1], [0, 0, 1, 1], [], []>} : vector<16x32xbf16>, vector<32x96xbf16>, vector<16x96xf32> -> vector<16x96xf32>
    %367 = vector.broadcast %364 : vector<1x96xf32> to vector<16x96xf32>
    %368 = arith.addf %366, %367 : vector<16x96xf32>
    %369 = vector.extract_strided_slice %368 {offsets = [0, 0], sizes = [16, 32], strides = [1, 1]} : vector<16x96xf32> to vector<16x32xf32>
    %370 = vector.extract_strided_slice %368 {offsets = [0, 32], sizes = [16, 32], strides = [1, 1]} : vector<16x96xf32> to vector<16x32xf32>
    %371 = vector.extract_strided_slice %368 {offsets = [0, 64], sizes = [16, 32], strides = [1, 1]} : vector<16x96xf32> to vector<16x32xf32>
    %c1_126 = arith.constant 1 : index
    %c0_127 = arith.constant 0 : index
    %c0_128 = arith.constant 0 : index
    %372 = vector.load %arg7[%c1_126, %c0_127, %c0_128] : memref<2x32x32xbf16, #tpu.memory_space<vmem>>, vector<1x32x32xbf16>
    %373 = vector.shape_cast %372 : vector<1x32x32xbf16> to vector<32x32xbf16>
    %374 = vector.extract_strided_slice %369 {offsets = [0, 0], sizes = [8, 32], strides = [1, 1]} : vector<16x32xf32> to vector<8x32xf32>
    %375 = vector.extract_strided_slice %370 {offsets = [0, 0], sizes = [8, 32], strides = [1, 1]} : vector<16x32xf32> to vector<8x32xf32>
    %376 = vector.extract_strided_slice %371 {offsets = [0, 0], sizes = [8, 32], strides = [1, 1]} : vector<16x32xf32> to vector<8x32xf32>
    %377 = vector.extract_strided_slice %374 {offsets = [0, 0], sizes = [8, 8], strides = [1, 1]} : vector<8x32xf32> to vector<8x8xf32>
    %378 = arith.truncf %377 : vector<8x8xf32> to vector<8x8xbf16>
    %379 = vector.extract_strided_slice %375 {offsets = [0, 0], sizes = [8, 8], strides = [1, 1]} : vector<8x32xf32> to vector<8x8xf32>
    %380 = arith.truncf %379 : vector<8x8xf32> to vector<8x8xbf16>
    %381 = vector.extract_strided_slice %376 {offsets = [0, 0], sizes = [8, 8], strides = [1, 1]} : vector<8x32xf32> to vector<8x8xf32>
    %382 = arith.truncf %381 : vector<8x8xf32> to vector<8x8xbf16>
    %cst_129 = arith.constant dense<0.000000e+00> : vector<8x8xf32>
    %383 = tpu.matmul %378, %380, %cst_129 {dimension_numbers = #tpu.dot_dimension_numbers<[1], [1], [0], [0], [0, 0, 1, 0], [], []>} : vector<8x8xbf16>, vector<8x8xbf16>, vector<8x8xf32> -> vector<8x8xf32>
    %cst_130 = arith.constant 0.353553385 : f32
    %384 = vector.broadcast %cst_130 : f32 to vector<8x8xf32>
    %385 = arith.mulf %383, %384 : vector<8x8xf32>
    %cst_131 = arith.constant -1.000000e+09 : f32
    %386 = vector.shape_cast %4 : vector<1x8xi1> to vector<1x8xi1>
    %387 = vector.broadcast %386 : vector<1x8xi1> to vector<8x8xi1>
    %388 = vector.broadcast %cst_131 : f32 to vector<8x8xf32>
    %389 = arith.select %387, %385, %388 : vector<8x8xi1>, vector<8x8xf32>
    %cst_132 = arith.constant dense<0xFF800000> : vector<8xf32>
    %390 = vector.multi_reduction <maximumf>, %389, %cst_132 [1] : vector<8x8xf32> to vector<8xf32>
    %391 = vector.shape_cast %390 : vector<8xf32> to vector<8x1xf32>
    %392 = vector.broadcast %391 : vector<8x1xf32> to vector<8x8xf32>
    %393 = arith.subf %389, %392 : vector<8x8xf32>
    %394 = math.exp %393 : vector<8x8xf32>
    %cst_133 = arith.constant dense<0.000000e+00> : vector<8xf32>
    %395 = vector.multi_reduction <add>, %394, %cst_133 [1] : vector<8x8xf32> to vector<8xf32>
    %396 = vector.shape_cast %395 : vector<8xf32> to vector<8x1xf32>
    %397 = tpu.reciprocal %396 {approx = true} : vector<8x1xf32> -> vector<8x1xf32>
    %398 = vector.broadcast %397 : vector<8x1xf32> to vector<8x8xf32>
    %399 = arith.mulf %394, %398 : vector<8x8xf32>
    %400 = arith.truncf %399 : vector<8x8xf32> to vector<8x8xbf16>
    %cst_134 = arith.constant dense<0.000000e+00> : vector<8x8xf32>
    %401 = tpu.matmul %400, %382, %cst_134 {dimension_numbers = #tpu.dot_dimension_numbers<[1], [0], [0], [1], [0, 0, 1, 1], [], []>} : vector<8x8xbf16>, vector<8x8xbf16>, vector<8x8xf32> -> vector<8x8xf32>
    %402 = arith.truncf %401 : vector<8x8xf32> to vector<8x8xbf16>
    %403 = vector.extract_strided_slice %373 {offsets = [0, 0], sizes = [8, 32], strides = [1, 1]} : vector<32x32xbf16> to vector<8x32xbf16>
    %cst_135 = arith.constant dense<0.000000e+00> : vector<8x32xf32>
    %404 = tpu.matmul %402, %403, %cst_135 {dimension_numbers = #tpu.dot_dimension_numbers<[1], [0], [0], [1], [0, 0, 1, 1], [], []>} : vector<8x8xbf16>, vector<8x32xbf16>, vector<8x32xf32> -> vector<8x32xf32>
    %405 = vector.extract_strided_slice %374 {offsets = [0, 8], sizes = [8, 8], strides = [1, 1]} : vector<8x32xf32> to vector<8x8xf32>
    %406 = arith.truncf %405 : vector<8x8xf32> to vector<8x8xbf16>
    %407 = vector.extract_strided_slice %375 {offsets = [0, 8], sizes = [8, 8], strides = [1, 1]} : vector<8x32xf32> to vector<8x8xf32>
    %408 = arith.truncf %407 : vector<8x8xf32> to vector<8x8xbf16>
    %409 = vector.extract_strided_slice %376 {offsets = [0, 8], sizes = [8, 8], strides = [1, 1]} : vector<8x32xf32> to vector<8x8xf32>
    %410 = arith.truncf %409 : vector<8x8xf32> to vector<8x8xbf16>
    %cst_136 = arith.constant dense<0.000000e+00> : vector<8x8xf32>
    %411 = tpu.matmul %406, %408, %cst_136 {dimension_numbers = #tpu.dot_dimension_numbers<[1], [1], [0], [0], [0, 0, 1, 0], [], []>} : vector<8x8xbf16>, vector<8x8xbf16>, vector<8x8xf32> -> vector<8x8xf32>
    %cst_137 = arith.constant 0.353553385 : f32
    %412 = vector.broadcast %cst_137 : f32 to vector<8x8xf32>
    %413 = arith.mulf %411, %412 : vector<8x8xf32>
    %cst_138 = arith.constant -1.000000e+09 : f32
    %414 = vector.shape_cast %4 : vector<1x8xi1> to vector<1x8xi1>
    %415 = vector.broadcast %414 : vector<1x8xi1> to vector<8x8xi1>
    %416 = vector.broadcast %cst_138 : f32 to vector<8x8xf32>
    %417 = arith.select %415, %413, %416 : vector<8x8xi1>, vector<8x8xf32>
    %cst_139 = arith.constant dense<0xFF800000> : vector<8xf32>
    %418 = vector.multi_reduction <maximumf>, %417, %cst_139 [1] : vector<8x8xf32> to vector<8xf32>
    %419 = vector.shape_cast %418 : vector<8xf32> to vector<8x1xf32>
    %420 = vector.broadcast %419 : vector<8x1xf32> to vector<8x8xf32>
    %421 = arith.subf %417, %420 : vector<8x8xf32>
    %422 = math.exp %421 : vector<8x8xf32>
    %cst_140 = arith.constant dense<0.000000e+00> : vector<8xf32>
    %423 = vector.multi_reduction <add>, %422, %cst_140 [1] : vector<8x8xf32> to vector<8xf32>
    %424 = vector.shape_cast %423 : vector<8xf32> to vector<8x1xf32>
    %425 = tpu.reciprocal %424 {approx = true} : vector<8x1xf32> -> vector<8x1xf32>
    %426 = vector.broadcast %425 : vector<8x1xf32> to vector<8x8xf32>
    %427 = arith.mulf %422, %426 : vector<8x8xf32>
    %428 = arith.truncf %427 : vector<8x8xf32> to vector<8x8xbf16>
    %cst_141 = arith.constant dense<0.000000e+00> : vector<8x8xf32>
    %429 = tpu.matmul %428, %410, %cst_141 {dimension_numbers = #tpu.dot_dimension_numbers<[1], [0], [0], [1], [0, 0, 1, 1], [], []>} : vector<8x8xbf16>, vector<8x8xbf16>, vector<8x8xf32> -> vector<8x8xf32>
    %430 = arith.truncf %429 : vector<8x8xf32> to vector<8x8xbf16>
    %431 = vector.extract_strided_slice %373 {offsets = [8, 0], sizes = [8, 32], strides = [1, 1]} : vector<32x32xbf16> to vector<8x32xbf16>
    %cst_142 = arith.constant dense<0.000000e+00> : vector<8x32xf32>
    %432 = tpu.matmul %430, %431, %cst_142 {dimension_numbers = #tpu.dot_dimension_numbers<[1], [0], [0], [1], [0, 0, 1, 1], [], []>} : vector<8x8xbf16>, vector<8x32xbf16>, vector<8x32xf32> -> vector<8x32xf32>
    %433 = arith.addf %404, %432 : vector<8x32xf32>
    %434 = vector.extract_strided_slice %374 {offsets = [0, 16], sizes = [8, 8], strides = [1, 1]} : vector<8x32xf32> to vector<8x8xf32>
    %435 = arith.truncf %434 : vector<8x8xf32> to vector<8x8xbf16>
    %436 = vector.extract_strided_slice %375 {offsets = [0, 16], sizes = [8, 8], strides = [1, 1]} : vector<8x32xf32> to vector<8x8xf32>
    %437 = arith.truncf %436 : vector<8x8xf32> to vector<8x8xbf16>
    %438 = vector.extract_strided_slice %376 {offsets = [0, 16], sizes = [8, 8], strides = [1, 1]} : vector<8x32xf32> to vector<8x8xf32>
    %439 = arith.truncf %438 : vector<8x8xf32> to vector<8x8xbf16>
    %cst_143 = arith.constant dense<0.000000e+00> : vector<8x8xf32>
    %440 = tpu.matmul %435, %437, %cst_143 {dimension_numbers = #tpu.dot_dimension_numbers<[1], [1], [0], [0], [0, 0, 1, 0], [], []>} : vector<8x8xbf16>, vector<8x8xbf16>, vector<8x8xf32> -> vector<8x8xf32>
    %cst_144 = arith.constant 0.353553385 : f32
    %441 = vector.broadcast %cst_144 : f32 to vector<8x8xf32>
    %442 = arith.mulf %440, %441 : vector<8x8xf32>
    %cst_145 = arith.constant -1.000000e+09 : f32
    %443 = vector.shape_cast %4 : vector<1x8xi1> to vector<1x8xi1>
    %444 = vector.broadcast %443 : vector<1x8xi1> to vector<8x8xi1>
    %445 = vector.broadcast %cst_145 : f32 to vector<8x8xf32>
    %446 = arith.select %444, %442, %445 : vector<8x8xi1>, vector<8x8xf32>
    %cst_146 = arith.constant dense<0xFF800000> : vector<8xf32>
    %447 = vector.multi_reduction <maximumf>, %446, %cst_146 [1] : vector<8x8xf32> to vector<8xf32>
    %448 = vector.shape_cast %447 : vector<8xf32> to vector<8x1xf32>
    %449 = vector.broadcast %448 : vector<8x1xf32> to vector<8x8xf32>
    %450 = arith.subf %446, %449 : vector<8x8xf32>
    %451 = math.exp %450 : vector<8x8xf32>
    %cst_147 = arith.constant dense<0.000000e+00> : vector<8xf32>
    %452 = vector.multi_reduction <add>, %451, %cst_147 [1] : vector<8x8xf32> to vector<8xf32>
    %453 = vector.shape_cast %452 : vector<8xf32> to vector<8x1xf32>
    %454 = tpu.reciprocal %453 {approx = true} : vector<8x1xf32> -> vector<8x1xf32>
    %455 = vector.broadcast %454 : vector<8x1xf32> to vector<8x8xf32>
    %456 = arith.mulf %451, %455 : vector<8x8xf32>
    %457 = arith.truncf %456 : vector<8x8xf32> to vector<8x8xbf16>
    %cst_148 = arith.constant dense<0.000000e+00> : vector<8x8xf32>
    %458 = tpu.matmul %457, %439, %cst_148 {dimension_numbers = #tpu.dot_dimension_numbers<[1], [0], [0], [1], [0, 0, 1, 1], [], []>} : vector<8x8xbf16>, vector<8x8xbf16>, vector<8x8xf32> -> vector<8x8xf32>
    %459 = arith.truncf %458 : vector<8x8xf32> to vector<8x8xbf16>
    %460 = vector.extract_strided_slice %373 {offsets = [16, 0], sizes = [8, 32], strides = [1, 1]} : vector<32x32xbf16> to vector<8x32xbf16>
    %cst_149 = arith.constant dense<0.000000e+00> : vector<8x32xf32>
    %461 = tpu.matmul %459, %460, %cst_149 {dimension_numbers = #tpu.dot_dimension_numbers<[1], [0], [0], [1], [0, 0, 1, 1], [], []>} : vector<8x8xbf16>, vector<8x32xbf16>, vector<8x32xf32> -> vector<8x32xf32>
    %462 = arith.addf %433, %461 : vector<8x32xf32>
    %463 = vector.extract_strided_slice %374 {offsets = [0, 24], sizes = [8, 8], strides = [1, 1]} : vector<8x32xf32> to vector<8x8xf32>
    %464 = arith.truncf %463 : vector<8x8xf32> to vector<8x8xbf16>
    %465 = vector.extract_strided_slice %375 {offsets = [0, 24], sizes = [8, 8], strides = [1, 1]} : vector<8x32xf32> to vector<8x8xf32>
    %466 = arith.truncf %465 : vector<8x8xf32> to vector<8x8xbf16>
    %467 = vector.extract_strided_slice %376 {offsets = [0, 24], sizes = [8, 8], strides = [1, 1]} : vector<8x32xf32> to vector<8x8xf32>
    %468 = arith.truncf %467 : vector<8x8xf32> to vector<8x8xbf16>
    %cst_150 = arith.constant dense<0.000000e+00> : vector<8x8xf32>
    %469 = tpu.matmul %464, %466, %cst_150 {dimension_numbers = #tpu.dot_dimension_numbers<[1], [1], [0], [0], [0, 0, 1, 0], [], []>} : vector<8x8xbf16>, vector<8x8xbf16>, vector<8x8xf32> -> vector<8x8xf32>
    %cst_151 = arith.constant 0.353553385 : f32
    %470 = vector.broadcast %cst_151 : f32 to vector<8x8xf32>
    %471 = arith.mulf %469, %470 : vector<8x8xf32>
    %cst_152 = arith.constant -1.000000e+09 : f32
    %472 = vector.shape_cast %4 : vector<1x8xi1> to vector<1x8xi1>
    %473 = vector.broadcast %472 : vector<1x8xi1> to vector<8x8xi1>
    %474 = vector.broadcast %cst_152 : f32 to vector<8x8xf32>
    %475 = arith.select %473, %471, %474 : vector<8x8xi1>, vector<8x8xf32>
    %cst_153 = arith.constant dense<0xFF800000> : vector<8xf32>
    %476 = vector.multi_reduction <maximumf>, %475, %cst_153 [1] : vector<8x8xf32> to vector<8xf32>
    %477 = vector.shape_cast %476 : vector<8xf32> to vector<8x1xf32>
    %478 = vector.broadcast %477 : vector<8x1xf32> to vector<8x8xf32>
    %479 = arith.subf %475, %478 : vector<8x8xf32>
    %480 = math.exp %479 : vector<8x8xf32>
    %cst_154 = arith.constant dense<0.000000e+00> : vector<8xf32>
    %481 = vector.multi_reduction <add>, %480, %cst_154 [1] : vector<8x8xf32> to vector<8xf32>
    %482 = vector.shape_cast %481 : vector<8xf32> to vector<8x1xf32>
    %483 = tpu.reciprocal %482 {approx = true} : vector<8x1xf32> -> vector<8x1xf32>
    %484 = vector.broadcast %483 : vector<8x1xf32> to vector<8x8xf32>
    %485 = arith.mulf %480, %484 : vector<8x8xf32>
    %486 = arith.truncf %485 : vector<8x8xf32> to vector<8x8xbf16>
    %cst_155 = arith.constant dense<0.000000e+00> : vector<8x8xf32>
    %487 = tpu.matmul %486, %468, %cst_155 {dimension_numbers = #tpu.dot_dimension_numbers<[1], [0], [0], [1], [0, 0, 1, 1], [], []>} : vector<8x8xbf16>, vector<8x8xbf16>, vector<8x8xf32> -> vector<8x8xf32>
    %488 = arith.truncf %487 : vector<8x8xf32> to vector<8x8xbf16>
    %489 = vector.extract_strided_slice %373 {offsets = [24, 0], sizes = [8, 32], strides = [1, 1]} : vector<32x32xbf16> to vector<8x32xbf16>
    %cst_156 = arith.constant dense<0.000000e+00> : vector<8x32xf32>
    %490 = tpu.matmul %488, %489, %cst_156 {dimension_numbers = #tpu.dot_dimension_numbers<[1], [0], [0], [1], [0, 0, 1, 1], [], []>} : vector<8x8xbf16>, vector<8x32xbf16>, vector<8x32xf32> -> vector<8x32xf32>
    %491 = arith.addf %462, %490 : vector<8x32xf32>
    %492 = vector.extract_strided_slice %369 {offsets = [8, 0], sizes = [8, 32], strides = [1, 1]} : vector<16x32xf32> to vector<8x32xf32>
    %493 = vector.extract_strided_slice %370 {offsets = [8, 0], sizes = [8, 32], strides = [1, 1]} : vector<16x32xf32> to vector<8x32xf32>
    %494 = vector.extract_strided_slice %371 {offsets = [8, 0], sizes = [8, 32], strides = [1, 1]} : vector<16x32xf32> to vector<8x32xf32>
    %495 = vector.extract_strided_slice %492 {offsets = [0, 0], sizes = [8, 8], strides = [1, 1]} : vector<8x32xf32> to vector<8x8xf32>
    %496 = arith.truncf %495 : vector<8x8xf32> to vector<8x8xbf16>
    %497 = vector.extract_strided_slice %493 {offsets = [0, 0], sizes = [8, 8], strides = [1, 1]} : vector<8x32xf32> to vector<8x8xf32>
    %498 = arith.truncf %497 : vector<8x8xf32> to vector<8x8xbf16>
    %499 = vector.extract_strided_slice %494 {offsets = [0, 0], sizes = [8, 8], strides = [1, 1]} : vector<8x32xf32> to vector<8x8xf32>
    %500 = arith.truncf %499 : vector<8x8xf32> to vector<8x8xbf16>
    %cst_157 = arith.constant dense<0.000000e+00> : vector<8x8xf32>
    %501 = tpu.matmul %496, %498, %cst_157 {dimension_numbers = #tpu.dot_dimension_numbers<[1], [1], [0], [0], [0, 0, 1, 0], [], []>} : vector<8x8xbf16>, vector<8x8xbf16>, vector<8x8xf32> -> vector<8x8xf32>
    %cst_158 = arith.constant 0.353553385 : f32
    %502 = vector.broadcast %cst_158 : f32 to vector<8x8xf32>
    %503 = arith.mulf %501, %502 : vector<8x8xf32>
    %cst_159 = arith.constant -1.000000e+09 : f32
    %504 = vector.shape_cast %7 : vector<1x8xi1> to vector<1x8xi1>
    %505 = vector.broadcast %504 : vector<1x8xi1> to vector<8x8xi1>
    %506 = vector.broadcast %cst_159 : f32 to vector<8x8xf32>
    %507 = arith.select %505, %503, %506 : vector<8x8xi1>, vector<8x8xf32>
    %cst_160 = arith.constant dense<0xFF800000> : vector<8xf32>
    %508 = vector.multi_reduction <maximumf>, %507, %cst_160 [1] : vector<8x8xf32> to vector<8xf32>
    %509 = vector.shape_cast %508 : vector<8xf32> to vector<8x1xf32>
    %510 = vector.broadcast %509 : vector<8x1xf32> to vector<8x8xf32>
    %511 = arith.subf %507, %510 : vector<8x8xf32>
    %512 = math.exp %511 : vector<8x8xf32>
    %cst_161 = arith.constant dense<0.000000e+00> : vector<8xf32>
    %513 = vector.multi_reduction <add>, %512, %cst_161 [1] : vector<8x8xf32> to vector<8xf32>
    %514 = vector.shape_cast %513 : vector<8xf32> to vector<8x1xf32>
    %515 = tpu.reciprocal %514 {approx = true} : vector<8x1xf32> -> vector<8x1xf32>
    %516 = vector.broadcast %515 : vector<8x1xf32> to vector<8x8xf32>
    %517 = arith.mulf %512, %516 : vector<8x8xf32>
    %518 = arith.truncf %517 : vector<8x8xf32> to vector<8x8xbf16>
    %cst_162 = arith.constant dense<0.000000e+00> : vector<8x8xf32>
    %519 = tpu.matmul %518, %500, %cst_162 {dimension_numbers = #tpu.dot_dimension_numbers<[1], [0], [0], [1], [0, 0, 1, 1], [], []>} : vector<8x8xbf16>, vector<8x8xbf16>, vector<8x8xf32> -> vector<8x8xf32>
    %520 = arith.truncf %519 : vector<8x8xf32> to vector<8x8xbf16>
    %521 = vector.extract_strided_slice %373 {offsets = [0, 0], sizes = [8, 32], strides = [1, 1]} : vector<32x32xbf16> to vector<8x32xbf16>
    %cst_163 = arith.constant dense<0.000000e+00> : vector<8x32xf32>
    %522 = tpu.matmul %520, %521, %cst_163 {dimension_numbers = #tpu.dot_dimension_numbers<[1], [0], [0], [1], [0, 0, 1, 1], [], []>} : vector<8x8xbf16>, vector<8x32xbf16>, vector<8x32xf32> -> vector<8x32xf32>
    %523 = vector.extract_strided_slice %492 {offsets = [0, 8], sizes = [8, 8], strides = [1, 1]} : vector<8x32xf32> to vector<8x8xf32>
    %524 = arith.truncf %523 : vector<8x8xf32> to vector<8x8xbf16>
    %525 = vector.extract_strided_slice %493 {offsets = [0, 8], sizes = [8, 8], strides = [1, 1]} : vector<8x32xf32> to vector<8x8xf32>
    %526 = arith.truncf %525 : vector<8x8xf32> to vector<8x8xbf16>
    %527 = vector.extract_strided_slice %494 {offsets = [0, 8], sizes = [8, 8], strides = [1, 1]} : vector<8x32xf32> to vector<8x8xf32>
    %528 = arith.truncf %527 : vector<8x8xf32> to vector<8x8xbf16>
    %cst_164 = arith.constant dense<0.000000e+00> : vector<8x8xf32>
    %529 = tpu.matmul %524, %526, %cst_164 {dimension_numbers = #tpu.dot_dimension_numbers<[1], [1], [0], [0], [0, 0, 1, 0], [], []>} : vector<8x8xbf16>, vector<8x8xbf16>, vector<8x8xf32> -> vector<8x8xf32>
    %cst_165 = arith.constant 0.353553385 : f32
    %530 = vector.broadcast %cst_165 : f32 to vector<8x8xf32>
    %531 = arith.mulf %529, %530 : vector<8x8xf32>
    %cst_166 = arith.constant -1.000000e+09 : f32
    %532 = vector.shape_cast %7 : vector<1x8xi1> to vector<1x8xi1>
    %533 = vector.broadcast %532 : vector<1x8xi1> to vector<8x8xi1>
    %534 = vector.broadcast %cst_166 : f32 to vector<8x8xf32>
    %535 = arith.select %533, %531, %534 : vector<8x8xi1>, vector<8x8xf32>
    %cst_167 = arith.constant dense<0xFF800000> : vector<8xf32>
    %536 = vector.multi_reduction <maximumf>, %535, %cst_167 [1] : vector<8x8xf32> to vector<8xf32>
    %537 = vector.shape_cast %536 : vector<8xf32> to vector<8x1xf32>
    %538 = vector.broadcast %537 : vector<8x1xf32> to vector<8x8xf32>
    %539 = arith.subf %535, %538 : vector<8x8xf32>
    %540 = math.exp %539 : vector<8x8xf32>
    %cst_168 = arith.constant dense<0.000000e+00> : vector<8xf32>
    %541 = vector.multi_reduction <add>, %540, %cst_168 [1] : vector<8x8xf32> to vector<8xf32>
    %542 = vector.shape_cast %541 : vector<8xf32> to vector<8x1xf32>
    %543 = tpu.reciprocal %542 {approx = true} : vector<8x1xf32> -> vector<8x1xf32>
    %544 = vector.broadcast %543 : vector<8x1xf32> to vector<8x8xf32>
    %545 = arith.mulf %540, %544 : vector<8x8xf32>
    %546 = arith.truncf %545 : vector<8x8xf32> to vector<8x8xbf16>
    %cst_169 = arith.constant dense<0.000000e+00> : vector<8x8xf32>
    %547 = tpu.matmul %546, %528, %cst_169 {dimension_numbers = #tpu.dot_dimension_numbers<[1], [0], [0], [1], [0, 0, 1, 1], [], []>} : vector<8x8xbf16>, vector<8x8xbf16>, vector<8x8xf32> -> vector<8x8xf32>
    %548 = arith.truncf %547 : vector<8x8xf32> to vector<8x8xbf16>
    %549 = vector.extract_strided_slice %373 {offsets = [8, 0], sizes = [8, 32], strides = [1, 1]} : vector<32x32xbf16> to vector<8x32xbf16>
    %cst_170 = arith.constant dense<0.000000e+00> : vector<8x32xf32>
    %550 = tpu.matmul %548, %549, %cst_170 {dimension_numbers = #tpu.dot_dimension_numbers<[1], [0], [0], [1], [0, 0, 1, 1], [], []>} : vector<8x8xbf16>, vector<8x32xbf16>, vector<8x32xf32> -> vector<8x32xf32>
    %551 = arith.addf %522, %550 : vector<8x32xf32>
    %552 = vector.extract_strided_slice %492 {offsets = [0, 16], sizes = [8, 8], strides = [1, 1]} : vector<8x32xf32> to vector<8x8xf32>
    %553 = arith.truncf %552 : vector<8x8xf32> to vector<8x8xbf16>
    %554 = vector.extract_strided_slice %493 {offsets = [0, 16], sizes = [8, 8], strides = [1, 1]} : vector<8x32xf32> to vector<8x8xf32>
    %555 = arith.truncf %554 : vector<8x8xf32> to vector<8x8xbf16>
    %556 = vector.extract_strided_slice %494 {offsets = [0, 16], sizes = [8, 8], strides = [1, 1]} : vector<8x32xf32> to vector<8x8xf32>
    %557 = arith.truncf %556 : vector<8x8xf32> to vector<8x8xbf16>
    %cst_171 = arith.constant dense<0.000000e+00> : vector<8x8xf32>
    %558 = tpu.matmul %553, %555, %cst_171 {dimension_numbers = #tpu.dot_dimension_numbers<[1], [1], [0], [0], [0, 0, 1, 0], [], []>} : vector<8x8xbf16>, vector<8x8xbf16>, vector<8x8xf32> -> vector<8x8xf32>
    %cst_172 = arith.constant 0.353553385 : f32
    %559 = vector.broadcast %cst_172 : f32 to vector<8x8xf32>
    %560 = arith.mulf %558, %559 : vector<8x8xf32>
    %cst_173 = arith.constant -1.000000e+09 : f32
    %561 = vector.shape_cast %7 : vector<1x8xi1> to vector<1x8xi1>
    %562 = vector.broadcast %561 : vector<1x8xi1> to vector<8x8xi1>
    %563 = vector.broadcast %cst_173 : f32 to vector<8x8xf32>
    %564 = arith.select %562, %560, %563 : vector<8x8xi1>, vector<8x8xf32>
    %cst_174 = arith.constant dense<0xFF800000> : vector<8xf32>
    %565 = vector.multi_reduction <maximumf>, %564, %cst_174 [1] : vector<8x8xf32> to vector<8xf32>
    %566 = vector.shape_cast %565 : vector<8xf32> to vector<8x1xf32>
    %567 = vector.broadcast %566 : vector<8x1xf32> to vector<8x8xf32>
    %568 = arith.subf %564, %567 : vector<8x8xf32>
    %569 = math.exp %568 : vector<8x8xf32>
    %cst_175 = arith.constant dense<0.000000e+00> : vector<8xf32>
    %570 = vector.multi_reduction <add>, %569, %cst_175 [1] : vector<8x8xf32> to vector<8xf32>
    %571 = vector.shape_cast %570 : vector<8xf32> to vector<8x1xf32>
    %572 = tpu.reciprocal %571 {approx = true} : vector<8x1xf32> -> vector<8x1xf32>
    %573 = vector.broadcast %572 : vector<8x1xf32> to vector<8x8xf32>
    %574 = arith.mulf %569, %573 : vector<8x8xf32>
    %575 = arith.truncf %574 : vector<8x8xf32> to vector<8x8xbf16>
    %cst_176 = arith.constant dense<0.000000e+00> : vector<8x8xf32>
    %576 = tpu.matmul %575, %557, %cst_176 {dimension_numbers = #tpu.dot_dimension_numbers<[1], [0], [0], [1], [0, 0, 1, 1], [], []>} : vector<8x8xbf16>, vector<8x8xbf16>, vector<8x8xf32> -> vector<8x8xf32>
    %577 = arith.truncf %576 : vector<8x8xf32> to vector<8x8xbf16>
    %578 = vector.extract_strided_slice %373 {offsets = [16, 0], sizes = [8, 32], strides = [1, 1]} : vector<32x32xbf16> to vector<8x32xbf16>
    %cst_177 = arith.constant dense<0.000000e+00> : vector<8x32xf32>
    %579 = tpu.matmul %577, %578, %cst_177 {dimension_numbers = #tpu.dot_dimension_numbers<[1], [0], [0], [1], [0, 0, 1, 1], [], []>} : vector<8x8xbf16>, vector<8x32xbf16>, vector<8x32xf32> -> vector<8x32xf32>
    %580 = arith.addf %551, %579 : vector<8x32xf32>
    %581 = vector.extract_strided_slice %492 {offsets = [0, 24], sizes = [8, 8], strides = [1, 1]} : vector<8x32xf32> to vector<8x8xf32>
    %582 = arith.truncf %581 : vector<8x8xf32> to vector<8x8xbf16>
    %583 = vector.extract_strided_slice %493 {offsets = [0, 24], sizes = [8, 8], strides = [1, 1]} : vector<8x32xf32> to vector<8x8xf32>
    %584 = arith.truncf %583 : vector<8x8xf32> to vector<8x8xbf16>
    %585 = vector.extract_strided_slice %494 {offsets = [0, 24], sizes = [8, 8], strides = [1, 1]} : vector<8x32xf32> to vector<8x8xf32>
    %586 = arith.truncf %585 : vector<8x8xf32> to vector<8x8xbf16>
    %cst_178 = arith.constant dense<0.000000e+00> : vector<8x8xf32>
    %587 = tpu.matmul %582, %584, %cst_178 {dimension_numbers = #tpu.dot_dimension_numbers<[1], [1], [0], [0], [0, 0, 1, 0], [], []>} : vector<8x8xbf16>, vector<8x8xbf16>, vector<8x8xf32> -> vector<8x8xf32>
    %cst_179 = arith.constant 0.353553385 : f32
    %588 = vector.broadcast %cst_179 : f32 to vector<8x8xf32>
    %589 = arith.mulf %587, %588 : vector<8x8xf32>
    %cst_180 = arith.constant -1.000000e+09 : f32
    %590 = vector.shape_cast %7 : vector<1x8xi1> to vector<1x8xi1>
    %591 = vector.broadcast %590 : vector<1x8xi1> to vector<8x8xi1>
    %592 = vector.broadcast %cst_180 : f32 to vector<8x8xf32>
    %593 = arith.select %591, %589, %592 : vector<8x8xi1>, vector<8x8xf32>
    %cst_181 = arith.constant dense<0xFF800000> : vector<8xf32>
    %594 = vector.multi_reduction <maximumf>, %593, %cst_181 [1] : vector<8x8xf32> to vector<8xf32>
    %595 = vector.shape_cast %594 : vector<8xf32> to vector<8x1xf32>
    %596 = vector.broadcast %595 : vector<8x1xf32> to vector<8x8xf32>
    %597 = arith.subf %593, %596 : vector<8x8xf32>
    %598 = math.exp %597 : vector<8x8xf32>
    %cst_182 = arith.constant dense<0.000000e+00> : vector<8xf32>
    %599 = vector.multi_reduction <add>, %598, %cst_182 [1] : vector<8x8xf32> to vector<8xf32>
    %600 = vector.shape_cast %599 : vector<8xf32> to vector<8x1xf32>
    %601 = tpu.reciprocal %600 {approx = true} : vector<8x1xf32> -> vector<8x1xf32>
    %602 = vector.broadcast %601 : vector<8x1xf32> to vector<8x8xf32>
    %603 = arith.mulf %598, %602 : vector<8x8xf32>
    %604 = arith.truncf %603 : vector<8x8xf32> to vector<8x8xbf16>
    %cst_183 = arith.constant dense<0.000000e+00> : vector<8x8xf32>
    %605 = tpu.matmul %604, %586, %cst_183 {dimension_numbers = #tpu.dot_dimension_numbers<[1], [0], [0], [1], [0, 0, 1, 1], [], []>} : vector<8x8xbf16>, vector<8x8xbf16>, vector<8x8xf32> -> vector<8x8xf32>
    %606 = arith.truncf %605 : vector<8x8xf32> to vector<8x8xbf16>
    %607 = vector.extract_strided_slice %373 {offsets = [24, 0], sizes = [8, 32], strides = [1, 1]} : vector<32x32xbf16> to vector<8x32xbf16>
    %cst_184 = arith.constant dense<0.000000e+00> : vector<8x32xf32>
    %608 = tpu.matmul %606, %607, %cst_184 {dimension_numbers = #tpu.dot_dimension_numbers<[1], [0], [0], [1], [0, 0, 1, 1], [], []>} : vector<8x8xbf16>, vector<8x32xbf16>, vector<8x32xf32> -> vector<8x32xf32>
    %609 = arith.addf %580, %608 : vector<8x32xf32>
    %610 = tpu.concatenate %491, %609 in 0 : vector<8x32xf32>, vector<8x32xf32> -> vector<16x32xf32>
    %611 = arith.addf %335, %610 : vector<16x32xf32>
    %c1_185 = arith.constant 1 : index
    %c0_186 = arith.constant 0 : index
    %c0_187 = arith.constant 0 : index
    %612 = vector.load %arg8[%c1_185, %c0_186, %c0_187] : memref<2x1x32xf32, #tpu.memory_space<vmem>>, vector<1x1x32xf32>
    %613 = vector.shape_cast %612 : vector<1x1x32xf32> to vector<1x32xf32>
    %614 = vector.broadcast %613 : vector<1x32xf32> to vector<16x32xf32>
    %615 = arith.addf %611, %614 : vector<16x32xf32>
    %c1_188 = arith.constant 1 : index
    %c0_189 = arith.constant 0 : index
    %c0_190 = arith.constant 0 : index
    %616 = vector.load %arg9[%c1_188, %c0_189, %c0_190] : memref<2x1x32xf32, #tpu.memory_space<vmem>>, vector<1x1x32xf32>
    %617 = vector.shape_cast %616 : vector<1x1x32xf32> to vector<1x32xf32>
    %c1_191 = arith.constant 1 : index
    %c0_192 = arith.constant 0 : index
    %c0_193 = arith.constant 0 : index
    %618 = vector.load %arg10[%c1_191, %c0_192, %c0_193] : memref<2x1x32xf32, #tpu.memory_space<vmem>>, vector<1x1x32xf32>
    %619 = vector.shape_cast %618 : vector<1x1x32xf32> to vector<1x32xf32>
    %cst_194 = arith.constant dense<0.000000e+00> : vector<16xf32>
    %620 = vector.multi_reduction <add>, %615, %cst_194 [1] : vector<16x32xf32> to vector<16xf32>
    %621 = vector.shape_cast %620 : vector<16xf32> to vector<16x1xf32>
    %cst_195 = arith.constant 3.200000e+01 : f32
    %622 = vector.broadcast %cst_195 : f32 to vector<16x1xf32>
    %623 = arith.divf %621, %622 : vector<16x1xf32>
    %624 = vector.broadcast %623 : vector<16x1xf32> to vector<16x32xf32>
    %625 = arith.subf %615, %624 : vector<16x32xf32>
    %626 = arith.mulf %625, %625 : vector<16x32xf32>
    %cst_196 = arith.constant dense<0.000000e+00> : vector<16xf32>
    %627 = vector.multi_reduction <add>, %626, %cst_196 [1] : vector<16x32xf32> to vector<16xf32>
    %628 = vector.shape_cast %627 : vector<16xf32> to vector<16x1xf32>
    %cst_197 = arith.constant 0.0322580636 : f32
    %629 = vector.broadcast %cst_197 : f32 to vector<16x1xf32>
    %630 = arith.mulf %628, %629 : vector<16x1xf32>
    %631 = math.sqrt %630 : vector<16x1xf32>
    %cst_198 = arith.constant 9.99999997E-7 : f32
    %632 = vector.broadcast %cst_198 : f32 to vector<16x1xf32>
    %633 = arith.addf %631, %632 : vector<16x1xf32>
    %634 = tpu.reciprocal %633 {approx = true} : vector<16x1xf32> -> vector<16x1xf32>
    %635 = vector.broadcast %634 : vector<16x1xf32> to vector<16x32xf32>
    %636 = arith.mulf %625, %635 : vector<16x32xf32>
    %637 = vector.broadcast %617 : vector<1x32xf32> to vector<16x32xf32>
    %638 = arith.mulf %637, %636 : vector<16x32xf32>
    %639 = vector.broadcast %619 : vector<1x32xf32> to vector<16x32xf32>
    %640 = arith.addf %638, %639 : vector<16x32xf32>
    %c1_199 = arith.constant 1 : index
    %c0_200 = arith.constant 0 : index
    %c0_201 = arith.constant 0 : index
    %641 = vector.load %arg11[%c1_199, %c0_200, %c0_201] : memref<2x32x64xbf16, #tpu.memory_space<vmem>>, vector<1x32x64xbf16>
    %642 = vector.shape_cast %641 : vector<1x32x64xbf16> to vector<32x64xbf16>
    %c1_202 = arith.constant 1 : index
    %c0_203 = arith.constant 0 : index
    %c0_204 = arith.constant 0 : index
    %643 = vector.load %arg12[%c1_202, %c0_203, %c0_204] : memref<2x1x64xf32, #tpu.memory_space<vmem>>, vector<1x1x64xf32>
    %644 = vector.shape_cast %643 : vector<1x1x64xf32> to vector<1x64xf32>
    %645 = arith.truncf %640 : vector<16x32xf32> to vector<16x32xbf16>
    %cst_205 = arith.constant dense<0.000000e+00> : vector<16x64xf32>
    %646 = tpu.matmul %645, %642, %cst_205 {dimension_numbers = #tpu.dot_dimension_numbers<[1], [0], [0], [1], [0, 0, 1, 1], [], []>} : vector<16x32xbf16>, vector<32x64xbf16>, vector<16x64xf32> -> vector<16x64xf32>
    %647 = vector.broadcast %644 : vector<1x64xf32> to vector<16x64xf32>
    %648 = arith.addf %646, %647 : vector<16x64xf32>
    %cst_206 = arith.constant 0.000000e+00 : f32
    %649 = vector.broadcast %cst_206 : f32 to vector<16x64xf32>
    %650 = arith.maximumf %648, %649 : vector<16x64xf32>
    %c1_207 = arith.constant 1 : index
    %c0_208 = arith.constant 0 : index
    %c0_209 = arith.constant 0 : index
    %651 = vector.load %arg13[%c1_207, %c0_208, %c0_209] : memref<2x64x32xbf16, #tpu.memory_space<vmem>>, vector<1x64x32xbf16>
    %652 = vector.shape_cast %651 : vector<1x64x32xbf16> to vector<64x32xbf16>
    %c1_210 = arith.constant 1 : index
    %c0_211 = arith.constant 0 : index
    %c0_212 = arith.constant 0 : index
    %653 = vector.load %arg14[%c1_210, %c0_211, %c0_212] : memref<2x1x32xf32, #tpu.memory_space<vmem>>, vector<1x1x32xf32>
    %654 = vector.shape_cast %653 : vector<1x1x32xf32> to vector<1x32xf32>
    %655 = arith.truncf %650 : vector<16x64xf32> to vector<16x64xbf16>
    %cst_213 = arith.constant dense<0.000000e+00> : vector<16x32xf32>
    %656 = tpu.matmul %655, %652, %cst_213 {dimension_numbers = #tpu.dot_dimension_numbers<[1], [0], [0], [1], [0, 0, 1, 1], [], []>} : vector<16x64xbf16>, vector<64x32xbf16>, vector<16x32xf32> -> vector<16x32xf32>
    %657 = vector.broadcast %654 : vector<1x32xf32> to vector<16x32xf32>
    %658 = arith.addf %656, %657 : vector<16x32xf32>
    %659 = arith.addf %615, %658 : vector<16x32xf32>
    %c0_214 = arith.constant 0 : index
    %c0_215 = arith.constant 0 : index
    %660 = vector.load %arg15[%c0_214, %c0_215] : memref<1x32xf32, #tpu.memory_space<vmem>>, vector<1x32xf32>
    %c0_216 = arith.constant 0 : index
    %c0_217 = arith.constant 0 : index
    %661 = vector.load %arg16[%c0_216, %c0_217] : memref<1x32xf32, #tpu.memory_space<vmem>>, vector<1x32xf32>
    %cst_218 = arith.constant dense<0.000000e+00> : vector<16xf32>
    %662 = vector.multi_reduction <add>, %659, %cst_218 [1] : vector<16x32xf32> to vector<16xf32>
    %663 = vector.shape_cast %662 : vector<16xf32> to vector<16x1xf32>
    %cst_219 = arith.constant 3.200000e+01 : f32
    %664 = vector.broadcast %cst_219 : f32 to vector<16x1xf32>
    %665 = arith.divf %663, %664 : vector<16x1xf32>
    %666 = vector.broadcast %665 : vector<16x1xf32> to vector<16x32xf32>
    %667 = arith.subf %659, %666 : vector<16x32xf32>
    %668 = arith.mulf %667, %667 : vector<16x32xf32>
    %cst_220 = arith.constant dense<0.000000e+00> : vector<16xf32>
    %669 = vector.multi_reduction <add>, %668, %cst_220 [1] : vector<16x32xf32> to vector<16xf32>
    %670 = vector.shape_cast %669 : vector<16xf32> to vector<16x1xf32>
    %cst_221 = arith.constant 0.0322580636 : f32
    %671 = vector.broadcast %cst_221 : f32 to vector<16x1xf32>
    %672 = arith.mulf %670, %671 : vector<16x1xf32>
    %673 = math.sqrt %672 : vector<16x1xf32>
    %cst_222 = arith.constant 9.99999997E-7 : f32
    %674 = vector.broadcast %cst_222 : f32 to vector<16x1xf32>
    %675 = arith.addf %673, %674 : vector<16x1xf32>
    %676 = tpu.reciprocal %675 {approx = true} : vector<16x1xf32> -> vector<16x1xf32>
    %677 = vector.broadcast %676 : vector<16x1xf32> to vector<16x32xf32>
    %678 = arith.mulf %667, %677 : vector<16x32xf32>
    %679 = vector.broadcast %660 : vector<1x32xf32> to vector<16x32xf32>
    %680 = arith.mulf %679, %678 : vector<16x32xf32>
    %681 = vector.broadcast %661 : vector<1x32xf32> to vector<16x32xf32>
    %682 = arith.addf %680, %681 : vector<16x32xf32>
    %c0_223 = arith.constant 0 : index
    %c0_224 = arith.constant 0 : index
    %683 = vector.load %arg1[%c0_223, %c0_224] : memref<16x32xf32, #tpu.memory_space<vmem>>, vector<16x32xf32>
    %c0_225 = arith.constant 0 : index
    %c0_226 = arith.constant 0 : index
    %c0_227 = arith.constant 0 : index
    %684 = vector.load %arg17[%c0_225, %c0_226, %c0_227] : memref<2x1x32xf32, #tpu.memory_space<vmem>>, vector<1x1x32xf32>
    %685 = vector.shape_cast %684 : vector<1x1x32xf32> to vector<1x32xf32>
    %c0_228 = arith.constant 0 : index
    %c0_229 = arith.constant 0 : index
    %c0_230 = arith.constant 0 : index
    %686 = vector.load %arg18[%c0_228, %c0_229, %c0_230] : memref<2x1x32xf32, #tpu.memory_space<vmem>>, vector<1x1x32xf32>
    %687 = vector.shape_cast %686 : vector<1x1x32xf32> to vector<1x32xf32>
    %cst_231 = arith.constant dense<0.000000e+00> : vector<16xf32>
    %688 = vector.multi_reduction <add>, %683, %cst_231 [1] : vector<16x32xf32> to vector<16xf32>
    %689 = vector.shape_cast %688 : vector<16xf32> to vector<16x1xf32>
    %cst_232 = arith.constant 3.200000e+01 : f32
    %690 = vector.broadcast %cst_232 : f32 to vector<16x1xf32>
    %691 = arith.divf %689, %690 : vector<16x1xf32>
    %692 = vector.broadcast %691 : vector<16x1xf32> to vector<16x32xf32>
    %693 = arith.subf %683, %692 : vector<16x32xf32>
    %694 = arith.mulf %693, %693 : vector<16x32xf32>
    %cst_233 = arith.constant dense<0.000000e+00> : vector<16xf32>
    %695 = vector.multi_reduction <add>, %694, %cst_233 [1] : vector<16x32xf32> to vector<16xf32>
    %696 = vector.shape_cast %695 : vector<16xf32> to vector<16x1xf32>
    %cst_234 = arith.constant 0.0322580636 : f32
    %697 = vector.broadcast %cst_234 : f32 to vector<16x1xf32>
    %698 = arith.mulf %696, %697 : vector<16x1xf32>
    %699 = math.sqrt %698 : vector<16x1xf32>
    %cst_235 = arith.constant 9.99999997E-7 : f32
    %700 = vector.broadcast %cst_235 : f32 to vector<16x1xf32>
    %701 = arith.addf %699, %700 : vector<16x1xf32>
    %702 = tpu.reciprocal %701 {approx = true} : vector<16x1xf32> -> vector<16x1xf32>
    %703 = vector.broadcast %702 : vector<16x1xf32> to vector<16x32xf32>
    %704 = arith.mulf %693, %703 : vector<16x32xf32>
    %705 = vector.broadcast %685 : vector<1x32xf32> to vector<16x32xf32>
    %706 = arith.mulf %705, %704 : vector<16x32xf32>
    %707 = vector.broadcast %687 : vector<1x32xf32> to vector<16x32xf32>
    %708 = arith.addf %706, %707 : vector<16x32xf32>
    %c0_236 = arith.constant 0 : index
    %c0_237 = arith.constant 0 : index
    %c0_238 = arith.constant 0 : index
    %709 = vector.load %arg19[%c0_236, %c0_237, %c0_238] : memref<2x32x96xbf16, #tpu.memory_space<vmem>>, vector<1x32x96xbf16>
    %710 = vector.shape_cast %709 : vector<1x32x96xbf16> to vector<32x96xbf16>
    %c0_239 = arith.constant 0 : index
    %c0_240 = arith.constant 0 : index
    %c0_241 = arith.constant 0 : index
    %711 = vector.load %arg20[%c0_239, %c0_240, %c0_241] : memref<2x1x96xf32, #tpu.memory_space<vmem>>, vector<1x1x96xf32>
    %712 = vector.shape_cast %711 : vector<1x1x96xf32> to vector<1x96xf32>
    %713 = arith.truncf %708 : vector<16x32xf32> to vector<16x32xbf16>
    %cst_242 = arith.constant dense<0.000000e+00> : vector<16x96xf32>
    %714 = tpu.matmul %713, %710, %cst_242 {dimension_numbers = #tpu.dot_dimension_numbers<[1], [0], [0], [1], [0, 0, 1, 1], [], []>} : vector<16x32xbf16>, vector<32x96xbf16>, vector<16x96xf32> -> vector<16x96xf32>
    %715 = vector.broadcast %712 : vector<1x96xf32> to vector<16x96xf32>
    %716 = arith.addf %714, %715 : vector<16x96xf32>
    %717 = vector.extract_strided_slice %716 {offsets = [0, 0], sizes = [16, 32], strides = [1, 1]} : vector<16x96xf32> to vector<16x32xf32>
    %718 = vector.extract_strided_slice %716 {offsets = [0, 32], sizes = [16, 32], strides = [1, 1]} : vector<16x96xf32> to vector<16x32xf32>
    %719 = vector.extract_strided_slice %716 {offsets = [0, 64], sizes = [16, 32], strides = [1, 1]} : vector<16x96xf32> to vector<16x32xf32>
    %c0_243 = arith.constant 0 : index
    %c0_244 = arith.constant 0 : index
    %c0_245 = arith.constant 0 : index
    %720 = vector.load %arg21[%c0_243, %c0_244, %c0_245] : memref<2x32x32xbf16, #tpu.memory_space<vmem>>, vector<1x32x32xbf16>
    %721 = vector.shape_cast %720 : vector<1x32x32xbf16> to vector<32x32xbf16>
    %722 = vector.extract_strided_slice %717 {offsets = [0, 0], sizes = [8, 32], strides = [1, 1]} : vector<16x32xf32> to vector<8x32xf32>
    %723 = vector.extract_strided_slice %718 {offsets = [0, 0], sizes = [8, 32], strides = [1, 1]} : vector<16x32xf32> to vector<8x32xf32>
    %724 = vector.extract_strided_slice %719 {offsets = [0, 0], sizes = [8, 32], strides = [1, 1]} : vector<16x32xf32> to vector<8x32xf32>
    %725 = vector.extract_strided_slice %722 {offsets = [0, 0], sizes = [8, 8], strides = [1, 1]} : vector<8x32xf32> to vector<8x8xf32>
    %726 = arith.truncf %725 : vector<8x8xf32> to vector<8x8xbf16>
    %727 = vector.extract_strided_slice %723 {offsets = [0, 0], sizes = [8, 8], strides = [1, 1]} : vector<8x32xf32> to vector<8x8xf32>
    %728 = arith.truncf %727 : vector<8x8xf32> to vector<8x8xbf16>
    %729 = vector.extract_strided_slice %724 {offsets = [0, 0], sizes = [8, 8], strides = [1, 1]} : vector<8x32xf32> to vector<8x8xf32>
    %730 = arith.truncf %729 : vector<8x8xf32> to vector<8x8xbf16>
    %cst_246 = arith.constant dense<0.000000e+00> : vector<8x8xf32>
    %731 = tpu.matmul %726, %728, %cst_246 {dimension_numbers = #tpu.dot_dimension_numbers<[1], [1], [0], [0], [0, 0, 1, 0], [], []>} : vector<8x8xbf16>, vector<8x8xbf16>, vector<8x8xf32> -> vector<8x8xf32>
    %cst_247 = arith.constant 0.353553385 : f32
    %732 = vector.broadcast %cst_247 : f32 to vector<8x8xf32>
    %733 = arith.mulf %731, %732 : vector<8x8xf32>
    %cst_248 = arith.constant -1.000000e+09 : f32
    %734 = vector.broadcast %cst_248 : f32 to vector<8x8xf32>
    %735 = arith.select %10, %733, %734 : vector<8x8xi1>, vector<8x8xf32>
    %cst_249 = arith.constant dense<0xFF800000> : vector<8xf32>
    %736 = vector.multi_reduction <maximumf>, %735, %cst_249 [1] : vector<8x8xf32> to vector<8xf32>
    %737 = vector.shape_cast %736 : vector<8xf32> to vector<8x1xf32>
    %738 = vector.broadcast %737 : vector<8x1xf32> to vector<8x8xf32>
    %739 = arith.subf %735, %738 : vector<8x8xf32>
    %740 = math.exp %739 : vector<8x8xf32>
    %cst_250 = arith.constant dense<0.000000e+00> : vector<8xf32>
    %741 = vector.multi_reduction <add>, %740, %cst_250 [1] : vector<8x8xf32> to vector<8xf32>
    %742 = vector.shape_cast %741 : vector<8xf32> to vector<8x1xf32>
    %743 = tpu.reciprocal %742 {approx = true} : vector<8x1xf32> -> vector<8x1xf32>
    %744 = vector.broadcast %743 : vector<8x1xf32> to vector<8x8xf32>
    %745 = arith.mulf %740, %744 : vector<8x8xf32>
    %746 = arith.truncf %745 : vector<8x8xf32> to vector<8x8xbf16>
    %cst_251 = arith.constant dense<0.000000e+00> : vector<8x8xf32>
    %747 = tpu.matmul %746, %730, %cst_251 {dimension_numbers = #tpu.dot_dimension_numbers<[1], [0], [0], [1], [0, 0, 1, 1], [], []>} : vector<8x8xbf16>, vector<8x8xbf16>, vector<8x8xf32> -> vector<8x8xf32>
    %748 = arith.truncf %747 : vector<8x8xf32> to vector<8x8xbf16>
    %749 = vector.extract_strided_slice %721 {offsets = [0, 0], sizes = [8, 32], strides = [1, 1]} : vector<32x32xbf16> to vector<8x32xbf16>
    %cst_252 = arith.constant dense<0.000000e+00> : vector<8x32xf32>
    %750 = tpu.matmul %748, %749, %cst_252 {dimension_numbers = #tpu.dot_dimension_numbers<[1], [0], [0], [1], [0, 0, 1, 1], [], []>} : vector<8x8xbf16>, vector<8x32xbf16>, vector<8x32xf32> -> vector<8x32xf32>
    %751 = vector.extract_strided_slice %722 {offsets = [0, 8], sizes = [8, 8], strides = [1, 1]} : vector<8x32xf32> to vector<8x8xf32>
    %752 = arith.truncf %751 : vector<8x8xf32> to vector<8x8xbf16>
    %753 = vector.extract_strided_slice %723 {offsets = [0, 8], sizes = [8, 8], strides = [1, 1]} : vector<8x32xf32> to vector<8x8xf32>
    %754 = arith.truncf %753 : vector<8x8xf32> to vector<8x8xbf16>
    %755 = vector.extract_strided_slice %724 {offsets = [0, 8], sizes = [8, 8], strides = [1, 1]} : vector<8x32xf32> to vector<8x8xf32>
    %756 = arith.truncf %755 : vector<8x8xf32> to vector<8x8xbf16>
    %cst_253 = arith.constant dense<0.000000e+00> : vector<8x8xf32>
    %757 = tpu.matmul %752, %754, %cst_253 {dimension_numbers = #tpu.dot_dimension_numbers<[1], [1], [0], [0], [0, 0, 1, 0], [], []>} : vector<8x8xbf16>, vector<8x8xbf16>, vector<8x8xf32> -> vector<8x8xf32>
    %cst_254 = arith.constant 0.353553385 : f32
    %758 = vector.broadcast %cst_254 : f32 to vector<8x8xf32>
    %759 = arith.mulf %757, %758 : vector<8x8xf32>
    %cst_255 = arith.constant -1.000000e+09 : f32
    %760 = vector.broadcast %cst_255 : f32 to vector<8x8xf32>
    %761 = arith.select %10, %759, %760 : vector<8x8xi1>, vector<8x8xf32>
    %cst_256 = arith.constant dense<0xFF800000> : vector<8xf32>
    %762 = vector.multi_reduction <maximumf>, %761, %cst_256 [1] : vector<8x8xf32> to vector<8xf32>
    %763 = vector.shape_cast %762 : vector<8xf32> to vector<8x1xf32>
    %764 = vector.broadcast %763 : vector<8x1xf32> to vector<8x8xf32>
    %765 = arith.subf %761, %764 : vector<8x8xf32>
    %766 = math.exp %765 : vector<8x8xf32>
    %cst_257 = arith.constant dense<0.000000e+00> : vector<8xf32>
    %767 = vector.multi_reduction <add>, %766, %cst_257 [1] : vector<8x8xf32> to vector<8xf32>
    %768 = vector.shape_cast %767 : vector<8xf32> to vector<8x1xf32>
    %769 = tpu.reciprocal %768 {approx = true} : vector<8x1xf32> -> vector<8x1xf32>
    %770 = vector.broadcast %769 : vector<8x1xf32> to vector<8x8xf32>
    %771 = arith.mulf %766, %770 : vector<8x8xf32>
    %772 = arith.truncf %771 : vector<8x8xf32> to vector<8x8xbf16>
    %cst_258 = arith.constant dense<0.000000e+00> : vector<8x8xf32>
    %773 = tpu.matmul %772, %756, %cst_258 {dimension_numbers = #tpu.dot_dimension_numbers<[1], [0], [0], [1], [0, 0, 1, 1], [], []>} : vector<8x8xbf16>, vector<8x8xbf16>, vector<8x8xf32> -> vector<8x8xf32>
    %774 = arith.truncf %773 : vector<8x8xf32> to vector<8x8xbf16>
    %775 = vector.extract_strided_slice %721 {offsets = [8, 0], sizes = [8, 32], strides = [1, 1]} : vector<32x32xbf16> to vector<8x32xbf16>
    %cst_259 = arith.constant dense<0.000000e+00> : vector<8x32xf32>
    %776 = tpu.matmul %774, %775, %cst_259 {dimension_numbers = #tpu.dot_dimension_numbers<[1], [0], [0], [1], [0, 0, 1, 1], [], []>} : vector<8x8xbf16>, vector<8x32xbf16>, vector<8x32xf32> -> vector<8x32xf32>
    %777 = arith.addf %750, %776 : vector<8x32xf32>
    %778 = vector.extract_strided_slice %722 {offsets = [0, 16], sizes = [8, 8], strides = [1, 1]} : vector<8x32xf32> to vector<8x8xf32>
    %779 = arith.truncf %778 : vector<8x8xf32> to vector<8x8xbf16>
    %780 = vector.extract_strided_slice %723 {offsets = [0, 16], sizes = [8, 8], strides = [1, 1]} : vector<8x32xf32> to vector<8x8xf32>
    %781 = arith.truncf %780 : vector<8x8xf32> to vector<8x8xbf16>
    %782 = vector.extract_strided_slice %724 {offsets = [0, 16], sizes = [8, 8], strides = [1, 1]} : vector<8x32xf32> to vector<8x8xf32>
    %783 = arith.truncf %782 : vector<8x8xf32> to vector<8x8xbf16>
    %cst_260 = arith.constant dense<0.000000e+00> : vector<8x8xf32>
    %784 = tpu.matmul %779, %781, %cst_260 {dimension_numbers = #tpu.dot_dimension_numbers<[1], [1], [0], [0], [0, 0, 1, 0], [], []>} : vector<8x8xbf16>, vector<8x8xbf16>, vector<8x8xf32> -> vector<8x8xf32>
    %cst_261 = arith.constant 0.353553385 : f32
    %785 = vector.broadcast %cst_261 : f32 to vector<8x8xf32>
    %786 = arith.mulf %784, %785 : vector<8x8xf32>
    %cst_262 = arith.constant -1.000000e+09 : f32
    %787 = vector.broadcast %cst_262 : f32 to vector<8x8xf32>
    %788 = arith.select %10, %786, %787 : vector<8x8xi1>, vector<8x8xf32>
    %cst_263 = arith.constant dense<0xFF800000> : vector<8xf32>
    %789 = vector.multi_reduction <maximumf>, %788, %cst_263 [1] : vector<8x8xf32> to vector<8xf32>
    %790 = vector.shape_cast %789 : vector<8xf32> to vector<8x1xf32>
    %791 = vector.broadcast %790 : vector<8x1xf32> to vector<8x8xf32>
    %792 = arith.subf %788, %791 : vector<8x8xf32>
    %793 = math.exp %792 : vector<8x8xf32>
    %cst_264 = arith.constant dense<0.000000e+00> : vector<8xf32>
    %794 = vector.multi_reduction <add>, %793, %cst_264 [1] : vector<8x8xf32> to vector<8xf32>
    %795 = vector.shape_cast %794 : vector<8xf32> to vector<8x1xf32>
    %796 = tpu.reciprocal %795 {approx = true} : vector<8x1xf32> -> vector<8x1xf32>
    %797 = vector.broadcast %796 : vector<8x1xf32> to vector<8x8xf32>
    %798 = arith.mulf %793, %797 : vector<8x8xf32>
    %799 = arith.truncf %798 : vector<8x8xf32> to vector<8x8xbf16>
    %cst_265 = arith.constant dense<0.000000e+00> : vector<8x8xf32>
    %800 = tpu.matmul %799, %783, %cst_265 {dimension_numbers = #tpu.dot_dimension_numbers<[1], [0], [0], [1], [0, 0, 1, 1], [], []>} : vector<8x8xbf16>, vector<8x8xbf16>, vector<8x8xf32> -> vector<8x8xf32>
    %801 = arith.truncf %800 : vector<8x8xf32> to vector<8x8xbf16>
    %802 = vector.extract_strided_slice %721 {offsets = [16, 0], sizes = [8, 32], strides = [1, 1]} : vector<32x32xbf16> to vector<8x32xbf16>
    %cst_266 = arith.constant dense<0.000000e+00> : vector<8x32xf32>
    %803 = tpu.matmul %801, %802, %cst_266 {dimension_numbers = #tpu.dot_dimension_numbers<[1], [0], [0], [1], [0, 0, 1, 1], [], []>} : vector<8x8xbf16>, vector<8x32xbf16>, vector<8x32xf32> -> vector<8x32xf32>
    %804 = arith.addf %777, %803 : vector<8x32xf32>
    %805 = vector.extract_strided_slice %722 {offsets = [0, 24], sizes = [8, 8], strides = [1, 1]} : vector<8x32xf32> to vector<8x8xf32>
    %806 = arith.truncf %805 : vector<8x8xf32> to vector<8x8xbf16>
    %807 = vector.extract_strided_slice %723 {offsets = [0, 24], sizes = [8, 8], strides = [1, 1]} : vector<8x32xf32> to vector<8x8xf32>
    %808 = arith.truncf %807 : vector<8x8xf32> to vector<8x8xbf16>
    %809 = vector.extract_strided_slice %724 {offsets = [0, 24], sizes = [8, 8], strides = [1, 1]} : vector<8x32xf32> to vector<8x8xf32>
    %810 = arith.truncf %809 : vector<8x8xf32> to vector<8x8xbf16>
    %cst_267 = arith.constant dense<0.000000e+00> : vector<8x8xf32>
    %811 = tpu.matmul %806, %808, %cst_267 {dimension_numbers = #tpu.dot_dimension_numbers<[1], [1], [0], [0], [0, 0, 1, 0], [], []>} : vector<8x8xbf16>, vector<8x8xbf16>, vector<8x8xf32> -> vector<8x8xf32>
    %cst_268 = arith.constant 0.353553385 : f32
    %812 = vector.broadcast %cst_268 : f32 to vector<8x8xf32>
    %813 = arith.mulf %811, %812 : vector<8x8xf32>
    %cst_269 = arith.constant -1.000000e+09 : f32
    %814 = vector.broadcast %cst_269 : f32 to vector<8x8xf32>
    %815 = arith.select %10, %813, %814 : vector<8x8xi1>, vector<8x8xf32>
    %cst_270 = arith.constant dense<0xFF800000> : vector<8xf32>
    %816 = vector.multi_reduction <maximumf>, %815, %cst_270 [1] : vector<8x8xf32> to vector<8xf32>
    %817 = vector.shape_cast %816 : vector<8xf32> to vector<8x1xf32>
    %818 = vector.broadcast %817 : vector<8x1xf32> to vector<8x8xf32>
    %819 = arith.subf %815, %818 : vector<8x8xf32>
    %820 = math.exp %819 : vector<8x8xf32>
    %cst_271 = arith.constant dense<0.000000e+00> : vector<8xf32>
    %821 = vector.multi_reduction <add>, %820, %cst_271 [1] : vector<8x8xf32> to vector<8xf32>
    %822 = vector.shape_cast %821 : vector<8xf32> to vector<8x1xf32>
    %823 = tpu.reciprocal %822 {approx = true} : vector<8x1xf32> -> vector<8x1xf32>
    %824 = vector.broadcast %823 : vector<8x1xf32> to vector<8x8xf32>
    %825 = arith.mulf %820, %824 : vector<8x8xf32>
    %826 = arith.truncf %825 : vector<8x8xf32> to vector<8x8xbf16>
    %cst_272 = arith.constant dense<0.000000e+00> : vector<8x8xf32>
    %827 = tpu.matmul %826, %810, %cst_272 {dimension_numbers = #tpu.dot_dimension_numbers<[1], [0], [0], [1], [0, 0, 1, 1], [], []>} : vector<8x8xbf16>, vector<8x8xbf16>, vector<8x8xf32> -> vector<8x8xf32>
    %828 = arith.truncf %827 : vector<8x8xf32> to vector<8x8xbf16>
    %829 = vector.extract_strided_slice %721 {offsets = [24, 0], sizes = [8, 32], strides = [1, 1]} : vector<32x32xbf16> to vector<8x32xbf16>
    %cst_273 = arith.constant dense<0.000000e+00> : vector<8x32xf32>
    %830 = tpu.matmul %828, %829, %cst_273 {dimension_numbers = #tpu.dot_dimension_numbers<[1], [0], [0], [1], [0, 0, 1, 1], [], []>} : vector<8x8xbf16>, vector<8x32xbf16>, vector<8x32xf32> -> vector<8x32xf32>
    %831 = arith.addf %804, %830 : vector<8x32xf32>
    %832 = vector.extract_strided_slice %717 {offsets = [8, 0], sizes = [8, 32], strides = [1, 1]} : vector<16x32xf32> to vector<8x32xf32>
    %833 = vector.extract_strided_slice %718 {offsets = [8, 0], sizes = [8, 32], strides = [1, 1]} : vector<16x32xf32> to vector<8x32xf32>
    %834 = vector.extract_strided_slice %719 {offsets = [8, 0], sizes = [8, 32], strides = [1, 1]} : vector<16x32xf32> to vector<8x32xf32>
    %835 = vector.extract_strided_slice %832 {offsets = [0, 0], sizes = [8, 8], strides = [1, 1]} : vector<8x32xf32> to vector<8x8xf32>
    %836 = arith.truncf %835 : vector<8x8xf32> to vector<8x8xbf16>
    %837 = vector.extract_strided_slice %833 {offsets = [0, 0], sizes = [8, 8], strides = [1, 1]} : vector<8x32xf32> to vector<8x8xf32>
    %838 = arith.truncf %837 : vector<8x8xf32> to vector<8x8xbf16>
    %839 = vector.extract_strided_slice %834 {offsets = [0, 0], sizes = [8, 8], strides = [1, 1]} : vector<8x32xf32> to vector<8x8xf32>
    %840 = arith.truncf %839 : vector<8x8xf32> to vector<8x8xbf16>
    %cst_274 = arith.constant dense<0.000000e+00> : vector<8x8xf32>
    %841 = tpu.matmul %836, %838, %cst_274 {dimension_numbers = #tpu.dot_dimension_numbers<[1], [1], [0], [0], [0, 0, 1, 0], [], []>} : vector<8x8xbf16>, vector<8x8xbf16>, vector<8x8xf32> -> vector<8x8xf32>
    %cst_275 = arith.constant 0.353553385 : f32
    %842 = vector.broadcast %cst_275 : f32 to vector<8x8xf32>
    %843 = arith.mulf %841, %842 : vector<8x8xf32>
    %cst_276 = arith.constant -1.000000e+09 : f32
    %844 = vector.broadcast %cst_276 : f32 to vector<8x8xf32>
    %845 = arith.select %10, %843, %844 : vector<8x8xi1>, vector<8x8xf32>
    %cst_277 = arith.constant dense<0xFF800000> : vector<8xf32>
    %846 = vector.multi_reduction <maximumf>, %845, %cst_277 [1] : vector<8x8xf32> to vector<8xf32>
    %847 = vector.shape_cast %846 : vector<8xf32> to vector<8x1xf32>
    %848 = vector.broadcast %847 : vector<8x1xf32> to vector<8x8xf32>
    %849 = arith.subf %845, %848 : vector<8x8xf32>
    %850 = math.exp %849 : vector<8x8xf32>
    %cst_278 = arith.constant dense<0.000000e+00> : vector<8xf32>
    %851 = vector.multi_reduction <add>, %850, %cst_278 [1] : vector<8x8xf32> to vector<8xf32>
    %852 = vector.shape_cast %851 : vector<8xf32> to vector<8x1xf32>
    %853 = tpu.reciprocal %852 {approx = true} : vector<8x1xf32> -> vector<8x1xf32>
    %854 = vector.broadcast %853 : vector<8x1xf32> to vector<8x8xf32>
    %855 = arith.mulf %850, %854 : vector<8x8xf32>
    %856 = arith.truncf %855 : vector<8x8xf32> to vector<8x8xbf16>
    %cst_279 = arith.constant dense<0.000000e+00> : vector<8x8xf32>
    %857 = tpu.matmul %856, %840, %cst_279 {dimension_numbers = #tpu.dot_dimension_numbers<[1], [0], [0], [1], [0, 0, 1, 1], [], []>} : vector<8x8xbf16>, vector<8x8xbf16>, vector<8x8xf32> -> vector<8x8xf32>
    %858 = arith.truncf %857 : vector<8x8xf32> to vector<8x8xbf16>
    %859 = vector.extract_strided_slice %721 {offsets = [0, 0], sizes = [8, 32], strides = [1, 1]} : vector<32x32xbf16> to vector<8x32xbf16>
    %cst_280 = arith.constant dense<0.000000e+00> : vector<8x32xf32>
    %860 = tpu.matmul %858, %859, %cst_280 {dimension_numbers = #tpu.dot_dimension_numbers<[1], [0], [0], [1], [0, 0, 1, 1], [], []>} : vector<8x8xbf16>, vector<8x32xbf16>, vector<8x32xf32> -> vector<8x32xf32>
    %861 = vector.extract_strided_slice %832 {offsets = [0, 8], sizes = [8, 8], strides = [1, 1]} : vector<8x32xf32> to vector<8x8xf32>
    %862 = arith.truncf %861 : vector<8x8xf32> to vector<8x8xbf16>
    %863 = vector.extract_strided_slice %833 {offsets = [0, 8], sizes = [8, 8], strides = [1, 1]} : vector<8x32xf32> to vector<8x8xf32>
    %864 = arith.truncf %863 : vector<8x8xf32> to vector<8x8xbf16>
    %865 = vector.extract_strided_slice %834 {offsets = [0, 8], sizes = [8, 8], strides = [1, 1]} : vector<8x32xf32> to vector<8x8xf32>
    %866 = arith.truncf %865 : vector<8x8xf32> to vector<8x8xbf16>
    %cst_281 = arith.constant dense<0.000000e+00> : vector<8x8xf32>
    %867 = tpu.matmul %862, %864, %cst_281 {dimension_numbers = #tpu.dot_dimension_numbers<[1], [1], [0], [0], [0, 0, 1, 0], [], []>} : vector<8x8xbf16>, vector<8x8xbf16>, vector<8x8xf32> -> vector<8x8xf32>
    %cst_282 = arith.constant 0.353553385 : f32
    %868 = vector.broadcast %cst_282 : f32 to vector<8x8xf32>
    %869 = arith.mulf %867, %868 : vector<8x8xf32>
    %cst_283 = arith.constant -1.000000e+09 : f32
    %870 = vector.broadcast %cst_283 : f32 to vector<8x8xf32>
    %871 = arith.select %10, %869, %870 : vector<8x8xi1>, vector<8x8xf32>
    %cst_284 = arith.constant dense<0xFF800000> : vector<8xf32>
    %872 = vector.multi_reduction <maximumf>, %871, %cst_284 [1] : vector<8x8xf32> to vector<8xf32>
    %873 = vector.shape_cast %872 : vector<8xf32> to vector<8x1xf32>
    %874 = vector.broadcast %873 : vector<8x1xf32> to vector<8x8xf32>
    %875 = arith.subf %871, %874 : vector<8x8xf32>
    %876 = math.exp %875 : vector<8x8xf32>
    %cst_285 = arith.constant dense<0.000000e+00> : vector<8xf32>
    %877 = vector.multi_reduction <add>, %876, %cst_285 [1] : vector<8x8xf32> to vector<8xf32>
    %878 = vector.shape_cast %877 : vector<8xf32> to vector<8x1xf32>
    %879 = tpu.reciprocal %878 {approx = true} : vector<8x1xf32> -> vector<8x1xf32>
    %880 = vector.broadcast %879 : vector<8x1xf32> to vector<8x8xf32>
    %881 = arith.mulf %876, %880 : vector<8x8xf32>
    %882 = arith.truncf %881 : vector<8x8xf32> to vector<8x8xbf16>
    %cst_286 = arith.constant dense<0.000000e+00> : vector<8x8xf32>
    %883 = tpu.matmul %882, %866, %cst_286 {dimension_numbers = #tpu.dot_dimension_numbers<[1], [0], [0], [1], [0, 0, 1, 1], [], []>} : vector<8x8xbf16>, vector<8x8xbf16>, vector<8x8xf32> -> vector<8x8xf32>
    %884 = arith.truncf %883 : vector<8x8xf32> to vector<8x8xbf16>
    %885 = vector.extract_strided_slice %721 {offsets = [8, 0], sizes = [8, 32], strides = [1, 1]} : vector<32x32xbf16> to vector<8x32xbf16>
    %cst_287 = arith.constant dense<0.000000e+00> : vector<8x32xf32>
    %886 = tpu.matmul %884, %885, %cst_287 {dimension_numbers = #tpu.dot_dimension_numbers<[1], [0], [0], [1], [0, 0, 1, 1], [], []>} : vector<8x8xbf16>, vector<8x32xbf16>, vector<8x32xf32> -> vector<8x32xf32>
    %887 = arith.addf %860, %886 : vector<8x32xf32>
    %888 = vector.extract_strided_slice %832 {offsets = [0, 16], sizes = [8, 8], strides = [1, 1]} : vector<8x32xf32> to vector<8x8xf32>
    %889 = arith.truncf %888 : vector<8x8xf32> to vector<8x8xbf16>
    %890 = vector.extract_strided_slice %833 {offsets = [0, 16], sizes = [8, 8], strides = [1, 1]} : vector<8x32xf32> to vector<8x8xf32>
    %891 = arith.truncf %890 : vector<8x8xf32> to vector<8x8xbf16>
    %892 = vector.extract_strided_slice %834 {offsets = [0, 16], sizes = [8, 8], strides = [1, 1]} : vector<8x32xf32> to vector<8x8xf32>
    %893 = arith.truncf %892 : vector<8x8xf32> to vector<8x8xbf16>
    %cst_288 = arith.constant dense<0.000000e+00> : vector<8x8xf32>
    %894 = tpu.matmul %889, %891, %cst_288 {dimension_numbers = #tpu.dot_dimension_numbers<[1], [1], [0], [0], [0, 0, 1, 0], [], []>} : vector<8x8xbf16>, vector<8x8xbf16>, vector<8x8xf32> -> vector<8x8xf32>
    %cst_289 = arith.constant 0.353553385 : f32
    %895 = vector.broadcast %cst_289 : f32 to vector<8x8xf32>
    %896 = arith.mulf %894, %895 : vector<8x8xf32>
    %cst_290 = arith.constant -1.000000e+09 : f32
    %897 = vector.broadcast %cst_290 : f32 to vector<8x8xf32>
    %898 = arith.select %10, %896, %897 : vector<8x8xi1>, vector<8x8xf32>
    %cst_291 = arith.constant dense<0xFF800000> : vector<8xf32>
    %899 = vector.multi_reduction <maximumf>, %898, %cst_291 [1] : vector<8x8xf32> to vector<8xf32>
    %900 = vector.shape_cast %899 : vector<8xf32> to vector<8x1xf32>
    %901 = vector.broadcast %900 : vector<8x1xf32> to vector<8x8xf32>
    %902 = arith.subf %898, %901 : vector<8x8xf32>
    %903 = math.exp %902 : vector<8x8xf32>
    %cst_292 = arith.constant dense<0.000000e+00> : vector<8xf32>
    %904 = vector.multi_reduction <add>, %903, %cst_292 [1] : vector<8x8xf32> to vector<8xf32>
    %905 = vector.shape_cast %904 : vector<8xf32> to vector<8x1xf32>
    %906 = tpu.reciprocal %905 {approx = true} : vector<8x1xf32> -> vector<8x1xf32>
    %907 = vector.broadcast %906 : vector<8x1xf32> to vector<8x8xf32>
    %908 = arith.mulf %903, %907 : vector<8x8xf32>
    %909 = arith.truncf %908 : vector<8x8xf32> to vector<8x8xbf16>
    %cst_293 = arith.constant dense<0.000000e+00> : vector<8x8xf32>
    %910 = tpu.matmul %909, %893, %cst_293 {dimension_numbers = #tpu.dot_dimension_numbers<[1], [0], [0], [1], [0, 0, 1, 1], [], []>} : vector<8x8xbf16>, vector<8x8xbf16>, vector<8x8xf32> -> vector<8x8xf32>
    %911 = arith.truncf %910 : vector<8x8xf32> to vector<8x8xbf16>
    %912 = vector.extract_strided_slice %721 {offsets = [16, 0], sizes = [8, 32], strides = [1, 1]} : vector<32x32xbf16> to vector<8x32xbf16>
    %cst_294 = arith.constant dense<0.000000e+00> : vector<8x32xf32>
    %913 = tpu.matmul %911, %912, %cst_294 {dimension_numbers = #tpu.dot_dimension_numbers<[1], [0], [0], [1], [0, 0, 1, 1], [], []>} : vector<8x8xbf16>, vector<8x32xbf16>, vector<8x32xf32> -> vector<8x32xf32>
    %914 = arith.addf %887, %913 : vector<8x32xf32>
    %915 = vector.extract_strided_slice %832 {offsets = [0, 24], sizes = [8, 8], strides = [1, 1]} : vector<8x32xf32> to vector<8x8xf32>
    %916 = arith.truncf %915 : vector<8x8xf32> to vector<8x8xbf16>
    %917 = vector.extract_strided_slice %833 {offsets = [0, 24], sizes = [8, 8], strides = [1, 1]} : vector<8x32xf32> to vector<8x8xf32>
    %918 = arith.truncf %917 : vector<8x8xf32> to vector<8x8xbf16>
    %919 = vector.extract_strided_slice %834 {offsets = [0, 24], sizes = [8, 8], strides = [1, 1]} : vector<8x32xf32> to vector<8x8xf32>
    %920 = arith.truncf %919 : vector<8x8xf32> to vector<8x8xbf16>
    %cst_295 = arith.constant dense<0.000000e+00> : vector<8x8xf32>
    %921 = tpu.matmul %916, %918, %cst_295 {dimension_numbers = #tpu.dot_dimension_numbers<[1], [1], [0], [0], [0, 0, 1, 0], [], []>} : vector<8x8xbf16>, vector<8x8xbf16>, vector<8x8xf32> -> vector<8x8xf32>
    %cst_296 = arith.constant 0.353553385 : f32
    %922 = vector.broadcast %cst_296 : f32 to vector<8x8xf32>
    %923 = arith.mulf %921, %922 : vector<8x8xf32>
    %cst_297 = arith.constant -1.000000e+09 : f32
    %924 = vector.broadcast %cst_297 : f32 to vector<8x8xf32>
    %925 = arith.select %10, %923, %924 : vector<8x8xi1>, vector<8x8xf32>
    %cst_298 = arith.constant dense<0xFF800000> : vector<8xf32>
    %926 = vector.multi_reduction <maximumf>, %925, %cst_298 [1] : vector<8x8xf32> to vector<8xf32>
    %927 = vector.shape_cast %926 : vector<8xf32> to vector<8x1xf32>
    %928 = vector.broadcast %927 : vector<8x1xf32> to vector<8x8xf32>
    %929 = arith.subf %925, %928 : vector<8x8xf32>
    %930 = math.exp %929 : vector<8x8xf32>
    %cst_299 = arith.constant dense<0.000000e+00> : vector<8xf32>
    %931 = vector.multi_reduction <add>, %930, %cst_299 [1] : vector<8x8xf32> to vector<8xf32>
    %932 = vector.shape_cast %931 : vector<8xf32> to vector<8x1xf32>
    %933 = tpu.reciprocal %932 {approx = true} : vector<8x1xf32> -> vector<8x1xf32>
    %934 = vector.broadcast %933 : vector<8x1xf32> to vector<8x8xf32>
    %935 = arith.mulf %930, %934 : vector<8x8xf32>
    %936 = arith.truncf %935 : vector<8x8xf32> to vector<8x8xbf16>
    %cst_300 = arith.constant dense<0.000000e+00> : vector<8x8xf32>
    %937 = tpu.matmul %936, %920, %cst_300 {dimension_numbers = #tpu.dot_dimension_numbers<[1], [0], [0], [1], [0, 0, 1, 1], [], []>} : vector<8x8xbf16>, vector<8x8xbf16>, vector<8x8xf32> -> vector<8x8xf32>
    %938 = arith.truncf %937 : vector<8x8xf32> to vector<8x8xbf16>
    %939 = vector.extract_strided_slice %721 {offsets = [24, 0], sizes = [8, 32], strides = [1, 1]} : vector<32x32xbf16> to vector<8x32xbf16>
    %cst_301 = arith.constant dense<0.000000e+00> : vector<8x32xf32>
    %940 = tpu.matmul %938, %939, %cst_301 {dimension_numbers = #tpu.dot_dimension_numbers<[1], [0], [0], [1], [0, 0, 1, 1], [], []>} : vector<8x8xbf16>, vector<8x32xbf16>, vector<8x32xf32> -> vector<8x32xf32>
    %941 = arith.addf %914, %940 : vector<8x32xf32>
    %942 = tpu.concatenate %831, %941 in 0 : vector<8x32xf32>, vector<8x32xf32> -> vector<16x32xf32>
    %943 = arith.addf %683, %942 : vector<16x32xf32>
    %c0_302 = arith.constant 0 : index
    %c0_303 = arith.constant 0 : index
    %c0_304 = arith.constant 0 : index
    %944 = vector.load %arg22[%c0_302, %c0_303, %c0_304] : memref<2x1x32xf32, #tpu.memory_space<vmem>>, vector<1x1x32xf32>
    %945 = vector.shape_cast %944 : vector<1x1x32xf32> to vector<1x32xf32>
    %946 = vector.broadcast %945 : vector<1x32xf32> to vector<16x32xf32>
    %947 = arith.addf %943, %946 : vector<16x32xf32>
    %c0_305 = arith.constant 0 : index
    %c0_306 = arith.constant 0 : index
    %c0_307 = arith.constant 0 : index
    %948 = vector.load %arg23[%c0_305, %c0_306, %c0_307] : memref<2x1x32xf32, #tpu.memory_space<vmem>>, vector<1x1x32xf32>
    %949 = vector.shape_cast %948 : vector<1x1x32xf32> to vector<1x32xf32>
    %c0_308 = arith.constant 0 : index
    %c0_309 = arith.constant 0 : index
    %c0_310 = arith.constant 0 : index
    %950 = vector.load %arg24[%c0_308, %c0_309, %c0_310] : memref<2x1x32xf32, #tpu.memory_space<vmem>>, vector<1x1x32xf32>
    %951 = vector.shape_cast %950 : vector<1x1x32xf32> to vector<1x32xf32>
    %cst_311 = arith.constant dense<0.000000e+00> : vector<16xf32>
    %952 = vector.multi_reduction <add>, %947, %cst_311 [1] : vector<16x32xf32> to vector<16xf32>
    %953 = vector.shape_cast %952 : vector<16xf32> to vector<16x1xf32>
    %cst_312 = arith.constant 3.200000e+01 : f32
    %954 = vector.broadcast %cst_312 : f32 to vector<16x1xf32>
    %955 = arith.divf %953, %954 : vector<16x1xf32>
    %956 = vector.broadcast %955 : vector<16x1xf32> to vector<16x32xf32>
    %957 = arith.subf %947, %956 : vector<16x32xf32>
    %958 = arith.mulf %957, %957 : vector<16x32xf32>
    %cst_313 = arith.constant dense<0.000000e+00> : vector<16xf32>
    %959 = vector.multi_reduction <add>, %958, %cst_313 [1] : vector<16x32xf32> to vector<16xf32>
    %960 = vector.shape_cast %959 : vector<16xf32> to vector<16x1xf32>
    %cst_314 = arith.constant 0.0322580636 : f32
    %961 = vector.broadcast %cst_314 : f32 to vector<16x1xf32>
    %962 = arith.mulf %960, %961 : vector<16x1xf32>
    %963 = math.sqrt %962 : vector<16x1xf32>
    %cst_315 = arith.constant 9.99999997E-7 : f32
    %964 = vector.broadcast %cst_315 : f32 to vector<16x1xf32>
    %965 = arith.addf %963, %964 : vector<16x1xf32>
    %966 = tpu.reciprocal %965 {approx = true} : vector<16x1xf32> -> vector<16x1xf32>
    %967 = vector.broadcast %966 : vector<16x1xf32> to vector<16x32xf32>
    %968 = arith.mulf %957, %967 : vector<16x32xf32>
    %969 = vector.broadcast %949 : vector<1x32xf32> to vector<16x32xf32>
    %970 = arith.mulf %969, %968 : vector<16x32xf32>
    %971 = vector.broadcast %951 : vector<1x32xf32> to vector<16x32xf32>
    %972 = arith.addf %970, %971 : vector<16x32xf32>
    %c0_316 = arith.constant 0 : index
    %c0_317 = arith.constant 0 : index
    %c0_318 = arith.constant 0 : index
    %973 = vector.load %arg25[%c0_316, %c0_317, %c0_318] : memref<2x32x32xbf16, #tpu.memory_space<vmem>>, vector<1x32x32xbf16>
    %974 = vector.shape_cast %973 : vector<1x32x32xbf16> to vector<32x32xbf16>
    %c0_319 = arith.constant 0 : index
    %c0_320 = arith.constant 0 : index
    %c0_321 = arith.constant 0 : index
    %975 = vector.load %arg26[%c0_319, %c0_320, %c0_321] : memref<2x1x32xf32, #tpu.memory_space<vmem>>, vector<1x1x32xf32>
    %976 = vector.shape_cast %975 : vector<1x1x32xf32> to vector<1x32xf32>
    %977 = arith.truncf %972 : vector<16x32xf32> to vector<16x32xbf16>
    %cst_322 = arith.constant dense<0.000000e+00> : vector<16x32xf32>
    %978 = tpu.matmul %977, %974, %cst_322 {dimension_numbers = #tpu.dot_dimension_numbers<[1], [0], [0], [1], [0, 0, 1, 1], [], []>} : vector<16x32xbf16>, vector<32x32xbf16>, vector<16x32xf32> -> vector<16x32xf32>
    %979 = vector.broadcast %976 : vector<1x32xf32> to vector<16x32xf32>
    %980 = arith.addf %978, %979 : vector<16x32xf32>
    %c0_323 = arith.constant 0 : index
    %c0_324 = arith.constant 0 : index
    %c0_325 = arith.constant 0 : index
    %981 = vector.load %arg27[%c0_323, %c0_324, %c0_325] : memref<2x32x64xbf16, #tpu.memory_space<vmem>>, vector<1x32x64xbf16>
    %982 = vector.shape_cast %981 : vector<1x32x64xbf16> to vector<32x64xbf16>
    %c0_326 = arith.constant 0 : index
    %c0_327 = arith.constant 0 : index
    %c0_328 = arith.constant 0 : index
    %983 = vector.load %arg28[%c0_326, %c0_327, %c0_328] : memref<2x1x64xf32, #tpu.memory_space<vmem>>, vector<1x1x64xf32>
    %984 = vector.shape_cast %983 : vector<1x1x64xf32> to vector<1x64xf32>
    %985 = arith.truncf %682 : vector<16x32xf32> to vector<16x32xbf16>
    %cst_329 = arith.constant dense<0.000000e+00> : vector<16x64xf32>
    %986 = tpu.matmul %985, %982, %cst_329 {dimension_numbers = #tpu.dot_dimension_numbers<[1], [0], [0], [1], [0, 0, 1, 1], [], []>} : vector<16x32xbf16>, vector<32x64xbf16>, vector<16x64xf32> -> vector<16x64xf32>
    %987 = vector.broadcast %984 : vector<1x64xf32> to vector<16x64xf32>
    %988 = arith.addf %986, %987 : vector<16x64xf32>
    %989 = vector.extract_strided_slice %988 {offsets = [0, 0], sizes = [16, 32], strides = [1, 1]} : vector<16x64xf32> to vector<16x32xf32>
    %990 = vector.extract_strided_slice %988 {offsets = [0, 32], sizes = [16, 32], strides = [1, 1]} : vector<16x64xf32> to vector<16x32xf32>
    %c0_330 = arith.constant 0 : index
    %c0_331 = arith.constant 0 : index
    %c0_332 = arith.constant 0 : index
    %991 = vector.load %arg29[%c0_330, %c0_331, %c0_332] : memref<2x32x32xbf16, #tpu.memory_space<vmem>>, vector<1x32x32xbf16>
    %992 = vector.shape_cast %991 : vector<1x32x32xbf16> to vector<32x32xbf16>
    %993 = vector.extract_strided_slice %980 {offsets = [0, 0], sizes = [8, 32], strides = [1, 1]} : vector<16x32xf32> to vector<8x32xf32>
    %994 = vector.extract_strided_slice %989 {offsets = [0, 0], sizes = [8, 32], strides = [1, 1]} : vector<16x32xf32> to vector<8x32xf32>
    %995 = vector.extract_strided_slice %990 {offsets = [0, 0], sizes = [8, 32], strides = [1, 1]} : vector<16x32xf32> to vector<8x32xf32>
    %996 = vector.extract_strided_slice %993 {offsets = [0, 0], sizes = [8, 8], strides = [1, 1]} : vector<8x32xf32> to vector<8x8xf32>
    %997 = arith.truncf %996 : vector<8x8xf32> to vector<8x8xbf16>
    %998 = vector.extract_strided_slice %994 {offsets = [0, 0], sizes = [8, 8], strides = [1, 1]} : vector<8x32xf32> to vector<8x8xf32>
    %999 = arith.truncf %998 : vector<8x8xf32> to vector<8x8xbf16>
    %1000 = vector.extract_strided_slice %995 {offsets = [0, 0], sizes = [8, 8], strides = [1, 1]} : vector<8x32xf32> to vector<8x8xf32>
    %1001 = arith.truncf %1000 : vector<8x8xf32> to vector<8x8xbf16>
    %cst_333 = arith.constant dense<0.000000e+00> : vector<8x8xf32>
    %1002 = tpu.matmul %997, %999, %cst_333 {dimension_numbers = #tpu.dot_dimension_numbers<[1], [1], [0], [0], [0, 0, 1, 0], [], []>} : vector<8x8xbf16>, vector<8x8xbf16>, vector<8x8xf32> -> vector<8x8xf32>
    %cst_334 = arith.constant 0.353553385 : f32
    %1003 = vector.broadcast %cst_334 : f32 to vector<8x8xf32>
    %1004 = arith.mulf %1002, %1003 : vector<8x8xf32>
    %cst_335 = arith.constant -1.000000e+09 : f32
    %1005 = vector.shape_cast %4 : vector<1x8xi1> to vector<1x8xi1>
    %1006 = vector.broadcast %1005 : vector<1x8xi1> to vector<8x8xi1>
    %1007 = vector.broadcast %cst_335 : f32 to vector<8x8xf32>
    %1008 = arith.select %1006, %1004, %1007 : vector<8x8xi1>, vector<8x8xf32>
    %cst_336 = arith.constant dense<0xFF800000> : vector<8xf32>
    %1009 = vector.multi_reduction <maximumf>, %1008, %cst_336 [1] : vector<8x8xf32> to vector<8xf32>
    %1010 = vector.shape_cast %1009 : vector<8xf32> to vector<8x1xf32>
    %1011 = vector.broadcast %1010 : vector<8x1xf32> to vector<8x8xf32>
    %1012 = arith.subf %1008, %1011 : vector<8x8xf32>
    %1013 = math.exp %1012 : vector<8x8xf32>
    %cst_337 = arith.constant dense<0.000000e+00> : vector<8xf32>
    %1014 = vector.multi_reduction <add>, %1013, %cst_337 [1] : vector<8x8xf32> to vector<8xf32>
    %1015 = vector.shape_cast %1014 : vector<8xf32> to vector<8x1xf32>
    %1016 = tpu.reciprocal %1015 {approx = true} : vector<8x1xf32> -> vector<8x1xf32>
    %1017 = vector.broadcast %1016 : vector<8x1xf32> to vector<8x8xf32>
    %1018 = arith.mulf %1013, %1017 : vector<8x8xf32>
    %1019 = arith.truncf %1018 : vector<8x8xf32> to vector<8x8xbf16>
    %cst_338 = arith.constant dense<0.000000e+00> : vector<8x8xf32>
    %1020 = tpu.matmul %1019, %1001, %cst_338 {dimension_numbers = #tpu.dot_dimension_numbers<[1], [0], [0], [1], [0, 0, 1, 1], [], []>} : vector<8x8xbf16>, vector<8x8xbf16>, vector<8x8xf32> -> vector<8x8xf32>
    %1021 = arith.truncf %1020 : vector<8x8xf32> to vector<8x8xbf16>
    %1022 = vector.extract_strided_slice %992 {offsets = [0, 0], sizes = [8, 32], strides = [1, 1]} : vector<32x32xbf16> to vector<8x32xbf16>
    %cst_339 = arith.constant dense<0.000000e+00> : vector<8x32xf32>
    %1023 = tpu.matmul %1021, %1022, %cst_339 {dimension_numbers = #tpu.dot_dimension_numbers<[1], [0], [0], [1], [0, 0, 1, 1], [], []>} : vector<8x8xbf16>, vector<8x32xbf16>, vector<8x32xf32> -> vector<8x32xf32>
    %1024 = vector.extract_strided_slice %993 {offsets = [0, 8], sizes = [8, 8], strides = [1, 1]} : vector<8x32xf32> to vector<8x8xf32>
    %1025 = arith.truncf %1024 : vector<8x8xf32> to vector<8x8xbf16>
    %1026 = vector.extract_strided_slice %994 {offsets = [0, 8], sizes = [8, 8], strides = [1, 1]} : vector<8x32xf32> to vector<8x8xf32>
    %1027 = arith.truncf %1026 : vector<8x8xf32> to vector<8x8xbf16>
    %1028 = vector.extract_strided_slice %995 {offsets = [0, 8], sizes = [8, 8], strides = [1, 1]} : vector<8x32xf32> to vector<8x8xf32>
    %1029 = arith.truncf %1028 : vector<8x8xf32> to vector<8x8xbf16>
    %cst_340 = arith.constant dense<0.000000e+00> : vector<8x8xf32>
    %1030 = tpu.matmul %1025, %1027, %cst_340 {dimension_numbers = #tpu.dot_dimension_numbers<[1], [1], [0], [0], [0, 0, 1, 0], [], []>} : vector<8x8xbf16>, vector<8x8xbf16>, vector<8x8xf32> -> vector<8x8xf32>
    %cst_341 = arith.constant 0.353553385 : f32
    %1031 = vector.broadcast %cst_341 : f32 to vector<8x8xf32>
    %1032 = arith.mulf %1030, %1031 : vector<8x8xf32>
    %cst_342 = arith.constant -1.000000e+09 : f32
    %1033 = vector.shape_cast %4 : vector<1x8xi1> to vector<1x8xi1>
    %1034 = vector.broadcast %1033 : vector<1x8xi1> to vector<8x8xi1>
    %1035 = vector.broadcast %cst_342 : f32 to vector<8x8xf32>
    %1036 = arith.select %1034, %1032, %1035 : vector<8x8xi1>, vector<8x8xf32>
    %cst_343 = arith.constant dense<0xFF800000> : vector<8xf32>
    %1037 = vector.multi_reduction <maximumf>, %1036, %cst_343 [1] : vector<8x8xf32> to vector<8xf32>
    %1038 = vector.shape_cast %1037 : vector<8xf32> to vector<8x1xf32>
    %1039 = vector.broadcast %1038 : vector<8x1xf32> to vector<8x8xf32>
    %1040 = arith.subf %1036, %1039 : vector<8x8xf32>
    %1041 = math.exp %1040 : vector<8x8xf32>
    %cst_344 = arith.constant dense<0.000000e+00> : vector<8xf32>
    %1042 = vector.multi_reduction <add>, %1041, %cst_344 [1] : vector<8x8xf32> to vector<8xf32>
    %1043 = vector.shape_cast %1042 : vector<8xf32> to vector<8x1xf32>
    %1044 = tpu.reciprocal %1043 {approx = true} : vector<8x1xf32> -> vector<8x1xf32>
    %1045 = vector.broadcast %1044 : vector<8x1xf32> to vector<8x8xf32>
    %1046 = arith.mulf %1041, %1045 : vector<8x8xf32>
    %1047 = arith.truncf %1046 : vector<8x8xf32> to vector<8x8xbf16>
    %cst_345 = arith.constant dense<0.000000e+00> : vector<8x8xf32>
    %1048 = tpu.matmul %1047, %1029, %cst_345 {dimension_numbers = #tpu.dot_dimension_numbers<[1], [0], [0], [1], [0, 0, 1, 1], [], []>} : vector<8x8xbf16>, vector<8x8xbf16>, vector<8x8xf32> -> vector<8x8xf32>
    %1049 = arith.truncf %1048 : vector<8x8xf32> to vector<8x8xbf16>
    %1050 = vector.extract_strided_slice %992 {offsets = [8, 0], sizes = [8, 32], strides = [1, 1]} : vector<32x32xbf16> to vector<8x32xbf16>
    %cst_346 = arith.constant dense<0.000000e+00> : vector<8x32xf32>
    %1051 = tpu.matmul %1049, %1050, %cst_346 {dimension_numbers = #tpu.dot_dimension_numbers<[1], [0], [0], [1], [0, 0, 1, 1], [], []>} : vector<8x8xbf16>, vector<8x32xbf16>, vector<8x32xf32> -> vector<8x32xf32>
    %1052 = arith.addf %1023, %1051 : vector<8x32xf32>
    %1053 = vector.extract_strided_slice %993 {offsets = [0, 16], sizes = [8, 8], strides = [1, 1]} : vector<8x32xf32> to vector<8x8xf32>
    %1054 = arith.truncf %1053 : vector<8x8xf32> to vector<8x8xbf16>
    %1055 = vector.extract_strided_slice %994 {offsets = [0, 16], sizes = [8, 8], strides = [1, 1]} : vector<8x32xf32> to vector<8x8xf32>
    %1056 = arith.truncf %1055 : vector<8x8xf32> to vector<8x8xbf16>
    %1057 = vector.extract_strided_slice %995 {offsets = [0, 16], sizes = [8, 8], strides = [1, 1]} : vector<8x32xf32> to vector<8x8xf32>
    %1058 = arith.truncf %1057 : vector<8x8xf32> to vector<8x8xbf16>
    %cst_347 = arith.constant dense<0.000000e+00> : vector<8x8xf32>
    %1059 = tpu.matmul %1054, %1056, %cst_347 {dimension_numbers = #tpu.dot_dimension_numbers<[1], [1], [0], [0], [0, 0, 1, 0], [], []>} : vector<8x8xbf16>, vector<8x8xbf16>, vector<8x8xf32> -> vector<8x8xf32>
    %cst_348 = arith.constant 0.353553385 : f32
    %1060 = vector.broadcast %cst_348 : f32 to vector<8x8xf32>
    %1061 = arith.mulf %1059, %1060 : vector<8x8xf32>
    %cst_349 = arith.constant -1.000000e+09 : f32
    %1062 = vector.shape_cast %4 : vector<1x8xi1> to vector<1x8xi1>
    %1063 = vector.broadcast %1062 : vector<1x8xi1> to vector<8x8xi1>
    %1064 = vector.broadcast %cst_349 : f32 to vector<8x8xf32>
    %1065 = arith.select %1063, %1061, %1064 : vector<8x8xi1>, vector<8x8xf32>
    %cst_350 = arith.constant dense<0xFF800000> : vector<8xf32>
    %1066 = vector.multi_reduction <maximumf>, %1065, %cst_350 [1] : vector<8x8xf32> to vector<8xf32>
    %1067 = vector.shape_cast %1066 : vector<8xf32> to vector<8x1xf32>
    %1068 = vector.broadcast %1067 : vector<8x1xf32> to vector<8x8xf32>
    %1069 = arith.subf %1065, %1068 : vector<8x8xf32>
    %1070 = math.exp %1069 : vector<8x8xf32>
    %cst_351 = arith.constant dense<0.000000e+00> : vector<8xf32>
    %1071 = vector.multi_reduction <add>, %1070, %cst_351 [1] : vector<8x8xf32> to vector<8xf32>
    %1072 = vector.shape_cast %1071 : vector<8xf32> to vector<8x1xf32>
    %1073 = tpu.reciprocal %1072 {approx = true} : vector<8x1xf32> -> vector<8x1xf32>
    %1074 = vector.broadcast %1073 : vector<8x1xf32> to vector<8x8xf32>
    %1075 = arith.mulf %1070, %1074 : vector<8x8xf32>
    %1076 = arith.truncf %1075 : vector<8x8xf32> to vector<8x8xbf16>
    %cst_352 = arith.constant dense<0.000000e+00> : vector<8x8xf32>
    %1077 = tpu.matmul %1076, %1058, %cst_352 {dimension_numbers = #tpu.dot_dimension_numbers<[1], [0], [0], [1], [0, 0, 1, 1], [], []>} : vector<8x8xbf16>, vector<8x8xbf16>, vector<8x8xf32> -> vector<8x8xf32>
    %1078 = arith.truncf %1077 : vector<8x8xf32> to vector<8x8xbf16>
    %1079 = vector.extract_strided_slice %992 {offsets = [16, 0], sizes = [8, 32], strides = [1, 1]} : vector<32x32xbf16> to vector<8x32xbf16>
    %cst_353 = arith.constant dense<0.000000e+00> : vector<8x32xf32>
    %1080 = tpu.matmul %1078, %1079, %cst_353 {dimension_numbers = #tpu.dot_dimension_numbers<[1], [0], [0], [1], [0, 0, 1, 1], [], []>} : vector<8x8xbf16>, vector<8x32xbf16>, vector<8x32xf32> -> vector<8x32xf32>
    %1081 = arith.addf %1052, %1080 : vector<8x32xf32>
    %1082 = vector.extract_strided_slice %993 {offsets = [0, 24], sizes = [8, 8], strides = [1, 1]} : vector<8x32xf32> to vector<8x8xf32>
    %1083 = arith.truncf %1082 : vector<8x8xf32> to vector<8x8xbf16>
    %1084 = vector.extract_strided_slice %994 {offsets = [0, 24], sizes = [8, 8], strides = [1, 1]} : vector<8x32xf32> to vector<8x8xf32>
    %1085 = arith.truncf %1084 : vector<8x8xf32> to vector<8x8xbf16>
    %1086 = vector.extract_strided_slice %995 {offsets = [0, 24], sizes = [8, 8], strides = [1, 1]} : vector<8x32xf32> to vector<8x8xf32>
    %1087 = arith.truncf %1086 : vector<8x8xf32> to vector<8x8xbf16>
    %cst_354 = arith.constant dense<0.000000e+00> : vector<8x8xf32>
    %1088 = tpu.matmul %1083, %1085, %cst_354 {dimension_numbers = #tpu.dot_dimension_numbers<[1], [1], [0], [0], [0, 0, 1, 0], [], []>} : vector<8x8xbf16>, vector<8x8xbf16>, vector<8x8xf32> -> vector<8x8xf32>
    %cst_355 = arith.constant 0.353553385 : f32
    %1089 = vector.broadcast %cst_355 : f32 to vector<8x8xf32>
    %1090 = arith.mulf %1088, %1089 : vector<8x8xf32>
    %cst_356 = arith.constant -1.000000e+09 : f32
    %1091 = vector.shape_cast %4 : vector<1x8xi1> to vector<1x8xi1>
    %1092 = vector.broadcast %1091 : vector<1x8xi1> to vector<8x8xi1>
    %1093 = vector.broadcast %cst_356 : f32 to vector<8x8xf32>
    %1094 = arith.select %1092, %1090, %1093 : vector<8x8xi1>, vector<8x8xf32>
    %cst_357 = arith.constant dense<0xFF800000> : vector<8xf32>
    %1095 = vector.multi_reduction <maximumf>, %1094, %cst_357 [1] : vector<8x8xf32> to vector<8xf32>
    %1096 = vector.shape_cast %1095 : vector<8xf32> to vector<8x1xf32>
    %1097 = vector.broadcast %1096 : vector<8x1xf32> to vector<8x8xf32>
    %1098 = arith.subf %1094, %1097 : vector<8x8xf32>
    %1099 = math.exp %1098 : vector<8x8xf32>
    %cst_358 = arith.constant dense<0.000000e+00> : vector<8xf32>
    %1100 = vector.multi_reduction <add>, %1099, %cst_358 [1] : vector<8x8xf32> to vector<8xf32>
    %1101 = vector.shape_cast %1100 : vector<8xf32> to vector<8x1xf32>
    %1102 = tpu.reciprocal %1101 {approx = true} : vector<8x1xf32> -> vector<8x1xf32>
    %1103 = vector.broadcast %1102 : vector<8x1xf32> to vector<8x8xf32>
    %1104 = arith.mulf %1099, %1103 : vector<8x8xf32>
    %1105 = arith.truncf %1104 : vector<8x8xf32> to vector<8x8xbf16>
    %cst_359 = arith.constant dense<0.000000e+00> : vector<8x8xf32>
    %1106 = tpu.matmul %1105, %1087, %cst_359 {dimension_numbers = #tpu.dot_dimension_numbers<[1], [0], [0], [1], [0, 0, 1, 1], [], []>} : vector<8x8xbf16>, vector<8x8xbf16>, vector<8x8xf32> -> vector<8x8xf32>
    %1107 = arith.truncf %1106 : vector<8x8xf32> to vector<8x8xbf16>
    %1108 = vector.extract_strided_slice %992 {offsets = [24, 0], sizes = [8, 32], strides = [1, 1]} : vector<32x32xbf16> to vector<8x32xbf16>
    %cst_360 = arith.constant dense<0.000000e+00> : vector<8x32xf32>
    %1109 = tpu.matmul %1107, %1108, %cst_360 {dimension_numbers = #tpu.dot_dimension_numbers<[1], [0], [0], [1], [0, 0, 1, 1], [], []>} : vector<8x8xbf16>, vector<8x32xbf16>, vector<8x32xf32> -> vector<8x32xf32>
    %1110 = arith.addf %1081, %1109 : vector<8x32xf32>
    %1111 = vector.extract_strided_slice %980 {offsets = [8, 0], sizes = [8, 32], strides = [1, 1]} : vector<16x32xf32> to vector<8x32xf32>
    %1112 = vector.extract_strided_slice %989 {offsets = [8, 0], sizes = [8, 32], strides = [1, 1]} : vector<16x32xf32> to vector<8x32xf32>
    %1113 = vector.extract_strided_slice %990 {offsets = [8, 0], sizes = [8, 32], strides = [1, 1]} : vector<16x32xf32> to vector<8x32xf32>
    %1114 = vector.extract_strided_slice %1111 {offsets = [0, 0], sizes = [8, 8], strides = [1, 1]} : vector<8x32xf32> to vector<8x8xf32>
    %1115 = arith.truncf %1114 : vector<8x8xf32> to vector<8x8xbf16>
    %1116 = vector.extract_strided_slice %1112 {offsets = [0, 0], sizes = [8, 8], strides = [1, 1]} : vector<8x32xf32> to vector<8x8xf32>
    %1117 = arith.truncf %1116 : vector<8x8xf32> to vector<8x8xbf16>
    %1118 = vector.extract_strided_slice %1113 {offsets = [0, 0], sizes = [8, 8], strides = [1, 1]} : vector<8x32xf32> to vector<8x8xf32>
    %1119 = arith.truncf %1118 : vector<8x8xf32> to vector<8x8xbf16>
    %cst_361 = arith.constant dense<0.000000e+00> : vector<8x8xf32>
    %1120 = tpu.matmul %1115, %1117, %cst_361 {dimension_numbers = #tpu.dot_dimension_numbers<[1], [1], [0], [0], [0, 0, 1, 0], [], []>} : vector<8x8xbf16>, vector<8x8xbf16>, vector<8x8xf32> -> vector<8x8xf32>
    %cst_362 = arith.constant 0.353553385 : f32
    %1121 = vector.broadcast %cst_362 : f32 to vector<8x8xf32>
    %1122 = arith.mulf %1120, %1121 : vector<8x8xf32>
    %cst_363 = arith.constant -1.000000e+09 : f32
    %1123 = vector.shape_cast %7 : vector<1x8xi1> to vector<1x8xi1>
    %1124 = vector.broadcast %1123 : vector<1x8xi1> to vector<8x8xi1>
    %1125 = vector.broadcast %cst_363 : f32 to vector<8x8xf32>
    %1126 = arith.select %1124, %1122, %1125 : vector<8x8xi1>, vector<8x8xf32>
    %cst_364 = arith.constant dense<0xFF800000> : vector<8xf32>
    %1127 = vector.multi_reduction <maximumf>, %1126, %cst_364 [1] : vector<8x8xf32> to vector<8xf32>
    %1128 = vector.shape_cast %1127 : vector<8xf32> to vector<8x1xf32>
    %1129 = vector.broadcast %1128 : vector<8x1xf32> to vector<8x8xf32>
    %1130 = arith.subf %1126, %1129 : vector<8x8xf32>
    %1131 = math.exp %1130 : vector<8x8xf32>
    %cst_365 = arith.constant dense<0.000000e+00> : vector<8xf32>
    %1132 = vector.multi_reduction <add>, %1131, %cst_365 [1] : vector<8x8xf32> to vector<8xf32>
    %1133 = vector.shape_cast %1132 : vector<8xf32> to vector<8x1xf32>
    %1134 = tpu.reciprocal %1133 {approx = true} : vector<8x1xf32> -> vector<8x1xf32>
    %1135 = vector.broadcast %1134 : vector<8x1xf32> to vector<8x8xf32>
    %1136 = arith.mulf %1131, %1135 : vector<8x8xf32>
    %1137 = arith.truncf %1136 : vector<8x8xf32> to vector<8x8xbf16>
    %cst_366 = arith.constant dense<0.000000e+00> : vector<8x8xf32>
    %1138 = tpu.matmul %1137, %1119, %cst_366 {dimension_numbers = #tpu.dot_dimension_numbers<[1], [0], [0], [1], [0, 0, 1, 1], [], []>} : vector<8x8xbf16>, vector<8x8xbf16>, vector<8x8xf32> -> vector<8x8xf32>
    %1139 = arith.truncf %1138 : vector<8x8xf32> to vector<8x8xbf16>
    %1140 = vector.extract_strided_slice %992 {offsets = [0, 0], sizes = [8, 32], strides = [1, 1]} : vector<32x32xbf16> to vector<8x32xbf16>
    %cst_367 = arith.constant dense<0.000000e+00> : vector<8x32xf32>
    %1141 = tpu.matmul %1139, %1140, %cst_367 {dimension_numbers = #tpu.dot_dimension_numbers<[1], [0], [0], [1], [0, 0, 1, 1], [], []>} : vector<8x8xbf16>, vector<8x32xbf16>, vector<8x32xf32> -> vector<8x32xf32>
    %1142 = vector.extract_strided_slice %1111 {offsets = [0, 8], sizes = [8, 8], strides = [1, 1]} : vector<8x32xf32> to vector<8x8xf32>
    %1143 = arith.truncf %1142 : vector<8x8xf32> to vector<8x8xbf16>
    %1144 = vector.extract_strided_slice %1112 {offsets = [0, 8], sizes = [8, 8], strides = [1, 1]} : vector<8x32xf32> to vector<8x8xf32>
    %1145 = arith.truncf %1144 : vector<8x8xf32> to vector<8x8xbf16>
    %1146 = vector.extract_strided_slice %1113 {offsets = [0, 8], sizes = [8, 8], strides = [1, 1]} : vector<8x32xf32> to vector<8x8xf32>
    %1147 = arith.truncf %1146 : vector<8x8xf32> to vector<8x8xbf16>
    %cst_368 = arith.constant dense<0.000000e+00> : vector<8x8xf32>
    %1148 = tpu.matmul %1143, %1145, %cst_368 {dimension_numbers = #tpu.dot_dimension_numbers<[1], [1], [0], [0], [0, 0, 1, 0], [], []>} : vector<8x8xbf16>, vector<8x8xbf16>, vector<8x8xf32> -> vector<8x8xf32>
    %cst_369 = arith.constant 0.353553385 : f32
    %1149 = vector.broadcast %cst_369 : f32 to vector<8x8xf32>
    %1150 = arith.mulf %1148, %1149 : vector<8x8xf32>
    %cst_370 = arith.constant -1.000000e+09 : f32
    %1151 = vector.shape_cast %7 : vector<1x8xi1> to vector<1x8xi1>
    %1152 = vector.broadcast %1151 : vector<1x8xi1> to vector<8x8xi1>
    %1153 = vector.broadcast %cst_370 : f32 to vector<8x8xf32>
    %1154 = arith.select %1152, %1150, %1153 : vector<8x8xi1>, vector<8x8xf32>
    %cst_371 = arith.constant dense<0xFF800000> : vector<8xf32>
    %1155 = vector.multi_reduction <maximumf>, %1154, %cst_371 [1] : vector<8x8xf32> to vector<8xf32>
    %1156 = vector.shape_cast %1155 : vector<8xf32> to vector<8x1xf32>
    %1157 = vector.broadcast %1156 : vector<8x1xf32> to vector<8x8xf32>
    %1158 = arith.subf %1154, %1157 : vector<8x8xf32>
    %1159 = math.exp %1158 : vector<8x8xf32>
    %cst_372 = arith.constant dense<0.000000e+00> : vector<8xf32>
    %1160 = vector.multi_reduction <add>, %1159, %cst_372 [1] : vector<8x8xf32> to vector<8xf32>
    %1161 = vector.shape_cast %1160 : vector<8xf32> to vector<8x1xf32>
    %1162 = tpu.reciprocal %1161 {approx = true} : vector<8x1xf32> -> vector<8x1xf32>
    %1163 = vector.broadcast %1162 : vector<8x1xf32> to vector<8x8xf32>
    %1164 = arith.mulf %1159, %1163 : vector<8x8xf32>
    %1165 = arith.truncf %1164 : vector<8x8xf32> to vector<8x8xbf16>
    %cst_373 = arith.constant dense<0.000000e+00> : vector<8x8xf32>
    %1166 = tpu.matmul %1165, %1147, %cst_373 {dimension_numbers = #tpu.dot_dimension_numbers<[1], [0], [0], [1], [0, 0, 1, 1], [], []>} : vector<8x8xbf16>, vector<8x8xbf16>, vector<8x8xf32> -> vector<8x8xf32>
    %1167 = arith.truncf %1166 : vector<8x8xf32> to vector<8x8xbf16>
    %1168 = vector.extract_strided_slice %992 {offsets = [8, 0], sizes = [8, 32], strides = [1, 1]} : vector<32x32xbf16> to vector<8x32xbf16>
    %cst_374 = arith.constant dense<0.000000e+00> : vector<8x32xf32>
    %1169 = tpu.matmul %1167, %1168, %cst_374 {dimension_numbers = #tpu.dot_dimension_numbers<[1], [0], [0], [1], [0, 0, 1, 1], [], []>} : vector<8x8xbf16>, vector<8x32xbf16>, vector<8x32xf32> -> vector<8x32xf32>
    %1170 = arith.addf %1141, %1169 : vector<8x32xf32>
    %1171 = vector.extract_strided_slice %1111 {offsets = [0, 16], sizes = [8, 8], strides = [1, 1]} : vector<8x32xf32> to vector<8x8xf32>
    %1172 = arith.truncf %1171 : vector<8x8xf32> to vector<8x8xbf16>
    %1173 = vector.extract_strided_slice %1112 {offsets = [0, 16], sizes = [8, 8], strides = [1, 1]} : vector<8x32xf32> to vector<8x8xf32>
    %1174 = arith.truncf %1173 : vector<8x8xf32> to vector<8x8xbf16>
    %1175 = vector.extract_strided_slice %1113 {offsets = [0, 16], sizes = [8, 8], strides = [1, 1]} : vector<8x32xf32> to vector<8x8xf32>
    %1176 = arith.truncf %1175 : vector<8x8xf32> to vector<8x8xbf16>
    %cst_375 = arith.constant dense<0.000000e+00> : vector<8x8xf32>
    %1177 = tpu.matmul %1172, %1174, %cst_375 {dimension_numbers = #tpu.dot_dimension_numbers<[1], [1], [0], [0], [0, 0, 1, 0], [], []>} : vector<8x8xbf16>, vector<8x8xbf16>, vector<8x8xf32> -> vector<8x8xf32>
    %cst_376 = arith.constant 0.353553385 : f32
    %1178 = vector.broadcast %cst_376 : f32 to vector<8x8xf32>
    %1179 = arith.mulf %1177, %1178 : vector<8x8xf32>
    %cst_377 = arith.constant -1.000000e+09 : f32
    %1180 = vector.shape_cast %7 : vector<1x8xi1> to vector<1x8xi1>
    %1181 = vector.broadcast %1180 : vector<1x8xi1> to vector<8x8xi1>
    %1182 = vector.broadcast %cst_377 : f32 to vector<8x8xf32>
    %1183 = arith.select %1181, %1179, %1182 : vector<8x8xi1>, vector<8x8xf32>
    %cst_378 = arith.constant dense<0xFF800000> : vector<8xf32>
    %1184 = vector.multi_reduction <maximumf>, %1183, %cst_378 [1] : vector<8x8xf32> to vector<8xf32>
    %1185 = vector.shape_cast %1184 : vector<8xf32> to vector<8x1xf32>
    %1186 = vector.broadcast %1185 : vector<8x1xf32> to vector<8x8xf32>
    %1187 = arith.subf %1183, %1186 : vector<8x8xf32>
    %1188 = math.exp %1187 : vector<8x8xf32>
    %cst_379 = arith.constant dense<0.000000e+00> : vector<8xf32>
    %1189 = vector.multi_reduction <add>, %1188, %cst_379 [1] : vector<8x8xf32> to vector<8xf32>
    %1190 = vector.shape_cast %1189 : vector<8xf32> to vector<8x1xf32>
    %1191 = tpu.reciprocal %1190 {approx = true} : vector<8x1xf32> -> vector<8x1xf32>
    %1192 = vector.broadcast %1191 : vector<8x1xf32> to vector<8x8xf32>
    %1193 = arith.mulf %1188, %1192 : vector<8x8xf32>
    %1194 = arith.truncf %1193 : vector<8x8xf32> to vector<8x8xbf16>
    %cst_380 = arith.constant dense<0.000000e+00> : vector<8x8xf32>
    %1195 = tpu.matmul %1194, %1176, %cst_380 {dimension_numbers = #tpu.dot_dimension_numbers<[1], [0], [0], [1], [0, 0, 1, 1], [], []>} : vector<8x8xbf16>, vector<8x8xbf16>, vector<8x8xf32> -> vector<8x8xf32>
    %1196 = arith.truncf %1195 : vector<8x8xf32> to vector<8x8xbf16>
    %1197 = vector.extract_strided_slice %992 {offsets = [16, 0], sizes = [8, 32], strides = [1, 1]} : vector<32x32xbf16> to vector<8x32xbf16>
    %cst_381 = arith.constant dense<0.000000e+00> : vector<8x32xf32>
    %1198 = tpu.matmul %1196, %1197, %cst_381 {dimension_numbers = #tpu.dot_dimension_numbers<[1], [0], [0], [1], [0, 0, 1, 1], [], []>} : vector<8x8xbf16>, vector<8x32xbf16>, vector<8x32xf32> -> vector<8x32xf32>
    %1199 = arith.addf %1170, %1198 : vector<8x32xf32>
    %1200 = vector.extract_strided_slice %1111 {offsets = [0, 24], sizes = [8, 8], strides = [1, 1]} : vector<8x32xf32> to vector<8x8xf32>
    %1201 = arith.truncf %1200 : vector<8x8xf32> to vector<8x8xbf16>
    %1202 = vector.extract_strided_slice %1112 {offsets = [0, 24], sizes = [8, 8], strides = [1, 1]} : vector<8x32xf32> to vector<8x8xf32>
    %1203 = arith.truncf %1202 : vector<8x8xf32> to vector<8x8xbf16>
    %1204 = vector.extract_strided_slice %1113 {offsets = [0, 24], sizes = [8, 8], strides = [1, 1]} : vector<8x32xf32> to vector<8x8xf32>
    %1205 = arith.truncf %1204 : vector<8x8xf32> to vector<8x8xbf16>
    %cst_382 = arith.constant dense<0.000000e+00> : vector<8x8xf32>
    %1206 = tpu.matmul %1201, %1203, %cst_382 {dimension_numbers = #tpu.dot_dimension_numbers<[1], [1], [0], [0], [0, 0, 1, 0], [], []>} : vector<8x8xbf16>, vector<8x8xbf16>, vector<8x8xf32> -> vector<8x8xf32>
    %cst_383 = arith.constant 0.353553385 : f32
    %1207 = vector.broadcast %cst_383 : f32 to vector<8x8xf32>
    %1208 = arith.mulf %1206, %1207 : vector<8x8xf32>
    %cst_384 = arith.constant -1.000000e+09 : f32
    %1209 = vector.shape_cast %7 : vector<1x8xi1> to vector<1x8xi1>
    %1210 = vector.broadcast %1209 : vector<1x8xi1> to vector<8x8xi1>
    %1211 = vector.broadcast %cst_384 : f32 to vector<8x8xf32>
    %1212 = arith.select %1210, %1208, %1211 : vector<8x8xi1>, vector<8x8xf32>
    %cst_385 = arith.constant dense<0xFF800000> : vector<8xf32>
    %1213 = vector.multi_reduction <maximumf>, %1212, %cst_385 [1] : vector<8x8xf32> to vector<8xf32>
    %1214 = vector.shape_cast %1213 : vector<8xf32> to vector<8x1xf32>
    %1215 = vector.broadcast %1214 : vector<8x1xf32> to vector<8x8xf32>
    %1216 = arith.subf %1212, %1215 : vector<8x8xf32>
    %1217 = math.exp %1216 : vector<8x8xf32>
    %cst_386 = arith.constant dense<0.000000e+00> : vector<8xf32>
    %1218 = vector.multi_reduction <add>, %1217, %cst_386 [1] : vector<8x8xf32> to vector<8xf32>
    %1219 = vector.shape_cast %1218 : vector<8xf32> to vector<8x1xf32>
    %1220 = tpu.reciprocal %1219 {approx = true} : vector<8x1xf32> -> vector<8x1xf32>
    %1221 = vector.broadcast %1220 : vector<8x1xf32> to vector<8x8xf32>
    %1222 = arith.mulf %1217, %1221 : vector<8x8xf32>
    %1223 = arith.truncf %1222 : vector<8x8xf32> to vector<8x8xbf16>
    %cst_387 = arith.constant dense<0.000000e+00> : vector<8x8xf32>
    %1224 = tpu.matmul %1223, %1205, %cst_387 {dimension_numbers = #tpu.dot_dimension_numbers<[1], [0], [0], [1], [0, 0, 1, 1], [], []>} : vector<8x8xbf16>, vector<8x8xbf16>, vector<8x8xf32> -> vector<8x8xf32>
    %1225 = arith.truncf %1224 : vector<8x8xf32> to vector<8x8xbf16>
    %1226 = vector.extract_strided_slice %992 {offsets = [24, 0], sizes = [8, 32], strides = [1, 1]} : vector<32x32xbf16> to vector<8x32xbf16>
    %cst_388 = arith.constant dense<0.000000e+00> : vector<8x32xf32>
    %1227 = tpu.matmul %1225, %1226, %cst_388 {dimension_numbers = #tpu.dot_dimension_numbers<[1], [0], [0], [1], [0, 0, 1, 1], [], []>} : vector<8x8xbf16>, vector<8x32xbf16>, vector<8x32xf32> -> vector<8x32xf32>
    %1228 = arith.addf %1199, %1227 : vector<8x32xf32>
    %1229 = tpu.concatenate %1110, %1228 in 0 : vector<8x32xf32>, vector<8x32xf32> -> vector<16x32xf32>
    %1230 = arith.addf %947, %1229 : vector<16x32xf32>
    %c0_389 = arith.constant 0 : index
    %c0_390 = arith.constant 0 : index
    %c0_391 = arith.constant 0 : index
    %1231 = vector.load %arg30[%c0_389, %c0_390, %c0_391] : memref<2x1x32xf32, #tpu.memory_space<vmem>>, vector<1x1x32xf32>
    %1232 = vector.shape_cast %1231 : vector<1x1x32xf32> to vector<1x32xf32>
    %1233 = vector.broadcast %1232 : vector<1x32xf32> to vector<16x32xf32>
    %1234 = arith.addf %1230, %1233 : vector<16x32xf32>
    %c0_392 = arith.constant 0 : index
    %c0_393 = arith.constant 0 : index
    %c0_394 = arith.constant 0 : index
    %1235 = vector.load %arg31[%c0_392, %c0_393, %c0_394] : memref<2x1x32xf32, #tpu.memory_space<vmem>>, vector<1x1x32xf32>
    %1236 = vector.shape_cast %1235 : vector<1x1x32xf32> to vector<1x32xf32>
    %c0_395 = arith.constant 0 : index
    %c0_396 = arith.constant 0 : index
    %c0_397 = arith.constant 0 : index
    %1237 = vector.load %arg32[%c0_395, %c0_396, %c0_397] : memref<2x1x32xf32, #tpu.memory_space<vmem>>, vector<1x1x32xf32>
    %1238 = vector.shape_cast %1237 : vector<1x1x32xf32> to vector<1x32xf32>
    %cst_398 = arith.constant dense<0.000000e+00> : vector<16xf32>
    %1239 = vector.multi_reduction <add>, %1234, %cst_398 [1] : vector<16x32xf32> to vector<16xf32>
    %1240 = vector.shape_cast %1239 : vector<16xf32> to vector<16x1xf32>
    %cst_399 = arith.constant 3.200000e+01 : f32
    %1241 = vector.broadcast %cst_399 : f32 to vector<16x1xf32>
    %1242 = arith.divf %1240, %1241 : vector<16x1xf32>
    %1243 = vector.broadcast %1242 : vector<16x1xf32> to vector<16x32xf32>
    %1244 = arith.subf %1234, %1243 : vector<16x32xf32>
    %1245 = arith.mulf %1244, %1244 : vector<16x32xf32>
    %cst_400 = arith.constant dense<0.000000e+00> : vector<16xf32>
    %1246 = vector.multi_reduction <add>, %1245, %cst_400 [1] : vector<16x32xf32> to vector<16xf32>
    %1247 = vector.shape_cast %1246 : vector<16xf32> to vector<16x1xf32>
    %cst_401 = arith.constant 0.0322580636 : f32
    %1248 = vector.broadcast %cst_401 : f32 to vector<16x1xf32>
    %1249 = arith.mulf %1247, %1248 : vector<16x1xf32>
    %1250 = math.sqrt %1249 : vector<16x1xf32>
    %cst_402 = arith.constant 9.99999997E-7 : f32
    %1251 = vector.broadcast %cst_402 : f32 to vector<16x1xf32>
    %1252 = arith.addf %1250, %1251 : vector<16x1xf32>
    %1253 = tpu.reciprocal %1252 {approx = true} : vector<16x1xf32> -> vector<16x1xf32>
    %1254 = vector.broadcast %1253 : vector<16x1xf32> to vector<16x32xf32>
    %1255 = arith.mulf %1244, %1254 : vector<16x32xf32>
    %1256 = vector.broadcast %1236 : vector<1x32xf32> to vector<16x32xf32>
    %1257 = arith.mulf %1256, %1255 : vector<16x32xf32>
    %1258 = vector.broadcast %1238 : vector<1x32xf32> to vector<16x32xf32>
    %1259 = arith.addf %1257, %1258 : vector<16x32xf32>
    %c0_403 = arith.constant 0 : index
    %c0_404 = arith.constant 0 : index
    %c0_405 = arith.constant 0 : index
    %1260 = vector.load %arg33[%c0_403, %c0_404, %c0_405] : memref<2x32x64xbf16, #tpu.memory_space<vmem>>, vector<1x32x64xbf16>
    %1261 = vector.shape_cast %1260 : vector<1x32x64xbf16> to vector<32x64xbf16>
    %c0_406 = arith.constant 0 : index
    %c0_407 = arith.constant 0 : index
    %c0_408 = arith.constant 0 : index
    %1262 = vector.load %arg34[%c0_406, %c0_407, %c0_408] : memref<2x1x64xf32, #tpu.memory_space<vmem>>, vector<1x1x64xf32>
    %1263 = vector.shape_cast %1262 : vector<1x1x64xf32> to vector<1x64xf32>
    %1264 = arith.truncf %1259 : vector<16x32xf32> to vector<16x32xbf16>
    %cst_409 = arith.constant dense<0.000000e+00> : vector<16x64xf32>
    %1265 = tpu.matmul %1264, %1261, %cst_409 {dimension_numbers = #tpu.dot_dimension_numbers<[1], [0], [0], [1], [0, 0, 1, 1], [], []>} : vector<16x32xbf16>, vector<32x64xbf16>, vector<16x64xf32> -> vector<16x64xf32>
    %1266 = vector.broadcast %1263 : vector<1x64xf32> to vector<16x64xf32>
    %1267 = arith.addf %1265, %1266 : vector<16x64xf32>
    %cst_410 = arith.constant 0.000000e+00 : f32
    %1268 = vector.broadcast %cst_410 : f32 to vector<16x64xf32>
    %1269 = arith.maximumf %1267, %1268 : vector<16x64xf32>
    %c0_411 = arith.constant 0 : index
    %c0_412 = arith.constant 0 : index
    %c0_413 = arith.constant 0 : index
    %1270 = vector.load %arg35[%c0_411, %c0_412, %c0_413] : memref<2x64x32xbf16, #tpu.memory_space<vmem>>, vector<1x64x32xbf16>
    %1271 = vector.shape_cast %1270 : vector<1x64x32xbf16> to vector<64x32xbf16>
    %c0_414 = arith.constant 0 : index
    %c0_415 = arith.constant 0 : index
    %c0_416 = arith.constant 0 : index
    %1272 = vector.load %arg36[%c0_414, %c0_415, %c0_416] : memref<2x1x32xf32, #tpu.memory_space<vmem>>, vector<1x1x32xf32>
    %1273 = vector.shape_cast %1272 : vector<1x1x32xf32> to vector<1x32xf32>
    %1274 = arith.truncf %1269 : vector<16x64xf32> to vector<16x64xbf16>
    %cst_417 = arith.constant dense<0.000000e+00> : vector<16x32xf32>
    %1275 = tpu.matmul %1274, %1271, %cst_417 {dimension_numbers = #tpu.dot_dimension_numbers<[1], [0], [0], [1], [0, 0, 1, 1], [], []>} : vector<16x64xbf16>, vector<64x32xbf16>, vector<16x32xf32> -> vector<16x32xf32>
    %1276 = vector.broadcast %1273 : vector<1x32xf32> to vector<16x32xf32>
    %1277 = arith.addf %1275, %1276 : vector<16x32xf32>
    %1278 = arith.addf %1234, %1277 : vector<16x32xf32>
    %c1_418 = arith.constant 1 : index
    %c0_419 = arith.constant 0 : index
    %c0_420 = arith.constant 0 : index
    %1279 = vector.load %arg17[%c1_418, %c0_419, %c0_420] : memref<2x1x32xf32, #tpu.memory_space<vmem>>, vector<1x1x32xf32>
    %1280 = vector.shape_cast %1279 : vector<1x1x32xf32> to vector<1x32xf32>
    %c1_421 = arith.constant 1 : index
    %c0_422 = arith.constant 0 : index
    %c0_423 = arith.constant 0 : index
    %1281 = vector.load %arg18[%c1_421, %c0_422, %c0_423] : memref<2x1x32xf32, #tpu.memory_space<vmem>>, vector<1x1x32xf32>
    %1282 = vector.shape_cast %1281 : vector<1x1x32xf32> to vector<1x32xf32>
    %cst_424 = arith.constant dense<0.000000e+00> : vector<16xf32>
    %1283 = vector.multi_reduction <add>, %1278, %cst_424 [1] : vector<16x32xf32> to vector<16xf32>
    %1284 = vector.shape_cast %1283 : vector<16xf32> to vector<16x1xf32>
    %cst_425 = arith.constant 3.200000e+01 : f32
    %1285 = vector.broadcast %cst_425 : f32 to vector<16x1xf32>
    %1286 = arith.divf %1284, %1285 : vector<16x1xf32>
    %1287 = vector.broadcast %1286 : vector<16x1xf32> to vector<16x32xf32>
    %1288 = arith.subf %1278, %1287 : vector<16x32xf32>
    %1289 = arith.mulf %1288, %1288 : vector<16x32xf32>
    %cst_426 = arith.constant dense<0.000000e+00> : vector<16xf32>
    %1290 = vector.multi_reduction <add>, %1289, %cst_426 [1] : vector<16x32xf32> to vector<16xf32>
    %1291 = vector.shape_cast %1290 : vector<16xf32> to vector<16x1xf32>
    %cst_427 = arith.constant 0.0322580636 : f32
    %1292 = vector.broadcast %cst_427 : f32 to vector<16x1xf32>
    %1293 = arith.mulf %1291, %1292 : vector<16x1xf32>
    %1294 = math.sqrt %1293 : vector<16x1xf32>
    %cst_428 = arith.constant 9.99999997E-7 : f32
    %1295 = vector.broadcast %cst_428 : f32 to vector<16x1xf32>
    %1296 = arith.addf %1294, %1295 : vector<16x1xf32>
    %1297 = tpu.reciprocal %1296 {approx = true} : vector<16x1xf32> -> vector<16x1xf32>
    %1298 = vector.broadcast %1297 : vector<16x1xf32> to vector<16x32xf32>
    %1299 = arith.mulf %1288, %1298 : vector<16x32xf32>
    %1300 = vector.broadcast %1280 : vector<1x32xf32> to vector<16x32xf32>
    %1301 = arith.mulf %1300, %1299 : vector<16x32xf32>
    %1302 = vector.broadcast %1282 : vector<1x32xf32> to vector<16x32xf32>
    %1303 = arith.addf %1301, %1302 : vector<16x32xf32>
    %c1_429 = arith.constant 1 : index
    %c0_430 = arith.constant 0 : index
    %c0_431 = arith.constant 0 : index
    %1304 = vector.load %arg19[%c1_429, %c0_430, %c0_431] : memref<2x32x96xbf16, #tpu.memory_space<vmem>>, vector<1x32x96xbf16>
    %1305 = vector.shape_cast %1304 : vector<1x32x96xbf16> to vector<32x96xbf16>
    %c1_432 = arith.constant 1 : index
    %c0_433 = arith.constant 0 : index
    %c0_434 = arith.constant 0 : index
    %1306 = vector.load %arg20[%c1_432, %c0_433, %c0_434] : memref<2x1x96xf32, #tpu.memory_space<vmem>>, vector<1x1x96xf32>
    %1307 = vector.shape_cast %1306 : vector<1x1x96xf32> to vector<1x96xf32>
    %1308 = arith.truncf %1303 : vector<16x32xf32> to vector<16x32xbf16>
    %cst_435 = arith.constant dense<0.000000e+00> : vector<16x96xf32>
    %1309 = tpu.matmul %1308, %1305, %cst_435 {dimension_numbers = #tpu.dot_dimension_numbers<[1], [0], [0], [1], [0, 0, 1, 1], [], []>} : vector<16x32xbf16>, vector<32x96xbf16>, vector<16x96xf32> -> vector<16x96xf32>
    %1310 = vector.broadcast %1307 : vector<1x96xf32> to vector<16x96xf32>
    %1311 = arith.addf %1309, %1310 : vector<16x96xf32>
    %1312 = vector.extract_strided_slice %1311 {offsets = [0, 0], sizes = [16, 32], strides = [1, 1]} : vector<16x96xf32> to vector<16x32xf32>
    %1313 = vector.extract_strided_slice %1311 {offsets = [0, 32], sizes = [16, 32], strides = [1, 1]} : vector<16x96xf32> to vector<16x32xf32>
    %1314 = vector.extract_strided_slice %1311 {offsets = [0, 64], sizes = [16, 32], strides = [1, 1]} : vector<16x96xf32> to vector<16x32xf32>
    %c1_436 = arith.constant 1 : index
    %c0_437 = arith.constant 0 : index
    %c0_438 = arith.constant 0 : index
    %1315 = vector.load %arg21[%c1_436, %c0_437, %c0_438] : memref<2x32x32xbf16, #tpu.memory_space<vmem>>, vector<1x32x32xbf16>
    %1316 = vector.shape_cast %1315 : vector<1x32x32xbf16> to vector<32x32xbf16>
    %1317 = vector.extract_strided_slice %1312 {offsets = [0, 0], sizes = [8, 32], strides = [1, 1]} : vector<16x32xf32> to vector<8x32xf32>
    %1318 = vector.extract_strided_slice %1313 {offsets = [0, 0], sizes = [8, 32], strides = [1, 1]} : vector<16x32xf32> to vector<8x32xf32>
    %1319 = vector.extract_strided_slice %1314 {offsets = [0, 0], sizes = [8, 32], strides = [1, 1]} : vector<16x32xf32> to vector<8x32xf32>
    %1320 = vector.extract_strided_slice %1317 {offsets = [0, 0], sizes = [8, 8], strides = [1, 1]} : vector<8x32xf32> to vector<8x8xf32>
    %1321 = arith.truncf %1320 : vector<8x8xf32> to vector<8x8xbf16>
    %1322 = vector.extract_strided_slice %1318 {offsets = [0, 0], sizes = [8, 8], strides = [1, 1]} : vector<8x32xf32> to vector<8x8xf32>
    %1323 = arith.truncf %1322 : vector<8x8xf32> to vector<8x8xbf16>
    %1324 = vector.extract_strided_slice %1319 {offsets = [0, 0], sizes = [8, 8], strides = [1, 1]} : vector<8x32xf32> to vector<8x8xf32>
    %1325 = arith.truncf %1324 : vector<8x8xf32> to vector<8x8xbf16>
    %cst_439 = arith.constant dense<0.000000e+00> : vector<8x8xf32>
    %1326 = tpu.matmul %1321, %1323, %cst_439 {dimension_numbers = #tpu.dot_dimension_numbers<[1], [1], [0], [0], [0, 0, 1, 0], [], []>} : vector<8x8xbf16>, vector<8x8xbf16>, vector<8x8xf32> -> vector<8x8xf32>
    %cst_440 = arith.constant 0.353553385 : f32
    %1327 = vector.broadcast %cst_440 : f32 to vector<8x8xf32>
    %1328 = arith.mulf %1326, %1327 : vector<8x8xf32>
    %cst_441 = arith.constant -1.000000e+09 : f32
    %1329 = vector.broadcast %cst_441 : f32 to vector<8x8xf32>
    %1330 = arith.select %10, %1328, %1329 : vector<8x8xi1>, vector<8x8xf32>
    %cst_442 = arith.constant dense<0xFF800000> : vector<8xf32>
    %1331 = vector.multi_reduction <maximumf>, %1330, %cst_442 [1] : vector<8x8xf32> to vector<8xf32>
    %1332 = vector.shape_cast %1331 : vector<8xf32> to vector<8x1xf32>
    %1333 = vector.broadcast %1332 : vector<8x1xf32> to vector<8x8xf32>
    %1334 = arith.subf %1330, %1333 : vector<8x8xf32>
    %1335 = math.exp %1334 : vector<8x8xf32>
    %cst_443 = arith.constant dense<0.000000e+00> : vector<8xf32>
    %1336 = vector.multi_reduction <add>, %1335, %cst_443 [1] : vector<8x8xf32> to vector<8xf32>
    %1337 = vector.shape_cast %1336 : vector<8xf32> to vector<8x1xf32>
    %1338 = tpu.reciprocal %1337 {approx = true} : vector<8x1xf32> -> vector<8x1xf32>
    %1339 = vector.broadcast %1338 : vector<8x1xf32> to vector<8x8xf32>
    %1340 = arith.mulf %1335, %1339 : vector<8x8xf32>
    %1341 = arith.truncf %1340 : vector<8x8xf32> to vector<8x8xbf16>
    %cst_444 = arith.constant dense<0.000000e+00> : vector<8x8xf32>
    %1342 = tpu.matmul %1341, %1325, %cst_444 {dimension_numbers = #tpu.dot_dimension_numbers<[1], [0], [0], [1], [0, 0, 1, 1], [], []>} : vector<8x8xbf16>, vector<8x8xbf16>, vector<8x8xf32> -> vector<8x8xf32>
    %1343 = arith.truncf %1342 : vector<8x8xf32> to vector<8x8xbf16>
    %1344 = vector.extract_strided_slice %1316 {offsets = [0, 0], sizes = [8, 32], strides = [1, 1]} : vector<32x32xbf16> to vector<8x32xbf16>
    %cst_445 = arith.constant dense<0.000000e+00> : vector<8x32xf32>
    %1345 = tpu.matmul %1343, %1344, %cst_445 {dimension_numbers = #tpu.dot_dimension_numbers<[1], [0], [0], [1], [0, 0, 1, 1], [], []>} : vector<8x8xbf16>, vector<8x32xbf16>, vector<8x32xf32> -> vector<8x32xf32>
    %1346 = vector.extract_strided_slice %1317 {offsets = [0, 8], sizes = [8, 8], strides = [1, 1]} : vector<8x32xf32> to vector<8x8xf32>
    %1347 = arith.truncf %1346 : vector<8x8xf32> to vector<8x8xbf16>
    %1348 = vector.extract_strided_slice %1318 {offsets = [0, 8], sizes = [8, 8], strides = [1, 1]} : vector<8x32xf32> to vector<8x8xf32>
    %1349 = arith.truncf %1348 : vector<8x8xf32> to vector<8x8xbf16>
    %1350 = vector.extract_strided_slice %1319 {offsets = [0, 8], sizes = [8, 8], strides = [1, 1]} : vector<8x32xf32> to vector<8x8xf32>
    %1351 = arith.truncf %1350 : vector<8x8xf32> to vector<8x8xbf16>
    %cst_446 = arith.constant dense<0.000000e+00> : vector<8x8xf32>
    %1352 = tpu.matmul %1347, %1349, %cst_446 {dimension_numbers = #tpu.dot_dimension_numbers<[1], [1], [0], [0], [0, 0, 1, 0], [], []>} : vector<8x8xbf16>, vector<8x8xbf16>, vector<8x8xf32> -> vector<8x8xf32>
    %cst_447 = arith.constant 0.353553385 : f32
    %1353 = vector.broadcast %cst_447 : f32 to vector<8x8xf32>
    %1354 = arith.mulf %1352, %1353 : vector<8x8xf32>
    %cst_448 = arith.constant -1.000000e+09 : f32
    %1355 = vector.broadcast %cst_448 : f32 to vector<8x8xf32>
    %1356 = arith.select %10, %1354, %1355 : vector<8x8xi1>, vector<8x8xf32>
    %cst_449 = arith.constant dense<0xFF800000> : vector<8xf32>
    %1357 = vector.multi_reduction <maximumf>, %1356, %cst_449 [1] : vector<8x8xf32> to vector<8xf32>
    %1358 = vector.shape_cast %1357 : vector<8xf32> to vector<8x1xf32>
    %1359 = vector.broadcast %1358 : vector<8x1xf32> to vector<8x8xf32>
    %1360 = arith.subf %1356, %1359 : vector<8x8xf32>
    %1361 = math.exp %1360 : vector<8x8xf32>
    %cst_450 = arith.constant dense<0.000000e+00> : vector<8xf32>
    %1362 = vector.multi_reduction <add>, %1361, %cst_450 [1] : vector<8x8xf32> to vector<8xf32>
    %1363 = vector.shape_cast %1362 : vector<8xf32> to vector<8x1xf32>
    %1364 = tpu.reciprocal %1363 {approx = true} : vector<8x1xf32> -> vector<8x1xf32>
    %1365 = vector.broadcast %1364 : vector<8x1xf32> to vector<8x8xf32>
    %1366 = arith.mulf %1361, %1365 : vector<8x8xf32>
    %1367 = arith.truncf %1366 : vector<8x8xf32> to vector<8x8xbf16>
    %cst_451 = arith.constant dense<0.000000e+00> : vector<8x8xf32>
    %1368 = tpu.matmul %1367, %1351, %cst_451 {dimension_numbers = #tpu.dot_dimension_numbers<[1], [0], [0], [1], [0, 0, 1, 1], [], []>} : vector<8x8xbf16>, vector<8x8xbf16>, vector<8x8xf32> -> vector<8x8xf32>
    %1369 = arith.truncf %1368 : vector<8x8xf32> to vector<8x8xbf16>
    %1370 = vector.extract_strided_slice %1316 {offsets = [8, 0], sizes = [8, 32], strides = [1, 1]} : vector<32x32xbf16> to vector<8x32xbf16>
    %cst_452 = arith.constant dense<0.000000e+00> : vector<8x32xf32>
    %1371 = tpu.matmul %1369, %1370, %cst_452 {dimension_numbers = #tpu.dot_dimension_numbers<[1], [0], [0], [1], [0, 0, 1, 1], [], []>} : vector<8x8xbf16>, vector<8x32xbf16>, vector<8x32xf32> -> vector<8x32xf32>
    %1372 = arith.addf %1345, %1371 : vector<8x32xf32>
    %1373 = vector.extract_strided_slice %1317 {offsets = [0, 16], sizes = [8, 8], strides = [1, 1]} : vector<8x32xf32> to vector<8x8xf32>
    %1374 = arith.truncf %1373 : vector<8x8xf32> to vector<8x8xbf16>
    %1375 = vector.extract_strided_slice %1318 {offsets = [0, 16], sizes = [8, 8], strides = [1, 1]} : vector<8x32xf32> to vector<8x8xf32>
    %1376 = arith.truncf %1375 : vector<8x8xf32> to vector<8x8xbf16>
    %1377 = vector.extract_strided_slice %1319 {offsets = [0, 16], sizes = [8, 8], strides = [1, 1]} : vector<8x32xf32> to vector<8x8xf32>
    %1378 = arith.truncf %1377 : vector<8x8xf32> to vector<8x8xbf16>
    %cst_453 = arith.constant dense<0.000000e+00> : vector<8x8xf32>
    %1379 = tpu.matmul %1374, %1376, %cst_453 {dimension_numbers = #tpu.dot_dimension_numbers<[1], [1], [0], [0], [0, 0, 1, 0], [], []>} : vector<8x8xbf16>, vector<8x8xbf16>, vector<8x8xf32> -> vector<8x8xf32>
    %cst_454 = arith.constant 0.353553385 : f32
    %1380 = vector.broadcast %cst_454 : f32 to vector<8x8xf32>
    %1381 = arith.mulf %1379, %1380 : vector<8x8xf32>
    %cst_455 = arith.constant -1.000000e+09 : f32
    %1382 = vector.broadcast %cst_455 : f32 to vector<8x8xf32>
    %1383 = arith.select %10, %1381, %1382 : vector<8x8xi1>, vector<8x8xf32>
    %cst_456 = arith.constant dense<0xFF800000> : vector<8xf32>
    %1384 = vector.multi_reduction <maximumf>, %1383, %cst_456 [1] : vector<8x8xf32> to vector<8xf32>
    %1385 = vector.shape_cast %1384 : vector<8xf32> to vector<8x1xf32>
    %1386 = vector.broadcast %1385 : vector<8x1xf32> to vector<8x8xf32>
    %1387 = arith.subf %1383, %1386 : vector<8x8xf32>
    %1388 = math.exp %1387 : vector<8x8xf32>
    %cst_457 = arith.constant dense<0.000000e+00> : vector<8xf32>
    %1389 = vector.multi_reduction <add>, %1388, %cst_457 [1] : vector<8x8xf32> to vector<8xf32>
    %1390 = vector.shape_cast %1389 : vector<8xf32> to vector<8x1xf32>
    %1391 = tpu.reciprocal %1390 {approx = true} : vector<8x1xf32> -> vector<8x1xf32>
    %1392 = vector.broadcast %1391 : vector<8x1xf32> to vector<8x8xf32>
    %1393 = arith.mulf %1388, %1392 : vector<8x8xf32>
    %1394 = arith.truncf %1393 : vector<8x8xf32> to vector<8x8xbf16>
    %cst_458 = arith.constant dense<0.000000e+00> : vector<8x8xf32>
    %1395 = tpu.matmul %1394, %1378, %cst_458 {dimension_numbers = #tpu.dot_dimension_numbers<[1], [0], [0], [1], [0, 0, 1, 1], [], []>} : vector<8x8xbf16>, vector<8x8xbf16>, vector<8x8xf32> -> vector<8x8xf32>
    %1396 = arith.truncf %1395 : vector<8x8xf32> to vector<8x8xbf16>
    %1397 = vector.extract_strided_slice %1316 {offsets = [16, 0], sizes = [8, 32], strides = [1, 1]} : vector<32x32xbf16> to vector<8x32xbf16>
    %cst_459 = arith.constant dense<0.000000e+00> : vector<8x32xf32>
    %1398 = tpu.matmul %1396, %1397, %cst_459 {dimension_numbers = #tpu.dot_dimension_numbers<[1], [0], [0], [1], [0, 0, 1, 1], [], []>} : vector<8x8xbf16>, vector<8x32xbf16>, vector<8x32xf32> -> vector<8x32xf32>
    %1399 = arith.addf %1372, %1398 : vector<8x32xf32>
    %1400 = vector.extract_strided_slice %1317 {offsets = [0, 24], sizes = [8, 8], strides = [1, 1]} : vector<8x32xf32> to vector<8x8xf32>
    %1401 = arith.truncf %1400 : vector<8x8xf32> to vector<8x8xbf16>
    %1402 = vector.extract_strided_slice %1318 {offsets = [0, 24], sizes = [8, 8], strides = [1, 1]} : vector<8x32xf32> to vector<8x8xf32>
    %1403 = arith.truncf %1402 : vector<8x8xf32> to vector<8x8xbf16>
    %1404 = vector.extract_strided_slice %1319 {offsets = [0, 24], sizes = [8, 8], strides = [1, 1]} : vector<8x32xf32> to vector<8x8xf32>
    %1405 = arith.truncf %1404 : vector<8x8xf32> to vector<8x8xbf16>
    %cst_460 = arith.constant dense<0.000000e+00> : vector<8x8xf32>
    %1406 = tpu.matmul %1401, %1403, %cst_460 {dimension_numbers = #tpu.dot_dimension_numbers<[1], [1], [0], [0], [0, 0, 1, 0], [], []>} : vector<8x8xbf16>, vector<8x8xbf16>, vector<8x8xf32> -> vector<8x8xf32>
    %cst_461 = arith.constant 0.353553385 : f32
    %1407 = vector.broadcast %cst_461 : f32 to vector<8x8xf32>
    %1408 = arith.mulf %1406, %1407 : vector<8x8xf32>
    %cst_462 = arith.constant -1.000000e+09 : f32
    %1409 = vector.broadcast %cst_462 : f32 to vector<8x8xf32>
    %1410 = arith.select %10, %1408, %1409 : vector<8x8xi1>, vector<8x8xf32>
    %cst_463 = arith.constant dense<0xFF800000> : vector<8xf32>
    %1411 = vector.multi_reduction <maximumf>, %1410, %cst_463 [1] : vector<8x8xf32> to vector<8xf32>
    %1412 = vector.shape_cast %1411 : vector<8xf32> to vector<8x1xf32>
    %1413 = vector.broadcast %1412 : vector<8x1xf32> to vector<8x8xf32>
    %1414 = arith.subf %1410, %1413 : vector<8x8xf32>
    %1415 = math.exp %1414 : vector<8x8xf32>
    %cst_464 = arith.constant dense<0.000000e+00> : vector<8xf32>
    %1416 = vector.multi_reduction <add>, %1415, %cst_464 [1] : vector<8x8xf32> to vector<8xf32>
    %1417 = vector.shape_cast %1416 : vector<8xf32> to vector<8x1xf32>
    %1418 = tpu.reciprocal %1417 {approx = true} : vector<8x1xf32> -> vector<8x1xf32>
    %1419 = vector.broadcast %1418 : vector<8x1xf32> to vector<8x8xf32>
    %1420 = arith.mulf %1415, %1419 : vector<8x8xf32>
    %1421 = arith.truncf %1420 : vector<8x8xf32> to vector<8x8xbf16>
    %cst_465 = arith.constant dense<0.000000e+00> : vector<8x8xf32>
    %1422 = tpu.matmul %1421, %1405, %cst_465 {dimension_numbers = #tpu.dot_dimension_numbers<[1], [0], [0], [1], [0, 0, 1, 1], [], []>} : vector<8x8xbf16>, vector<8x8xbf16>, vector<8x8xf32> -> vector<8x8xf32>
    %1423 = arith.truncf %1422 : vector<8x8xf32> to vector<8x8xbf16>
    %1424 = vector.extract_strided_slice %1316 {offsets = [24, 0], sizes = [8, 32], strides = [1, 1]} : vector<32x32xbf16> to vector<8x32xbf16>
    %cst_466 = arith.constant dense<0.000000e+00> : vector<8x32xf32>
    %1425 = tpu.matmul %1423, %1424, %cst_466 {dimension_numbers = #tpu.dot_dimension_numbers<[1], [0], [0], [1], [0, 0, 1, 1], [], []>} : vector<8x8xbf16>, vector<8x32xbf16>, vector<8x32xf32> -> vector<8x32xf32>
    %1426 = arith.addf %1399, %1425 : vector<8x32xf32>
    %1427 = vector.extract_strided_slice %1312 {offsets = [8, 0], sizes = [8, 32], strides = [1, 1]} : vector<16x32xf32> to vector<8x32xf32>
    %1428 = vector.extract_strided_slice %1313 {offsets = [8, 0], sizes = [8, 32], strides = [1, 1]} : vector<16x32xf32> to vector<8x32xf32>
    %1429 = vector.extract_strided_slice %1314 {offsets = [8, 0], sizes = [8, 32], strides = [1, 1]} : vector<16x32xf32> to vector<8x32xf32>
    %1430 = vector.extract_strided_slice %1427 {offsets = [0, 0], sizes = [8, 8], strides = [1, 1]} : vector<8x32xf32> to vector<8x8xf32>
    %1431 = arith.truncf %1430 : vector<8x8xf32> to vector<8x8xbf16>
    %1432 = vector.extract_strided_slice %1428 {offsets = [0, 0], sizes = [8, 8], strides = [1, 1]} : vector<8x32xf32> to vector<8x8xf32>
    %1433 = arith.truncf %1432 : vector<8x8xf32> to vector<8x8xbf16>
    %1434 = vector.extract_strided_slice %1429 {offsets = [0, 0], sizes = [8, 8], strides = [1, 1]} : vector<8x32xf32> to vector<8x8xf32>
    %1435 = arith.truncf %1434 : vector<8x8xf32> to vector<8x8xbf16>
    %cst_467 = arith.constant dense<0.000000e+00> : vector<8x8xf32>
    %1436 = tpu.matmul %1431, %1433, %cst_467 {dimension_numbers = #tpu.dot_dimension_numbers<[1], [1], [0], [0], [0, 0, 1, 0], [], []>} : vector<8x8xbf16>, vector<8x8xbf16>, vector<8x8xf32> -> vector<8x8xf32>
    %cst_468 = arith.constant 0.353553385 : f32
    %1437 = vector.broadcast %cst_468 : f32 to vector<8x8xf32>
    %1438 = arith.mulf %1436, %1437 : vector<8x8xf32>
    %cst_469 = arith.constant -1.000000e+09 : f32
    %1439 = vector.broadcast %cst_469 : f32 to vector<8x8xf32>
    %1440 = arith.select %10, %1438, %1439 : vector<8x8xi1>, vector<8x8xf32>
    %cst_470 = arith.constant dense<0xFF800000> : vector<8xf32>
    %1441 = vector.multi_reduction <maximumf>, %1440, %cst_470 [1] : vector<8x8xf32> to vector<8xf32>
    %1442 = vector.shape_cast %1441 : vector<8xf32> to vector<8x1xf32>
    %1443 = vector.broadcast %1442 : vector<8x1xf32> to vector<8x8xf32>
    %1444 = arith.subf %1440, %1443 : vector<8x8xf32>
    %1445 = math.exp %1444 : vector<8x8xf32>
    %cst_471 = arith.constant dense<0.000000e+00> : vector<8xf32>
    %1446 = vector.multi_reduction <add>, %1445, %cst_471 [1] : vector<8x8xf32> to vector<8xf32>
    %1447 = vector.shape_cast %1446 : vector<8xf32> to vector<8x1xf32>
    %1448 = tpu.reciprocal %1447 {approx = true} : vector<8x1xf32> -> vector<8x1xf32>
    %1449 = vector.broadcast %1448 : vector<8x1xf32> to vector<8x8xf32>
    %1450 = arith.mulf %1445, %1449 : vector<8x8xf32>
    %1451 = arith.truncf %1450 : vector<8x8xf32> to vector<8x8xbf16>
    %cst_472 = arith.constant dense<0.000000e+00> : vector<8x8xf32>
    %1452 = tpu.matmul %1451, %1435, %cst_472 {dimension_numbers = #tpu.dot_dimension_numbers<[1], [0], [0], [1], [0, 0, 1, 1], [], []>} : vector<8x8xbf16>, vector<8x8xbf16>, vector<8x8xf32> -> vector<8x8xf32>
    %1453 = arith.truncf %1452 : vector<8x8xf32> to vector<8x8xbf16>
    %1454 = vector.extract_strided_slice %1316 {offsets = [0, 0], sizes = [8, 32], strides = [1, 1]} : vector<32x32xbf16> to vector<8x32xbf16>
    %cst_473 = arith.constant dense<0.000000e+00> : vector<8x32xf32>
    %1455 = tpu.matmul %1453, %1454, %cst_473 {dimension_numbers = #tpu.dot_dimension_numbers<[1], [0], [0], [1], [0, 0, 1, 1], [], []>} : vector<8x8xbf16>, vector<8x32xbf16>, vector<8x32xf32> -> vector<8x32xf32>
    %1456 = vector.extract_strided_slice %1427 {offsets = [0, 8], sizes = [8, 8], strides = [1, 1]} : vector<8x32xf32> to vector<8x8xf32>
    %1457 = arith.truncf %1456 : vector<8x8xf32> to vector<8x8xbf16>
    %1458 = vector.extract_strided_slice %1428 {offsets = [0, 8], sizes = [8, 8], strides = [1, 1]} : vector<8x32xf32> to vector<8x8xf32>
    %1459 = arith.truncf %1458 : vector<8x8xf32> to vector<8x8xbf16>
    %1460 = vector.extract_strided_slice %1429 {offsets = [0, 8], sizes = [8, 8], strides = [1, 1]} : vector<8x32xf32> to vector<8x8xf32>
    %1461 = arith.truncf %1460 : vector<8x8xf32> to vector<8x8xbf16>
    %cst_474 = arith.constant dense<0.000000e+00> : vector<8x8xf32>
    %1462 = tpu.matmul %1457, %1459, %cst_474 {dimension_numbers = #tpu.dot_dimension_numbers<[1], [1], [0], [0], [0, 0, 1, 0], [], []>} : vector<8x8xbf16>, vector<8x8xbf16>, vector<8x8xf32> -> vector<8x8xf32>
    %cst_475 = arith.constant 0.353553385 : f32
    %1463 = vector.broadcast %cst_475 : f32 to vector<8x8xf32>
    %1464 = arith.mulf %1462, %1463 : vector<8x8xf32>
    %cst_476 = arith.constant -1.000000e+09 : f32
    %1465 = vector.broadcast %cst_476 : f32 to vector<8x8xf32>
    %1466 = arith.select %10, %1464, %1465 : vector<8x8xi1>, vector<8x8xf32>
    %cst_477 = arith.constant dense<0xFF800000> : vector<8xf32>
    %1467 = vector.multi_reduction <maximumf>, %1466, %cst_477 [1] : vector<8x8xf32> to vector<8xf32>
    %1468 = vector.shape_cast %1467 : vector<8xf32> to vector<8x1xf32>
    %1469 = vector.broadcast %1468 : vector<8x1xf32> to vector<8x8xf32>
    %1470 = arith.subf %1466, %1469 : vector<8x8xf32>
    %1471 = math.exp %1470 : vector<8x8xf32>
    %cst_478 = arith.constant dense<0.000000e+00> : vector<8xf32>
    %1472 = vector.multi_reduction <add>, %1471, %cst_478 [1] : vector<8x8xf32> to vector<8xf32>
    %1473 = vector.shape_cast %1472 : vector<8xf32> to vector<8x1xf32>
    %1474 = tpu.reciprocal %1473 {approx = true} : vector<8x1xf32> -> vector<8x1xf32>
    %1475 = vector.broadcast %1474 : vector<8x1xf32> to vector<8x8xf32>
    %1476 = arith.mulf %1471, %1475 : vector<8x8xf32>
    %1477 = arith.truncf %1476 : vector<8x8xf32> to vector<8x8xbf16>
    %cst_479 = arith.constant dense<0.000000e+00> : vector<8x8xf32>
    %1478 = tpu.matmul %1477, %1461, %cst_479 {dimension_numbers = #tpu.dot_dimension_numbers<[1], [0], [0], [1], [0, 0, 1, 1], [], []>} : vector<8x8xbf16>, vector<8x8xbf16>, vector<8x8xf32> -> vector<8x8xf32>
    %1479 = arith.truncf %1478 : vector<8x8xf32> to vector<8x8xbf16>
    %1480 = vector.extract_strided_slice %1316 {offsets = [8, 0], sizes = [8, 32], strides = [1, 1]} : vector<32x32xbf16> to vector<8x32xbf16>
    %cst_480 = arith.constant dense<0.000000e+00> : vector<8x32xf32>
    %1481 = tpu.matmul %1479, %1480, %cst_480 {dimension_numbers = #tpu.dot_dimension_numbers<[1], [0], [0], [1], [0, 0, 1, 1], [], []>} : vector<8x8xbf16>, vector<8x32xbf16>, vector<8x32xf32> -> vector<8x32xf32>
    %1482 = arith.addf %1455, %1481 : vector<8x32xf32>
    %1483 = vector.extract_strided_slice %1427 {offsets = [0, 16], sizes = [8, 8], strides = [1, 1]} : vector<8x32xf32> to vector<8x8xf32>
    %1484 = arith.truncf %1483 : vector<8x8xf32> to vector<8x8xbf16>
    %1485 = vector.extract_strided_slice %1428 {offsets = [0, 16], sizes = [8, 8], strides = [1, 1]} : vector<8x32xf32> to vector<8x8xf32>
    %1486 = arith.truncf %1485 : vector<8x8xf32> to vector<8x8xbf16>
    %1487 = vector.extract_strided_slice %1429 {offsets = [0, 16], sizes = [8, 8], strides = [1, 1]} : vector<8x32xf32> to vector<8x8xf32>
    %1488 = arith.truncf %1487 : vector<8x8xf32> to vector<8x8xbf16>
    %cst_481 = arith.constant dense<0.000000e+00> : vector<8x8xf32>
    %1489 = tpu.matmul %1484, %1486, %cst_481 {dimension_numbers = #tpu.dot_dimension_numbers<[1], [1], [0], [0], [0, 0, 1, 0], [], []>} : vector<8x8xbf16>, vector<8x8xbf16>, vector<8x8xf32> -> vector<8x8xf32>
    %cst_482 = arith.constant 0.353553385 : f32
    %1490 = vector.broadcast %cst_482 : f32 to vector<8x8xf32>
    %1491 = arith.mulf %1489, %1490 : vector<8x8xf32>
    %cst_483 = arith.constant -1.000000e+09 : f32
    %1492 = vector.broadcast %cst_483 : f32 to vector<8x8xf32>
    %1493 = arith.select %10, %1491, %1492 : vector<8x8xi1>, vector<8x8xf32>
    %cst_484 = arith.constant dense<0xFF800000> : vector<8xf32>
    %1494 = vector.multi_reduction <maximumf>, %1493, %cst_484 [1] : vector<8x8xf32> to vector<8xf32>
    %1495 = vector.shape_cast %1494 : vector<8xf32> to vector<8x1xf32>
    %1496 = vector.broadcast %1495 : vector<8x1xf32> to vector<8x8xf32>
    %1497 = arith.subf %1493, %1496 : vector<8x8xf32>
    %1498 = math.exp %1497 : vector<8x8xf32>
    %cst_485 = arith.constant dense<0.000000e+00> : vector<8xf32>
    %1499 = vector.multi_reduction <add>, %1498, %cst_485 [1] : vector<8x8xf32> to vector<8xf32>
    %1500 = vector.shape_cast %1499 : vector<8xf32> to vector<8x1xf32>
    %1501 = tpu.reciprocal %1500 {approx = true} : vector<8x1xf32> -> vector<8x1xf32>
    %1502 = vector.broadcast %1501 : vector<8x1xf32> to vector<8x8xf32>
    %1503 = arith.mulf %1498, %1502 : vector<8x8xf32>
    %1504 = arith.truncf %1503 : vector<8x8xf32> to vector<8x8xbf16>
    %cst_486 = arith.constant dense<0.000000e+00> : vector<8x8xf32>
    %1505 = tpu.matmul %1504, %1488, %cst_486 {dimension_numbers = #tpu.dot_dimension_numbers<[1], [0], [0], [1], [0, 0, 1, 1], [], []>} : vector<8x8xbf16>, vector<8x8xbf16>, vector<8x8xf32> -> vector<8x8xf32>
    %1506 = arith.truncf %1505 : vector<8x8xf32> to vector<8x8xbf16>
    %1507 = vector.extract_strided_slice %1316 {offsets = [16, 0], sizes = [8, 32], strides = [1, 1]} : vector<32x32xbf16> to vector<8x32xbf16>
    %cst_487 = arith.constant dense<0.000000e+00> : vector<8x32xf32>
    %1508 = tpu.matmul %1506, %1507, %cst_487 {dimension_numbers = #tpu.dot_dimension_numbers<[1], [0], [0], [1], [0, 0, 1, 1], [], []>} : vector<8x8xbf16>, vector<8x32xbf16>, vector<8x32xf32> -> vector<8x32xf32>
    %1509 = arith.addf %1482, %1508 : vector<8x32xf32>
    %1510 = vector.extract_strided_slice %1427 {offsets = [0, 24], sizes = [8, 8], strides = [1, 1]} : vector<8x32xf32> to vector<8x8xf32>
    %1511 = arith.truncf %1510 : vector<8x8xf32> to vector<8x8xbf16>
    %1512 = vector.extract_strided_slice %1428 {offsets = [0, 24], sizes = [8, 8], strides = [1, 1]} : vector<8x32xf32> to vector<8x8xf32>
    %1513 = arith.truncf %1512 : vector<8x8xf32> to vector<8x8xbf16>
    %1514 = vector.extract_strided_slice %1429 {offsets = [0, 24], sizes = [8, 8], strides = [1, 1]} : vector<8x32xf32> to vector<8x8xf32>
    %1515 = arith.truncf %1514 : vector<8x8xf32> to vector<8x8xbf16>
    %cst_488 = arith.constant dense<0.000000e+00> : vector<8x8xf32>
    %1516 = tpu.matmul %1511, %1513, %cst_488 {dimension_numbers = #tpu.dot_dimension_numbers<[1], [1], [0], [0], [0, 0, 1, 0], [], []>} : vector<8x8xbf16>, vector<8x8xbf16>, vector<8x8xf32> -> vector<8x8xf32>
    %cst_489 = arith.constant 0.353553385 : f32
    %1517 = vector.broadcast %cst_489 : f32 to vector<8x8xf32>
    %1518 = arith.mulf %1516, %1517 : vector<8x8xf32>
    %cst_490 = arith.constant -1.000000e+09 : f32
    %1519 = vector.broadcast %cst_490 : f32 to vector<8x8xf32>
    %1520 = arith.select %10, %1518, %1519 : vector<8x8xi1>, vector<8x8xf32>
    %cst_491 = arith.constant dense<0xFF800000> : vector<8xf32>
    %1521 = vector.multi_reduction <maximumf>, %1520, %cst_491 [1] : vector<8x8xf32> to vector<8xf32>
    %1522 = vector.shape_cast %1521 : vector<8xf32> to vector<8x1xf32>
    %1523 = vector.broadcast %1522 : vector<8x1xf32> to vector<8x8xf32>
    %1524 = arith.subf %1520, %1523 : vector<8x8xf32>
    %1525 = math.exp %1524 : vector<8x8xf32>
    %cst_492 = arith.constant dense<0.000000e+00> : vector<8xf32>
    %1526 = vector.multi_reduction <add>, %1525, %cst_492 [1] : vector<8x8xf32> to vector<8xf32>
    %1527 = vector.shape_cast %1526 : vector<8xf32> to vector<8x1xf32>
    %1528 = tpu.reciprocal %1527 {approx = true} : vector<8x1xf32> -> vector<8x1xf32>
    %1529 = vector.broadcast %1528 : vector<8x1xf32> to vector<8x8xf32>
    %1530 = arith.mulf %1525, %1529 : vector<8x8xf32>
    %1531 = arith.truncf %1530 : vector<8x8xf32> to vector<8x8xbf16>
    %cst_493 = arith.constant dense<0.000000e+00> : vector<8x8xf32>
    %1532 = tpu.matmul %1531, %1515, %cst_493 {dimension_numbers = #tpu.dot_dimension_numbers<[1], [0], [0], [1], [0, 0, 1, 1], [], []>} : vector<8x8xbf16>, vector<8x8xbf16>, vector<8x8xf32> -> vector<8x8xf32>
    %1533 = arith.truncf %1532 : vector<8x8xf32> to vector<8x8xbf16>
    %1534 = vector.extract_strided_slice %1316 {offsets = [24, 0], sizes = [8, 32], strides = [1, 1]} : vector<32x32xbf16> to vector<8x32xbf16>
    %cst_494 = arith.constant dense<0.000000e+00> : vector<8x32xf32>
    %1535 = tpu.matmul %1533, %1534, %cst_494 {dimension_numbers = #tpu.dot_dimension_numbers<[1], [0], [0], [1], [0, 0, 1, 1], [], []>} : vector<8x8xbf16>, vector<8x32xbf16>, vector<8x32xf32> -> vector<8x32xf32>
    %1536 = arith.addf %1509, %1535 : vector<8x32xf32>
    %1537 = tpu.concatenate %1426, %1536 in 0 : vector<8x32xf32>, vector<8x32xf32> -> vector<16x32xf32>
    %1538 = arith.addf %1278, %1537 : vector<16x32xf32>
    %c1_495 = arith.constant 1 : index
    %c0_496 = arith.constant 0 : index
    %c0_497 = arith.constant 0 : index
    %1539 = vector.load %arg22[%c1_495, %c0_496, %c0_497] : memref<2x1x32xf32, #tpu.memory_space<vmem>>, vector<1x1x32xf32>
    %1540 = vector.shape_cast %1539 : vector<1x1x32xf32> to vector<1x32xf32>
    %1541 = vector.broadcast %1540 : vector<1x32xf32> to vector<16x32xf32>
    %1542 = arith.addf %1538, %1541 : vector<16x32xf32>
    %c1_498 = arith.constant 1 : index
    %c0_499 = arith.constant 0 : index
    %c0_500 = arith.constant 0 : index
    %1543 = vector.load %arg23[%c1_498, %c0_499, %c0_500] : memref<2x1x32xf32, #tpu.memory_space<vmem>>, vector<1x1x32xf32>
    %1544 = vector.shape_cast %1543 : vector<1x1x32xf32> to vector<1x32xf32>
    %c1_501 = arith.constant 1 : index
    %c0_502 = arith.constant 0 : index
    %c0_503 = arith.constant 0 : index
    %1545 = vector.load %arg24[%c1_501, %c0_502, %c0_503] : memref<2x1x32xf32, #tpu.memory_space<vmem>>, vector<1x1x32xf32>
    %1546 = vector.shape_cast %1545 : vector<1x1x32xf32> to vector<1x32xf32>
    %cst_504 = arith.constant dense<0.000000e+00> : vector<16xf32>
    %1547 = vector.multi_reduction <add>, %1542, %cst_504 [1] : vector<16x32xf32> to vector<16xf32>
    %1548 = vector.shape_cast %1547 : vector<16xf32> to vector<16x1xf32>
    %cst_505 = arith.constant 3.200000e+01 : f32
    %1549 = vector.broadcast %cst_505 : f32 to vector<16x1xf32>
    %1550 = arith.divf %1548, %1549 : vector<16x1xf32>
    %1551 = vector.broadcast %1550 : vector<16x1xf32> to vector<16x32xf32>
    %1552 = arith.subf %1542, %1551 : vector<16x32xf32>
    %1553 = arith.mulf %1552, %1552 : vector<16x32xf32>
    %cst_506 = arith.constant dense<0.000000e+00> : vector<16xf32>
    %1554 = vector.multi_reduction <add>, %1553, %cst_506 [1] : vector<16x32xf32> to vector<16xf32>
    %1555 = vector.shape_cast %1554 : vector<16xf32> to vector<16x1xf32>
    %cst_507 = arith.constant 0.0322580636 : f32
    %1556 = vector.broadcast %cst_507 : f32 to vector<16x1xf32>
    %1557 = arith.mulf %1555, %1556 : vector<16x1xf32>
    %1558 = math.sqrt %1557 : vector<16x1xf32>
    %cst_508 = arith.constant 9.99999997E-7 : f32
    %1559 = vector.broadcast %cst_508 : f32 to vector<16x1xf32>
    %1560 = arith.addf %1558, %1559 : vector<16x1xf32>
    %1561 = tpu.reciprocal %1560 {approx = true} : vector<16x1xf32> -> vector<16x1xf32>
    %1562 = vector.broadcast %1561 : vector<16x1xf32> to vector<16x32xf32>
    %1563 = arith.mulf %1552, %1562 : vector<16x32xf32>
    %1564 = vector.broadcast %1544 : vector<1x32xf32> to vector<16x32xf32>
    %1565 = arith.mulf %1564, %1563 : vector<16x32xf32>
    %1566 = vector.broadcast %1546 : vector<1x32xf32> to vector<16x32xf32>
    %1567 = arith.addf %1565, %1566 : vector<16x32xf32>
    %c1_509 = arith.constant 1 : index
    %c0_510 = arith.constant 0 : index
    %c0_511 = arith.constant 0 : index
    %1568 = vector.load %arg25[%c1_509, %c0_510, %c0_511] : memref<2x32x32xbf16, #tpu.memory_space<vmem>>, vector<1x32x32xbf16>
    %1569 = vector.shape_cast %1568 : vector<1x32x32xbf16> to vector<32x32xbf16>
    %c1_512 = arith.constant 1 : index
    %c0_513 = arith.constant 0 : index
    %c0_514 = arith.constant 0 : index
    %1570 = vector.load %arg26[%c1_512, %c0_513, %c0_514] : memref<2x1x32xf32, #tpu.memory_space<vmem>>, vector<1x1x32xf32>
    %1571 = vector.shape_cast %1570 : vector<1x1x32xf32> to vector<1x32xf32>
    %1572 = arith.truncf %1567 : vector<16x32xf32> to vector<16x32xbf16>
    %cst_515 = arith.constant dense<0.000000e+00> : vector<16x32xf32>
    %1573 = tpu.matmul %1572, %1569, %cst_515 {dimension_numbers = #tpu.dot_dimension_numbers<[1], [0], [0], [1], [0, 0, 1, 1], [], []>} : vector<16x32xbf16>, vector<32x32xbf16>, vector<16x32xf32> -> vector<16x32xf32>
    %1574 = vector.broadcast %1571 : vector<1x32xf32> to vector<16x32xf32>
    %1575 = arith.addf %1573, %1574 : vector<16x32xf32>
    %c1_516 = arith.constant 1 : index
    %c0_517 = arith.constant 0 : index
    %c0_518 = arith.constant 0 : index
    %1576 = vector.load %arg27[%c1_516, %c0_517, %c0_518] : memref<2x32x64xbf16, #tpu.memory_space<vmem>>, vector<1x32x64xbf16>
    %1577 = vector.shape_cast %1576 : vector<1x32x64xbf16> to vector<32x64xbf16>
    %c1_519 = arith.constant 1 : index
    %c0_520 = arith.constant 0 : index
    %c0_521 = arith.constant 0 : index
    %1578 = vector.load %arg28[%c1_519, %c0_520, %c0_521] : memref<2x1x64xf32, #tpu.memory_space<vmem>>, vector<1x1x64xf32>
    %1579 = vector.shape_cast %1578 : vector<1x1x64xf32> to vector<1x64xf32>
    %1580 = arith.truncf %682 : vector<16x32xf32> to vector<16x32xbf16>
    %cst_522 = arith.constant dense<0.000000e+00> : vector<16x64xf32>
    %1581 = tpu.matmul %1580, %1577, %cst_522 {dimension_numbers = #tpu.dot_dimension_numbers<[1], [0], [0], [1], [0, 0, 1, 1], [], []>} : vector<16x32xbf16>, vector<32x64xbf16>, vector<16x64xf32> -> vector<16x64xf32>
    %1582 = vector.broadcast %1579 : vector<1x64xf32> to vector<16x64xf32>
    %1583 = arith.addf %1581, %1582 : vector<16x64xf32>
    %1584 = vector.extract_strided_slice %1583 {offsets = [0, 0], sizes = [16, 32], strides = [1, 1]} : vector<16x64xf32> to vector<16x32xf32>
    %1585 = vector.extract_strided_slice %1583 {offsets = [0, 32], sizes = [16, 32], strides = [1, 1]} : vector<16x64xf32> to vector<16x32xf32>
    %c1_523 = arith.constant 1 : index
    %c0_524 = arith.constant 0 : index
    %c0_525 = arith.constant 0 : index
    %1586 = vector.load %arg29[%c1_523, %c0_524, %c0_525] : memref<2x32x32xbf16, #tpu.memory_space<vmem>>, vector<1x32x32xbf16>
    %1587 = vector.shape_cast %1586 : vector<1x32x32xbf16> to vector<32x32xbf16>
    %1588 = vector.extract_strided_slice %1575 {offsets = [0, 0], sizes = [8, 32], strides = [1, 1]} : vector<16x32xf32> to vector<8x32xf32>
    %1589 = vector.extract_strided_slice %1584 {offsets = [0, 0], sizes = [8, 32], strides = [1, 1]} : vector<16x32xf32> to vector<8x32xf32>
    %1590 = vector.extract_strided_slice %1585 {offsets = [0, 0], sizes = [8, 32], strides = [1, 1]} : vector<16x32xf32> to vector<8x32xf32>
    %1591 = vector.extract_strided_slice %1588 {offsets = [0, 0], sizes = [8, 8], strides = [1, 1]} : vector<8x32xf32> to vector<8x8xf32>
    %1592 = arith.truncf %1591 : vector<8x8xf32> to vector<8x8xbf16>
    %1593 = vector.extract_strided_slice %1589 {offsets = [0, 0], sizes = [8, 8], strides = [1, 1]} : vector<8x32xf32> to vector<8x8xf32>
    %1594 = arith.truncf %1593 : vector<8x8xf32> to vector<8x8xbf16>
    %1595 = vector.extract_strided_slice %1590 {offsets = [0, 0], sizes = [8, 8], strides = [1, 1]} : vector<8x32xf32> to vector<8x8xf32>
    %1596 = arith.truncf %1595 : vector<8x8xf32> to vector<8x8xbf16>
    %cst_526 = arith.constant dense<0.000000e+00> : vector<8x8xf32>
    %1597 = tpu.matmul %1592, %1594, %cst_526 {dimension_numbers = #tpu.dot_dimension_numbers<[1], [1], [0], [0], [0, 0, 1, 0], [], []>} : vector<8x8xbf16>, vector<8x8xbf16>, vector<8x8xf32> -> vector<8x8xf32>
    %cst_527 = arith.constant 0.353553385 : f32
    %1598 = vector.broadcast %cst_527 : f32 to vector<8x8xf32>
    %1599 = arith.mulf %1597, %1598 : vector<8x8xf32>
    %cst_528 = arith.constant -1.000000e+09 : f32
    %1600 = vector.shape_cast %4 : vector<1x8xi1> to vector<1x8xi1>
    %1601 = vector.broadcast %1600 : vector<1x8xi1> to vector<8x8xi1>
    %1602 = vector.broadcast %cst_528 : f32 to vector<8x8xf32>
    %1603 = arith.select %1601, %1599, %1602 : vector<8x8xi1>, vector<8x8xf32>
    %cst_529 = arith.constant dense<0xFF800000> : vector<8xf32>
    %1604 = vector.multi_reduction <maximumf>, %1603, %cst_529 [1] : vector<8x8xf32> to vector<8xf32>
    %1605 = vector.shape_cast %1604 : vector<8xf32> to vector<8x1xf32>
    %1606 = vector.broadcast %1605 : vector<8x1xf32> to vector<8x8xf32>
    %1607 = arith.subf %1603, %1606 : vector<8x8xf32>
    %1608 = math.exp %1607 : vector<8x8xf32>
    %cst_530 = arith.constant dense<0.000000e+00> : vector<8xf32>
    %1609 = vector.multi_reduction <add>, %1608, %cst_530 [1] : vector<8x8xf32> to vector<8xf32>
    %1610 = vector.shape_cast %1609 : vector<8xf32> to vector<8x1xf32>
    %1611 = tpu.reciprocal %1610 {approx = true} : vector<8x1xf32> -> vector<8x1xf32>
    %1612 = vector.broadcast %1611 : vector<8x1xf32> to vector<8x8xf32>
    %1613 = arith.mulf %1608, %1612 : vector<8x8xf32>
    %1614 = arith.truncf %1613 : vector<8x8xf32> to vector<8x8xbf16>
    %cst_531 = arith.constant dense<0.000000e+00> : vector<8x8xf32>
    %1615 = tpu.matmul %1614, %1596, %cst_531 {dimension_numbers = #tpu.dot_dimension_numbers<[1], [0], [0], [1], [0, 0, 1, 1], [], []>} : vector<8x8xbf16>, vector<8x8xbf16>, vector<8x8xf32> -> vector<8x8xf32>
    %1616 = arith.truncf %1615 : vector<8x8xf32> to vector<8x8xbf16>
    %1617 = vector.extract_strided_slice %1587 {offsets = [0, 0], sizes = [8, 32], strides = [1, 1]} : vector<32x32xbf16> to vector<8x32xbf16>
    %cst_532 = arith.constant dense<0.000000e+00> : vector<8x32xf32>
    %1618 = tpu.matmul %1616, %1617, %cst_532 {dimension_numbers = #tpu.dot_dimension_numbers<[1], [0], [0], [1], [0, 0, 1, 1], [], []>} : vector<8x8xbf16>, vector<8x32xbf16>, vector<8x32xf32> -> vector<8x32xf32>
    %1619 = vector.extract_strided_slice %1588 {offsets = [0, 8], sizes = [8, 8], strides = [1, 1]} : vector<8x32xf32> to vector<8x8xf32>
    %1620 = arith.truncf %1619 : vector<8x8xf32> to vector<8x8xbf16>
    %1621 = vector.extract_strided_slice %1589 {offsets = [0, 8], sizes = [8, 8], strides = [1, 1]} : vector<8x32xf32> to vector<8x8xf32>
    %1622 = arith.truncf %1621 : vector<8x8xf32> to vector<8x8xbf16>
    %1623 = vector.extract_strided_slice %1590 {offsets = [0, 8], sizes = [8, 8], strides = [1, 1]} : vector<8x32xf32> to vector<8x8xf32>
    %1624 = arith.truncf %1623 : vector<8x8xf32> to vector<8x8xbf16>
    %cst_533 = arith.constant dense<0.000000e+00> : vector<8x8xf32>
    %1625 = tpu.matmul %1620, %1622, %cst_533 {dimension_numbers = #tpu.dot_dimension_numbers<[1], [1], [0], [0], [0, 0, 1, 0], [], []>} : vector<8x8xbf16>, vector<8x8xbf16>, vector<8x8xf32> -> vector<8x8xf32>
    %cst_534 = arith.constant 0.353553385 : f32
    %1626 = vector.broadcast %cst_534 : f32 to vector<8x8xf32>
    %1627 = arith.mulf %1625, %1626 : vector<8x8xf32>
    %cst_535 = arith.constant -1.000000e+09 : f32
    %1628 = vector.shape_cast %4 : vector<1x8xi1> to vector<1x8xi1>
    %1629 = vector.broadcast %1628 : vector<1x8xi1> to vector<8x8xi1>
    %1630 = vector.broadcast %cst_535 : f32 to vector<8x8xf32>
    %1631 = arith.select %1629, %1627, %1630 : vector<8x8xi1>, vector<8x8xf32>
    %cst_536 = arith.constant dense<0xFF800000> : vector<8xf32>
    %1632 = vector.multi_reduction <maximumf>, %1631, %cst_536 [1] : vector<8x8xf32> to vector<8xf32>
    %1633 = vector.shape_cast %1632 : vector<8xf32> to vector<8x1xf32>
    %1634 = vector.broadcast %1633 : vector<8x1xf32> to vector<8x8xf32>
    %1635 = arith.subf %1631, %1634 : vector<8x8xf32>
    %1636 = math.exp %1635 : vector<8x8xf32>
    %cst_537 = arith.constant dense<0.000000e+00> : vector<8xf32>
    %1637 = vector.multi_reduction <add>, %1636, %cst_537 [1] : vector<8x8xf32> to vector<8xf32>
    %1638 = vector.shape_cast %1637 : vector<8xf32> to vector<8x1xf32>
    %1639 = tpu.reciprocal %1638 {approx = true} : vector<8x1xf32> -> vector<8x1xf32>
    %1640 = vector.broadcast %1639 : vector<8x1xf32> to vector<8x8xf32>
    %1641 = arith.mulf %1636, %1640 : vector<8x8xf32>
    %1642 = arith.truncf %1641 : vector<8x8xf32> to vector<8x8xbf16>
    %cst_538 = arith.constant dense<0.000000e+00> : vector<8x8xf32>
    %1643 = tpu.matmul %1642, %1624, %cst_538 {dimension_numbers = #tpu.dot_dimension_numbers<[1], [0], [0], [1], [0, 0, 1, 1], [], []>} : vector<8x8xbf16>, vector<8x8xbf16>, vector<8x8xf32> -> vector<8x8xf32>
    %1644 = arith.truncf %1643 : vector<8x8xf32> to vector<8x8xbf16>
    %1645 = vector.extract_strided_slice %1587 {offsets = [8, 0], sizes = [8, 32], strides = [1, 1]} : vector<32x32xbf16> to vector<8x32xbf16>
    %cst_539 = arith.constant dense<0.000000e+00> : vector<8x32xf32>
    %1646 = tpu.matmul %1644, %1645, %cst_539 {dimension_numbers = #tpu.dot_dimension_numbers<[1], [0], [0], [1], [0, 0, 1, 1], [], []>} : vector<8x8xbf16>, vector<8x32xbf16>, vector<8x32xf32> -> vector<8x32xf32>
    %1647 = arith.addf %1618, %1646 : vector<8x32xf32>
    %1648 = vector.extract_strided_slice %1588 {offsets = [0, 16], sizes = [8, 8], strides = [1, 1]} : vector<8x32xf32> to vector<8x8xf32>
    %1649 = arith.truncf %1648 : vector<8x8xf32> to vector<8x8xbf16>
    %1650 = vector.extract_strided_slice %1589 {offsets = [0, 16], sizes = [8, 8], strides = [1, 1]} : vector<8x32xf32> to vector<8x8xf32>
    %1651 = arith.truncf %1650 : vector<8x8xf32> to vector<8x8xbf16>
    %1652 = vector.extract_strided_slice %1590 {offsets = [0, 16], sizes = [8, 8], strides = [1, 1]} : vector<8x32xf32> to vector<8x8xf32>
    %1653 = arith.truncf %1652 : vector<8x8xf32> to vector<8x8xbf16>
    %cst_540 = arith.constant dense<0.000000e+00> : vector<8x8xf32>
    %1654 = tpu.matmul %1649, %1651, %cst_540 {dimension_numbers = #tpu.dot_dimension_numbers<[1], [1], [0], [0], [0, 0, 1, 0], [], []>} : vector<8x8xbf16>, vector<8x8xbf16>, vector<8x8xf32> -> vector<8x8xf32>
    %cst_541 = arith.constant 0.353553385 : f32
    %1655 = vector.broadcast %cst_541 : f32 to vector<8x8xf32>
    %1656 = arith.mulf %1654, %1655 : vector<8x8xf32>
    %cst_542 = arith.constant -1.000000e+09 : f32
    %1657 = vector.shape_cast %4 : vector<1x8xi1> to vector<1x8xi1>
    %1658 = vector.broadcast %1657 : vector<1x8xi1> to vector<8x8xi1>
    %1659 = vector.broadcast %cst_542 : f32 to vector<8x8xf32>
    %1660 = arith.select %1658, %1656, %1659 : vector<8x8xi1>, vector<8x8xf32>
    %cst_543 = arith.constant dense<0xFF800000> : vector<8xf32>
    %1661 = vector.multi_reduction <maximumf>, %1660, %cst_543 [1] : vector<8x8xf32> to vector<8xf32>
    %1662 = vector.shape_cast %1661 : vector<8xf32> to vector<8x1xf32>
    %1663 = vector.broadcast %1662 : vector<8x1xf32> to vector<8x8xf32>
    %1664 = arith.subf %1660, %1663 : vector<8x8xf32>
    %1665 = math.exp %1664 : vector<8x8xf32>
    %cst_544 = arith.constant dense<0.000000e+00> : vector<8xf32>
    %1666 = vector.multi_reduction <add>, %1665, %cst_544 [1] : vector<8x8xf32> to vector<8xf32>
    %1667 = vector.shape_cast %1666 : vector<8xf32> to vector<8x1xf32>
    %1668 = tpu.reciprocal %1667 {approx = true} : vector<8x1xf32> -> vector<8x1xf32>
    %1669 = vector.broadcast %1668 : vector<8x1xf32> to vector<8x8xf32>
    %1670 = arith.mulf %1665, %1669 : vector<8x8xf32>
    %1671 = arith.truncf %1670 : vector<8x8xf32> to vector<8x8xbf16>
    %cst_545 = arith.constant dense<0.000000e+00> : vector<8x8xf32>
    %1672 = tpu.matmul %1671, %1653, %cst_545 {dimension_numbers = #tpu.dot_dimension_numbers<[1], [0], [0], [1], [0, 0, 1, 1], [], []>} : vector<8x8xbf16>, vector<8x8xbf16>, vector<8x8xf32> -> vector<8x8xf32>
    %1673 = arith.truncf %1672 : vector<8x8xf32> to vector<8x8xbf16>
    %1674 = vector.extract_strided_slice %1587 {offsets = [16, 0], sizes = [8, 32], strides = [1, 1]} : vector<32x32xbf16> to vector<8x32xbf16>
    %cst_546 = arith.constant dense<0.000000e+00> : vector<8x32xf32>
    %1675 = tpu.matmul %1673, %1674, %cst_546 {dimension_numbers = #tpu.dot_dimension_numbers<[1], [0], [0], [1], [0, 0, 1, 1], [], []>} : vector<8x8xbf16>, vector<8x32xbf16>, vector<8x32xf32> -> vector<8x32xf32>
    %1676 = arith.addf %1647, %1675 : vector<8x32xf32>
    %1677 = vector.extract_strided_slice %1588 {offsets = [0, 24], sizes = [8, 8], strides = [1, 1]} : vector<8x32xf32> to vector<8x8xf32>
    %1678 = arith.truncf %1677 : vector<8x8xf32> to vector<8x8xbf16>
    %1679 = vector.extract_strided_slice %1589 {offsets = [0, 24], sizes = [8, 8], strides = [1, 1]} : vector<8x32xf32> to vector<8x8xf32>
    %1680 = arith.truncf %1679 : vector<8x8xf32> to vector<8x8xbf16>
    %1681 = vector.extract_strided_slice %1590 {offsets = [0, 24], sizes = [8, 8], strides = [1, 1]} : vector<8x32xf32> to vector<8x8xf32>
    %1682 = arith.truncf %1681 : vector<8x8xf32> to vector<8x8xbf16>
    %cst_547 = arith.constant dense<0.000000e+00> : vector<8x8xf32>
    %1683 = tpu.matmul %1678, %1680, %cst_547 {dimension_numbers = #tpu.dot_dimension_numbers<[1], [1], [0], [0], [0, 0, 1, 0], [], []>} : vector<8x8xbf16>, vector<8x8xbf16>, vector<8x8xf32> -> vector<8x8xf32>
    %cst_548 = arith.constant 0.353553385 : f32
    %1684 = vector.broadcast %cst_548 : f32 to vector<8x8xf32>
    %1685 = arith.mulf %1683, %1684 : vector<8x8xf32>
    %cst_549 = arith.constant -1.000000e+09 : f32
    %1686 = vector.shape_cast %4 : vector<1x8xi1> to vector<1x8xi1>
    %1687 = vector.broadcast %1686 : vector<1x8xi1> to vector<8x8xi1>
    %1688 = vector.broadcast %cst_549 : f32 to vector<8x8xf32>
    %1689 = arith.select %1687, %1685, %1688 : vector<8x8xi1>, vector<8x8xf32>
    %cst_550 = arith.constant dense<0xFF800000> : vector<8xf32>
    %1690 = vector.multi_reduction <maximumf>, %1689, %cst_550 [1] : vector<8x8xf32> to vector<8xf32>
    %1691 = vector.shape_cast %1690 : vector<8xf32> to vector<8x1xf32>
    %1692 = vector.broadcast %1691 : vector<8x1xf32> to vector<8x8xf32>
    %1693 = arith.subf %1689, %1692 : vector<8x8xf32>
    %1694 = math.exp %1693 : vector<8x8xf32>
    %cst_551 = arith.constant dense<0.000000e+00> : vector<8xf32>
    %1695 = vector.multi_reduction <add>, %1694, %cst_551 [1] : vector<8x8xf32> to vector<8xf32>
    %1696 = vector.shape_cast %1695 : vector<8xf32> to vector<8x1xf32>
    %1697 = tpu.reciprocal %1696 {approx = true} : vector<8x1xf32> -> vector<8x1xf32>
    %1698 = vector.broadcast %1697 : vector<8x1xf32> to vector<8x8xf32>
    %1699 = arith.mulf %1694, %1698 : vector<8x8xf32>
    %1700 = arith.truncf %1699 : vector<8x8xf32> to vector<8x8xbf16>
    %cst_552 = arith.constant dense<0.000000e+00> : vector<8x8xf32>
    %1701 = tpu.matmul %1700, %1682, %cst_552 {dimension_numbers = #tpu.dot_dimension_numbers<[1], [0], [0], [1], [0, 0, 1, 1], [], []>} : vector<8x8xbf16>, vector<8x8xbf16>, vector<8x8xf32> -> vector<8x8xf32>
    %1702 = arith.truncf %1701 : vector<8x8xf32> to vector<8x8xbf16>
    %1703 = vector.extract_strided_slice %1587 {offsets = [24, 0], sizes = [8, 32], strides = [1, 1]} : vector<32x32xbf16> to vector<8x32xbf16>
    %cst_553 = arith.constant dense<0.000000e+00> : vector<8x32xf32>
    %1704 = tpu.matmul %1702, %1703, %cst_553 {dimension_numbers = #tpu.dot_dimension_numbers<[1], [0], [0], [1], [0, 0, 1, 1], [], []>} : vector<8x8xbf16>, vector<8x32xbf16>, vector<8x32xf32> -> vector<8x32xf32>
    %1705 = arith.addf %1676, %1704 : vector<8x32xf32>
    %1706 = vector.extract_strided_slice %1575 {offsets = [8, 0], sizes = [8, 32], strides = [1, 1]} : vector<16x32xf32> to vector<8x32xf32>
    %1707 = vector.extract_strided_slice %1584 {offsets = [8, 0], sizes = [8, 32], strides = [1, 1]} : vector<16x32xf32> to vector<8x32xf32>
    %1708 = vector.extract_strided_slice %1585 {offsets = [8, 0], sizes = [8, 32], strides = [1, 1]} : vector<16x32xf32> to vector<8x32xf32>
    %1709 = vector.extract_strided_slice %1706 {offsets = [0, 0], sizes = [8, 8], strides = [1, 1]} : vector<8x32xf32> to vector<8x8xf32>
    %1710 = arith.truncf %1709 : vector<8x8xf32> to vector<8x8xbf16>
    %1711 = vector.extract_strided_slice %1707 {offsets = [0, 0], sizes = [8, 8], strides = [1, 1]} : vector<8x32xf32> to vector<8x8xf32>
    %1712 = arith.truncf %1711 : vector<8x8xf32> to vector<8x8xbf16>
    %1713 = vector.extract_strided_slice %1708 {offsets = [0, 0], sizes = [8, 8], strides = [1, 1]} : vector<8x32xf32> to vector<8x8xf32>
    %1714 = arith.truncf %1713 : vector<8x8xf32> to vector<8x8xbf16>
    %cst_554 = arith.constant dense<0.000000e+00> : vector<8x8xf32>
    %1715 = tpu.matmul %1710, %1712, %cst_554 {dimension_numbers = #tpu.dot_dimension_numbers<[1], [1], [0], [0], [0, 0, 1, 0], [], []>} : vector<8x8xbf16>, vector<8x8xbf16>, vector<8x8xf32> -> vector<8x8xf32>
    %cst_555 = arith.constant 0.353553385 : f32
    %1716 = vector.broadcast %cst_555 : f32 to vector<8x8xf32>
    %1717 = arith.mulf %1715, %1716 : vector<8x8xf32>
    %cst_556 = arith.constant -1.000000e+09 : f32
    %1718 = vector.shape_cast %7 : vector<1x8xi1> to vector<1x8xi1>
    %1719 = vector.broadcast %1718 : vector<1x8xi1> to vector<8x8xi1>
    %1720 = vector.broadcast %cst_556 : f32 to vector<8x8xf32>
    %1721 = arith.select %1719, %1717, %1720 : vector<8x8xi1>, vector<8x8xf32>
    %cst_557 = arith.constant dense<0xFF800000> : vector<8xf32>
    %1722 = vector.multi_reduction <maximumf>, %1721, %cst_557 [1] : vector<8x8xf32> to vector<8xf32>
    %1723 = vector.shape_cast %1722 : vector<8xf32> to vector<8x1xf32>
    %1724 = vector.broadcast %1723 : vector<8x1xf32> to vector<8x8xf32>
    %1725 = arith.subf %1721, %1724 : vector<8x8xf32>
    %1726 = math.exp %1725 : vector<8x8xf32>
    %cst_558 = arith.constant dense<0.000000e+00> : vector<8xf32>
    %1727 = vector.multi_reduction <add>, %1726, %cst_558 [1] : vector<8x8xf32> to vector<8xf32>
    %1728 = vector.shape_cast %1727 : vector<8xf32> to vector<8x1xf32>
    %1729 = tpu.reciprocal %1728 {approx = true} : vector<8x1xf32> -> vector<8x1xf32>
    %1730 = vector.broadcast %1729 : vector<8x1xf32> to vector<8x8xf32>
    %1731 = arith.mulf %1726, %1730 : vector<8x8xf32>
    %1732 = arith.truncf %1731 : vector<8x8xf32> to vector<8x8xbf16>
    %cst_559 = arith.constant dense<0.000000e+00> : vector<8x8xf32>
    %1733 = tpu.matmul %1732, %1714, %cst_559 {dimension_numbers = #tpu.dot_dimension_numbers<[1], [0], [0], [1], [0, 0, 1, 1], [], []>} : vector<8x8xbf16>, vector<8x8xbf16>, vector<8x8xf32> -> vector<8x8xf32>
    %1734 = arith.truncf %1733 : vector<8x8xf32> to vector<8x8xbf16>
    %1735 = vector.extract_strided_slice %1587 {offsets = [0, 0], sizes = [8, 32], strides = [1, 1]} : vector<32x32xbf16> to vector<8x32xbf16>
    %cst_560 = arith.constant dense<0.000000e+00> : vector<8x32xf32>
    %1736 = tpu.matmul %1734, %1735, %cst_560 {dimension_numbers = #tpu.dot_dimension_numbers<[1], [0], [0], [1], [0, 0, 1, 1], [], []>} : vector<8x8xbf16>, vector<8x32xbf16>, vector<8x32xf32> -> vector<8x32xf32>
    %1737 = vector.extract_strided_slice %1706 {offsets = [0, 8], sizes = [8, 8], strides = [1, 1]} : vector<8x32xf32> to vector<8x8xf32>
    %1738 = arith.truncf %1737 : vector<8x8xf32> to vector<8x8xbf16>
    %1739 = vector.extract_strided_slice %1707 {offsets = [0, 8], sizes = [8, 8], strides = [1, 1]} : vector<8x32xf32> to vector<8x8xf32>
    %1740 = arith.truncf %1739 : vector<8x8xf32> to vector<8x8xbf16>
    %1741 = vector.extract_strided_slice %1708 {offsets = [0, 8], sizes = [8, 8], strides = [1, 1]} : vector<8x32xf32> to vector<8x8xf32>
    %1742 = arith.truncf %1741 : vector<8x8xf32> to vector<8x8xbf16>
    %cst_561 = arith.constant dense<0.000000e+00> : vector<8x8xf32>
    %1743 = tpu.matmul %1738, %1740, %cst_561 {dimension_numbers = #tpu.dot_dimension_numbers<[1], [1], [0], [0], [0, 0, 1, 0], [], []>} : vector<8x8xbf16>, vector<8x8xbf16>, vector<8x8xf32> -> vector<8x8xf32>
    %cst_562 = arith.constant 0.353553385 : f32
    %1744 = vector.broadcast %cst_562 : f32 to vector<8x8xf32>
    %1745 = arith.mulf %1743, %1744 : vector<8x8xf32>
    %cst_563 = arith.constant -1.000000e+09 : f32
    %1746 = vector.shape_cast %7 : vector<1x8xi1> to vector<1x8xi1>
    %1747 = vector.broadcast %1746 : vector<1x8xi1> to vector<8x8xi1>
    %1748 = vector.broadcast %cst_563 : f32 to vector<8x8xf32>
    %1749 = arith.select %1747, %1745, %1748 : vector<8x8xi1>, vector<8x8xf32>
    %cst_564 = arith.constant dense<0xFF800000> : vector<8xf32>
    %1750 = vector.multi_reduction <maximumf>, %1749, %cst_564 [1] : vector<8x8xf32> to vector<8xf32>
    %1751 = vector.shape_cast %1750 : vector<8xf32> to vector<8x1xf32>
    %1752 = vector.broadcast %1751 : vector<8x1xf32> to vector<8x8xf32>
    %1753 = arith.subf %1749, %1752 : vector<8x8xf32>
    %1754 = math.exp %1753 : vector<8x8xf32>
    %cst_565 = arith.constant dense<0.000000e+00> : vector<8xf32>
    %1755 = vector.multi_reduction <add>, %1754, %cst_565 [1] : vector<8x8xf32> to vector<8xf32>
    %1756 = vector.shape_cast %1755 : vector<8xf32> to vector<8x1xf32>
    %1757 = tpu.reciprocal %1756 {approx = true} : vector<8x1xf32> -> vector<8x1xf32>
    %1758 = vector.broadcast %1757 : vector<8x1xf32> to vector<8x8xf32>
    %1759 = arith.mulf %1754, %1758 : vector<8x8xf32>
    %1760 = arith.truncf %1759 : vector<8x8xf32> to vector<8x8xbf16>
    %cst_566 = arith.constant dense<0.000000e+00> : vector<8x8xf32>
    %1761 = tpu.matmul %1760, %1742, %cst_566 {dimension_numbers = #tpu.dot_dimension_numbers<[1], [0], [0], [1], [0, 0, 1, 1], [], []>} : vector<8x8xbf16>, vector<8x8xbf16>, vector<8x8xf32> -> vector<8x8xf32>
    %1762 = arith.truncf %1761 : vector<8x8xf32> to vector<8x8xbf16>
    %1763 = vector.extract_strided_slice %1587 {offsets = [8, 0], sizes = [8, 32], strides = [1, 1]} : vector<32x32xbf16> to vector<8x32xbf16>
    %cst_567 = arith.constant dense<0.000000e+00> : vector<8x32xf32>
    %1764 = tpu.matmul %1762, %1763, %cst_567 {dimension_numbers = #tpu.dot_dimension_numbers<[1], [0], [0], [1], [0, 0, 1, 1], [], []>} : vector<8x8xbf16>, vector<8x32xbf16>, vector<8x32xf32> -> vector<8x32xf32>
    %1765 = arith.addf %1736, %1764 : vector<8x32xf32>
    %1766 = vector.extract_strided_slice %1706 {offsets = [0, 16], sizes = [8, 8], strides = [1, 1]} : vector<8x32xf32> to vector<8x8xf32>
    %1767 = arith.truncf %1766 : vector<8x8xf32> to vector<8x8xbf16>
    %1768 = vector.extract_strided_slice %1707 {offsets = [0, 16], sizes = [8, 8], strides = [1, 1]} : vector<8x32xf32> to vector<8x8xf32>
    %1769 = arith.truncf %1768 : vector<8x8xf32> to vector<8x8xbf16>
    %1770 = vector.extract_strided_slice %1708 {offsets = [0, 16], sizes = [8, 8], strides = [1, 1]} : vector<8x32xf32> to vector<8x8xf32>
    %1771 = arith.truncf %1770 : vector<8x8xf32> to vector<8x8xbf16>
    %cst_568 = arith.constant dense<0.000000e+00> : vector<8x8xf32>
    %1772 = tpu.matmul %1767, %1769, %cst_568 {dimension_numbers = #tpu.dot_dimension_numbers<[1], [1], [0], [0], [0, 0, 1, 0], [], []>} : vector<8x8xbf16>, vector<8x8xbf16>, vector<8x8xf32> -> vector<8x8xf32>
    %cst_569 = arith.constant 0.353553385 : f32
    %1773 = vector.broadcast %cst_569 : f32 to vector<8x8xf32>
    %1774 = arith.mulf %1772, %1773 : vector<8x8xf32>
    %cst_570 = arith.constant -1.000000e+09 : f32
    %1775 = vector.shape_cast %7 : vector<1x8xi1> to vector<1x8xi1>
    %1776 = vector.broadcast %1775 : vector<1x8xi1> to vector<8x8xi1>
    %1777 = vector.broadcast %cst_570 : f32 to vector<8x8xf32>
    %1778 = arith.select %1776, %1774, %1777 : vector<8x8xi1>, vector<8x8xf32>
    %cst_571 = arith.constant dense<0xFF800000> : vector<8xf32>
    %1779 = vector.multi_reduction <maximumf>, %1778, %cst_571 [1] : vector<8x8xf32> to vector<8xf32>
    %1780 = vector.shape_cast %1779 : vector<8xf32> to vector<8x1xf32>
    %1781 = vector.broadcast %1780 : vector<8x1xf32> to vector<8x8xf32>
    %1782 = arith.subf %1778, %1781 : vector<8x8xf32>
    %1783 = math.exp %1782 : vector<8x8xf32>
    %cst_572 = arith.constant dense<0.000000e+00> : vector<8xf32>
    %1784 = vector.multi_reduction <add>, %1783, %cst_572 [1] : vector<8x8xf32> to vector<8xf32>
    %1785 = vector.shape_cast %1784 : vector<8xf32> to vector<8x1xf32>
    %1786 = tpu.reciprocal %1785 {approx = true} : vector<8x1xf32> -> vector<8x1xf32>
    %1787 = vector.broadcast %1786 : vector<8x1xf32> to vector<8x8xf32>
    %1788 = arith.mulf %1783, %1787 : vector<8x8xf32>
    %1789 = arith.truncf %1788 : vector<8x8xf32> to vector<8x8xbf16>
    %cst_573 = arith.constant dense<0.000000e+00> : vector<8x8xf32>
    %1790 = tpu.matmul %1789, %1771, %cst_573 {dimension_numbers = #tpu.dot_dimension_numbers<[1], [0], [0], [1], [0, 0, 1, 1], [], []>} : vector<8x8xbf16>, vector<8x8xbf16>, vector<8x8xf32> -> vector<8x8xf32>
    %1791 = arith.truncf %1790 : vector<8x8xf32> to vector<8x8xbf16>
    %1792 = vector.extract_strided_slice %1587 {offsets = [16, 0], sizes = [8, 32], strides = [1, 1]} : vector<32x32xbf16> to vector<8x32xbf16>
    %cst_574 = arith.constant dense<0.000000e+00> : vector<8x32xf32>
    %1793 = tpu.matmul %1791, %1792, %cst_574 {dimension_numbers = #tpu.dot_dimension_numbers<[1], [0], [0], [1], [0, 0, 1, 1], [], []>} : vector<8x8xbf16>, vector<8x32xbf16>, vector<8x32xf32> -> vector<8x32xf32>
    %1794 = arith.addf %1765, %1793 : vector<8x32xf32>
    %1795 = vector.extract_strided_slice %1706 {offsets = [0, 24], sizes = [8, 8], strides = [1, 1]} : vector<8x32xf32> to vector<8x8xf32>
    %1796 = arith.truncf %1795 : vector<8x8xf32> to vector<8x8xbf16>
    %1797 = vector.extract_strided_slice %1707 {offsets = [0, 24], sizes = [8, 8], strides = [1, 1]} : vector<8x32xf32> to vector<8x8xf32>
    %1798 = arith.truncf %1797 : vector<8x8xf32> to vector<8x8xbf16>
    %1799 = vector.extract_strided_slice %1708 {offsets = [0, 24], sizes = [8, 8], strides = [1, 1]} : vector<8x32xf32> to vector<8x8xf32>
    %1800 = arith.truncf %1799 : vector<8x8xf32> to vector<8x8xbf16>
    %cst_575 = arith.constant dense<0.000000e+00> : vector<8x8xf32>
    %1801 = tpu.matmul %1796, %1798, %cst_575 {dimension_numbers = #tpu.dot_dimension_numbers<[1], [1], [0], [0], [0, 0, 1, 0], [], []>} : vector<8x8xbf16>, vector<8x8xbf16>, vector<8x8xf32> -> vector<8x8xf32>
    %cst_576 = arith.constant 0.353553385 : f32
    %1802 = vector.broadcast %cst_576 : f32 to vector<8x8xf32>
    %1803 = arith.mulf %1801, %1802 : vector<8x8xf32>
    %cst_577 = arith.constant -1.000000e+09 : f32
    %1804 = vector.shape_cast %7 : vector<1x8xi1> to vector<1x8xi1>
    %1805 = vector.broadcast %1804 : vector<1x8xi1> to vector<8x8xi1>
    %1806 = vector.broadcast %cst_577 : f32 to vector<8x8xf32>
    %1807 = arith.select %1805, %1803, %1806 : vector<8x8xi1>, vector<8x8xf32>
    %cst_578 = arith.constant dense<0xFF800000> : vector<8xf32>
    %1808 = vector.multi_reduction <maximumf>, %1807, %cst_578 [1] : vector<8x8xf32> to vector<8xf32>
    %1809 = vector.shape_cast %1808 : vector<8xf32> to vector<8x1xf32>
    %1810 = vector.broadcast %1809 : vector<8x1xf32> to vector<8x8xf32>
    %1811 = arith.subf %1807, %1810 : vector<8x8xf32>
    %1812 = math.exp %1811 : vector<8x8xf32>
    %cst_579 = arith.constant dense<0.000000e+00> : vector<8xf32>
    %1813 = vector.multi_reduction <add>, %1812, %cst_579 [1] : vector<8x8xf32> to vector<8xf32>
    %1814 = vector.shape_cast %1813 : vector<8xf32> to vector<8x1xf32>
    %1815 = tpu.reciprocal %1814 {approx = true} : vector<8x1xf32> -> vector<8x1xf32>
    %1816 = vector.broadcast %1815 : vector<8x1xf32> to vector<8x8xf32>
    %1817 = arith.mulf %1812, %1816 : vector<8x8xf32>
    %1818 = arith.truncf %1817 : vector<8x8xf32> to vector<8x8xbf16>
    %cst_580 = arith.constant dense<0.000000e+00> : vector<8x8xf32>
    %1819 = tpu.matmul %1818, %1800, %cst_580 {dimension_numbers = #tpu.dot_dimension_numbers<[1], [0], [0], [1], [0, 0, 1, 1], [], []>} : vector<8x8xbf16>, vector<8x8xbf16>, vector<8x8xf32> -> vector<8x8xf32>
    %1820 = arith.truncf %1819 : vector<8x8xf32> to vector<8x8xbf16>
    %1821 = vector.extract_strided_slice %1587 {offsets = [24, 0], sizes = [8, 32], strides = [1, 1]} : vector<32x32xbf16> to vector<8x32xbf16>
    %cst_581 = arith.constant dense<0.000000e+00> : vector<8x32xf32>
    %1822 = tpu.matmul %1820, %1821, %cst_581 {dimension_numbers = #tpu.dot_dimension_numbers<[1], [0], [0], [1], [0, 0, 1, 1], [], []>} : vector<8x8xbf16>, vector<8x32xbf16>, vector<8x32xf32> -> vector<8x32xf32>
    %1823 = arith.addf %1794, %1822 : vector<8x32xf32>
    %1824 = tpu.concatenate %1705, %1823 in 0 : vector<8x32xf32>, vector<8x32xf32> -> vector<16x32xf32>
    %1825 = arith.addf %1542, %1824 : vector<16x32xf32>
    %c1_582 = arith.constant 1 : index
    %c0_583 = arith.constant 0 : index
    %c0_584 = arith.constant 0 : index
    %1826 = vector.load %arg30[%c1_582, %c0_583, %c0_584] : memref<2x1x32xf32, #tpu.memory_space<vmem>>, vector<1x1x32xf32>
    %1827 = vector.shape_cast %1826 : vector<1x1x32xf32> to vector<1x32xf32>
    %1828 = vector.broadcast %1827 : vector<1x32xf32> to vector<16x32xf32>
    %1829 = arith.addf %1825, %1828 : vector<16x32xf32>
    %c1_585 = arith.constant 1 : index
    %c0_586 = arith.constant 0 : index
    %c0_587 = arith.constant 0 : index
    %1830 = vector.load %arg31[%c1_585, %c0_586, %c0_587] : memref<2x1x32xf32, #tpu.memory_space<vmem>>, vector<1x1x32xf32>
    %1831 = vector.shape_cast %1830 : vector<1x1x32xf32> to vector<1x32xf32>
    %c1_588 = arith.constant 1 : index
    %c0_589 = arith.constant 0 : index
    %c0_590 = arith.constant 0 : index
    %1832 = vector.load %arg32[%c1_588, %c0_589, %c0_590] : memref<2x1x32xf32, #tpu.memory_space<vmem>>, vector<1x1x32xf32>
    %1833 = vector.shape_cast %1832 : vector<1x1x32xf32> to vector<1x32xf32>
    %cst_591 = arith.constant dense<0.000000e+00> : vector<16xf32>
    %1834 = vector.multi_reduction <add>, %1829, %cst_591 [1] : vector<16x32xf32> to vector<16xf32>
    %1835 = vector.shape_cast %1834 : vector<16xf32> to vector<16x1xf32>
    %cst_592 = arith.constant 3.200000e+01 : f32
    %1836 = vector.broadcast %cst_592 : f32 to vector<16x1xf32>
    %1837 = arith.divf %1835, %1836 : vector<16x1xf32>
    %1838 = vector.broadcast %1837 : vector<16x1xf32> to vector<16x32xf32>
    %1839 = arith.subf %1829, %1838 : vector<16x32xf32>
    %1840 = arith.mulf %1839, %1839 : vector<16x32xf32>
    %cst_593 = arith.constant dense<0.000000e+00> : vector<16xf32>
    %1841 = vector.multi_reduction <add>, %1840, %cst_593 [1] : vector<16x32xf32> to vector<16xf32>
    %1842 = vector.shape_cast %1841 : vector<16xf32> to vector<16x1xf32>
    %cst_594 = arith.constant 0.0322580636 : f32
    %1843 = vector.broadcast %cst_594 : f32 to vector<16x1xf32>
    %1844 = arith.mulf %1842, %1843 : vector<16x1xf32>
    %1845 = math.sqrt %1844 : vector<16x1xf32>
    %cst_595 = arith.constant 9.99999997E-7 : f32
    %1846 = vector.broadcast %cst_595 : f32 to vector<16x1xf32>
    %1847 = arith.addf %1845, %1846 : vector<16x1xf32>
    %1848 = tpu.reciprocal %1847 {approx = true} : vector<16x1xf32> -> vector<16x1xf32>
    %1849 = vector.broadcast %1848 : vector<16x1xf32> to vector<16x32xf32>
    %1850 = arith.mulf %1839, %1849 : vector<16x32xf32>
    %1851 = vector.broadcast %1831 : vector<1x32xf32> to vector<16x32xf32>
    %1852 = arith.mulf %1851, %1850 : vector<16x32xf32>
    %1853 = vector.broadcast %1833 : vector<1x32xf32> to vector<16x32xf32>
    %1854 = arith.addf %1852, %1853 : vector<16x32xf32>
    %c1_596 = arith.constant 1 : index
    %c0_597 = arith.constant 0 : index
    %c0_598 = arith.constant 0 : index
    %1855 = vector.load %arg33[%c1_596, %c0_597, %c0_598] : memref<2x32x64xbf16, #tpu.memory_space<vmem>>, vector<1x32x64xbf16>
    %1856 = vector.shape_cast %1855 : vector<1x32x64xbf16> to vector<32x64xbf16>
    %c1_599 = arith.constant 1 : index
    %c0_600 = arith.constant 0 : index
    %c0_601 = arith.constant 0 : index
    %1857 = vector.load %arg34[%c1_599, %c0_600, %c0_601] : memref<2x1x64xf32, #tpu.memory_space<vmem>>, vector<1x1x64xf32>
    %1858 = vector.shape_cast %1857 : vector<1x1x64xf32> to vector<1x64xf32>
    %1859 = arith.truncf %1854 : vector<16x32xf32> to vector<16x32xbf16>
    %cst_602 = arith.constant dense<0.000000e+00> : vector<16x64xf32>
    %1860 = tpu.matmul %1859, %1856, %cst_602 {dimension_numbers = #tpu.dot_dimension_numbers<[1], [0], [0], [1], [0, 0, 1, 1], [], []>} : vector<16x32xbf16>, vector<32x64xbf16>, vector<16x64xf32> -> vector<16x64xf32>
    %1861 = vector.broadcast %1858 : vector<1x64xf32> to vector<16x64xf32>
    %1862 = arith.addf %1860, %1861 : vector<16x64xf32>
    %cst_603 = arith.constant 0.000000e+00 : f32
    %1863 = vector.broadcast %cst_603 : f32 to vector<16x64xf32>
    %1864 = arith.maximumf %1862, %1863 : vector<16x64xf32>
    %c1_604 = arith.constant 1 : index
    %c0_605 = arith.constant 0 : index
    %c0_606 = arith.constant 0 : index
    %1865 = vector.load %arg35[%c1_604, %c0_605, %c0_606] : memref<2x64x32xbf16, #tpu.memory_space<vmem>>, vector<1x64x32xbf16>
    %1866 = vector.shape_cast %1865 : vector<1x64x32xbf16> to vector<64x32xbf16>
    %c1_607 = arith.constant 1 : index
    %c0_608 = arith.constant 0 : index
    %c0_609 = arith.constant 0 : index
    %1867 = vector.load %arg36[%c1_607, %c0_608, %c0_609] : memref<2x1x32xf32, #tpu.memory_space<vmem>>, vector<1x1x32xf32>
    %1868 = vector.shape_cast %1867 : vector<1x1x32xf32> to vector<1x32xf32>
    %1869 = arith.truncf %1864 : vector<16x64xf32> to vector<16x64xbf16>
    %cst_610 = arith.constant dense<0.000000e+00> : vector<16x32xf32>
    %1870 = tpu.matmul %1869, %1866, %cst_610 {dimension_numbers = #tpu.dot_dimension_numbers<[1], [0], [0], [1], [0, 0, 1, 1], [], []>} : vector<16x64xbf16>, vector<64x32xbf16>, vector<16x32xf32> -> vector<16x32xf32>
    %1871 = vector.broadcast %1868 : vector<1x32xf32> to vector<16x32xf32>
    %1872 = arith.addf %1870, %1871 : vector<16x32xf32>
    %1873 = arith.addf %1829, %1872 : vector<16x32xf32>
    %c0_611 = arith.constant 0 : index
    %c0_612 = arith.constant 0 : index
    %1874 = vector.load %arg37[%c0_611, %c0_612] : memref<1x32xf32, #tpu.memory_space<vmem>>, vector<1x32xf32>
    %c0_613 = arith.constant 0 : index
    %c0_614 = arith.constant 0 : index
    %1875 = vector.load %arg38[%c0_613, %c0_614] : memref<1x32xf32, #tpu.memory_space<vmem>>, vector<1x32xf32>
    %cst_615 = arith.constant dense<0.000000e+00> : vector<16xf32>
    %1876 = vector.multi_reduction <add>, %1873, %cst_615 [1] : vector<16x32xf32> to vector<16xf32>
    %1877 = vector.shape_cast %1876 : vector<16xf32> to vector<16x1xf32>
    %cst_616 = arith.constant 3.200000e+01 : f32
    %1878 = vector.broadcast %cst_616 : f32 to vector<16x1xf32>
    %1879 = arith.divf %1877, %1878 : vector<16x1xf32>
    %1880 = vector.broadcast %1879 : vector<16x1xf32> to vector<16x32xf32>
    %1881 = arith.subf %1873, %1880 : vector<16x32xf32>
    %1882 = arith.mulf %1881, %1881 : vector<16x32xf32>
    %cst_617 = arith.constant dense<0.000000e+00> : vector<16xf32>
    %1883 = vector.multi_reduction <add>, %1882, %cst_617 [1] : vector<16x32xf32> to vector<16xf32>
    %1884 = vector.shape_cast %1883 : vector<16xf32> to vector<16x1xf32>
    %cst_618 = arith.constant 0.0322580636 : f32
    %1885 = vector.broadcast %cst_618 : f32 to vector<16x1xf32>
    %1886 = arith.mulf %1884, %1885 : vector<16x1xf32>
    %1887 = math.sqrt %1886 : vector<16x1xf32>
    %cst_619 = arith.constant 9.99999997E-7 : f32
    %1888 = vector.broadcast %cst_619 : f32 to vector<16x1xf32>
    %1889 = arith.addf %1887, %1888 : vector<16x1xf32>
    %1890 = tpu.reciprocal %1889 {approx = true} : vector<16x1xf32> -> vector<16x1xf32>
    %1891 = vector.broadcast %1890 : vector<16x1xf32> to vector<16x32xf32>
    %1892 = arith.mulf %1881, %1891 : vector<16x32xf32>
    %1893 = vector.broadcast %1874 : vector<1x32xf32> to vector<16x32xf32>
    %1894 = arith.mulf %1893, %1892 : vector<16x32xf32>
    %1895 = vector.broadcast %1875 : vector<1x32xf32> to vector<16x32xf32>
    %1896 = arith.addf %1894, %1895 : vector<16x32xf32>
    %c0_620 = arith.constant 0 : index
    %c0_621 = arith.constant 0 : index
    %1897 = vector.load %arg39[%c0_620, %c0_621] : memref<16x32xf32, #tpu.memory_space<vmem>>, vector<16x32xf32>
    tpu.vector_store %arg39[%c0_620, %c0_621], %1896 {strides = array<i32>} : memref<16x32xf32, #tpu.memory_space<vmem>>, vector<16x32xf32>,
    return
  }
}

</mosaic_0001>

<llo_original>
// kernel: tpu_custom_call.1
$region0: #{tpu_custom_call.1}
  #allocation0 [shape = 'u32[]', space=smem, size = 0x4, offset = 0x4, fixed_abs, tag = 'smem constant byte address 0x4 - core index']
  #allocation1 [shape = 'u32[72,128]{1,0:T(1,128)}', space=vmem, size = 0x9000, scoped, tag = 'internal scratch']
  %s0 = inlined_call_operand.smem [shape: u32[40], index: -1, kind: input, shape index: {}]
  %s1 = sld [smem:[%s0]]
  %s2 = scalar_lea.smem %s0, 1
  %s3 = sld [smem:[%s2]]
  %s4 = scalar_lea.smem %s0, 2
  %s5 = sld [smem:[%s4]]
  %s6 = scalar_lea.smem %s0, 3
  %s7 = sld [smem:[%s6]]
  %s8 = scalar_lea.smem %s0, 4
  %s9 = sld [smem:[%s8]]
  %s10 = scalar_lea.smem %s0, 5
  %s11 = sld [smem:[%s10]]
  %s12 = scalar_lea.smem %s0, 6
  %s13 = sld [smem:[%s12]]
  %s14 = scalar_lea.smem %s0, 7
  %s15 = sld [smem:[%s14]]
  %s16 = scalar_lea.smem %s0, 8
  %s17 = sld [smem:[%s16]]
  %s18 = scalar_lea.smem %s0, 9
  %s19 = sld [smem:[%s18]]
  %s20 = scalar_lea.smem %s0, 10
  %s21 = sld [smem:[%s20]]
  %s22 = scalar_lea.smem %s0, 11
  %s23 = sld [smem:[%s22]]
  %s24 = scalar_lea.smem %s0, 12
  %s25 = sld [smem:[%s24]]
  %s26 = scalar_lea.smem %s0, 13
  %s27 = sld [smem:[%s26]]
  %s28 = scalar_lea.smem %s0, 14
  %s29 = sld [smem:[%s28]]
  %s30 = scalar_lea.smem %s0, 15
  %s31 = sld [smem:[%s30]]
  %s32 = scalar_lea.smem %s0, 16
  %s33 = sld [smem:[%s32]]
  %s34 = scalar_lea.smem %s0, 17
  %s35 = sld [smem:[%s34]]
  %s36 = scalar_lea.smem %s0, 18
  %s37 = sld [smem:[%s36]]
  %s38 = scalar_lea.smem %s0, 19
  %s39 = sld [smem:[%s38]]
  %s40 = scalar_lea.smem %s0, 20
  %s41 = sld [smem:[%s40]]
  %s42 = scalar_lea.smem %s0, 21
  %s43 = sld [smem:[%s42]]
  %s44 = scalar_lea.smem %s0, 22
  %s45 = sld [smem:[%s44]]
  %s46 = scalar_lea.smem %s0, 23
  %s47 = sld [smem:[%s46]]
  %s48 = scalar_lea.smem %s0, 24
  %s49 = sld [smem:[%s48]]
  %s50 = scalar_lea.smem %s0, 25
  %s51 = sld [smem:[%s50]]
  %s52 = scalar_lea.smem %s0, 26
  %s53 = sld [smem:[%s52]]
  %s54 = scalar_lea.smem %s0, 27
  %s55 = sld [smem:[%s54]]
  %s56 = scalar_lea.smem %s0, 28
  %s57 = sld [smem:[%s56]]
  %s58 = scalar_lea.smem %s0, 29
  %s59 = sld [smem:[%s58]]
  %s60 = scalar_lea.smem %s0, 30
  %s61 = sld [smem:[%s60]]
  %s62 = scalar_lea.smem %s0, 31
  %s63 = sld [smem:[%s62]]
  %s64 = scalar_lea.smem %s0, 32
  %s65 = sld [smem:[%s64]]
  %s66 = scalar_lea.smem %s0, 33
  %s67 = sld [smem:[%s66]]
  %s68 = scalar_lea.smem %s0, 34
  %s69 = sld [smem:[%s68]]
  %s70 = scalar_lea.smem %s0, 35
  %s71 = sld [smem:[%s70]]
  %s72 = scalar_lea.smem %s0, 36
  %s73 = sld [smem:[%s72]]
  %s74 = scalar_lea.smem %s0, 37
  %s75 = sld [smem:[%s74]]
  %s76 = scalar_lea.smem %s0, 38
  %s77 = sld [smem:[%s76]]
  %s78 = scalar_lea.smem %s0, 39
  %s79 = sld [smem:[%s78]]
  %s80 = sld [smem:[#allocation0]]
  $region222: #{tpu_custom_call.1} parent=0
    _
  %s82 = ssub.s32 1, %s80
  %s83 = scalar_select 0, %s82, %s80
  $region1: #{tpu_custom_call.1} parent=0
    #allocation2 [shape = 'u8[8192]{0}', space=vmem, size = 0x2000, scoped, tag = 'input window, operand 0, single buffered']
    #allocation3 [shape = 's32[1]{0}', space=sflag, size = 0x4, scoped, tag = 'scoped memory for tpu_custom_call.1']
    #allocation4 [shape = 's32[1]{0}', space=sflag, size = 0x4, scoped, tag = 'scoped memory for tpu_custom_call.1']
    #allocation5 [shape = 'u8[8192]{0}', space=vmem, size = 0x2000, scoped, tag = 'input window, operand 1, single buffered']
    #allocation6 [shape = 's32[1]{0}', space=sflag, size = 0x4, scoped, tag = 'scoped memory for tpu_custom_call.1']
    #allocation7 [shape = 'u8[512]{0}', space=vmem, size = 0x400, scoped, tag = 'input window, operand 2, single buffered']
    #allocation8 [shape = 'u8[1024]{0}', space=vmem, size = 0x400, scoped, tag = 'input window, operand 4, single buffered']
    #allocation9 [shape = 's32[1]{0}', space=sflag, size = 0x4, scoped, tag = 'scoped memory for tpu_custom_call.1']
    #allocation10 [shape = 'u8[1024]{0}', space=vmem, size = 0x400, scoped, tag = 'input window, operand 8, single buffered']
    #allocation11 [shape = 'u8[1024]{0}', space=vmem, size = 0x400, scoped, tag = 'input window, operand 14, single buffered']
    #allocation12 [shape = 's32[1]{0}', space=sflag, size = 0x4, scoped, tag = 'scoped memory for tpu_custom_call.1']
    #allocation13 [shape = 'u8[512]{0}', space=vmem, size = 0x400, scoped, tag = 'input window, operand 15, single buffered']
    #allocation14 [shape = 'u8[512]{0}', space=vmem, size = 0x400, scoped, tag = 'input window, operand 16, single buffered']
    #allocation15 [shape = 's32[1]{0}', space=sflag, size = 0x4, scoped, tag = 'scoped memory for tpu_custom_call.1']
    #allocation16 [shape = 'u8[16384]{0}', space=vmem, size = 0x4000, scoped, tag = 'input window, operand 25, single buffered']
    #allocation17 [shape = 'u8[1024]{0}', space=vmem, size = 0x400, scoped, tag = 'input window, operand 26, single buffered']
    #allocation18 [shape = 's32[1]{0}', space=sflag, size = 0x4, scoped, tag = 'scoped memory for tpu_custom_call.1']
    #allocation19 [shape = 'u8[16384]{0}', space=vmem, size = 0x4000, scoped, tag = 'input window, operand 27, single buffered']
    #allocation20 [shape = 'u8[16384]{0}', space=vmem, size = 0x4000, scoped, tag = 'input window, operand 29, single buffered']
    #allocation21 [shape = 's32[1]{0}', space=sflag, size = 0x4, scoped, tag = 'scoped memory for tpu_custom_call.1']
    #allocation22 [shape = 'u8[1024]{0}', space=vmem, size = 0x400, scoped, tag = 'input window, operand 32, single buffered']
    #allocation23 [shape = 'u8[16384]{0}', space=vmem, size = 0x4000, scoped, tag = 'input window, operand 33, single buffered']
    #allocation24 [shape = 's32[1]{0}', space=sflag, size = 0x4, scoped, tag = 'scoped memory for tpu_custom_call.1']
    #allocation25 [shape = 'u8[8192]{0}', space=vmem, size = 0x2000, scoped, tag = 'output window, operand 0, single buffered']
    %84 = vsyncpa [#allocation3], 0
    %85 = vsyncpa [#allocation6], 0
    %86 = vsyncpa [#allocation9], 0
    %87 = vsyncpa [#allocation12], 0
    %88 = vsyncpa [#allocation15], 0
    %89 = vsyncpa [#allocation18], 0
    %90 = vsyncpa [#allocation21], 0
    %91 = vsyncpa [#allocation24], 0
    %92 = vsyncpa [#allocation4], 0
    // Predicated region
    $region2: #{tpu_custom_call.1} parent=1 // pred_check
      _
    $region3: #{tpu_custom_call.1} parent=1 // pred_check_branch
      %94 = sbr.rel (0) target = $region5
    $region4: #{tpu_custom_call.1} parent=1 // pred_region
      %96 = vsyncadd [#allocation3], 0
      %s97 = sshll.u32 %s1, 4
      %s98 = int_to_ptr.hbm [resolvable:$true] %s97
      %s99 = sshll.u32 [#allocation2], 4
      %s100 = int_to_ptr.vmem [resolvable:$true] %s99
      %105 = dma.hbm_to_vmem [thread:$0]  %s98, 256, %s100, [#allocation3], 128, 128, 8
    $region5: #{tpu_custom_call.1} parent=1 // pred_fallthru
      _
    // Predicated region
    $region6: #{tpu_custom_call.1} parent=1 // pred_check
      _
    $region7: #{tpu_custom_call.1} parent=1 // pred_check_branch
      %107 = sbr.rel (0) target = $region9
    $region8: #{tpu_custom_call.1} parent=1 // pred_region
      %109 = vsyncadd [#allocation6], 0
      %s110 = sshll.u32 %s3, 4
      %s111 = int_to_ptr.hbm [resolvable:$true] %s110
      %s112 = sshll.u32 [#allocation5], 4
      %s113 = int_to_ptr.vmem [resolvable:$true] %s112
      %118 = dma.hbm_to_vmem [thread:$0]  %s111, 256, %s113, [#allocation6], 128, 128, 8
    $region9: #{tpu_custom_call.1} parent=1 // pred_fallthru
      _
    // Predicated region
    $region10: #{tpu_custom_call.1} parent=1 // pred_check
      _
    $region11: #{tpu_custom_call.1} parent=1 // pred_check_branch
      %120 = sbr.rel (0) target = $region13
    $region12: #{tpu_custom_call.1} parent=1 // pred_region
      %122 = vsyncadd [#allocation6], 0
      %s124 = sshll.u32 %s5, 4
      %s125 = int_to_ptr.hbm [resolvable:$true] %s124
      %s126 = sshll.u32 [#allocation7], 4
      %s127 = int_to_ptr.vmem [resolvable:$true] %s126
      %129 = dma.hbm_to_vmem [thread:$0]  %s125, 16, %s127, [#allocation6]
    $region13: #{tpu_custom_call.1} parent=1 // pred_fallthru
      _
    // Predicated region
    $region14: #{tpu_custom_call.1} parent=1 // pred_check
      _
    $region15: #{tpu_custom_call.1} parent=1 // pred_check_branch
      %131 = sbr.rel (0) target = $region17
    $region16: #{tpu_custom_call.1} parent=1 // pred_region
      _
    $region17: #{tpu_custom_call.1} parent=1 // pred_fallthru
      _
    // Predicated region
    $region18: #{tpu_custom_call.1} parent=1 // pred_check
      _
    $region19: #{tpu_custom_call.1} parent=1 // pred_check_branch
      %133 = sbr.rel (0) target = $region21
    $region20: #{tpu_custom_call.1} parent=1 // pred_region
      %135 = vsyncadd [#allocation9], 0
      %s136 = sshll.u32 %s9, 4
      %s137 = int_to_ptr.hbm [resolvable:$true] %s136
      %s138 = sshll.u32 [#allocation8], 4
      %s139 = int_to_ptr.vmem [resolvable:$true] %s138
      %144 = dma.hbm_to_vmem [thread:$0]  %s137, 32, %s139, [#allocation9], 16, 16, 1
    $region21: #{tpu_custom_call.1} parent=1 // pred_fallthru
      _
    // Predicated region
    $region22: #{tpu_custom_call.1} parent=1 // pred_check
      _
    $region23: #{tpu_custom_call.1} parent=1 // pred_check_branch
      %146 = sbr.rel (0) target = $region25
    $region24: #{tpu_custom_call.1} parent=1 // pred_region
      _
    $region25: #{tpu_custom_call.1} parent=1 // pred_fallthru
      _
    // Predicated region
    $region26: #{tpu_custom_call.1} parent=1 // pred_check
      _
    $region27: #{tpu_custom_call.1} parent=1 // pred_check_branch
      %148 = sbr.rel (0) target = $region29
    $region28: #{tpu_custom_call.1} parent=1 // pred_region
      _
    $region29: #{tpu_custom_call.1} parent=1 // pred_fallthru
      _
    // Predicated region
    $region30: #{tpu_custom_call.1} parent=1 // pred_check
      _
    $region31: #{tpu_custom_call.1} parent=1 // pred_check_branch
      %150 = sbr.rel (0) target = $region33
    $region32: #{tpu_custom_call.1} parent=1 // pred_region
      _
    $region33: #{tpu_custom_call.1} parent=1 // pred_fallthru
      _
    // Predicated region
    $region34: #{tpu_custom_call.1} parent=1 // pred_check
      _
    $region35: #{tpu_custom_call.1} parent=1 // pred_check_branch
      %152 = sbr.rel (0) target = $region37
    $region36: #{tpu_custom_call.1} parent=1 // pred_region
      %154 = vsyncadd [#allocation9], 0
      %s155 = sshll.u32 %s17, 4
      %s156 = int_to_ptr.hbm [resolvable:$true] %s155
      %s157 = sshll.u32 [#allocation10], 4
      %s158 = int_to_ptr.vmem [resolvable:$true] %s157
      %163 = dma.hbm_to_vmem [thread:$0]  %s156, 32, %s158, [#allocation9], 16, 16, 1
    $region37: #{tpu_custom_call.1} parent=1 // pred_fallthru
      _
    // Predicated region
    $region38: #{tpu_custom_call.1} parent=1 // pred_check
      _
    $region39: #{tpu_custom_call.1} parent=1 // pred_check_branch
      %165 = sbr.rel (0) target = $region41
    $region40: #{tpu_custom_call.1} parent=1 // pred_region
      _
    $region41: #{tpu_custom_call.1} parent=1 // pred_fallthru
      _
    // Predicated region
    $region42: #{tpu_custom_call.1} parent=1 // pred_check
      _
    $region43: #{tpu_custom_call.1} parent=1 // pred_check_branch
      %167 = sbr.rel (0) target = $region45
    $region44: #{tpu_custom_call.1} parent=1 // pred_region
      _
    $region45: #{tpu_custom_call.1} parent=1 // pred_fallthru
      _
    // Predicated region
    $region46: #{tpu_custom_call.1} parent=1 // pred_check
      _
    $region47: #{tpu_custom_call.1} parent=1 // pred_check_branch
      %169 = sbr.rel (0) target = $region49
    $region48: #{tpu_custom_call.1} parent=1 // pred_region
      _
    $region49: #{tpu_custom_call.1} parent=1 // pred_fallthru
      _
    // Predicated region
    $region50: #{tpu_custom_call.1} parent=1 // pred_check
      _
    $region51: #{tpu_custom_call.1} parent=1 // pred_check_branch
      %171 = sbr.rel (0) target = $region53
    $region52: #{tpu_custom_call.1} parent=1 // pred_region
      _
    $region53: #{tpu_custom_call.1} parent=1 // pred_fallthru
      _
    // Predicated region
    $region54: #{tpu_custom_call.1} parent=1 // pred_check
      _
    $region55: #{tpu_custom_call.1} parent=1 // pred_check_branch
      %173 = sbr.rel (0) target = $region57
    $region56: #{tpu_custom_call.1} parent=1 // pred_region
      _
    $region57: #{tpu_custom_call.1} parent=1 // pred_fallthru
      _
    // Predicated region
    $region58: #{tpu_custom_call.1} parent=1 // pred_check
      _
    $region59: #{tpu_custom_call.1} parent=1 // pred_check_branch
      %175 = sbr.rel (0) target = $region61
    $region60: #{tpu_custom_call.1} parent=1 // pred_region
      %177 = vsyncadd [#allocation12], 0
      %s178 = sshll.u32 %s29, 4
      %s179 = int_to_ptr.hbm [resolvable:$true] %s178
      %s180 = sshll.u32 [#allocation11], 4
      %s181 = int_to_ptr.vmem [resolvable:$true] %s180
      %186 = dma.hbm_to_vmem [thread:$0]  %s179, 32, %s181, [#allocation12], 16, 16, 1
    $region61: #{tpu_custom_call.1} parent=1 // pred_fallthru
      _
    // Predicated region
    $region62: #{tpu_custom_call.1} parent=1 // pred_check
      _
    $region63: #{tpu_custom_call.1} parent=1 // pred_check_branch
      %188 = sbr.rel (0) target = $region65
    $region64: #{tpu_custom_call.1} parent=1 // pred_region
      %190 = vsyncadd [#allocation12], 0
      %s192 = sshll.u32 %s31, 4
      %s193 = int_to_ptr.hbm [resolvable:$true] %s192
      %s194 = sshll.u32 [#allocation13], 4
      %s195 = int_to_ptr.vmem [resolvable:$true] %s194
      %197 = dma.hbm_to_vmem [thread:$0]  %s193, 16, %s195, [#allocation12]
    $region65: #{tpu_custom_call.1} parent=1 // pred_fallthru
      _
    // Predicated region
    $region66: #{tpu_custom_call.1} parent=1 // pred_check
      _
    $region67: #{tpu_custom_call.1} parent=1 // pred_check_branch
      %199 = sbr.rel (0) target = $region69
    $region68: #{tpu_custom_call.1} parent=1 // pred_region
      %201 = vsyncadd [#allocation15], 0
      %s203 = sshll.u32 %s33, 4
      %s204 = int_to_ptr.hbm [resolvable:$true] %s203
      %s205 = sshll.u32 [#allocation14], 4
      %s206 = int_to_ptr.vmem [resolvable:$true] %s205
      %208 = dma.hbm_to_vmem [thread:$0]  %s204, 16, %s206, [#allocation15]
    $region69: #{tpu_custom_call.1} parent=1 // pred_fallthru
      _
    // Predicated region
    $region70: #{tpu_custom_call.1} parent=1 // pred_check
      _
    $region71: #{tpu_custom_call.1} parent=1 // pred_check_branch
      %210 = sbr.rel (0) target = $region73
    $region72: #{tpu_custom_call.1} parent=1 // pred_region
      _
    $region73: #{tpu_custom_call.1} parent=1 // pred_fallthru
      _
    // Predicated region
    $region74: #{tpu_custom_call.1} parent=1 // pred_check
      _
    $region75: #{tpu_custom_call.1} parent=1 // pred_check_branch
      %212 = sbr.rel (0) target = $region77
    $region76: #{tpu_custom_call.1} parent=1 // pred_region
      _
    $region77: #{tpu_custom_call.1} parent=1 // pred_fallthru
      _
    // Predicated region
    $region78: #{tpu_custom_call.1} parent=1 // pred_check
      _
    $region79: #{tpu_custom_call.1} parent=1 // pred_check_branch
      %214 = sbr.rel (0) target = $region81
    $region80: #{tpu_custom_call.1} parent=1 // pred_region
      _
    $region81: #{tpu_custom_call.1} parent=1 // pred_fallthru
      _
    // Predicated region
    $region82: #{tpu_custom_call.1} parent=1 // pred_check
      _
    $region83: #{tpu_custom_call.1} parent=1 // pred_check_branch
      %216 = sbr.rel (0) target = $region85
    $region84: #{tpu_custom_call.1} parent=1 // pred_region
      _
    $region85: #{tpu_custom_call.1} parent=1 // pred_fallthru
      _
    // Predicated region
    $region86: #{tpu_custom_call.1} parent=1 // pred_check
      _
    $region87: #{tpu_custom_call.1} parent=1 // pred_check_branch
      %218 = sbr.rel (0) target = $region89
    $region88: #{tpu_custom_call.1} parent=1 // pred_region
      _
    $region89: #{tpu_custom_call.1} parent=1 // pred_fallthru
      _
    // Predicated region
    $region90: #{tpu_custom_call.1} parent=1 // pred_check
      _
    $region91: #{tpu_custom_call.1} parent=1 // pred_check_branch
      %220 = sbr.rel (0) target = $region93
    $region92: #{tpu_custom_call.1} parent=1 // pred_region
      _
    $region93: #{tpu_custom_call.1} parent=1 // pred_fallthru
      _
    // Predicated region
    $region94: #{tpu_custom_call.1} parent=1 // pred_check
      _
    $region95: #{tpu_custom_call.1} parent=1 // pred_check_branch
      %222 = sbr.rel (0) target = $region97
    $region96: #{tpu_custom_call.1} parent=1 // pred_region
      _
    $region97: #{tpu_custom_call.1} parent=1 // pred_fallthru
      _
    // Predicated region
    $region98: #{tpu_custom_call.1} parent=1 // pred_check
      _
    $region99: #{tpu_custom_call.1} parent=1 // pred_check_branch
      %224 = sbr.rel (0) target = $region101
    $region100: #{tpu_custom_call.1} parent=1 // pred_region
      _
    $region101: #{tpu_custom_call.1} parent=1 // pred_fallthru
      _
    // Predicated region
    $region102: #{tpu_custom_call.1} parent=1 // pred_check
      _
    $region103: #{tpu_custom_call.1} parent=1 // pred_check_branch
      %226 = sbr.rel (0) target = $region105
    $region104: #{tpu_custom_call.1} parent=1 // pred_region
      %228 = vsyncadd [#allocation15], 0
      %s229 = sshll.u32 %s51, 4
      %s230 = int_to_ptr.hbm [resolvable:$true] %s229
      %s231 = sshll.u32 [#allocation16], 4
      %s232 = int_to_ptr.vmem [resolvable:$true] %s231
      %237 = dma.hbm_to_vmem [thread:$0]  %s230, 512, %s232, [#allocation15], 64, 64, 4
    $region105: #{tpu_custom_call.1} parent=1 // pred_fallthru
      _
    // Predicated region
    $region106: #{tpu_custom_call.1} parent=1 // pred_check
      _
    $region107: #{tpu_custom_call.1} parent=1 // pred_check_branch
      %239 = sbr.rel (0) target = $region109
    $region108: #{tpu_custom_call.1} parent=1 // pred_region
      %241 = vsyncadd [#allocation18], 0
      %s242 = sshll.u32 %s53, 4
      %s243 = int_to_ptr.hbm [resolvable:$true] %s242
      %s244 = sshll.u32 [#allocation17], 4
      %s245 = int_to_ptr.vmem [resolvable:$true] %s244
      %250 = dma.hbm_to_vmem [thread:$0]  %s243, 32, %s245, [#allocation18], 16, 16, 1
    $region109: #{tpu_custom_call.1} parent=1 // pred_fallthru
      _
    // Predicated region
    $region110: #{tpu_custom_call.1} parent=1 // pred_check
      _
    $region111: #{tpu_custom_call.1} parent=1 // pred_check_branch
      %252 = sbr.rel (0) target = $region113
    $region112: #{tpu_custom_call.1} parent=1 // pred_region
      %254 = vsyncadd [#allocation18], 0
      %s255 = sshll.u32 %s55, 4
      %s256 = int_to_ptr.hbm [resolvable:$true] %s255
      %s257 = sshll.u32 [#allocation19], 4
      %s258 = int_to_ptr.vmem [resolvable:$true] %s257
      %263 = dma.hbm_to_vmem [thread:$0]  %s256, 512, %s258, [#allocation18], 64, 64, 4
    $region113: #{tpu_custom_call.1} parent=1 // pred_fallthru
      _
    // Predicated region
    $region114: #{tpu_custom_call.1} parent=1 // pred_check
      _
    $region115: #{tpu_custom_call.1} parent=1 // pred_check_branch
      %265 = sbr.rel (0) target = $region117
    $region116: #{tpu_custom_call.1} parent=1 // pred_region
      _
    $region117: #{tpu_custom_call.1} parent=1 // pred_fallthru
      _
    // Predicated region
    $region118: #{tpu_custom_call.1} parent=1 // pred_check
      _
    $region119: #{tpu_custom_call.1} parent=1 // pred_check_branch
      %267 = sbr.rel (0) target = $region121
    $region120: #{tpu_custom_call.1} parent=1 // pred_region
      %269 = vsyncadd [#allocation21], 0
      %s270 = sshll.u32 %s59, 4
      %s271 = int_to_ptr.hbm [resolvable:$true] %s270
      %s272 = sshll.u32 [#allocation20], 4
      %s273 = int_to_ptr.vmem [resolvable:$true] %s272
      %278 = dma.hbm_to_vmem [thread:$0]  %s271, 512, %s273, [#allocation21], 64, 64, 4
    $region121: #{tpu_custom_call.1} parent=1 // pred_fallthru
      _
    // Predicated region
    $region122: #{tpu_custom_call.1} parent=1 // pred_check
      _
    $region123: #{tpu_custom_call.1} parent=1 // pred_check_branch
      %280 = sbr.rel (0) target = $region125
    $region124: #{tpu_custom_call.1} parent=1 // pred_region
      _
    $region125: #{tpu_custom_call.1} parent=1 // pred_fallthru
      _
    // Predicated region
    $region126: #{tpu_custom_call.1} parent=1 // pred_check
      _
    $region127: #{tpu_custom_call.1} parent=1 // pred_check_branch
      %282 = sbr.rel (0) target = $region129
    $region128: #{tpu_custom_call.1} parent=1 // pred_region
      _
    $region129: #{tpu_custom_call.1} parent=1 // pred_fallthru
      _
    // Predicated region
    $region130: #{tpu_custom_call.1} parent=1 // pred_check
      _
    $region131: #{tpu_custom_call.1} parent=1 // pred_check_branch
      %284 = sbr.rel (0) target = $region133
    $region132: #{tpu_custom_call.1} parent=1 // pred_region
      %286 = vsyncadd [#allocation21], 0
      %s287 = sshll.u32 %s65, 4
      %s288 = int_to_ptr.hbm [resolvable:$true] %s287
      %s289 = sshll.u32 [#allocation22], 4
      %s290 = int_to_ptr.vmem [resolvable:$true] %s289
      %295 = dma.hbm_to_vmem [thread:$0]  %s288, 32, %s290, [#allocation21], 16, 16, 1
    $region133: #{tpu_custom_call.1} parent=1 // pred_fallthru
      _
    // Predicated region
    $region134: #{tpu_custom_call.1} parent=1 // pred_check
      _
    $region135: #{tpu_custom_call.1} parent=1 // pred_check_branch
      %297 = sbr.rel (0) target = $region137
    $region136: #{tpu_custom_call.1} parent=1 // pred_region
      %299 = vsyncadd [#allocation24], 0
      %s300 = sshll.u32 %s67, 4
      %s301 = int_to_ptr.hbm [resolvable:$true] %s300
      %s302 = sshll.u32 [#allocation23], 4
      %s303 = int_to_ptr.vmem [resolvable:$true] %s302
      %308 = dma.hbm_to_vmem [thread:$0]  %s301, 512, %s303, [#allocation24], 64, 64, 4
    $region137: #{tpu_custom_call.1} parent=1 // pred_fallthru
      _
    // Predicated region
    $region138: #{tpu_custom_call.1} parent=1 // pred_check
      _
    $region139: #{tpu_custom_call.1} parent=1 // pred_check_branch
      %310 = sbr.rel (0) target = $region141
    $region140: #{tpu_custom_call.1} parent=1 // pred_region
      _
    $region141: #{tpu_custom_call.1} parent=1 // pred_fallthru
      _
    // Predicated region
    $region142: #{tpu_custom_call.1} parent=1 // pred_check
      _
    $region143: #{tpu_custom_call.1} parent=1 // pred_check_branch
      %312 = sbr.rel (0) target = $region145
    $region144: #{tpu_custom_call.1} parent=1 // pred_region
      _
    $region145: #{tpu_custom_call.1} parent=1 // pred_fallthru
      _
    // Predicated region
    $region146: #{tpu_custom_call.1} parent=1 // pred_check
      _
    $region147: #{tpu_custom_call.1} parent=1 // pred_check_branch
      %314 = sbr.rel (0) target = $region149
    $region148: #{tpu_custom_call.1} parent=1 // pred_region
      _
    $region149: #{tpu_custom_call.1} parent=1 // pred_fallthru
      _
    // Predicated region
    $region150: #{tpu_custom_call.1} parent=1 // pred_check
      _
    $region151: #{tpu_custom_call.1} parent=1 // pred_check_branch
      %316 = sbr.rel (0) target = $region153
    $region152: #{tpu_custom_call.1} parent=1 // pred_region
      _
    $region153: #{tpu_custom_call.1} parent=1 // pred_fallthru
      _
    // Predicated region
    $region154: #{tpu_custom_call.1} parent=1 // pred_check
      _
    $region155: #{tpu_custom_call.1} parent=1 // pred_check_branch
      %318 = sbr.rel (0) target = $region157
    $region156: #{tpu_custom_call.1} parent=1 // pred_region
      _
    $region157: #{tpu_custom_call.1} parent=1 // pred_fallthru
      _
    // Predicated region
    $region158: #{tpu_custom_call.1} parent=1 // pred_check
      _
    $region159: #{tpu_custom_call.1} parent=1 // pred_check_branch
      %320 = sbr.rel (0) target = $region161
    $region160: #{tpu_custom_call.1} parent=1 // pred_region
      %322 = dma.done [#allocation3], 256
    $region161: #{tpu_custom_call.1} parent=1 // pred_fallthru
      _
    // Predicated region
    $region162: #{tpu_custom_call.1} parent=1 // pred_check
      _
    $region163: #{tpu_custom_call.1} parent=1 // pred_check_branch
      %324 = sbr.rel (0) target = $region165
    $region164: #{tpu_custom_call.1} parent=1 // pred_region
      %326 = dma.done [#allocation6], 256
    $region165: #{tpu_custom_call.1} parent=1 // pred_fallthru
      _
    // Predicated region
    $region166: #{tpu_custom_call.1} parent=1 // pred_check
      _
    $region167: #{tpu_custom_call.1} parent=1 // pred_check_branch
      %328 = sbr.rel (0) target = $region169
    $region168: #{tpu_custom_call.1} parent=1 // pred_region
      %330 = dma.done [#allocation6], 16
    $region169: #{tpu_custom_call.1} parent=1 // pred_fallthru
      _
    // Predicated region
    $region170: #{tpu_custom_call.1} parent=1 // pred_check
      _
    $region171: #{tpu_custom_call.1} parent=1 // pred_check_branch
      %332 = sbr.rel (0) target = $region173
    $region172: #{tpu_custom_call.1} parent=1 // pred_region
      %334 = dma.done [#allocation9], 32
    $region173: #{tpu_custom_call.1} parent=1 // pred_fallthru
      _
    // Predicated region
    $region174: #{tpu_custom_call.1} parent=1 // pred_check
      _
    $region175: #{tpu_custom_call.1} parent=1 // pred_check_branch
      %336 = sbr.rel (0) target = $region177
    $region176: #{tpu_custom_call.1} parent=1 // pred_region
      %338 = dma.done [#allocation9], 32
    $region177: #{tpu_custom_call.1} parent=1 // pred_fallthru
      _
    // Predicated region
    $region178: #{tpu_custom_call.1} parent=1 // pred_check
      _
    $region179: #{tpu_custom_call.1} parent=1 // pred_check_branch
      %340 = sbr.rel (0) target = $region181
    $region180: #{tpu_custom_call.1} parent=1 // pred_region
      %342 = dma.done [#allocation12], 32
    $region181: #{tpu_custom_call.1} parent=1 // pred_fallthru
      _
    // Predicated region
    $region182: #{tpu_custom_call.1} parent=1 // pred_check
      _
    $region183: #{tpu_custom_call.1} parent=1 // pred_check_branch
      %344 = sbr.rel (0) target = $region185
    $region184: #{tpu_custom_call.1} parent=1 // pred_region
      %346 = dma.done [#allocation12], 16
    $region185: #{tpu_custom_call.1} parent=1 // pred_fallthru
      _
    // Predicated region
    $region186: #{tpu_custom_call.1} parent=1 // pred_check
      _
    $region187: #{tpu_custom_call.1} parent=1 // pred_check_branch
      %348 = sbr.rel (0) target = $region189
    $region188: #{tpu_custom_call.1} parent=1 // pred_region
      %350 = dma.done [#allocation15], 16
    $region189: #{tpu_custom_call.1} parent=1 // pred_fallthru
      _
    // Predicated region
    $region190: #{tpu_custom_call.1} parent=1 // pred_check
      _
    $region191: #{tpu_custom_call.1} parent=1 // pred_check_branch
      %352 = sbr.rel (0) target = $region193
    $region192: #{tpu_custom_call.1} parent=1 // pred_region
      %354 = dma.done [#allocation15], 512
    $region193: #{tpu_custom_call.1} parent=1 // pred_fallthru
      _
    // Predicated region
    $region194: #{tpu_custom_call.1} parent=1 // pred_check
      _
    $region195: #{tpu_custom_call.1} parent=1 // pred_check_branch
      %356 = sbr.rel (0) target = $region197
    $region196: #{tpu_custom_call.1} parent=1 // pred_region
      %358 = dma.done [#allocation18], 32
    $region197: #{tpu_custom_call.1} parent=1 // pred_fallthru
      _
    // Predicated region
    $region198: #{tpu_custom_call.1} parent=1 // pred_check
      _
    $region199: #{tpu_custom_call.1} parent=1 // pred_check_branch
      %360 = sbr.rel (0) target = $region201
    $region200: #{tpu_custom_call.1} parent=1 // pred_region
      %362 = dma.done [#allocation18], 512
    $region201: #{tpu_custom_call.1} parent=1 // pred_fallthru
      _
    // Predicated region
    $region202: #{tpu_custom_call.1} parent=1 // pred_check
      _
    $region203: #{tpu_custom_call.1} parent=1 // pred_check_branch
      %364 = sbr.rel (0) target = $region205
    $region204: #{tpu_custom_call.1} parent=1 // pred_region
      %366 = dma.done [#allocation21], 512
    $region205: #{tpu_custom_call.1} parent=1 // pred_fallthru
      _
    // Predicated region
    $region206: #{tpu_custom_call.1} parent=1 // pred_check
      _
    $region207: #{tpu_custom_call.1} parent=1 // pred_check_branch
      %368 = sbr.rel (0) target = $region209
    $region208: #{tpu_custom_call.1} parent=1 // pred_region
      %370 = dma.done [#allocation21], 32
    $region209: #{tpu_custom_call.1} parent=1 // pred_fallthru
      _
    // Predicated region
    $region210: #{tpu_custom_call.1} parent=1 // pred_check
      _
    $region211: #{tpu_custom_call.1} parent=1 // pred_check_branch
      %372 = sbr.rel (0) target = $region213
    $region212: #{tpu_custom_call.1} parent=1 // pred_region
      %374 = dma.done [#allocation24], 512
    $region213: #{tpu_custom_call.1} parent=1 // pred_fallthru
      _
    %v376 = vld [vmem:[#allocation7] sm:$0x1]
    %v377 = vunpack.c.0.s8 %v376
    %vm378 = vcmp.ne.s32.totalorder %v377, 0
    %v379 = vlaneseq
    %v380 = vshrl.u32 %v379, 7
    %v381 = vlaneseq
    %v382 = vand.u32 %v381, 127
    %vm383 = vcmp.le.s32.totalorder %v382, %v380
    %v384 = vld [vmem:[#allocation2] sm:$0xff]
    %v385 = vld [vmem:[#allocation2 + $0x8] sm:$0xff]
    %v386 = vld [vmem:[%s7] sm:$0x1]
    %v387 = vld [vmem:[#allocation8] sm:$0x1]
    %vm388 = vcmask 261120
    %v389 = vsel %vm388, %v384, 0.0
    %390 = vadd.xlane.f32.xlu0 %v389
    %v391 = vpop.xlane.xlu0 %390
    %v392 = vsel %vm388, %v385, 0.0
    %393 = vadd.xlane.f32.xlu0 %v392
    %v394 = vpop.xlane.xlu0 %393
    %v395 = vrcp.pop 32.0
    %v396 = vmul.f32 32.0, %v395
    %v397 = vsub.f32 1.0, %v396
    %v398 = vmul.f32 %v395, %v397
    %v399 = vadd.f32 %v395, %v398
    %vm400 = vweird.f32 %v395
    %v401 = vsel %vm400, %v395, %v399
    %v402 = vmul.f32 %v391, %v401
    %v403 = vmul.f32 %v394, %v401
    %v404 = vsub.f32 %v384, %v402
    %v405 = vsub.f32 %v385, %v403
    %v406 = vmul.f32 %v404, %v404
    %v407 = vmul.f32 %v405, %v405
    %v408 = vsel %vm388, %v406, 0.0
    %409 = vadd.xlane.f32.xlu0 %v408
    %v410 = vpop.xlane.xlu0 %409
    %v411 = vsel %vm388, %v407, 0.0
    %412 = vadd.xlane.f32.xlu0 %v411
    %v413 = vpop.xlane.xlu0 %412
    %v414 = vmul.f32 %v410, 0.032258064
    %v415 = vmul.f32 %v413, 0.032258064
    %v416 = vrsqrt.pop %v414
    %v417 = vmul.f32 %v416, %v414
    %v418 = vmul.f32 %v417, %v416
    %v419 = vmul.f32 0.5, %v418
    %v420 = vsub.f32 1.5, %v419
    %v421 = vmul.f32 %v416, %v420
    %v422 = vmul.f32 %v414, %v421
    %vm423 = vcmp.eq.f32.partialorder %v414, inf
    %v424 = vsel %vm423, %v414, %v422
    %vm425 = vcmp.eq.f32.partialorder %v414, 0.0
    %v426 = vand.u32 %v414, 2147483648
    %v427 = vsel %vm425, %v426, %v424
    %v428 = vrsqrt.pop %v415
    %v429 = vmul.f32 %v428, %v415
    %v430 = vmul.f32 %v429, %v428
    %v431 = vmul.f32 0.5, %v430
    %v432 = vsub.f32 1.5, %v431
    %v433 = vmul.f32 %v428, %v432
    %v434 = vmul.f32 %v415, %v433
    %vm435 = vcmp.eq.f32.partialorder %v415, inf
    %v436 = vsel %vm435, %v415, %v434
    %vm437 = vcmp.eq.f32.partialorder %v415, 0.0
    %v438 = vand.u32 %v415, 2147483648
    %v439 = vsel %vm437, %v438, %v436
    %v440 = vadd.f32 %v427, 1e-06
    %v441 = vadd.f32 %v439, 1e-06
    %v442 = vrcp.pop %v440
    %v443 = vrcp.pop %v441
    %v444 = vmul.f32 %v404, %v442
    %v445 = vmul.f32 %v405, %v443
    %v447 = vperm.slane %v386, 0
    %v449 = vmul.f32 %v447, %v444
    %v450 = vmul.f32 %v447, %v445
    %v452 = vperm.slane %v387, 0
    %v454 = vadd.f32 %v449, %v452
    %v455 = vadd.f32 %v450, %v452
    %v456 = vld [vmem:[%s11] sm:$0xf]
    %v457 = vld [vmem:[%s11 + $0x4] sm:$0xf]
    %v458 = vld [vmem:[%s11 + $0x8] sm:$0xf]
    %v459 = vld [vmem:[%s11 + $0xc] sm:$0xf]
    %v460 = vld [vmem:[%s13] sm:$0x1]
    %v461 = vpack.c.bf16 %v455, %v454
    %v463 = vperm.slane %v460, 0
    %v469 = vunpack.c.l.b16 %v456
    %v470 = vunpack.c.l.b16 %v457
    %v471 = vunpack.c.l.b16 %v458
    %v472 = vunpack.c.l.b16 %v459
    %v473 = vpack.c.b16 %v470, %v469
    %v474 = vpack.c.b16 %v472, %v471
    %v478 = vsel %vm388, %v461, 0
    %480 = vmatpush.bf16.msra.mxu0 0
    %481 = vmatpush.bf16.msra.mxu0 0
    %482 = vmatpush.bf16.msra.mxu0 0
    %483 = vmatpush.bf16.msra.mxu0 0
    %484 = vmatpush.bf16.msra.mxu0 0
    %485 = vmatpush.bf16.msra.mxu0 0
    %486 = vmatpush.bf16.msra.mxu0 %v474
    %487 = vmatpush.bf16.msra.mxu0 %v473
    %488 = vmatmul.bf16.gmra.mxu0 %v478
    %v489 = vpop.f32.mrf.mxu0
    %v490 = vadd.f32 %v463, %v489
    %v491 = vpop.f32.mrf.mxu0
    %v492 = vadd.f32 %v463, %v491
    %493 = vdwg.mxu0
    %v494 = vld [vmem:[%s15] sm:$0xf]
    %v495 = vld [vmem:[%s15 + $0x4] sm:$0xf]
    %v496 = vld [vmem:[%s15 + $0x8] sm:$0xf]
    %v497 = vld [vmem:[%s15 + $0xc] sm:$0xf]
    %v498 = vpack.c.bf16 %v490, %v490
    %500 = vrot.lane.b32.xlu0 %v498, 96
    %v501 = vpop.permute.xlu0 %500
    %vm502 = vcmask 64512
    %v504 = vsel %vm502, %v498, 0
    %v507 = vsel %vm502, %v501, 0
    %509 = vmatpush.bf16.xpose.msra.mxu0 0
    %510 = vmatpush.bf16.xpose.msra.mxu0 0
    %511 = vmatpush.bf16.xpose.msra.mxu0 0
    %512 = vmatpush.bf16.xpose.msra.mxu0 0
    %513 = vmatpush.bf16.xpose.msra.mxu0 0
    %514 = vmatpush.bf16.xpose.msra.mxu0 0
    %515 = vmatpush.bf16.xpose.msra.mxu0 0
    %516 = vmatpush.bf16.xpose.msra.mxu0 %v507
    %517 = vmatmul.bf16.gmra.mxu0 %v504
    %v518 = vpop.f32.mrf.mxu0
    %v519 = vadd.f32 0.0, %v518
    %v520 = vpop.f32.mrf.mxu0
    %521 = vdwg.mxu0
    %v522 = vmul.f32 %v519, 0.35355338
    %v523 = vsel %vm378, 1, 0
    %v524 = vperm.slane %v523, 0
    %vm525 = vcmp.eq.s32.totalorder %v524, 1
    %v526 = vsel %vm525, %v522, -1e+09
    %v527 = vsel %vm502, %v526, -inf
    %528 = vmax.xlane.f32.xlu0 %v527
    %v529 = vpop.xlane.xlu0 %528
    %v530 = vsub.f32 %v526, %v529
    %v531 = vmul.f32 %v530, 1.442695
    %v532 = vpow.pop %v531
    %v533 = vsel %vm502, %v532, 0.0
    %534 = vadd.xlane.f32.xlu0 %v533
    %v535 = vpop.xlane.xlu0 %534
    %v536 = vrcp.pop %v535
    %v537 = vmul.f32 %v532, %v536
    %v538 = vpack.c.bf16 %v537, %v537
    %539 = vrot.lane.b32.xlu0 %v498, 64
    %v540 = vpop.permute.xlu0 %539
    %v542 = vsel %vm502, %v538, 0
    %vm544 = vcmask 1043456
    %v546 = vsel %vm544, %v540, 0
    %548 = vmatpush.bf16.msra.mxu0 0
    %549 = vmatpush.bf16.msra.mxu0 0
    %550 = vmatpush.bf16.msra.mxu0 0
    %551 = vmatpush.bf16.msra.mxu0 0
    %552 = vmatpush.bf16.msra.mxu0 0
    %553 = vmatpush.bf16.msra.mxu0 0
    %554 = vmatpush.bf16.msra.mxu0 0
    %555 = vmatpush.bf16.msra.mxu0 %v546
    %556 = vmatmul.bf16.gmra.mxu0 %v542
    %v557 = vpop.f32.mrf.mxu0
    %v558 = vadd.f32 0.0, %v557
    %v559 = vpop.f32.mrf.mxu0
    %560 = vdwg.mxu0
    %v561 = vpack.c.bf16 %v558, %v558
    %562 = vrot.lane.b32.xlu0 %v498, 120
    %v563 = vpop.permute.xlu0 %562
    %564 = vrot.lane.b32.xlu0 %v498, 88
    %v565 = vpop.permute.xlu0 %564
    %v567 = vsel %vm502, %v563, 0
    %v570 = vsel %vm502, %v565, 0
    %572 = vmatpush.bf16.xpose.msra.mxu0 0
    %573 = vmatpush.bf16.xpose.msra.mxu0 0
    %574 = vmatpush.bf16.xpose.msra.mxu0 0
    %575 = vmatpush.bf16.xpose.msra.mxu0 0
    %576 = vmatpush.bf16.xpose.msra.mxu0 0
    %577 = vmatpush.bf16.xpose.msra.mxu0 0
    %578 = vmatpush.bf16.xpose.msra.mxu0 0
    %579 = vmatpush.bf16.xpose.msra.mxu0 %v570
    %580 = vmatmul.bf16.gmra.mxu0 %v567
    %v581 = vpop.f32.mrf.mxu0
    %v582 = vadd.f32 0.0, %v581
    %v583 = vpop.f32.mrf.mxu0
    %584 = vdwg.mxu0
    %v585 = vmul.f32 %v582, 0.35355338
    %v586 = vsel %vm525, %v585, -1e+09
    %v587 = vsel %vm502, %v586, -inf
    %588 = vmax.xlane.f32.xlu0 %v587
    %v589 = vpop.xlane.xlu0 %588
    %v590 = vsub.f32 %v586, %v589
    %v591 = vmul.f32 %v590, 1.442695
    %v592 = vpow.pop %v591
    %v593 = vsel %vm502, %v592, 0.0
    %594 = vadd.xlane.f32.xlu0 %v593
    %v595 = vpop.xlane.xlu0 %594
    %v596 = vrcp.pop %v595
    %v597 = vmul.f32 %v592, %v596
    %v598 = vpack.c.bf16 %v597, %v597
    %599 = vrot.lane.b32.xlu0 %v498, 56
    %v600 = vpop.permute.xlu0 %599
    %v602 = vsel %vm502, %v598, 0
    %v605 = vsel %vm544, %v600, 0
    %607 = vmatpush.bf16.msra.mxu0 0
    %608 = vmatpush.bf16.msra.mxu0 0
    %609 = vmatpush.bf16.msra.mxu0 0
    %610 = vmatpush.bf16.msra.mxu0 0
    %611 = vmatpush.bf16.msra.mxu0 0
    %612 = vmatpush.bf16.msra.mxu0 0
    %613 = vmatpush.bf16.msra.mxu0 0
    %614 = vmatpush.bf16.msra.mxu0 %v605
    %615 = vmatmul.bf16.gmra.mxu0 %v602
    %v616 = vpop.f32.mrf.mxu0
    %v617 = vadd.f32 0.0, %v616
    %v618 = vpop.f32.mrf.mxu0
    %619 = vdwg.mxu0
    %v620 = vpack.c.bf16 %v617, %v617
    %v622 = vsel %vm502, %v620, 0
    %v625 = vsel %vm544, %v495, 0
    %627 = vmatpush.bf16.msra.mxu0 0
    %628 = vmatpush.bf16.msra.mxu0 0
    %629 = vmatpush.bf16.msra.mxu0 0
    %630 = vmatpush.bf16.msra.mxu0 0
    %631 = vmatpush.bf16.msra.mxu0 0
    %632 = vmatpush.bf16.msra.mxu0 0
    %633 = vmatpush.bf16.msra.mxu0 0
    %634 = vmatpush.bf16.msra.mxu0 %v625
    %635 = vmatmul.bf16.gmra.mxu0 %v622
    %v636 = vpop.f32.mrf.mxu0
    %v637 = vadd.f32 0.0, %v636
    %v638 = vpop.f32.mrf.mxu0
    %639 = vdwg.mxu0
    %v641 = vsel %vm502, %v561, 0
    %v644 = vsel %vm544, %v494, 0
    %646 = vmatpush.bf16.msra.mxu0 0
    %647 = vmatpush.bf16.msra.mxu0 0
    %648 = vmatpush.bf16.msra.mxu0 0
    %649 = vmatpush.bf16.msra.mxu0 0
    %650 = vmatpush.bf16.msra.mxu0 0
    %651 = vmatpush.bf16.msra.mxu0 0
    %652 = vmatpush.bf16.msra.mxu0 0
    %653 = vmatpush.bf16.msra.mxu0 %v644
    %654 = vmatmul.bf16.gmra.mxu0 %v641
    %v655 = vpop.f32.mrf.mxu0
    %v656 = vadd.f32 %v637, %v655
    %v657 = vpop.f32.mrf.mxu0
    %658 = vdwg.mxu0
    %659 = vrot.lane.b32.xlu0 %v498, 112
    %v660 = vpop.permute.xlu0 %659
    %661 = vrot.lane.b32.xlu0 %v498, 80
    %v662 = vpop.permute.xlu0 %661
    %v664 = vsel %vm502, %v660, 0
    %v667 = vsel %vm502, %v662, 0
    %669 = vmatpush.bf16.xpose.msra.mxu0 0
    %670 = vmatpush.bf16.xpose.msra.mxu0 0
    %671 = vmatpush.bf16.xpose.msra.mxu0 0
    %672 = vmatpush.bf16.xpose.msra.mxu0 0
    %673 = vmatpush.bf16.xpose.msra.mxu0 0
    %674 = vmatpush.bf16.xpose.msra.mxu0 0
    %675 = vmatpush.bf16.xpose.msra.mxu0 0
    %676 = vmatpush.bf16.xpose.msra.mxu0 %v667
    %677 = vmatmul.bf16.gmra.mxu0 %v664
    %v678 = vpop.f32.mrf.mxu0
    %v679 = vadd.f32 0.0, %v678
    %v680 = vpop.f32.mrf.mxu0
    %681 = vdwg.mxu0
    %v682 = vmul.f32 %v679, 0.35355338
    %v683 = vsel %vm525, %v682, -1e+09
    %v684 = vsel %vm502, %v683, -inf
    %685 = vmax.xlane.f32.xlu0 %v684
    %v686 = vpop.xlane.xlu0 %685
    %v687 = vsub.f32 %v683, %v686
    %v688 = vmul.f32 %v687, 1.442695
    %v689 = vpow.pop %v688
    %v690 = vsel %vm502, %v689, 0.0
    %691 = vadd.xlane.f32.xlu0 %v690
    %v692 = vpop.xlane.xlu0 %691
    %v693 = vrcp.pop %v692
    %v694 = vmul.f32 %v689, %v693
    %v695 = vpack.c.bf16 %v694, %v694
    %696 = vrot.lane.b32.xlu0 %v498, 48
    %v697 = vpop.permute.xlu0 %696
    %v699 = vsel %vm502, %v695, 0
    %v702 = vsel %vm544, %v697, 0
    %704 = vmatpush.bf16.msra.mxu0 0
    %705 = vmatpush.bf16.msra.mxu0 0
    %706 = vmatpush.bf16.msra.mxu0 0
    %707 = vmatpush.bf16.msra.mxu0 0
    %708 = vmatpush.bf16.msra.mxu0 0
    %709 = vmatpush.bf16.msra.mxu0 0
    %710 = vmatpush.bf16.msra.mxu0 0
    %711 = vmatpush.bf16.msra.mxu0 %v702
    %712 = vmatmul.bf16.gmra.mxu0 %v699
    %v713 = vpop.f32.mrf.mxu0
    %v714 = vadd.f32 0.0, %v713
    %v715 = vpop.f32.mrf.mxu0
    %716 = vdwg.mxu0
    %v717 = vpack.c.bf16 %v714, %v714
    %v719 = vsel %vm502, %v717, 0
    %v722 = vsel %vm544, %v496, 0
    %724 = vmatpush.bf16.msra.mxu0 0
    %725 = vmatpush.bf16.msra.mxu0 0
    %726 = vmatpush.bf16.msra.mxu0 0
    %727 = vmatpush.bf16.msra.mxu0 0
    %728 = vmatpush.bf16.msra.mxu0 0
    %729 = vmatpush.bf16.msra.mxu0 0
    %730 = vmatpush.bf16.msra.mxu0 0
    %731 = vmatpush.bf16.msra.mxu0 %v722
    %732 = vmatmul.bf16.gmra.mxu0 %v719
    %v733 = vpop.f32.mrf.mxu0
    %v734 = vadd.f32 0.0, %v733
    %v735 = vpop.f32.mrf.mxu0
    %736 = vdwg.mxu0
    %v737 = vadd.f32 %v656, %v734
    %738 = vrot.lane.b32.xlu0 %v498, 104
    %v739 = vpop.permute.xlu0 %738
    %740 = vrot.lane.b32.xlu0 %v498, 72
    %v741 = vpop.permute.xlu0 %740
    %v743 = vsel %vm502, %v739, 0
    %v746 = vsel %vm502, %v741, 0
    %748 = vmatpush.bf16.xpose.msra.mxu0 0
    %749 = vmatpush.bf16.xpose.msra.mxu0 0
    %750 = vmatpush.bf16.xpose.msra.mxu0 0
    %751 = vmatpush.bf16.xpose.msra.mxu0 0
    %752 = vmatpush.bf16.xpose.msra.mxu0 0
    %753 = vmatpush.bf16.xpose.msra.mxu0 0
    %754 = vmatpush.bf16.xpose.msra.mxu0 0
    %755 = vmatpush.bf16.xpose.msra.mxu0 %v746
    %756 = vmatmul.bf16.gmra.mxu0 %v743
    %v757 = vpop.f32.mrf.mxu0
    %v758 = vadd.f32 0.0, %v757
    %v759 = vpop.f32.mrf.mxu0
    %760 = vdwg.mxu0
    %v761 = vmul.f32 %v758, 0.35355338
    %v762 = vsel %vm525, %v761, -1e+09
    %v763 = vsel %vm502, %v762, -inf
    %764 = vmax.xlane.f32.xlu0 %v763
    %v765 = vpop.xlane.xlu0 %764
    %v766 = vsub.f32 %v762, %v765
    %v767 = vmul.f32 %v766, 1.442695
    %v768 = vpow.pop %v767
    %v769 = vsel %vm502, %v768, 0.0
    %770 = vadd.xlane.f32.xlu0 %v769
    %v771 = vpop.xlane.xlu0 %770
    %v772 = vrcp.pop %v771
    %v773 = vmul.f32 %v768, %v772
    %v774 = vpack.c.bf16 %v773, %v773
    %775 = vrot.lane.b32.xlu0 %v498, 40
    %v776 = vpop.permute.xlu0 %775
    %v778 = vsel %vm502, %v774, 0
    %v781 = vsel %vm544, %v776, 0
    %783 = vmatpush.bf16.msra.mxu0 0
    %784 = vmatpush.bf16.msra.mxu0 0
    %785 = vmatpush.bf16.msra.mxu0 0
    %786 = vmatpush.bf16.msra.mxu0 0
    %787 = vmatpush.bf16.msra.mxu0 0
    %788 = vmatpush.bf16.msra.mxu0 0
    %789 = vmatpush.bf16.msra.mxu0 0
    %790 = vmatpush.bf16.msra.mxu0 %v781
    %791 = vmatmul.bf16.gmra.mxu0 %v778
    %v792 = vpop.f32.mrf.mxu0
    %v793 = vadd.f32 0.0, %v792
    %v794 = vpop.f32.mrf.mxu0
    %795 = vdwg.mxu0
    %v796 = vpack.c.bf16 %v793, %v793
    %v798 = vsel %vm502, %v796, 0
    %v801 = vsel %vm544, %v497, 0
    %803 = vmatpush.bf16.msra.mxu0 0
    %804 = vmatpush.bf16.msra.mxu0 0
    %805 = vmatpush.bf16.msra.mxu0 0
    %806 = vmatpush.bf16.msra.mxu0 0
    %807 = vmatpush.bf16.msra.mxu0 0
    %808 = vmatpush.bf16.msra.mxu0 0
    %809 = vmatpush.bf16.msra.mxu0 0
    %810 = vmatpush.bf16.msra.mxu0 %v801
    %811 = vmatmul.bf16.gmra.mxu0 %v798
    %v812 = vpop.f32.mrf.mxu0
    %v813 = vadd.f32 0.0, %v812
    %v814 = vpop.f32.mrf.mxu0
    %815 = vdwg.mxu0
    %v816 = vadd.f32 %v737, %v813
    %v817 = vpack.c.bf16 %v492, %v492
    %819 = vrot.lane.b32.xlu0 %v817, 96
    %v820 = vpop.permute.xlu0 %819
    %v822 = vsel %vm502, %v817, 0
    %v825 = vsel %vm502, %v820, 0
    %827 = vmatpush.bf16.xpose.msra.mxu0 0
    %828 = vmatpush.bf16.xpose.msra.mxu0 0
    %829 = vmatpush.bf16.xpose.msra.mxu0 0
    %830 = vmatpush.bf16.xpose.msra.mxu0 0
    %831 = vmatpush.bf16.xpose.msra.mxu0 0
    %832 = vmatpush.bf16.xpose.msra.mxu0 0
    %833 = vmatpush.bf16.xpose.msra.mxu0 0
    %834 = vmatpush.bf16.xpose.msra.mxu0 %v825
    %835 = vmatmul.bf16.gmra.mxu0 %v822
    %v836 = vpop.f32.mrf.mxu0
    %v837 = vadd.f32 0.0, %v836
    %v838 = vpop.f32.mrf.mxu0
    %839 = vdwg.mxu0
    %v840 = vmul.f32 %v837, 0.35355338
    %v841 = vperm.slane %v523, 1
    %vm842 = vcmp.eq.s32.totalorder %v841, 1
    %v843 = vsel %vm842, %v840, -1e+09
    %v844 = vsel %vm502, %v843, -inf
    %845 = vmax.xlane.f32.xlu0 %v844
    %v846 = vpop.xlane.xlu0 %845
    %v847 = vsub.f32 %v843, %v846
    %v848 = vmul.f32 %v847, 1.442695
    %v849 = vpow.pop %v848
    %v850 = vsel %vm502, %v849, 0.0
    %851 = vadd.xlane.f32.xlu0 %v850
    %v852 = vpop.xlane.xlu0 %851
    %v853 = vrcp.pop %v852
    %v854 = vmul.f32 %v849, %v853
    %v855 = vpack.c.bf16 %v854, %v854
    %856 = vrot.lane.b32.xlu0 %v817, 64
    %v857 = vpop.permute.xlu0 %856
    %v859 = vsel %vm502, %v855, 0
    %v862 = vsel %vm544, %v857, 0
    %864 = vmatpush.bf16.msra.mxu0 0
    %865 = vmatpush.bf16.msra.mxu0 0
    %866 = vmatpush.bf16.msra.mxu0 0
    %867 = vmatpush.bf16.msra.mxu0 0
    %868 = vmatpush.bf16.msra.mxu0 0
    %869 = vmatpush.bf16.msra.mxu0 0
    %870 = vmatpush.bf16.msra.mxu0 0
    %871 = vmatpush.bf16.msra.mxu0 %v862
    %872 = vmatmul.bf16.gmra.mxu0 %v859
    %v873 = vpop.f32.mrf.mxu0
    %v874 = vadd.f32 0.0, %v873
    %v875 = vpop.f32.mrf.mxu0
    %876 = vdwg.mxu0
    %v877 = vpack.c.bf16 %v874, %v874
    %878 = vrot.lane.b32.xlu0 %v817, 120
    %v879 = vpop.permute.xlu0 %878
    %880 = vrot.lane.b32.xlu0 %v817, 88
    %v881 = vpop.permute.xlu0 %880
    %v883 = vsel %vm502, %v879, 0
    %v886 = vsel %vm502, %v881, 0
    %888 = vmatpush.bf16.xpose.msra.mxu0 0
    %889 = vmatpush.bf16.xpose.msra.mxu0 0
    %890 = vmatpush.bf16.xpose.msra.mxu0 0
    %891 = vmatpush.bf16.xpose.msra.mxu0 0
    %892 = vmatpush.bf16.xpose.msra.mxu0 0
    %893 = vmatpush.bf16.xpose.msra.mxu0 0
    %894 = vmatpush.bf16.xpose.msra.mxu0 0
    %895 = vmatpush.bf16.xpose.msra.mxu0 %v886
    %896 = vmatmul.bf16.gmra.mxu0 %v883
    %v897 = vpop.f32.mrf.mxu0
    %v898 = vadd.f32 0.0, %v897
    %v899 = vpop.f32.mrf.mxu0
    %900 = vdwg.mxu0
    %v901 = vmul.f32 %v898, 0.35355338
    %v902 = vsel %vm842, %v901, -1e+09
    %v903 = vsel %vm502, %v902, -inf
    %904 = vmax.xlane.f32.xlu0 %v903
    %v905 = vpop.xlane.xlu0 %904
    %v906 = vsub.f32 %v902, %v905
    %v907 = vmul.f32 %v906, 1.442695
    %v908 = vpow.pop %v907
    %v909 = vsel %vm502, %v908, 0.0
    %910 = vadd.xlane.f32.xlu0 %v909
    %v911 = vpop.xlane.xlu0 %910
    %v912 = vrcp.pop %v911
    %v913 = vmul.f32 %v908, %v912
    %v914 = vpack.c.bf16 %v913, %v913
    %915 = vrot.lane.b32.xlu0 %v817, 56
    %v916 = vpop.permute.xlu0 %915
    %v918 = vsel %vm502, %v914, 0
    %v921 = vsel %vm544, %v916, 0
    %923 = vmatpush.bf16.msra.mxu0 0
    %924 = vmatpush.bf16.msra.mxu0 0
    %925 = vmatpush.bf16.msra.mxu0 0
    %926 = vmatpush.bf16.msra.mxu0 0
    %927 = vmatpush.bf16.msra.mxu0 0
    %928 = vmatpush.bf16.msra.mxu0 0
    %929 = vmatpush.bf16.msra.mxu0 0
    %930 = vmatpush.bf16.msra.mxu0 %v921
    %931 = vmatmul.bf16.gmra.mxu0 %v918
    %v932 = vpop.f32.mrf.mxu0
    %v933 = vadd.f32 0.0, %v932
    %v934 = vpop.f32.mrf.mxu0
    %935 = vdwg.mxu0
    %v936 = vpack.c.bf16 %v933, %v933
    %v938 = vsel %vm502, %v936, 0
    %940 = vmatpush.bf16.msra.mxu0 0
    %941 = vmatpush.bf16.msra.mxu0 0
    %942 = vmatpush.bf16.msra.mxu0 0
    %943 = vmatpush.bf16.msra.mxu0 0
    %944 = vmatpush.bf16.msra.mxu0 0
    %945 = vmatpush.bf16.msra.mxu0 0
    %946 = vmatpush.bf16.msra.mxu0 0
    %947 = vmatpush.bf16.msra.mxu0 %v625
    %948 = vmatmul.bf16.gmra.mxu0 %v938
    %v949 = vpop.f32.mrf.mxu0
    %v950 = vadd.f32 0.0, %v949
    %v951 = vpop.f32.mrf.mxu0
    %952 = vdwg.mxu0
    %v954 = vsel %vm502, %v877, 0
    %956 = vmatpush.bf16.msra.mxu0 0
    %957 = vmatpush.bf16.msra.mxu0 0
    %958 = vmatpush.bf16.msra.mxu0 0
    %959 = vmatpush.bf16.msra.mxu0 0
    %960 = vmatpush.bf16.msra.mxu0 0
    %961 = vmatpush.bf16.msra.mxu0 0
    %962 = vmatpush.bf16.msra.mxu0 0
    %963 = vmatpush.bf16.msra.mxu0 %v644
    %964 = vmatmul.bf16.gmra.mxu0 %v954
    %v965 = vpop.f32.mrf.mxu0
    %v966 = vadd.f32 %v950, %v965
    %v967 = vpop.f32.mrf.mxu0
    %968 = vdwg.mxu0
    %969 = vrot.lane.b32.xlu0 %v817, 112
    %v970 = vpop.permute.xlu0 %969
    %971 = vrot.lane.b32.xlu0 %v817, 80
    %v972 = vpop.permute.xlu0 %971
    %v974 = vsel %vm502, %v970, 0
    %v977 = vsel %vm502, %v972, 0
    %979 = vmatpush.bf16.xpose.msra.mxu0 0
    %980 = vmatpush.bf16.xpose.msra.mxu0 0
    %981 = vmatpush.bf16.xpose.msra.mxu0 0
    %982 = vmatpush.bf16.xpose.msra.mxu0 0
    %983 = vmatpush.bf16.xpose.msra.mxu0 0
    %984 = vmatpush.bf16.xpose.msra.mxu0 0
    %985 = vmatpush.bf16.xpose.msra.mxu0 0
    %986 = vmatpush.bf16.xpose.msra.mxu0 %v977
    %987 = vmatmul.bf16.gmra.mxu0 %v974
    %v988 = vpop.f32.mrf.mxu0
    %v989 = vadd.f32 0.0, %v988
    %v990 = vpop.f32.mrf.mxu0
    %991 = vdwg.mxu0
    %v992 = vmul.f32 %v989, 0.35355338
    %v993 = vsel %vm842, %v992, -1e+09
    %v994 = vsel %vm502, %v993, -inf
    %995 = vmax.xlane.f32.xlu0 %v994
    %v996 = vpop.xlane.xlu0 %995
    %v997 = vsub.f32 %v993, %v996
    %v998 = vmul.f32 %v997, 1.442695
    %v999 = vpow.pop %v998
    %v1000 = vsel %vm502, %v999, 0.0
    %1001 = vadd.xlane.f32.xlu0 %v1000
    %v1002 = vpop.xlane.xlu0 %1001
    %v1003 = vrcp.pop %v1002
    %v1004 = vmul.f32 %v999, %v1003
    %v1005 = vpack.c.bf16 %v1004, %v1004
    %1006 = vrot.lane.b32.xlu0 %v817, 48
    %v1007 = vpop.permute.xlu0 %1006
    %v1009 = vsel %vm502, %v1005, 0
    %v1012 = vsel %vm544, %v1007, 0
    %1014 = vmatpush.bf16.msra.mxu0 0
    %1015 = vmatpush.bf16.msra.mxu0 0
    %1016 = vmatpush.bf16.msra.mxu0 0
    %1017 = vmatpush.bf16.msra.mxu0 0
    %1018 = vmatpush.bf16.msra.mxu0 0
    %1019 = vmatpush.bf16.msra.mxu0 0
    %1020 = vmatpush.bf16.msra.mxu0 0
    %1021 = vmatpush.bf16.msra.mxu0 %v1012
    %1022 = vmatmul.bf16.gmra.mxu0 %v1009
    %v1023 = vpop.f32.mrf.mxu0
    %v1024 = vadd.f32 0.0, %v1023
    %v1025 = vpop.f32.mrf.mxu0
    %1026 = vdwg.mxu0
    %v1027 = vpack.c.bf16 %v1024, %v1024
    %v1029 = vsel %vm502, %v1027, 0
    %1031 = vmatpush.bf16.msra.mxu0 0
    %1032 = vmatpush.bf16.msra.mxu0 0
    %1033 = vmatpush.bf16.msra.mxu0 0
    %1034 = vmatpush.bf16.msra.mxu0 0
    %1035 = vmatpush.bf16.msra.mxu0 0
    %1036 = vmatpush.bf16.msra.mxu0 0
    %1037 = vmatpush.bf16.msra.mxu0 0
    %1038 = vmatpush.bf16.msra.mxu0 %v722
    %1039 = vmatmul.bf16.gmra.mxu0 %v1029
    %v1040 = vpop.f32.mrf.mxu0
    %v1041 = vadd.f32 0.0, %v1040
    %v1042 = vpop.f32.mrf.mxu0
    %1043 = vdwg.mxu0
    %v1044 = vadd.f32 %v966, %v1041
    %1045 = vrot.lane.b32.xlu0 %v817, 104
    %v1046 = vpop.permute.xlu0 %1045
    %1047 = vrot.lane.b32.xlu0 %v817, 72
    %v1048 = vpop.permute.xlu0 %1047
    %v1050 = vsel %vm502, %v1046, 0
    %v1053 = vsel %vm502, %v1048, 0
    %1055 = vmatpush.bf16.xpose.msra.mxu0 0
    %1056 = vmatpush.bf16.xpose.msra.mxu0 0
    %1057 = vmatpush.bf16.xpose.msra.mxu0 0
    %1058 = vmatpush.bf16.xpose.msra.mxu0 0
    %1059 = vmatpush.bf16.xpose.msra.mxu0 0
    %1060 = vmatpush.bf16.xpose.msra.mxu0 0
    %1061 = vmatpush.bf16.xpose.msra.mxu0 0
    %1062 = vmatpush.bf16.xpose.msra.mxu0 %v1053
    %1063 = vmatmul.bf16.gmra.mxu0 %v1050
    %v1064 = vpop.f32.mrf.mxu0
    %v1065 = vadd.f32 0.0, %v1064
    %v1066 = vpop.f32.mrf.mxu0
    %1067 = vdwg.mxu0
    %v1068 = vmul.f32 %v1065, 0.35355338
    %v1069 = vsel %vm842, %v1068, -1e+09
    %v1070 = vsel %vm502, %v1069, -inf
    %1071 = vmax.xlane.f32.xlu0 %v1070
    %v1072 = vpop.xlane.xlu0 %1071
    %v1073 = vsub.f32 %v1069, %v1072
    %v1074 = vmul.f32 %v1073, 1.442695
    %v1075 = vpow.pop %v1074
    %v1076 = vsel %vm502, %v1075, 0.0
    %1077 = vadd.xlane.f32.xlu0 %v1076
    %v1078 = vpop.xlane.xlu0 %1077
    %v1079 = vrcp.pop %v1078
    %v1080 = vmul.f32 %v1075, %v1079
    %v1081 = vpack.c.bf16 %v1080, %v1080
    %1082 = vrot.lane.b32.xlu0 %v817, 40
    %v1083 = vpop.permute.xlu0 %1082
    %v1085 = vsel %vm502, %v1081, 0
    %v1088 = vsel %vm544, %v1083, 0
    %1090 = vmatpush.bf16.msra.mxu0 0
    %1091 = vmatpush.bf16.msra.mxu0 0
    %1092 = vmatpush.bf16.msra.mxu0 0
    %1093 = vmatpush.bf16.msra.mxu0 0
    %1094 = vmatpush.bf16.msra.mxu0 0
    %1095 = vmatpush.bf16.msra.mxu0 0
    %1096 = vmatpush.bf16.msra.mxu0 0
    %1097 = vmatpush.bf16.msra.mxu0 %v1088
    %1098 = vmatmul.bf16.gmra.mxu0 %v1085
    %v1099 = vpop.f32.mrf.mxu0
    %v1100 = vadd.f32 0.0, %v1099
    %v1101 = vpop.f32.mrf.mxu0
    %1102 = vdwg.mxu0
    %v1103 = vpack.c.bf16 %v1100, %v1100
    %v1105 = vsel %vm502, %v1103, 0
    %1107 = vmatpush.bf16.msra.mxu0 0
    %1108 = vmatpush.bf16.msra.mxu0 0
    %1109 = vmatpush.bf16.msra.mxu0 0
    %1110 = vmatpush.bf16.msra.mxu0 0
    %1111 = vmatpush.bf16.msra.mxu0 0
    %1112 = vmatpush.bf16.msra.mxu0 0
    %1113 = vmatpush.bf16.msra.mxu0 0
    %1114 = vmatpush.bf16.msra.mxu0 %v801
    %1115 = vmatmul.bf16.gmra.mxu0 %v1105
    %v1116 = vpop.f32.mrf.mxu0
    %v1117 = vadd.f32 0.0, %v1116
    %v1118 = vpop.f32.mrf.mxu0
    %1119 = vdwg.mxu0
    %v1120 = vadd.f32 %v1044, %v1117
    %v1121 = vadd.f32 %v384, %v816
    %v1122 = vadd.f32 %v385, %v1120
    %v1123 = vld [vmem:[#allocation10] sm:$0x1]
    %v1125 = vperm.slane %v1123, 0
    %v1127 = vadd.f32 %v1121, %v1125
    %v1128 = vadd.f32 %v1122, %v1125
    %v1129 = vld [vmem:[%s19] sm:$0x1]
    %v1130 = vld [vmem:[%s21] sm:$0x1]
    %v1131 = vsel %vm388, %v1127, 0.0
    %1132 = vadd.xlane.f32.xlu0 %v1131
    %v1133 = vpop.xlane.xlu0 %1132
    %v1134 = vsel %vm388, %v1128, 0.0
    %1135 = vadd.xlane.f32.xlu0 %v1134
    %v1136 = vpop.xlane.xlu0 %1135
    %v1137 = vmul.f32 %v1133, %v401
    %v1138 = vmul.f32 %v1136, %v401
    %v1139 = vsub.f32 %v1127, %v1137
    %v1140 = vsub.f32 %v1128, %v1138
    %v1141 = vmul.f32 %v1139, %v1139
    %v1142 = vmul.f32 %v1140, %v1140
    %v1143 = vsel %vm388, %v1141, 0.0
    %1144 = vadd.xlane.f32.xlu0 %v1143
    %v1145 = vpop.xlane.xlu0 %1144
    %v1146 = vsel %vm388, %v1142, 0.0
    %1147 = vadd.xlane.f32.xlu0 %v1146
    %v1148 = vpop.xlane.xlu0 %1147
    %v1149 = vmul.f32 %v1145, 0.032258064
    %v1150 = vmul.f32 %v1148, 0.032258064
    %v1151 = vrsqrt.pop %v1149
    %v1152 = vmul.f32 %v1151, %v1149
    %v1153 = vmul.f32 %v1152, %v1151
    %v1154 = vmul.f32 0.5, %v1153
    %v1155 = vsub.f32 1.5, %v1154
    %v1156 = vmul.f32 %v1151, %v1155
    %v1157 = vmul.f32 %v1149, %v1156
    %vm1158 = vcmp.eq.f32.partialorder %v1149, inf
    %v1159 = vsel %vm1158, %v1149, %v1157
    %vm1160 = vcmp.eq.f32.partialorder %v1149, 0.0
    %v1161 = vand.u32 %v1149, 2147483648
    %v1162 = vsel %vm1160, %v1161, %v1159
    %v1163 = vrsqrt.pop %v1150
    %v1164 = vmul.f32 %v1163, %v1150
    %v1165 = vmul.f32 %v1164, %v1163
    %v1166 = vmul.f32 0.5, %v1165
    %v1167 = vsub.f32 1.5, %v1166
    %v1168 = vmul.f32 %v1163, %v1167
    %v1169 = vmul.f32 %v1150, %v1168
    %vm1170 = vcmp.eq.f32.partialorder %v1150, inf
    %v1171 = vsel %vm1170, %v1150, %v1169
    %vm1172 = vcmp.eq.f32.partialorder %v1150, 0.0
    %v1173 = vand.u32 %v1150, 2147483648
    %v1174 = vsel %vm1172, %v1173, %v1171
    %v1175 = vadd.f32 %v1162, 1e-06
    %v1176 = vadd.f32 %v1174, 1e-06
    %v1177 = vrcp.pop %v1175
    %v1178 = vrcp.pop %v1176
    %v1179 = vmul.f32 %v1139, %v1177
    %v1180 = vmul.f32 %v1140, %v1178
    %v1182 = vperm.slane %v1129, 0
    %v1184 = vmul.f32 %v1182, %v1179
    %v1185 = vmul.f32 %v1182, %v1180
    %v1187 = vperm.slane %v1130, 0
    %v1189 = vadd.f32 %v1184, %v1187
    %v1190 = vadd.f32 %v1185, %v1187
    %v1191 = vld [vmem:[%s23] sm:$0xf]
    %v1192 = vld [vmem:[%s23 + $0x4] sm:$0xf]
    %v1193 = vld [vmem:[%s23 + $0x8] sm:$0xf]
    %v1194 = vld [vmem:[%s23 + $0xc] sm:$0xf]
    %v1195 = vld [vmem:[%s25] sm:$0x1]
    %v1196 = vpack.c.bf16 %v1190, %v1189
    %v1198 = vperm.slane %v1195, 0
    %v1204 = vunpack.c.l.b16 %v1191
    %v1205 = vunpack.c.l.b16 %v1192
    %v1206 = vunpack.c.l.b16 %v1193
    %v1207 = vunpack.c.l.b16 %v1194
    %v1208 = vpack.c.b16 %v1205, %v1204
    %v1209 = vpack.c.b16 %v1207, %v1206
    %v1213 = vsel %vm388, %v1196, 0
    %1215 = vmatpush.bf16.msra.mxu0 0
    %1216 = vmatpush.bf16.msra.mxu0 0
    %1217 = vmatpush.bf16.msra.mxu0 0
    %1218 = vmatpush.bf16.msra.mxu0 0
    %1219 = vmatpush.bf16.msra.mxu0 0
    %1220 = vmatpush.bf16.msra.mxu0 0
    %1221 = vmatpush.bf16.msra.mxu0 %v1209
    %1222 = vmatpush.bf16.msra.mxu0 %v1208
    %1223 = vmatmul.bf16.gmra.mxu0 %v1213
    %v1224 = vpop.f32.mrf.mxu0
    %v1225 = vadd.f32 %v1198, %v1224
    %v1226 = vpop.f32.mrf.mxu0
    %v1227 = vadd.f32 %v1198, %v1226
    %1228 = vdwg.mxu0
    %v1229 = vmax.f32 %v1225, 0.0
    %v1230 = vmax.f32 %v1227, 0.0
    %v1231 = vld [vmem:[%s27] sm:$0xf]
    %v1232 = vld [vmem:[%s27 + $0x4] sm:$0xf]
    %v1233 = vld [vmem:[%s27 + $0x8] sm:$0xf]
    %v1234 = vld [vmem:[%s27 + $0xc] sm:$0xf]
    %v1235 = vld [vmem:[%s27 + $0x10] sm:$0xf]
    %v1236 = vld [vmem:[%s27 + $0x14] sm:$0xf]
    %v1237 = vld [vmem:[%s27 + $0x18] sm:$0xf]
    %v1238 = vld [vmem:[%s27 + $0x1c] sm:$0xf]
    %v1239 = vld [vmem:[#allocation11] sm:$0x1]
    %v1240 = vpack.c.bf16 %v1230, %v1229
    %v1242 = vperm.slane %v1239, 0
    %v1252 = vunpack.c.l.b16 %v1231
    %v1253 = vunpack.c.l.b16 %v1232
    %v1254 = vunpack.c.l.b16 %v1233
    %v1255 = vunpack.c.l.b16 %v1234
    %v1256 = vunpack.c.l.b16 %v1235
    %v1257 = vunpack.c.l.b16 %v1236
    %v1258 = vunpack.c.l.b16 %v1237
    %v1259 = vunpack.c.l.b16 %v1238
    %v1260 = vpack.c.b16 %v1253, %v1252
    %v1261 = vpack.c.b16 %v1255, %v1254
    %v1262 = vpack.c.b16 %v1257, %v1256
    %v1263 = vpack.c.b16 %v1259, %v1258
    %vm1268 = vcmask 523264
    %v1270 = vsel %vm1268, %v1240, 0
    %1272 = vmatpush.bf16.msra.mxu0 0
    %1273 = vmatpush.bf16.msra.mxu0 0
    %1274 = vmatpush.bf16.msra.mxu0 0
    %1275 = vmatpush.bf16.msra.mxu0 0
    %1276 = vmatpush.bf16.msra.mxu0 %v1263
    %1277 = vmatpush.bf16.msra.mxu0 %v1262
    %1278 = vmatpush.bf16.msra.mxu0 %v1261
    %1279 = vmatpush.bf16.msra.mxu0 %v1260
    %1280 = vmatmul.bf16.gmra.mxu0 %v1270
    %v1281 = vpop.f32.mrf.mxu0
    %v1282 = vadd.f32 %v1242, %v1281
    %v1283 = vpop.f32.mrf.mxu0
    %v1284 = vadd.f32 %v1242, %v1283
    %1285 = vdwg.mxu0
    %v1286 = vadd.f32 %v1127, %v1282
    %v1287 = vadd.f32 %v1128, %v1284
    %s1288 = scalar_lea.vmem %s7, 1
    %v1289 = vld [vmem:[%s1288] sm:$0x1]
    %s1290 = scalar_lea.vmem [#allocation8], 1
    %v1291 = vld [vmem:[%s1290] sm:$0x1]
    %v1292 = vsel %vm388, %v1286, 0.0
    %1293 = vadd.xlane.f32.xlu0 %v1292
    %v1294 = vpop.xlane.xlu0 %1293
    %v1295 = vsel %vm388, %v1287, 0.0
    %1296 = vadd.xlane.f32.xlu0 %v1295
    %v1297 = vpop.xlane.xlu0 %1296
    %v1298 = vmul.f32 %v1294, %v401
    %v1299 = vmul.f32 %v1297, %v401
    %v1300 = vsub.f32 %v1286, %v1298
    %v1301 = vsub.f32 %v1287, %v1299
    %v1302 = vmul.f32 %v1300, %v1300
    %v1303 = vmul.f32 %v1301, %v1301
    %v1304 = vsel %vm388, %v1302, 0.0
    %1305 = vadd.xlane.f32.xlu0 %v1304
    %v1306 = vpop.xlane.xlu0 %1305
    %v1307 = vsel %vm388, %v1303, 0.0
    %1308 = vadd.xlane.f32.xlu0 %v1307
    %v1309 = vpop.xlane.xlu0 %1308
    %v1310 = vmul.f32 %v1306, 0.032258064
    %v1311 = vmul.f32 %v1309, 0.032258064
    %v1312 = vrsqrt.pop %v1310
    %v1313 = vmul.f32 %v1312, %v1310
    %v1314 = vmul.f32 %v1313, %v1312
    %v1315 = vmul.f32 0.5, %v1314
    %v1316 = vsub.f32 1.5, %v1315
    %v1317 = vmul.f32 %v1312, %v1316
    %v1318 = vmul.f32 %v1310, %v1317
    %vm1319 = vcmp.eq.f32.partialorder %v1310, inf
    %v1320 = vsel %vm1319, %v1310, %v1318
    %vm1321 = vcmp.eq.f32.partialorder %v1310, 0.0
    %v1322 = vand.u32 %v1310, 2147483648
    %v1323 = vsel %vm1321, %v1322, %v1320
    %v1324 = vrsqrt.pop %v1311
    %v1325 = vmul.f32 %v1324, %v1311
    %v1326 = vmul.f32 %v1325, %v1324
    %v1327 = vmul.f32 0.5, %v1326
    %v1328 = vsub.f32 1.5, %v1327
    %v1329 = vmul.f32 %v1324, %v1328
    %v1330 = vmul.f32 %v1311, %v1329
    %vm1331 = vcmp.eq.f32.partialorder %v1311, inf
    %v1332 = vsel %vm1331, %v1311, %v1330
    %vm1333 = vcmp.eq.f32.partialorder %v1311, 0.0
    %v1334 = vand.u32 %v1311, 2147483648
    %v1335 = vsel %vm1333, %v1334, %v1332
    %v1336 = vadd.f32 %v1323, 1e-06
    %v1337 = vadd.f32 %v1335, 1e-06
    %v1338 = vrcp.pop %v1336
    %v1339 = vrcp.pop %v1337
    %v1340 = vmul.f32 %v1300, %v1338
    %v1341 = vmul.f32 %v1301, %v1339
    %v1343 = vperm.slane %v1289, 0
    %v1345 = vmul.f32 %v1343, %v1340
    %v1346 = vmul.f32 %v1343, %v1341
    %v1348 = vperm.slane %v1291, 0
    %v1350 = vadd.f32 %v1345, %v1348
    %v1351 = vadd.f32 %v1346, %v1348
    %s1352 = scalar_lea.vmem %s11, 16
    %v1353 = vld [vmem:[%s1352] sm:$0xf]
    %v1354 = vld [vmem:[%s1352 + $0x4] sm:$0xf]
    %v1355 = vld [vmem:[%s1352 + $0x8] sm:$0xf]
    %v1356 = vld [vmem:[%s1352 + $0xc] sm:$0xf]
    %s1357 = scalar_lea.vmem %s13, 1
    %v1358 = vld [vmem:[%s1357] sm:$0x1]
    %v1359 = vpack.c.bf16 %v1351, %v1350
    %v1361 = vperm.slane %v1358, 0
    %v1367 = vunpack.c.l.b16 %v1353
    %v1368 = vunpack.c.l.b16 %v1354
    %v1369 = vunpack.c.l.b16 %v1355
    %v1370 = vunpack.c.l.b16 %v1356
    %v1371 = vpack.c.b16 %v1368, %v1367
    %v1372 = vpack.c.b16 %v1370, %v1369
    %v1376 = vsel %vm388, %v1359, 0
    %1378 = vmatpush.bf16.msra.mxu0 0
    %1379 = vmatpush.bf16.msra.mxu0 0
    %1380 = vmatpush.bf16.msra.mxu0 0
    %1381 = vmatpush.bf16.msra.mxu0 0
    %1382 = vmatpush.bf16.msra.mxu0 0
    %1383 = vmatpush.bf16.msra.mxu0 0
    %1384 = vmatpush.bf16.msra.mxu0 %v1372
    %1385 = vmatpush.bf16.msra.mxu0 %v1371
    %1386 = vmatmul.bf16.gmra.mxu0 %v1376
    %v1387 = vpop.f32.mrf.mxu0
    %v1388 = vadd.f32 %v1361, %v1387
    %v1389 = vpop.f32.mrf.mxu0
    %v1390 = vadd.f32 %v1361, %v1389
    %1391 = vdwg.mxu0
    %s1392 = scalar_lea.vmem %s15, 16
    %v1393 = vld [vmem:[%s1392] sm:$0xf]
    %v1394 = vld [vmem:[%s1392 + $0x4] sm:$0xf]
    %v1395 = vld [vmem:[%s1392 + $0x8] sm:$0xf]
    %v1396 = vld [vmem:[%s1392 + $0xc] sm:$0xf]
    %v1397 = vpack.c.bf16 %v1388, %v1388
    %1399 = vrot.lane.b32.xlu0 %v1397, 96
    %v1400 = vpop.permute.xlu0 %1399
    %v1402 = vsel %vm502, %v1397, 0
    %v1405 = vsel %vm502, %v1400, 0
    %1407 = vmatpush.bf16.xpose.msra.mxu0 0
    %1408 = vmatpush.bf16.xpose.msra.mxu0 0
    %1409 = vmatpush.bf16.xpose.msra.mxu0 0
    %1410 = vmatpush.bf16.xpose.msra.mxu0 0
    %1411 = vmatpush.bf16.xpose.msra.mxu0 0
    %1412 = vmatpush.bf16.xpose.msra.mxu0 0
    %1413 = vmatpush.bf16.xpose.msra.mxu0 0
    %1414 = vmatpush.bf16.xpose.msra.mxu0 %v1405
    %1415 = vmatmul.bf16.gmra.mxu0 %v1402
    %v1416 = vpop.f32.mrf.mxu0
    %v1417 = vadd.f32 0.0, %v1416
    %v1418 = vpop.f32.mrf.mxu0
    %1419 = vdwg.mxu0
    %v1420 = vmul.f32 %v1417, 0.35355338
    %v1421 = vsel %vm525, %v1420, -1e+09
    %v1422 = vsel %vm502, %v1421, -inf
    %1423 = vmax.xlane.f32.xlu0 %v1422
    %v1424 = vpop.xlane.xlu0 %1423
    %v1425 = vsub.f32 %v1421, %v1424
    %v1426 = vmul.f32 %v1425, 1.442695
    %v1427 = vpow.pop %v1426
    %v1428 = vsel %vm502, %v1427, 0.0
    %1429 = vadd.xlane.f32.xlu0 %v1428
    %v1430 = vpop.xlane.xlu0 %1429
    %v1431 = vrcp.pop %v1430
    %v1432 = vmul.f32 %v1427, %v1431
    %v1433 = vpack.c.bf16 %v1432, %v1432
    %1434 = vrot.lane.b32.xlu0 %v1397, 64
    %v1435 = vpop.permute.xlu0 %1434
    %v1437 = vsel %vm502, %v1433, 0
    %v1440 = vsel %vm544, %v1435, 0
    %1442 = vmatpush.bf16.msra.mxu0 0
    %1443 = vmatpush.bf16.msra.mxu0 0
    %1444 = vmatpush.bf16.msra.mxu0 0
    %1445 = vmatpush.bf16.msra.mxu0 0
    %1446 = vmatpush.bf16.msra.mxu0 0
    %1447 = vmatpush.bf16.msra.mxu0 0
    %1448 = vmatpush.bf16.msra.mxu0 0
    %1449 = vmatpush.bf16.msra.mxu0 %v1440
    %1450 = vmatmul.bf16.gmra.mxu0 %v1437
    %v1451 = vpop.f32.mrf.mxu0
    %v1452 = vadd.f32 0.0, %v1451
    %v1453 = vpop.f32.mrf.mxu0
    %1454 = vdwg.mxu0
    %v1455 = vpack.c.bf16 %v1452, %v1452
    %1456 = vrot.lane.b32.xlu0 %v1397, 120
    %v1457 = vpop.permute.xlu0 %1456
    %1458 = vrot.lane.b32.xlu0 %v1397, 88
    %v1459 = vpop.permute.xlu0 %1458
    %v1461 = vsel %vm502, %v1457, 0
    %v1464 = vsel %vm502, %v1459, 0
    %1466 = vmatpush.bf16.xpose.msra.mxu0 0
    %1467 = vmatpush.bf16.xpose.msra.mxu0 0
    %1468 = vmatpush.bf16.xpose.msra.mxu0 0
    %1469 = vmatpush.bf16.xpose.msra.mxu0 0
    %1470 = vmatpush.bf16.xpose.msra.mxu0 0
    %1471 = vmatpush.bf16.xpose.msra.mxu0 0
    %1472 = vmatpush.bf16.xpose.msra.mxu0 0
    %1473 = vmatpush.bf16.xpose.msra.mxu0 %v1464
    %1474 = vmatmul.bf16.gmra.mxu0 %v1461
    %v1475 = vpop.f32.mrf.mxu0
    %v1476 = vadd.f32 0.0, %v1475
    %v1477 = vpop.f32.mrf.mxu0
    %1478 = vdwg.mxu0
    %v1479 = vmul.f32 %v1476, 0.35355338
    %v1480 = vsel %vm525, %v1479, -1e+09
    %v1481 = vsel %vm502, %v1480, -inf
    %1482 = vmax.xlane.f32.xlu0 %v1481
    %v1483 = vpop.xlane.xlu0 %1482
    %v1484 = vsub.f32 %v1480, %v1483
    %v1485 = vmul.f32 %v1484, 1.442695
    %v1486 = vpow.pop %v1485
    %v1487 = vsel %vm502, %v1486, 0.0
    %1488 = vadd.xlane.f32.xlu0 %v1487
    %v1489 = vpop.xlane.xlu0 %1488
    %v1490 = vrcp.pop %v1489
    %v1491 = vmul.f32 %v1486, %v1490
    %v1492 = vpack.c.bf16 %v1491, %v1491
    %1493 = vrot.lane.b32.xlu0 %v1397, 56
    %v1494 = vpop.permute.xlu0 %1493
    %v1496 = vsel %vm502, %v1492, 0
    %v1499 = vsel %vm544, %v1494, 0
    %1501 = vmatpush.bf16.msra.mxu0 0
    %1502 = vmatpush.bf16.msra.mxu0 0
    %1503 = vmatpush.bf16.msra.mxu0 0
    %1504 = vmatpush.bf16.msra.mxu0 0
    %1505 = vmatpush.bf16.msra.mxu0 0
    %1506 = vmatpush.bf16.msra.mxu0 0
    %1507 = vmatpush.bf16.msra.mxu0 0
    %1508 = vmatpush.bf16.msra.mxu0 %v1499
    %1509 = vmatmul.bf16.gmra.mxu0 %v1496
    %v1510 = vpop.f32.mrf.mxu0
    %v1511 = vadd.f32 0.0, %v1510
    %v1512 = vpop.f32.mrf.mxu0
    %1513 = vdwg.mxu0
    %v1514 = vpack.c.bf16 %v1511, %v1511
    %v1516 = vsel %vm502, %v1514, 0
    %v1519 = vsel %vm544, %v1394, 0
    %1521 = vmatpush.bf16.msra.mxu0 0
    %1522 = vmatpush.bf16.msra.mxu0 0
    %1523 = vmatpush.bf16.msra.mxu0 0
    %1524 = vmatpush.bf16.msra.mxu0 0
    %1525 = vmatpush.bf16.msra.mxu0 0
    %1526 = vmatpush.bf16.msra.mxu0 0
    %1527 = vmatpush.bf16.msra.mxu0 0
    %1528 = vmatpush.bf16.msra.mxu0 %v1519
    %1529 = vmatmul.bf16.gmra.mxu0 %v1516
    %v1530 = vpop.f32.mrf.mxu0
    %v1531 = vadd.f32 0.0, %v1530
    %v1532 = vpop.f32.mrf.mxu0
    %1533 = vdwg.mxu0
    %v1535 = vsel %vm502, %v1455, 0
    %v1538 = vsel %vm544, %v1393, 0
    %1540 = vmatpush.bf16.msra.mxu0 0
    %1541 = vmatpush.bf16.msra.mxu0 0
    %1542 = vmatpush.bf16.msra.mxu0 0
    %1543 = vmatpush.bf16.msra.mxu0 0
    %1544 = vmatpush.bf16.msra.mxu0 0
    %1545 = vmatpush.bf16.msra.mxu0 0
    %1546 = vmatpush.bf16.msra.mxu0 0
    %1547 = vmatpush.bf16.msra.mxu0 %v1538
    %1548 = vmatmul.bf16.gmra.mxu0 %v1535
    %v1549 = vpop.f32.mrf.mxu0
    %v1550 = vadd.f32 %v1531, %v1549
    %v1551 = vpop.f32.mrf.mxu0
    %1552 = vdwg.mxu0
    %1553 = vrot.lane.b32.xlu0 %v1397, 112
    %v1554 = vpop.permute.xlu0 %1553
    %1555 = vrot.lane.b32.xlu0 %v1397, 80
    %v1556 = vpop.permute.xlu0 %1555
    %v1558 = vsel %vm502, %v1554, 0
    %v1561 = vsel %vm502, %v1556, 0
    %1563 = vmatpush.bf16.xpose.msra.mxu0 0
    %1564 = vmatpush.bf16.xpose.msra.mxu0 0
    %1565 = vmatpush.bf16.xpose.msra.mxu0 0
    %1566 = vmatpush.bf16.xpose.msra.mxu0 0
    %1567 = vmatpush.bf16.xpose.msra.mxu0 0
    %1568 = vmatpush.bf16.xpose.msra.mxu0 0
    %1569 = vmatpush.bf16.xpose.msra.mxu0 0
    %1570 = vmatpush.bf16.xpose.msra.mxu0 %v1561
    %1571 = vmatmul.bf16.gmra.mxu0 %v1558
    %v1572 = vpop.f32.mrf.mxu0
    %v1573 = vadd.f32 0.0, %v1572
    %v1574 = vpop.f32.mrf.mxu0
    %1575 = vdwg.mxu0
    %v1576 = vmul.f32 %v1573, 0.35355338
    %v1577 = vsel %vm525, %v1576, -1e+09
    %v1578 = vsel %vm502, %v1577, -inf
    %1579 = vmax.xlane.f32.xlu0 %v1578
    %v1580 = vpop.xlane.xlu0 %1579
    %v1581 = vsub.f32 %v1577, %v1580
    %v1582 = vmul.f32 %v1581, 1.442695
    %v1583 = vpow.pop %v1582
    %v1584 = vsel %vm502, %v1583, 0.0
    %1585 = vadd.xlane.f32.xlu0 %v1584
    %v1586 = vpop.xlane.xlu0 %1585
    %v1587 = vrcp.pop %v1586
    %v1588 = vmul.f32 %v1583, %v1587
    %v1589 = vpack.c.bf16 %v1588, %v1588
    %1590 = vrot.lane.b32.xlu0 %v1397, 48
    %v1591 = vpop.permute.xlu0 %1590
    %v1593 = vsel %vm502, %v1589, 0
    %v1596 = vsel %vm544, %v1591, 0
    %1598 = vmatpush.bf16.msra.mxu0 0
    %1599 = vmatpush.bf16.msra.mxu0 0
    %1600 = vmatpush.bf16.msra.mxu0 0
    %1601 = vmatpush.bf16.msra.mxu0 0
    %1602 = vmatpush.bf16.msra.mxu0 0
    %1603 = vmatpush.bf16.msra.mxu0 0
    %1604 = vmatpush.bf16.msra.mxu0 0
    %1605 = vmatpush.bf16.msra.mxu0 %v1596
    %1606 = vmatmul.bf16.gmra.mxu0 %v1593
    %v1607 = vpop.f32.mrf.mxu0
    %v1608 = vadd.f32 0.0, %v1607
    %v1609 = vpop.f32.mrf.mxu0
    %1610 = vdwg.mxu0
    %v1611 = vpack.c.bf16 %v1608, %v1608
    %v1613 = vsel %vm502, %v1611, 0
    %v1616 = vsel %vm544, %v1395, 0
    %1618 = vmatpush.bf16.msra.mxu0 0
    %1619 = vmatpush.bf16.msra.mxu0 0
    %1620 = vmatpush.bf16.msra.mxu0 0
    %1621 = vmatpush.bf16.msra.mxu0 0
    %1622 = vmatpush.bf16.msra.mxu0 0
    %1623 = vmatpush.bf16.msra.mxu0 0
    %1624 = vmatpush.bf16.msra.mxu0 0
    %1625 = vmatpush.bf16.msra.mxu0 %v1616
    %1626 = vmatmul.bf16.gmra.mxu0 %v1613
    %v1627 = vpop.f32.mrf.mxu0
    %v1628 = vadd.f32 0.0, %v1627
    %v1629 = vpop.f32.mrf.mxu0
    %1630 = vdwg.mxu0
    %v1631 = vadd.f32 %v1550, %v1628
    %1632 = vrot.lane.b32.xlu0 %v1397, 104
    %v1633 = vpop.permute.xlu0 %1632
    %1634 = vrot.lane.b32.xlu0 %v1397, 72
    %v1635 = vpop.permute.xlu0 %1634
    %v1637 = vsel %vm502, %v1633, 0
    %v1640 = vsel %vm502, %v1635, 0
    %1642 = vmatpush.bf16.xpose.msra.mxu0 0
    %1643 = vmatpush.bf16.xpose.msra.mxu0 0
    %1644 = vmatpush.bf16.xpose.msra.mxu0 0
    %1645 = vmatpush.bf16.xpose.msra.mxu0 0
    %1646 = vmatpush.bf16.xpose.msra.mxu0 0
    %1647 = vmatpush.bf16.xpose.msra.mxu0 0
    %1648 = vmatpush.bf16.xpose.msra.mxu0 0
    %1649 = vmatpush.bf16.xpose.msra.mxu0 %v1640
    %1650 = vmatmul.bf16.gmra.mxu0 %v1637
    %v1651 = vpop.f32.mrf.mxu0
    %v1652 = vadd.f32 0.0, %v1651
    %v1653 = vpop.f32.mrf.mxu0
    %1654 = vdwg.mxu0
    %v1655 = vmul.f32 %v1652, 0.35355338
    %v1656 = vsel %vm525, %v1655, -1e+09
    %v1657 = vsel %vm502, %v1656, -inf
    %1658 = vmax.xlane.f32.xlu0 %v1657
    %v1659 = vpop.xlane.xlu0 %1658
    %v1660 = vsub.f32 %v1656, %v1659
    %v1661 = vmul.f32 %v1660, 1.442695
    %v1662 = vpow.pop %v1661
    %v1663 = vsel %vm502, %v1662, 0.0
    %1664 = vadd.xlane.f32.xlu0 %v1663
    %v1665 = vpop.xlane.xlu0 %1664
    %v1666 = vrcp.pop %v1665
    %v1667 = vmul.f32 %v1662, %v1666
    %v1668 = vpack.c.bf16 %v1667, %v1667
    %1669 = vrot.lane.b32.xlu0 %v1397, 40
    %v1670 = vpop.permute.xlu0 %1669
    %v1672 = vsel %vm502, %v1668, 0
    %v1675 = vsel %vm544, %v1670, 0
    %1677 = vmatpush.bf16.msra.mxu0 0
    %1678 = vmatpush.bf16.msra.mxu0 0
    %1679 = vmatpush.bf16.msra.mxu0 0
    %1680 = vmatpush.bf16.msra.mxu0 0
    %1681 = vmatpush.bf16.msra.mxu0 0
    %1682 = vmatpush.bf16.msra.mxu0 0
    %1683 = vmatpush.bf16.msra.mxu0 0
    %1684 = vmatpush.bf16.msra.mxu0 %v1675
    %1685 = vmatmul.bf16.gmra.mxu0 %v1672
    %v1686 = vpop.f32.mrf.mxu0
    %v1687 = vadd.f32 0.0, %v1686
    %v1688 = vpop.f32.mrf.mxu0
    %1689 = vdwg.mxu0
    %v1690 = vpack.c.bf16 %v1687, %v1687
    %v1692 = vsel %vm502, %v1690, 0
    %v1695 = vsel %vm544, %v1396, 0
    %1697 = vmatpush.bf16.msra.mxu0 0
    %1698 = vmatpush.bf16.msra.mxu0 0
    %1699 = vmatpush.bf16.msra.mxu0 0
    %1700 = vmatpush.bf16.msra.mxu0 0
    %1701 = vmatpush.bf16.msra.mxu0 0
    %1702 = vmatpush.bf16.msra.mxu0 0
    %1703 = vmatpush.bf16.msra.mxu0 0
    %1704 = vmatpush.bf16.msra.mxu0 %v1695
    %1705 = vmatmul.bf16.gmra.mxu0 %v1692
    %v1706 = vpop.f32.mrf.mxu0
    %v1707 = vadd.f32 0.0, %v1706
    %v1708 = vpop.f32.mrf.mxu0
    %1709 = vdwg.mxu0
    %v1710 = vadd.f32 %v1631, %v1707
    %v1711 = vpack.c.bf16 %v1390, %v1390
    %1713 = vrot.lane.b32.xlu0 %v1711, 96
    %v1714 = vpop.permute.xlu0 %1713
    %v1716 = vsel %vm502, %v1711, 0
    %v1719 = vsel %vm502, %v1714, 0
    %1721 = vmatpush.bf16.xpose.msra.mxu0 0
    %1722 = vmatpush.bf16.xpose.msra.mxu0 0
    %1723 = vmatpush.bf16.xpose.msra.mxu0 0
    %1724 = vmatpush.bf16.xpose.msra.mxu0 0
    %1725 = vmatpush.bf16.xpose.msra.mxu0 0
    %1726 = vmatpush.bf16.xpose.msra.mxu0 0
    %1727 = vmatpush.bf16.xpose.msra.mxu0 0
    %1728 = vmatpush.bf16.xpose.msra.mxu0 %v1719
    %1729 = vmatmul.bf16.gmra.mxu0 %v1716
    %v1730 = vpop.f32.mrf.mxu0
    %v1731 = vadd.f32 0.0, %v1730
    %v1732 = vpop.f32.mrf.mxu0
    %1733 = vdwg.mxu0
    %v1734 = vmul.f32 %v1731, 0.35355338
    %v1735 = vsel %vm842, %v1734, -1e+09
    %v1736 = vsel %vm502, %v1735, -inf
    %1737 = vmax.xlane.f32.xlu0 %v1736
    %v1738 = vpop.xlane.xlu0 %1737
    %v1739 = vsub.f32 %v1735, %v1738
    %v1740 = vmul.f32 %v1739, 1.442695
    %v1741 = vpow.pop %v1740
    %v1742 = vsel %vm502, %v1741, 0.0
    %1743 = vadd.xlane.f32.xlu0 %v1742
    %v1744 = vpop.xlane.xlu0 %1743
    %v1745 = vrcp.pop %v1744
    %v1746 = vmul.f32 %v1741, %v1745
    %v1747 = vpack.c.bf16 %v1746, %v1746
    %1748 = vrot.lane.b32.xlu0 %v1711, 64
    %v1749 = vpop.permute.xlu0 %1748
    %v1751 = vsel %vm502, %v1747, 0
    %v1754 = vsel %vm544, %v1749, 0
    %1756 = vmatpush.bf16.msra.mxu0 0
    %1757 = vmatpush.bf16.msra.mxu0 0
    %1758 = vmatpush.bf16.msra.mxu0 0
    %1759 = vmatpush.bf16.msra.mxu0 0
    %1760 = vmatpush.bf16.msra.mxu0 0
    %1761 = vmatpush.bf16.msra.mxu0 0
    %1762 = vmatpush.bf16.msra.mxu0 0
    %1763 = vmatpush.bf16.msra.mxu0 %v1754
    %1764 = vmatmul.bf16.gmra.mxu0 %v1751
    %v1765 = vpop.f32.mrf.mxu0
    %v1766 = vadd.f32 0.0, %v1765
    %v1767 = vpop.f32.mrf.mxu0
    %1768 = vdwg.mxu0
    %v1769 = vpack.c.bf16 %v1766, %v1766
    %1770 = vrot.lane.b32.xlu0 %v1711, 120
    %v1771 = vpop.permute.xlu0 %1770
    %1772 = vrot.lane.b32.xlu0 %v1711, 88
    %v1773 = vpop.permute.xlu0 %1772
    %v1775 = vsel %vm502, %v1771, 0
    %v1778 = vsel %vm502, %v1773, 0
    %1780 = vmatpush.bf16.xpose.msra.mxu0 0
    %1781 = vmatpush.bf16.xpose.msra.mxu0 0
    %1782 = vmatpush.bf16.xpose.msra.mxu0 0
    %1783 = vmatpush.bf16.xpose.msra.mxu0 0
    %1784 = vmatpush.bf16.xpose.msra.mxu0 0
    %1785 = vmatpush.bf16.xpose.msra.mxu0 0
    %1786 = vmatpush.bf16.xpose.msra.mxu0 0
    %1787 = vmatpush.bf16.xpose.msra.mxu0 %v1778
    %1788 = vmatmul.bf16.gmra.mxu0 %v1775
    %v1789 = vpop.f32.mrf.mxu0
    %v1790 = vadd.f32 0.0, %v1789
    %v1791 = vpop.f32.mrf.mxu0
    %1792 = vdwg.mxu0
    %v1793 = vmul.f32 %v1790, 0.35355338
    %v1794 = vsel %vm842, %v1793, -1e+09
    %v1795 = vsel %vm502, %v1794, -inf
    %1796 = vmax.xlane.f32.xlu0 %v1795
    %v1797 = vpop.xlane.xlu0 %1796
    %v1798 = vsub.f32 %v1794, %v1797
    %v1799 = vmul.f32 %v1798, 1.442695
    %v1800 = vpow.pop %v1799
    %v1801 = vsel %vm502, %v1800, 0.0
    %1802 = vadd.xlane.f32.xlu0 %v1801
    %v1803 = vpop.xlane.xlu0 %1802
    %v1804 = vrcp.pop %v1803
    %v1805 = vmul.f32 %v1800, %v1804
    %v1806 = vpack.c.bf16 %v1805, %v1805
    %1807 = vrot.lane.b32.xlu0 %v1711, 56
    %v1808 = vpop.permute.xlu0 %1807
    %v1810 = vsel %vm502, %v1806, 0
    %v1813 = vsel %vm544, %v1808, 0
    %1815 = vmatpush.bf16.msra.mxu0 0
    %1816 = vmatpush.bf16.msra.mxu0 0
    %1817 = vmatpush.bf16.msra.mxu0 0
    %1818 = vmatpush.bf16.msra.mxu0 0
    %1819 = vmatpush.bf16.msra.mxu0 0
    %1820 = vmatpush.bf16.msra.mxu0 0
    %1821 = vmatpush.bf16.msra.mxu0 0
    %1822 = vmatpush.bf16.msra.mxu0 %v1813
    %1823 = vmatmul.bf16.gmra.mxu0 %v1810
    %v1824 = vpop.f32.mrf.mxu0
    %v1825 = vadd.f32 0.0, %v1824
    %v1826 = vpop.f32.mrf.mxu0
    %1827 = vdwg.mxu0
    %v1828 = vpack.c.bf16 %v1825, %v1825
    %v1830 = vsel %vm502, %v1828, 0
    %1832 = vmatpush.bf16.msra.mxu0 0
    %1833 = vmatpush.bf16.msra.mxu0 0
    %1834 = vmatpush.bf16.msra.mxu0 0
    %1835 = vmatpush.bf16.msra.mxu0 0
    %1836 = vmatpush.bf16.msra.mxu0 0
    %1837 = vmatpush.bf16.msra.mxu0 0
    %1838 = vmatpush.bf16.msra.mxu0 0
    %1839 = vmatpush.bf16.msra.mxu0 %v1519
    %1840 = vmatmul.bf16.gmra.mxu0 %v1830
    %v1841 = vpop.f32.mrf.mxu0
    %v1842 = vadd.f32 0.0, %v1841
    %v1843 = vpop.f32.mrf.mxu0
    %1844 = vdwg.mxu0
    %v1846 = vsel %vm502, %v1769, 0
    %1848 = vmatpush.bf16.msra.mxu0 0
    %1849 = vmatpush.bf16.msra.mxu0 0
    %1850 = vmatpush.bf16.msra.mxu0 0
    %1851 = vmatpush.bf16.msra.mxu0 0
    %1852 = vmatpush.bf16.msra.mxu0 0
    %1853 = vmatpush.bf16.msra.mxu0 0
    %1854 = vmatpush.bf16.msra.mxu0 0
    %1855 = vmatpush.bf16.msra.mxu0 %v1538
    %1856 = vmatmul.bf16.gmra.mxu0 %v1846
    %v1857 = vpop.f32.mrf.mxu0
    %v1858 = vadd.f32 %v1842, %v1857
    %v1859 = vpop.f32.mrf.mxu0
    %1860 = vdwg.mxu0
    %1861 = vrot.lane.b32.xlu0 %v1711, 112
    %v1862 = vpop.permute.xlu0 %1861
    %1863 = vrot.lane.b32.xlu0 %v1711, 80
    %v1864 = vpop.permute.xlu0 %1863
    %v1866 = vsel %vm502, %v1862, 0
    %v1869 = vsel %vm502, %v1864, 0
    %1871 = vmatpush.bf16.xpose.msra.mxu0 0
    %1872 = vmatpush.bf16.xpose.msra.mxu0 0
    %1873 = vmatpush.bf16.xpose.msra.mxu0 0
    %1874 = vmatpush.bf16.xpose.msra.mxu0 0
    %1875 = vmatpush.bf16.xpose.msra.mxu0 0
    %1876 = vmatpush.bf16.xpose.msra.mxu0 0
    %1877 = vmatpush.bf16.xpose.msra.mxu0 0
    %1878 = vmatpush.bf16.xpose.msra.mxu0 %v1869
    %1879 = vmatmul.bf16.gmra.mxu0 %v1866
    %v1880 = vpop.f32.mrf.mxu0
    %v1881 = vadd.f32 0.0, %v1880
    %v1882 = vpop.f32.mrf.mxu0
    %1883 = vdwg.mxu0
    %v1884 = vmul.f32 %v1881, 0.35355338
    %v1885 = vsel %vm842, %v1884, -1e+09
    %v1886 = vsel %vm502, %v1885, -inf
    %1887 = vmax.xlane.f32.xlu0 %v1886
    %v1888 = vpop.xlane.xlu0 %1887
    %v1889 = vsub.f32 %v1885, %v1888
    %v1890 = vmul.f32 %v1889, 1.442695
    %v1891 = vpow.pop %v1890
    %v1892 = vsel %vm502, %v1891, 0.0
    %1893 = vadd.xlane.f32.xlu0 %v1892
    %v1894 = vpop.xlane.xlu0 %1893
    %v1895 = vrcp.pop %v1894
    %v1896 = vmul.f32 %v1891, %v1895
    %v1897 = vpack.c.bf16 %v1896, %v1896
    %1898 = vrot.lane.b32.xlu0 %v1711, 48
    %v1899 = vpop.permute.xlu0 %1898
    %v1901 = vsel %vm502, %v1897, 0
    %v1904 = vsel %vm544, %v1899, 0
    %1906 = vmatpush.bf16.msra.mxu0 0
    %1907 = vmatpush.bf16.msra.mxu0 0
    %1908 = vmatpush.bf16.msra.mxu0 0
    %1909 = vmatpush.bf16.msra.mxu0 0
    %1910 = vmatpush.bf16.msra.mxu0 0
    %1911 = vmatpush.bf16.msra.mxu0 0
    %1912 = vmatpush.bf16.msra.mxu0 0
    %1913 = vmatpush.bf16.msra.mxu0 %v1904
    %1914 = vmatmul.bf16.gmra.mxu0 %v1901
    %v1915 = vpop.f32.mrf.mxu0
    %v1916 = vadd.f32 0.0, %v1915
    %v1917 = vpop.f32.mrf.mxu0
    %1918 = vdwg.mxu0
    %v1919 = vpack.c.bf16 %v1916, %v1916
    %v1921 = vsel %vm502, %v1919, 0
    %1923 = vmatpush.bf16.msra.mxu0 0
    %1924 = vmatpush.bf16.msra.mxu0 0
    %1925 = vmatpush.bf16.msra.mxu0 0
    %1926 = vmatpush.bf16.msra.mxu0 0
    %1927 = vmatpush.bf16.msra.mxu0 0
    %1928 = vmatpush.bf16.msra.mxu0 0
    %1929 = vmatpush.bf16.msra.mxu0 0
    %1930 = vmatpush.bf16.msra.mxu0 %v1616
    %1931 = vmatmul.bf16.gmra.mxu0 %v1921
    %v1932 = vpop.f32.mrf.mxu0
    %v1933 = vadd.f32 0.0, %v1932
    %v1934 = vpop.f32.mrf.mxu0
    %1935 = vdwg.mxu0
    %v1936 = vadd.f32 %v1858, %v1933
    %1937 = vrot.lane.b32.xlu0 %v1711, 104
    %v1938 = vpop.permute.xlu0 %1937
    %1939 = vrot.lane.b32.xlu0 %v1711, 72
    %v1940 = vpop.permute.xlu0 %1939
    %v1942 = vsel %vm502, %v1938, 0
    %v1945 = vsel %vm502, %v1940, 0
    %1947 = vmatpush.bf16.xpose.msra.mxu0 0
    %1948 = vmatpush.bf16.xpose.msra.mxu0 0
    %1949 = vmatpush.bf16.xpose.msra.mxu0 0
    %1950 = vmatpush.bf16.xpose.msra.mxu0 0
    %1951 = vmatpush.bf16.xpose.msra.mxu0 0
    %1952 = vmatpush.bf16.xpose.msra.mxu0 0
    %1953 = vmatpush.bf16.xpose.msra.mxu0 0
    %1954 = vmatpush.bf16.xpose.msra.mxu0 %v1945
    %1955 = vmatmul.bf16.gmra.mxu0 %v1942
    %v1956 = vpop.f32.mrf.mxu0
    %v1957 = vadd.f32 0.0, %v1956
    %v1958 = vpop.f32.mrf.mxu0
    %1959 = vdwg.mxu0
    %v1960 = vmul.f32 %v1957, 0.35355338
    %v1961 = vsel %vm842, %v1960, -1e+09
    %v1962 = vsel %vm502, %v1961, -inf
    %1963 = vmax.xlane.f32.xlu0 %v1962
    %v1964 = vpop.xlane.xlu0 %1963
    %v1965 = vsub.f32 %v1961, %v1964
    %v1966 = vmul.f32 %v1965, 1.442695
    %v1967 = vpow.pop %v1966
    %v1968 = vsel %vm502, %v1967, 0.0
    %1969 = vadd.xlane.f32.xlu0 %v1968
    %v1970 = vpop.xlane.xlu0 %1969
    %v1971 = vrcp.pop %v1970
    %v1972 = vmul.f32 %v1967, %v1971
    %v1973 = vpack.c.bf16 %v1972, %v1972
    %1974 = vrot.lane.b32.xlu0 %v1711, 40
    %v1975 = vpop.permute.xlu0 %1974
    %v1977 = vsel %vm502, %v1973, 0
    %v1980 = vsel %vm544, %v1975, 0
    %1982 = vmatpush.bf16.msra.mxu0 0
    %1983 = vmatpush.bf16.msra.mxu0 0
    %1984 = vmatpush.bf16.msra.mxu0 0
    %1985 = vmatpush.bf16.msra.mxu0 0
    %1986 = vmatpush.bf16.msra.mxu0 0
    %1987 = vmatpush.bf16.msra.mxu0 0
    %1988 = vmatpush.bf16.msra.mxu0 0
    %1989 = vmatpush.bf16.msra.mxu0 %v1980
    %1990 = vmatmul.bf16.gmra.mxu0 %v1977
    %v1991 = vpop.f32.mrf.mxu0
    %v1992 = vadd.f32 0.0, %v1991
    %v1993 = vpop.f32.mrf.mxu0
    %1994 = vdwg.mxu0
    %v1995 = vpack.c.bf16 %v1992, %v1992
    %v1997 = vsel %vm502, %v1995, 0
    %1999 = vmatpush.bf16.msra.mxu0 0
    %2000 = vmatpush.bf16.msra.mxu0 0
    %2001 = vmatpush.bf16.msra.mxu0 0
    %2002 = vmatpush.bf16.msra.mxu0 0
    %2003 = vmatpush.bf16.msra.mxu0 0
    %2004 = vmatpush.bf16.msra.mxu0 0
    %2005 = vmatpush.bf16.msra.mxu0 0
    %2006 = vmatpush.bf16.msra.mxu0 %v1695
    %2007 = vmatmul.bf16.gmra.mxu0 %v1997
    %v2008 = vpop.f32.mrf.mxu0
    %v2009 = vadd.f32 0.0, %v2008
    %v2010 = vpop.f32.mrf.mxu0
    %2011 = vdwg.mxu0
    %v2012 = vadd.f32 %v1936, %v2009
    %v2013 = vadd.f32 %v1286, %v1710
    %v2014 = vadd.f32 %v1287, %v2012
    %s2015 = scalar_lea.vmem [#allocation10], 1
    %v2016 = vld [vmem:[%s2015] sm:$0x1]
    %v2018 = vperm.slane %v2016, 0
    %v2020 = vadd.f32 %v2013, %v2018
    %v2021 = vadd.f32 %v2014, %v2018
    %s2022 = scalar_lea.vmem %s19, 1
    %v2023 = vld [vmem:[%s2022] sm:$0x1]
    %s2024 = scalar_lea.vmem %s21, 1
    %v2025 = vld [vmem:[%s2024] sm:$0x1]
    %v2026 = vsel %vm388, %v2020, 0.0
    %2027 = vadd.xlane.f32.xlu0 %v2026
    %v2028 = vpop.xlane.xlu0 %2027
    %v2029 = vsel %vm388, %v2021, 0.0
    %2030 = vadd.xlane.f32.xlu0 %v2029
    %v2031 = vpop.xlane.xlu0 %2030
    %v2032 = vmul.f32 %v2028, %v401
    %v2033 = vmul.f32 %v2031, %v401
    %v2034 = vsub.f32 %v2020, %v2032
    %v2035 = vsub.f32 %v2021, %v2033
    %v2036 = vmul.f32 %v2034, %v2034
    %v2037 = vmul.f32 %v2035, %v2035
    %v2038 = vsel %vm388, %v2036, 0.0
    %2039 = vadd.xlane.f32.xlu0 %v2038
    %v2040 = vpop.xlane.xlu0 %2039
    %v2041 = vsel %vm388, %v2037, 0.0
    %2042 = vadd.xlane.f32.xlu0 %v2041
    %v2043 = vpop.xlane.xlu0 %2042
    %v2044 = vmul.f32 %v2040, 0.032258064
    %v2045 = vmul.f32 %v2043, 0.032258064
    %v2046 = vrsqrt.pop %v2044
    %v2047 = vmul.f32 %v2046, %v2044
    %v2048 = vmul.f32 %v2047, %v2046
    %v2049 = vmul.f32 0.5, %v2048
    %v2050 = vsub.f32 1.5, %v2049
    %v2051 = vmul.f32 %v2046, %v2050
    %v2052 = vmul.f32 %v2044, %v2051
    %vm2053 = vcmp.eq.f32.partialorder %v2044, inf
    %v2054 = vsel %vm2053, %v2044, %v2052
    %vm2055 = vcmp.eq.f32.partialorder %v2044, 0.0
    %v2056 = vand.u32 %v2044, 2147483648
    %v2057 = vsel %vm2055, %v2056, %v2054
    %v2058 = vrsqrt.pop %v2045
    %v2059 = vmul.f32 %v2058, %v2045
    %v2060 = vmul.f32 %v2059, %v2058
    %v2061 = vmul.f32 0.5, %v2060
    %v2062 = vsub.f32 1.5, %v2061
    %v2063 = vmul.f32 %v2058, %v2062
    %v2064 = vmul.f32 %v2045, %v2063
    %vm2065 = vcmp.eq.f32.partialorder %v2045, inf
    %v2066 = vsel %vm2065, %v2045, %v2064
    %vm2067 = vcmp.eq.f32.partialorder %v2045, 0.0
    %v2068 = vand.u32 %v2045, 2147483648
    %v2069 = vsel %vm2067, %v2068, %v2066
    %v2070 = vadd.f32 %v2057, 1e-06
    %v2071 = vadd.f32 %v2069, 1e-06
    %v2072 = vrcp.pop %v2070
    %v2073 = vrcp.pop %v2071
    %v2074 = vmul.f32 %v2034, %v2072
    %v2075 = vmul.f32 %v2035, %v2073
    %v2077 = vperm.slane %v2023, 0
    %v2079 = vmul.f32 %v2077, %v2074
    %v2080 = vmul.f32 %v2077, %v2075
    %v2082 = vperm.slane %v2025, 0
    %v2084 = vadd.f32 %v2079, %v2082
    %v2085 = vadd.f32 %v2080, %v2082
    %s2086 = scalar_lea.vmem %s23, 16
    %v2087 = vld [vmem:[%s2086] sm:$0xf]
    %v2088 = vld [vmem:[%s2086 + $0x4] sm:$0xf]
    %v2089 = vld [vmem:[%s2086 + $0x8] sm:$0xf]
    %v2090 = vld [vmem:[%s2086 + $0xc] sm:$0xf]
    %s2091 = scalar_lea.vmem %s25, 1
    %v2092 = vld [vmem:[%s2091] sm:$0x1]
    %v2093 = vpack.c.bf16 %v2085, %v2084
    %v2095 = vperm.slane %v2092, 0
    %v2101 = vunpack.c.l.b16 %v2087
    %v2102 = vunpack.c.l.b16 %v2088
    %v2103 = vunpack.c.l.b16 %v2089
    %v2104 = vunpack.c.l.b16 %v2090
    %v2105 = vpack.c.b16 %v2102, %v2101
    %v2106 = vpack.c.b16 %v2104, %v2103
    %v2110 = vsel %vm388, %v2093, 0
    %2112 = vmatpush.bf16.msra.mxu0 0
    %2113 = vmatpush.bf16.msra.mxu0 0
    %2114 = vmatpush.bf16.msra.mxu0 0
    %2115 = vmatpush.bf16.msra.mxu0 0
    %2116 = vmatpush.bf16.msra.mxu0 0
    %2117 = vmatpush.bf16.msra.mxu0 0
    %2118 = vmatpush.bf16.msra.mxu0 %v2106
    %2119 = vmatpush.bf16.msra.mxu0 %v2105
    %2120 = vmatmul.bf16.gmra.mxu0 %v2110
    %v2121 = vpop.f32.mrf.mxu0
    %v2122 = vadd.f32 %v2095, %v2121
    %v2123 = vpop.f32.mrf.mxu0
    %v2124 = vadd.f32 %v2095, %v2123
    %2125 = vdwg.mxu0
    %v2126 = vmax.f32 %v2122, 0.0
    %v2127 = vmax.f32 %v2124, 0.0
    %s2128 = scalar_lea.vmem %s27, 32
    %v2129 = vld [vmem:[%s2128] sm:$0xf]
    %v2130 = vld [vmem:[%s2128 + $0x4] sm:$0xf]
    %v2131 = vld [vmem:[%s2128 + $0x8] sm:$0xf]
    %v2132 = vld [vmem:[%s2128 + $0xc] sm:$0xf]
    %v2133 = vld [vmem:[%s2128 + $0x10] sm:$0xf]
    %v2134 = vld [vmem:[%s2128 + $0x14] sm:$0xf]
    %v2135 = vld [vmem:[%s2128 + $0x18] sm:$0xf]
    %v2136 = vld [vmem:[%s2128 + $0x1c] sm:$0xf]
    %s2137 = scalar_lea.vmem [#allocation11], 1
    %v2138 = vld [vmem:[%s2137] sm:$0x1]
    %v2139 = vpack.c.bf16 %v2127, %v2126
    %v2141 = vperm.slane %v2138, 0
    %v2151 = vunpack.c.l.b16 %v2129
    %v2152 = vunpack.c.l.b16 %v2130
    %v2153 = vunpack.c.l.b16 %v2131
    %v2154 = vunpack.c.l.b16 %v2132
    %v2155 = vunpack.c.l.b16 %v2133
    %v2156 = vunpack.c.l.b16 %v2134
    %v2157 = vunpack.c.l.b16 %v2135
    %v2158 = vunpack.c.l.b16 %v2136
    %v2159 = vpack.c.b16 %v2152, %v2151
    %v2160 = vpack.c.b16 %v2154, %v2153
    %v2161 = vpack.c.b16 %v2156, %v2155
    %v2162 = vpack.c.b16 %v2158, %v2157
    %v2168 = vsel %vm1268, %v2139, 0
    %2170 = vmatpush.bf16.msra.mxu0 0
    %2171 = vmatpush.bf16.msra.mxu0 0
    %2172 = vmatpush.bf16.msra.mxu0 0
    %2173 = vmatpush.bf16.msra.mxu0 0
    %2174 = vmatpush.bf16.msra.mxu0 %v2162
    %2175 = vmatpush.bf16.msra.mxu0 %v2161
    %2176 = vmatpush.bf16.msra.mxu0 %v2160
    %2177 = vmatpush.bf16.msra.mxu0 %v2159
    %2178 = vmatmul.bf16.gmra.mxu0 %v2168
    %v2179 = vpop.f32.mrf.mxu0
    %v2180 = vadd.f32 %v2141, %v2179
    %v2181 = vpop.f32.mrf.mxu0
    %v2182 = vadd.f32 %v2141, %v2181
    %2183 = vdwg.mxu0
    %v2184 = vadd.f32 %v2020, %v2180
    %v2185 = vadd.f32 %v2021, %v2182
    %v2186 = vld [vmem:[#allocation13] sm:$0x1]
    %v2187 = vld [vmem:[#allocation14] sm:$0x1]
    %v2188 = vsel %vm388, %v2184, 0.0
    %2189 = vadd.xlane.f32.xlu0 %v2188
    %v2190 = vpop.xlane.xlu0 %2189
    %v2191 = vsel %vm388, %v2185, 0.0
    %2192 = vadd.xlane.f32.xlu0 %v2191
    %v2193 = vpop.xlane.xlu0 %2192
    %v2194 = vmul.f32 %v2190, %v401
    %v2195 = vmul.f32 %v2193, %v401
    %v2196 = vsub.f32 %v2184, %v2194
    %v2197 = vsub.f32 %v2185, %v2195
    %v2198 = vmul.f32 %v2196, %v2196
    %v2199 = vmul.f32 %v2197, %v2197
    %v2200 = vsel %vm388, %v2198, 0.0
    %2201 = vadd.xlane.f32.xlu0 %v2200
    %v2202 = vpop.xlane.xlu0 %2201
    %v2203 = vsel %vm388, %v2199, 0.0
    %2204 = vadd.xlane.f32.xlu0 %v2203
    %v2205 = vpop.xlane.xlu0 %2204
    %v2206 = vmul.f32 %v2202, 0.032258064
    %v2207 = vmul.f32 %v2205, 0.032258064
    %v2208 = vrsqrt.pop %v2206
    %v2209 = vmul.f32 %v2208, %v2206
    %v2210 = vmul.f32 %v2209, %v2208
    %v2211 = vmul.f32 0.5, %v2210
    %v2212 = vsub.f32 1.5, %v2211
    %v2213 = vmul.f32 %v2208, %v2212
    %v2214 = vmul.f32 %v2206, %v2213
    %vm2215 = vcmp.eq.f32.partialorder %v2206, inf
    %v2216 = vsel %vm2215, %v2206, %v2214
    %vm2217 = vcmp.eq.f32.partialorder %v2206, 0.0
    %v2218 = vand.u32 %v2206, 2147483648
    %v2219 = vsel %vm2217, %v2218, %v2216
    %v2220 = vrsqrt.pop %v2207
    %v2221 = vmul.f32 %v2220, %v2207
    %v2222 = vmul.f32 %v2221, %v2220
    %v2223 = vmul.f32 0.5, %v2222
    %v2224 = vsub.f32 1.5, %v2223
    %v2225 = vmul.f32 %v2220, %v2224
    %v2226 = vmul.f32 %v2207, %v2225
    %vm2227 = vcmp.eq.f32.partialorder %v2207, inf
    %v2228 = vsel %vm2227, %v2207, %v2226
    %vm2229 = vcmp.eq.f32.partialorder %v2207, 0.0
    %v2230 = vand.u32 %v2207, 2147483648
    %v2231 = vsel %vm2229, %v2230, %v2228
    %v2232 = vadd.f32 %v2219, 1e-06
    %v2233 = vadd.f32 %v2231, 1e-06
    %v2234 = vrcp.pop %v2232
    %v2235 = vrcp.pop %v2233
    %v2236 = vmul.f32 %v2196, %v2234
    %v2237 = vmul.f32 %v2197, %v2235
    %v2239 = vperm.slane %v2186, 0
    %v2241 = vmul.f32 %v2239, %v2236
    %v2242 = vmul.f32 %v2239, %v2237
    %v2244 = vperm.slane %v2187, 0
    %v2246 = vadd.f32 %v2241, %v2244
    %v2247 = vadd.f32 %v2242, %v2244
    %v2248 = vld [vmem:[#allocation5] sm:$0xff]
    %v2249 = vld [vmem:[#allocation5 + $0x8] sm:$0xff]
    %v2250 = vld [vmem:[%s35] sm:$0x1]
    %v2251 = vld [vmem:[%s37] sm:$0x1]
    %v2252 = vsel %vm388, %v2248, 0.0
    %2253 = vadd.xlane.f32.xlu0 %v2252
    %v2254 = vpop.xlane.xlu0 %2253
    %v2255 = vsel %vm388, %v2249, 0.0
    %2256 = vadd.xlane.f32.xlu0 %v2255
    %v2257 = vpop.xlane.xlu0 %2256
    %v2258 = vmul.f32 %v2254, %v401
    %v2259 = vmul.f32 %v2257, %v401
    %v2260 = vsub.f32 %v2248, %v2258
    %v2261 = vsub.f32 %v2249, %v2259
    %v2262 = vmul.f32 %v2260, %v2260
    %v2263 = vmul.f32 %v2261, %v2261
    %v2264 = vsel %vm388, %v2262, 0.0
    %2265 = vadd.xlane.f32.xlu0 %v2264
    %v2266 = vpop.xlane.xlu0 %2265
    %v2267 = vsel %vm388, %v2263, 0.0
    %2268 = vadd.xlane.f32.xlu0 %v2267
    %v2269 = vpop.xlane.xlu0 %2268
    %v2270 = vmul.f32 %v2266, 0.032258064
    %v2271 = vmul.f32 %v2269, 0.032258064
    %v2272 = vrsqrt.pop %v2270
    %v2273 = vmul.f32 %v2272, %v2270
    %v2274 = vmul.f32 %v2273, %v2272
    %v2275 = vmul.f32 0.5, %v2274
    %v2276 = vsub.f32 1.5, %v2275
    %v2277 = vmul.f32 %v2272, %v2276
    %v2278 = vmul.f32 %v2270, %v2277
    %vm2279 = vcmp.eq.f32.partialorder %v2270, inf
    %v2280 = vsel %vm2279, %v2270, %v2278
    %vm2281 = vcmp.eq.f32.partialorder %v2270, 0.0
    %v2282 = vand.u32 %v2270, 2147483648
    %v2283 = vsel %vm2281, %v2282, %v2280
    %v2284 = vrsqrt.pop %v2271
    %v2285 = vmul.f32 %v2284, %v2271
    %v2286 = vmul.f32 %v2285, %v2284
    %v2287 = vmul.f32 0.5, %v2286
    %v2288 = vsub.f32 1.5, %v2287
    %v2289 = vmul.f32 %v2284, %v2288
    %v2290 = vmul.f32 %v2271, %v2289
    %vm2291 = vcmp.eq.f32.partialorder %v2271, inf
    %v2292 = vsel %vm2291, %v2271, %v2290
    %vm2293 = vcmp.eq.f32.partialorder %v2271, 0.0
    %v2294 = vand.u32 %v2271, 2147483648
    %v2295 = vsel %vm2293, %v2294, %v2292
    %v2296 = vadd.f32 %v2283, 1e-06
    %v2297 = vadd.f32 %v2295, 1e-06
    %v2298 = vrcp.pop %v2296
    %v2299 = vrcp.pop %v2297
    %v2300 = vmul.f32 %v2260, %v2298
    %v2301 = vmul.f32 %v2261, %v2299
    %v2303 = vperm.slane %v2250, 0
    %v2305 = vmul.f32 %v2303, %v2300
    %v2306 = vmul.f32 %v2303, %v2301
    %v2308 = vperm.slane %v2251, 0
    %v2310 = vadd.f32 %v2305, %v2308
    %v2311 = vadd.f32 %v2306, %v2308
    %v2312 = vld [vmem:[%s39] sm:$0xf]
    %v2313 = vld [vmem:[%s39 + $0x4] sm:$0xf]
    %v2314 = vld [vmem:[%s39 + $0x8] sm:$0xf]
    %v2315 = vld [vmem:[%s39 + $0xc] sm:$0xf]
    %v2316 = vld [vmem:[%s41] sm:$0x1]
    %v2317 = vpack.c.bf16 %v2311, %v2310
    %v2319 = vperm.slane %v2316, 0
    %v2325 = vunpack.c.l.b16 %v2312
    %v2326 = vunpack.c.l.b16 %v2313
    %v2327 = vunpack.c.l.b16 %v2314
    %v2328 = vunpack.c.l.b16 %v2315
    %v2329 = vpack.c.b16 %v2326, %v2325
    %v2330 = vpack.c.b16 %v2328, %v2327
    %v2334 = vsel %vm388, %v2317, 0
    %2336 = vmatpush.bf16.msra.mxu0 0
    %2337 = vmatpush.bf16.msra.mxu0 0
    %2338 = vmatpush.bf16.msra.mxu0 0
    %2339 = vmatpush.bf16.msra.mxu0 0
    %2340 = vmatpush.bf16.msra.mxu0 0
    %2341 = vmatpush.bf16.msra.mxu0 0
    %2342 = vmatpush.bf16.msra.mxu0 %v2330
    %2343 = vmatpush.bf16.msra.mxu0 %v2329
    %2344 = vmatmul.bf16.gmra.mxu0 %v2334
    %v2345 = vpop.f32.mrf.mxu0
    %v2346 = vadd.f32 %v2319, %v2345
    %v2347 = vpop.f32.mrf.mxu0
    %v2348 = vadd.f32 %v2319, %v2347
    %2349 = vdwg.mxu0
    %v2350 = vld [vmem:[%s43] sm:$0xf]
    %v2351 = vld [vmem:[%s43 + $0x4] sm:$0xf]
    %v2352 = vld [vmem:[%s43 + $0x8] sm:$0xf]
    %v2353 = vld [vmem:[%s43 + $0xc] sm:$0xf]
    %v2354 = vpack.c.bf16 %v2346, %v2346
    %2356 = vrot.lane.b32.xlu0 %v2354, 96
    %v2357 = vpop.permute.xlu0 %2356
    %v2359 = vsel %vm502, %v2354, 0
    %v2362 = vsel %vm502, %v2357, 0
    %2364 = vmatpush.bf16.xpose.msra.mxu0 0
    %2365 = vmatpush.bf16.xpose.msra.mxu0 0
    %2366 = vmatpush.bf16.xpose.msra.mxu0 0
    %2367 = vmatpush.bf16.xpose.msra.mxu0 0
    %2368 = vmatpush.bf16.xpose.msra.mxu0 0
    %2369 = vmatpush.bf16.xpose.msra.mxu0 0
    %2370 = vmatpush.bf16.xpose.msra.mxu0 0
    %2371 = vmatpush.bf16.xpose.msra.mxu0 %v2362
    %2372 = vmatmul.bf16.gmra.mxu0 %v2359
    %v2373 = vpop.f32.mrf.mxu0
    %v2374 = vadd.f32 0.0, %v2373
    %v2375 = vpop.f32.mrf.mxu0
    %2376 = vdwg.mxu0
    %v2377 = vmul.f32 %v2374, 0.35355338
    %v2378 = vsel %vm383, %v2377, -1e+09
    %v2379 = vsel %vm502, %v2378, -inf
    %2380 = vmax.xlane.f32.xlu0 %v2379
    %v2381 = vpop.xlane.xlu0 %2380
    %v2382 = vsub.f32 %v2378, %v2381
    %v2383 = vmul.f32 %v2382, 1.442695
    %v2384 = vpow.pop %v2383
    %v2385 = vsel %vm502, %v2384, 0.0
    %2386 = vadd.xlane.f32.xlu0 %v2385
    %v2387 = vpop.xlane.xlu0 %2386
    %v2388 = vrcp.pop %v2387
    %v2389 = vmul.f32 %v2384, %v2388
    %v2390 = vpack.c.bf16 %v2389, %v2389
    %2391 = vrot.lane.b32.xlu0 %v2354, 64
    %v2392 = vpop.permute.xlu0 %2391
    %v2394 = vsel %vm502, %v2390, 0
    %v2397 = vsel %vm544, %v2392, 0
    %2399 = vmatpush.bf16.msra.mxu0 0
    %2400 = vmatpush.bf16.msra.mxu0 0
    %2401 = vmatpush.bf16.msra.mxu0 0
    %2402 = vmatpush.bf16.msra.mxu0 0
    %2403 = vmatpush.bf16.msra.mxu0 0
    %2404 = vmatpush.bf16.msra.mxu0 0
    %2405 = vmatpush.bf16.msra.mxu0 0
    %2406 = vmatpush.bf16.msra.mxu0 %v2397
    %2407 = vmatmul.bf16.gmra.mxu0 %v2394
    %v2408 = vpop.f32.mrf.mxu0
    %v2409 = vadd.f32 0.0, %v2408
    %v2410 = vpop.f32.mrf.mxu0
    %2411 = vdwg.mxu0
    %v2412 = vpack.c.bf16 %v2409, %v2409
    %2413 = vrot.lane.b32.xlu0 %v2354, 120
    %v2414 = vpop.permute.xlu0 %2413
    %2415 = vrot.lane.b32.xlu0 %v2354, 88
    %v2416 = vpop.permute.xlu0 %2415
    %v2418 = vsel %vm502, %v2414, 0
    %v2421 = vsel %vm502, %v2416, 0
    %2423 = vmatpush.bf16.xpose.msra.mxu0 0
    %2424 = vmatpush.bf16.xpose.msra.mxu0 0
    %2425 = vmatpush.bf16.xpose.msra.mxu0 0
    %2426 = vmatpush.bf16.xpose.msra.mxu0 0
    %2427 = vmatpush.bf16.xpose.msra.mxu0 0
    %2428 = vmatpush.bf16.xpose.msra.mxu0 0
    %2429 = vmatpush.bf16.xpose.msra.mxu0 0
    %2430 = vmatpush.bf16.xpose.msra.mxu0 %v2421
    %2431 = vmatmul.bf16.gmra.mxu0 %v2418
    %v2432 = vpop.f32.mrf.mxu0
    %v2433 = vadd.f32 0.0, %v2432
    %v2434 = vpop.f32.mrf.mxu0
    %2435 = vdwg.mxu0
    %v2436 = vmul.f32 %v2433, 0.35355338
    %v2437 = vsel %vm383, %v2436, -1e+09
    %v2438 = vsel %vm502, %v2437, -inf
    %2439 = vmax.xlane.f32.xlu0 %v2438
    %v2440 = vpop.xlane.xlu0 %2439
    %v2441 = vsub.f32 %v2437, %v2440
    %v2442 = vmul.f32 %v2441, 1.442695
    %v2443 = vpow.pop %v2442
    %v2444 = vsel %vm502, %v2443, 0.0
    %2445 = vadd.xlane.f32.xlu0 %v2444
    %v2446 = vpop.xlane.xlu0 %2445
    %v2447 = vrcp.pop %v2446
    %v2448 = vmul.f32 %v2443, %v2447
    %v2449 = vpack.c.bf16 %v2448, %v2448
    %2450 = vrot.lane.b32.xlu0 %v2354, 56
    %v2451 = vpop.permute.xlu0 %2450
    %v2453 = vsel %vm502, %v2449, 0
    %v2456 = vsel %vm544, %v2451, 0
    %2458 = vmatpush.bf16.msra.mxu0 0
    %2459 = vmatpush.bf16.msra.mxu0 0
    %2460 = vmatpush.bf16.msra.mxu0 0
    %2461 = vmatpush.bf16.msra.mxu0 0
    %2462 = vmatpush.bf16.msra.mxu0 0
    %2463 = vmatpush.bf16.msra.mxu0 0
    %2464 = vmatpush.bf16.msra.mxu0 0
    %2465 = vmatpush.bf16.msra.mxu0 %v2456
    %2466 = vmatmul.bf16.gmra.mxu0 %v2453
    %v2467 = vpop.f32.mrf.mxu0
    %v2468 = vadd.f32 0.0, %v2467
    %v2469 = vpop.f32.mrf.mxu0
    %2470 = vdwg.mxu0
    %v2471 = vpack.c.bf16 %v2468, %v2468
    %v2473 = vsel %vm502, %v2471, 0
    %v2476 = vsel %vm544, %v2351, 0
    %2478 = vmatpush.bf16.msra.mxu0 0
    %2479 = vmatpush.bf16.msra.mxu0 0
    %2480 = vmatpush.bf16.msra.mxu0 0
    %2481 = vmatpush.bf16.msra.mxu0 0
    %2482 = vmatpush.bf16.msra.mxu0 0
    %2483 = vmatpush.bf16.msra.mxu0 0
    %2484 = vmatpush.bf16.msra.mxu0 0
    %2485 = vmatpush.bf16.msra.mxu0 %v2476
    %2486 = vmatmul.bf16.gmra.mxu0 %v2473
    %v2487 = vpop.f32.mrf.mxu0
    %v2488 = vadd.f32 0.0, %v2487
    %v2489 = vpop.f32.mrf.mxu0
    %2490 = vdwg.mxu0
    %v2492 = vsel %vm502, %v2412, 0
    %v2495 = vsel %vm544, %v2350, 0
    %2497 = vmatpush.bf16.msra.mxu0 0
    %2498 = vmatpush.bf16.msra.mxu0 0
    %2499 = vmatpush.bf16.msra.mxu0 0
    %2500 = vmatpush.bf16.msra.mxu0 0
    %2501 = vmatpush.bf16.msra.mxu0 0
    %2502 = vmatpush.bf16.msra.mxu0 0
    %2503 = vmatpush.bf16.msra.mxu0 0
    %2504 = vmatpush.bf16.msra.mxu0 %v2495
    %2505 = vmatmul.bf16.gmra.mxu0 %v2492
    %v2506 = vpop.f32.mrf.mxu0
    %v2507 = vadd.f32 %v2488, %v2506
    %v2508 = vpop.f32.mrf.mxu0
    %2509 = vdwg.mxu0
    %2510 = vrot.lane.b32.xlu0 %v2354, 112
    %v2511 = vpop.permute.xlu0 %2510
    %2512 = vrot.lane.b32.xlu0 %v2354, 80
    %v2513 = vpop.permute.xlu0 %2512
    %v2515 = vsel %vm502, %v2511, 0
    %v2518 = vsel %vm502, %v2513, 0
    %2520 = vmatpush.bf16.xpose.msra.mxu0 0
    %2521 = vmatpush.bf16.xpose.msra.mxu0 0
    %2522 = vmatpush.bf16.xpose.msra.mxu0 0
    %2523 = vmatpush.bf16.xpose.msra.mxu0 0
    %2524 = vmatpush.bf16.xpose.msra.mxu0 0
    %2525 = vmatpush.bf16.xpose.msra.mxu0 0
    %2526 = vmatpush.bf16.xpose.msra.mxu0 0
    %2527 = vmatpush.bf16.xpose.msra.mxu0 %v2518
    %2528 = vmatmul.bf16.gmra.mxu0 %v2515
    %v2529 = vpop.f32.mrf.mxu0
    %v2530 = vadd.f32 0.0, %v2529
    %v2531 = vpop.f32.mrf.mxu0
    %2532 = vdwg.mxu0
    %v2533 = vmul.f32 %v2530, 0.35355338
    %v2534 = vsel %vm383, %v2533, -1e+09
    %v2535 = vsel %vm502, %v2534, -inf
    %2536 = vmax.xlane.f32.xlu0 %v2535
    %v2537 = vpop.xlane.xlu0 %2536
    %v2538 = vsub.f32 %v2534, %v2537
    %v2539 = vmul.f32 %v2538, 1.442695
    %v2540 = vpow.pop %v2539
    %v2541 = vsel %vm502, %v2540, 0.0
    %2542 = vadd.xlane.f32.xlu0 %v2541
    %v2543 = vpop.xlane.xlu0 %2542
    %v2544 = vrcp.pop %v2543
    %v2545 = vmul.f32 %v2540, %v2544
    %v2546 = vpack.c.bf16 %v2545, %v2545
    %2547 = vrot.lane.b32.xlu0 %v2354, 48
    %v2548 = vpop.permute.xlu0 %2547
    %v2550 = vsel %vm502, %v2546, 0
    %v2553 = vsel %vm544, %v2548, 0
    %2555 = vmatpush.bf16.msra.mxu0 0
    %2556 = vmatpush.bf16.msra.mxu0 0
    %2557 = vmatpush.bf16.msra.mxu0 0
    %2558 = vmatpush.bf16.msra.mxu0 0
    %2559 = vmatpush.bf16.msra.mxu0 0
    %2560 = vmatpush.bf16.msra.mxu0 0
    %2561 = vmatpush.bf16.msra.mxu0 0
    %2562 = vmatpush.bf16.msra.mxu0 %v2553
    %2563 = vmatmul.bf16.gmra.mxu0 %v2550
    %v2564 = vpop.f32.mrf.mxu0
    %v2565 = vadd.f32 0.0, %v2564
    %v2566 = vpop.f32.mrf.mxu0
    %2567 = vdwg.mxu0
    %v2568 = vpack.c.bf16 %v2565, %v2565
    %v2570 = vsel %vm502, %v2568, 0
    %v2573 = vsel %vm544, %v2352, 0
    %2575 = vmatpush.bf16.msra.mxu0 0
    %2576 = vmatpush.bf16.msra.mxu0 0
    %2577 = vmatpush.bf16.msra.mxu0 0
    %2578 = vmatpush.bf16.msra.mxu0 0
    %2579 = vmatpush.bf16.msra.mxu0 0
    %2580 = vmatpush.bf16.msra.mxu0 0
    %2581 = vmatpush.bf16.msra.mxu0 0
    %2582 = vmatpush.bf16.msra.mxu0 %v2573
    %2583 = vmatmul.bf16.gmra.mxu0 %v2570
    %v2584 = vpop.f32.mrf.mxu0
    %v2585 = vadd.f32 0.0, %v2584
    %v2586 = vpop.f32.mrf.mxu0
    %2587 = vdwg.mxu0
    %v2588 = vadd.f32 %v2507, %v2585
    %2589 = vrot.lane.b32.xlu0 %v2354, 104
    %v2590 = vpop.permute.xlu0 %2589
    %2591 = vrot.lane.b32.xlu0 %v2354, 72
    %v2592 = vpop.permute.xlu0 %2591
    %v2594 = vsel %vm502, %v2590, 0
    %v2597 = vsel %vm502, %v2592, 0
    %2599 = vmatpush.bf16.xpose.msra.mxu0 0
    %2600 = vmatpush.bf16.xpose.msra.mxu0 0
    %2601 = vmatpush.bf16.xpose.msra.mxu0 0
    %2602 = vmatpush.bf16.xpose.msra.mxu0 0
    %2603 = vmatpush.bf16.xpose.msra.mxu0 0
    %2604 = vmatpush.bf16.xpose.msra.mxu0 0
    %2605 = vmatpush.bf16.xpose.msra.mxu0 0
    %2606 = vmatpush.bf16.xpose.msra.mxu0 %v2597
    %2607 = vmatmul.bf16.gmra.mxu0 %v2594
    %v2608 = vpop.f32.mrf.mxu0
    %v2609 = vadd.f32 0.0, %v2608
    %v2610 = vpop.f32.mrf.mxu0
    %2611 = vdwg.mxu0
    %v2612 = vmul.f32 %v2609, 0.35355338
    %v2613 = vsel %vm383, %v2612, -1e+09
    %v2614 = vsel %vm502, %v2613, -inf
    %2615 = vmax.xlane.f32.xlu0 %v2614
    %v2616 = vpop.xlane.xlu0 %2615
    %v2617 = vsub.f32 %v2613, %v2616
    %v2618 = vmul.f32 %v2617, 1.442695
    %v2619 = vpow.pop %v2618
    %v2620 = vsel %vm502, %v2619, 0.0
    %2621 = vadd.xlane.f32.xlu0 %v2620
    %v2622 = vpop.xlane.xlu0 %2621
    %v2623 = vrcp.pop %v2622
    %v2624 = vmul.f32 %v2619, %v2623
    %v2625 = vpack.c.bf16 %v2624, %v2624
    %2626 = vrot.lane.b32.xlu0 %v2354, 40
    %v2627 = vpop.permute.xlu0 %2626
    %v2629 = vsel %vm502, %v2625, 0
    %v2632 = vsel %vm544, %v2627, 0
    %2634 = vmatpush.bf16.msra.mxu0 0
    %2635 = vmatpush.bf16.msra.mxu0 0
    %2636 = vmatpush.bf16.msra.mxu0 0
    %2637 = vmatpush.bf16.msra.mxu0 0
    %2638 = vmatpush.bf16.msra.mxu0 0
    %2639 = vmatpush.bf16.msra.mxu0 0
    %2640 = vmatpush.bf16.msra.mxu0 0
    %2641 = vmatpush.bf16.msra.mxu0 %v2632
    %2642 = vmatmul.bf16.gmra.mxu0 %v2629
    %v2643 = vpop.f32.mrf.mxu0
    %v2644 = vadd.f32 0.0, %v2643
    %v2645 = vpop.f32.mrf.mxu0
    %2646 = vdwg.mxu0
    %v2647 = vpack.c.bf16 %v2644, %v2644
    %v2649 = vsel %vm502, %v2647, 0
    %v2652 = vsel %vm544, %v2353, 0
    %2654 = vmatpush.bf16.msra.mxu0 0
    %2655 = vmatpush.bf16.msra.mxu0 0
    %2656 = vmatpush.bf16.msra.mxu0 0
    %2657 = vmatpush.bf16.msra.mxu0 0
    %2658 = vmatpush.bf16.msra.mxu0 0
    %2659 = vmatpush.bf16.msra.mxu0 0
    %2660 = vmatpush.bf16.msra.mxu0 0
    %2661 = vmatpush.bf16.msra.mxu0 %v2652
    %2662 = vmatmul.bf16.gmra.mxu0 %v2649
    %v2663 = vpop.f32.mrf.mxu0
    %v2664 = vadd.f32 0.0, %v2663
    %v2665 = vpop.f32.mrf.mxu0
    %2666 = vdwg.mxu0
    %v2667 = vadd.f32 %v2588, %v2664
    %v2668 = vpack.c.bf16 %v2348, %v2348
    %2670 = vrot.lane.b32.xlu0 %v2668, 96
    %v2671 = vpop.permute.xlu0 %2670
    %v2673 = vsel %vm502, %v2668, 0
    %v2676 = vsel %vm502, %v2671, 0
    %2678 = vmatpush.bf16.xpose.msra.mxu0 0
    %2679 = vmatpush.bf16.xpose.msra.mxu0 0
    %2680 = vmatpush.bf16.xpose.msra.mxu0 0
    %2681 = vmatpush.bf16.xpose.msra.mxu0 0
    %2682 = vmatpush.bf16.xpose.msra.mxu0 0
    %2683 = vmatpush.bf16.xpose.msra.mxu0 0
    %2684 = vmatpush.bf16.xpose.msra.mxu0 0
    %2685 = vmatpush.bf16.xpose.msra.mxu0 %v2676
    %2686 = vmatmul.bf16.gmra.mxu0 %v2673
    %v2687 = vpop.f32.mrf.mxu0
    %v2688 = vadd.f32 0.0, %v2687
    %v2689 = vpop.f32.mrf.mxu0
    %2690 = vdwg.mxu0
    %v2691 = vmul.f32 %v2688, 0.35355338
    %v2692 = vsel %vm383, %v2691, -1e+09
    %v2693 = vsel %vm502, %v2692, -inf
    %2694 = vmax.xlane.f32.xlu0 %v2693
    %v2695 = vpop.xlane.xlu0 %2694
    %v2696 = vsub.f32 %v2692, %v2695
    %v2697 = vmul.f32 %v2696, 1.442695
    %v2698 = vpow.pop %v2697
    %v2699 = vsel %vm502, %v2698, 0.0
    %2700 = vadd.xlane.f32.xlu0 %v2699
    %v2701 = vpop.xlane.xlu0 %2700
    %v2702 = vrcp.pop %v2701
    %v2703 = vmul.f32 %v2698, %v2702
    %v2704 = vpack.c.bf16 %v2703, %v2703
    %2705 = vrot.lane.b32.xlu0 %v2668, 64
    %v2706 = vpop.permute.xlu0 %2705
    %v2708 = vsel %vm502, %v2704, 0
    %v2711 = vsel %vm544, %v2706, 0
    %2713 = vmatpush.bf16.msra.mxu0 0
    %2714 = vmatpush.bf16.msra.mxu0 0
    %2715 = vmatpush.bf16.msra.mxu0 0
    %2716 = vmatpush.bf16.msra.mxu0 0
    %2717 = vmatpush.bf16.msra.mxu0 0
    %2718 = vmatpush.bf16.msra.mxu0 0
    %2719 = vmatpush.bf16.msra.mxu0 0
    %2720 = vmatpush.bf16.msra.mxu0 %v2711
    %2721 = vmatmul.bf16.gmra.mxu0 %v2708
    %v2722 = vpop.f32.mrf.mxu0
    %v2723 = vadd.f32 0.0, %v2722
    %v2724 = vpop.f32.mrf.mxu0
    %2725 = vdwg.mxu0
    %v2726 = vpack.c.bf16 %v2723, %v2723
    %2727 = vrot.lane.b32.xlu0 %v2668, 120
    %v2728 = vpop.permute.xlu0 %2727
    %2729 = vrot.lane.b32.xlu0 %v2668, 88
    %v2730 = vpop.permute.xlu0 %2729
    %v2732 = vsel %vm502, %v2728, 0
    %v2735 = vsel %vm502, %v2730, 0
    %2737 = vmatpush.bf16.xpose.msra.mxu0 0
    %2738 = vmatpush.bf16.xpose.msra.mxu0 0
    %2739 = vmatpush.bf16.xpose.msra.mxu0 0
    %2740 = vmatpush.bf16.xpose.msra.mxu0 0
    %2741 = vmatpush.bf16.xpose.msra.mxu0 0
    %2742 = vmatpush.bf16.xpose.msra.mxu0 0
    %2743 = vmatpush.bf16.xpose.msra.mxu0 0
    %2744 = vmatpush.bf16.xpose.msra.mxu0 %v2735
    %2745 = vmatmul.bf16.gmra.mxu0 %v2732
    %v2746 = vpop.f32.mrf.mxu0
    %v2747 = vadd.f32 0.0, %v2746
    %v2748 = vpop.f32.mrf.mxu0
    %2749 = vdwg.mxu0
    %v2750 = vmul.f32 %v2747, 0.35355338
    %v2751 = vsel %vm383, %v2750, -1e+09
    %v2752 = vsel %vm502, %v2751, -inf
    %2753 = vmax.xlane.f32.xlu0 %v2752
    %v2754 = vpop.xlane.xlu0 %2753
    %v2755 = vsub.f32 %v2751, %v2754
    %v2756 = vmul.f32 %v2755, 1.442695
    %v2757 = vpow.pop %v2756
    %v2758 = vsel %vm502, %v2757, 0.0
    %2759 = vadd.xlane.f32.xlu0 %v2758
    %v2760 = vpop.xlane.xlu0 %2759
    %v2761 = vrcp.pop %v2760
    %v2762 = vmul.f32 %v2757, %v2761
    %v2763 = vpack.c.bf16 %v2762, %v2762
    %2764 = vrot.lane.b32.xlu0 %v2668, 56
    %v2765 = vpop.permute.xlu0 %2764
    %v2767 = vsel %vm502, %v2763, 0
    %v2770 = vsel %vm544, %v2765, 0
    %2772 = vmatpush.bf16.msra.mxu0 0
    %2773 = vmatpush.bf16.msra.mxu0 0
    %2774 = vmatpush.bf16.msra.mxu0 0
    %2775 = vmatpush.bf16.msra.mxu0 0
    %2776 = vmatpush.bf16.msra.mxu0 0
    %2777 = vmatpush.bf16.msra.mxu0 0
    %2778 = vmatpush.bf16.msra.mxu0 0
    %2779 = vmatpush.bf16.msra.mxu0 %v2770
    %2780 = vmatmul.bf16.gmra.mxu0 %v2767
    %v2781 = vpop.f32.mrf.mxu0
    %v2782 = vadd.f32 0.0, %v2781
    %v2783 = vpop.f32.mrf.mxu0
    %2784 = vdwg.mxu0
    %v2785 = vpack.c.bf16 %v2782, %v2782
    %v2787 = vsel %vm502, %v2785, 0
    %2789 = vmatpush.bf16.msra.mxu0 0
    %2790 = vmatpush.bf16.msra.mxu0 0
    %2791 = vmatpush.bf16.msra.mxu0 0
    %2792 = vmatpush.bf16.msra.mxu0 0
    %2793 = vmatpush.bf16.msra.mxu0 0
    %2794 = vmatpush.bf16.msra.mxu0 0
    %2795 = vmatpush.bf16.msra.mxu0 0
    %2796 = vmatpush.bf16.msra.mxu0 %v2476
    %2797 = vmatmul.bf16.gmra.mxu0 %v2787
    %v2798 = vpop.f32.mrf.mxu0
    %v2799 = vadd.f32 0.0, %v2798
    %v2800 = vpop.f32.mrf.mxu0
    %2801 = vdwg.mxu0
    %v2803 = vsel %vm502, %v2726, 0
    %2805 = vmatpush.bf16.msra.mxu0 0
    %2806 = vmatpush.bf16.msra.mxu0 0
    %2807 = vmatpush.bf16.msra.mxu0 0
    %2808 = vmatpush.bf16.msra.mxu0 0
    %2809 = vmatpush.bf16.msra.mxu0 0
    %2810 = vmatpush.bf16.msra.mxu0 0
    %2811 = vmatpush.bf16.msra.mxu0 0
    %2812 = vmatpush.bf16.msra.mxu0 %v2495
    %2813 = vmatmul.bf16.gmra.mxu0 %v2803
    %v2814 = vpop.f32.mrf.mxu0
    %v2815 = vadd.f32 %v2799, %v2814
    %v2816 = vpop.f32.mrf.mxu0
    %2817 = vdwg.mxu0
    %2818 = vrot.lane.b32.xlu0 %v2668, 112
    %v2819 = vpop.permute.xlu0 %2818
    %2820 = vrot.lane.b32.xlu0 %v2668, 80
    %v2821 = vpop.permute.xlu0 %2820
    %v2823 = vsel %vm502, %v2819, 0
    %v2826 = vsel %vm502, %v2821, 0
    %2828 = vmatpush.bf16.xpose.msra.mxu0 0
    %2829 = vmatpush.bf16.xpose.msra.mxu0 0
    %2830 = vmatpush.bf16.xpose.msra.mxu0 0
    %2831 = vmatpush.bf16.xpose.msra.mxu0 0
    %2832 = vmatpush.bf16.xpose.msra.mxu0 0
    %2833 = vmatpush.bf16.xpose.msra.mxu0 0
    %2834 = vmatpush.bf16.xpose.msra.mxu0 0
    %2835 = vmatpush.bf16.xpose.msra.mxu0 %v2826
    %2836 = vmatmul.bf16.gmra.mxu0 %v2823
    %v2837 = vpop.f32.mrf.mxu0
    %v2838 = vadd.f32 0.0, %v2837
    %v2839 = vpop.f32.mrf.mxu0
    %2840 = vdwg.mxu0
    %v2841 = vmul.f32 %v2838, 0.35355338
    %v2842 = vsel %vm383, %v2841, -1e+09
    %v2843 = vsel %vm502, %v2842, -inf
    %2844 = vmax.xlane.f32.xlu0 %v2843
    %v2845 = vpop.xlane.xlu0 %2844
    %v2846 = vsub.f32 %v2842, %v2845
    %v2847 = vmul.f32 %v2846, 1.442695
    %v2848 = vpow.pop %v2847
    %v2849 = vsel %vm502, %v2848, 0.0
    %2850 = vadd.xlane.f32.xlu0 %v2849
    %v2851 = vpop.xlane.xlu0 %2850
    %v2852 = vrcp.pop %v2851
    %v2853 = vmul.f32 %v2848, %v2852
    %v2854 = vpack.c.bf16 %v2853, %v2853
    %2855 = vrot.lane.b32.xlu0 %v2668, 48
    %v2856 = vpop.permute.xlu0 %2855
    %v2858 = vsel %vm502, %v2854, 0
    %v2861 = vsel %vm544, %v2856, 0
    %2863 = vmatpush.bf16.msra.mxu0 0
    %2864 = vmatpush.bf16.msra.mxu0 0
    %2865 = vmatpush.bf16.msra.mxu0 0
    %2866 = vmatpush.bf16.msra.mxu0 0
    %2867 = vmatpush.bf16.msra.mxu0 0
    %2868 = vmatpush.bf16.msra.mxu0 0
    %2869 = vmatpush.bf16.msra.mxu0 0
    %2870 = vmatpush.bf16.msra.mxu0 %v2861
    %2871 = vmatmul.bf16.gmra.mxu0 %v2858
    %v2872 = vpop.f32.mrf.mxu0
    %v2873 = vadd.f32 0.0, %v2872
    %v2874 = vpop.f32.mrf.mxu0
    %2875 = vdwg.mxu0
    %v2876 = vpack.c.bf16 %v2873, %v2873
    %v2878 = vsel %vm502, %v2876, 0
    %2880 = vmatpush.bf16.msra.mxu0 0
    %2881 = vmatpush.bf16.msra.mxu0 0
    %2882 = vmatpush.bf16.msra.mxu0 0
    %2883 = vmatpush.bf16.msra.mxu0 0
    %2884 = vmatpush.bf16.msra.mxu0 0
    %2885 = vmatpush.bf16.msra.mxu0 0
    %2886 = vmatpush.bf16.msra.mxu0 0
    %2887 = vmatpush.bf16.msra.mxu0 %v2573
    %2888 = vmatmul.bf16.gmra.mxu0 %v2878
    %v2889 = vpop.f32.mrf.mxu0
    %v2890 = vadd.f32 0.0, %v2889
    %v2891 = vpop.f32.mrf.mxu0
    %2892 = vdwg.mxu0
    %v2893 = vadd.f32 %v2815, %v2890
    %2894 = vrot.lane.b32.xlu0 %v2668, 104
    %v2895 = vpop.permute.xlu0 %2894
    %2896 = vrot.lane.b32.xlu0 %v2668, 72
    %v2897 = vpop.permute.xlu0 %2896
    %v2899 = vsel %vm502, %v2895, 0
    %v2902 = vsel %vm502, %v2897, 0
    %2904 = vmatpush.bf16.xpose.msra.mxu0 0
    %2905 = vmatpush.bf16.xpose.msra.mxu0 0
    %2906 = vmatpush.bf16.xpose.msra.mxu0 0
    %2907 = vmatpush.bf16.xpose.msra.mxu0 0
    %2908 = vmatpush.bf16.xpose.msra.mxu0 0
    %2909 = vmatpush.bf16.xpose.msra.mxu0 0
    %2910 = vmatpush.bf16.xpose.msra.mxu0 0
    %2911 = vmatpush.bf16.xpose.msra.mxu0 %v2902
    %2912 = vmatmul.bf16.gmra.mxu0 %v2899
    %v2913 = vpop.f32.mrf.mxu0
    %v2914 = vadd.f32 0.0, %v2913
    %v2915 = vpop.f32.mrf.mxu0
    %2916 = vdwg.mxu0
    %v2917 = vmul.f32 %v2914, 0.35355338
    %v2918 = vsel %vm383, %v2917, -1e+09
    %v2919 = vsel %vm502, %v2918, -inf
    %2920 = vmax.xlane.f32.xlu0 %v2919
    %v2921 = vpop.xlane.xlu0 %2920
    %v2922 = vsub.f32 %v2918, %v2921
    %v2923 = vmul.f32 %v2922, 1.442695
    %v2924 = vpow.pop %v2923
    %v2925 = vsel %vm502, %v2924, 0.0
    %2926 = vadd.xlane.f32.xlu0 %v2925
    %v2927 = vpop.xlane.xlu0 %2926
    %v2928 = vrcp.pop %v2927
    %v2929 = vmul.f32 %v2924, %v2928
    %v2930 = vpack.c.bf16 %v2929, %v2929
    %2931 = vrot.lane.b32.xlu0 %v2668, 40
    %v2932 = vpop.permute.xlu0 %2931
    %v2934 = vsel %vm502, %v2930, 0
    %v2937 = vsel %vm544, %v2932, 0
    %2939 = vmatpush.bf16.msra.mxu0 0
    %2940 = vmatpush.bf16.msra.mxu0 0
    %2941 = vmatpush.bf16.msra.mxu0 0
    %2942 = vmatpush.bf16.msra.mxu0 0
    %2943 = vmatpush.bf16.msra.mxu0 0
    %2944 = vmatpush.bf16.msra.mxu0 0
    %2945 = vmatpush.bf16.msra.mxu0 0
    %2946 = vmatpush.bf16.msra.mxu0 %v2937
    %2947 = vmatmul.bf16.gmra.mxu0 %v2934
    %v2948 = vpop.f32.mrf.mxu0
    %v2949 = vadd.f32 0.0, %v2948
    %v2950 = vpop.f32.mrf.mxu0
    %2951 = vdwg.mxu0
    %v2952 = vpack.c.bf16 %v2949, %v2949
    %v2954 = vsel %vm502, %v2952, 0
    %2956 = vmatpush.bf16.msra.mxu0 0
    %2957 = vmatpush.bf16.msra.mxu0 0
    %2958 = vmatpush.bf16.msra.mxu0 0
    %2959 = vmatpush.bf16.msra.mxu0 0
    %2960 = vmatpush.bf16.msra.mxu0 0
    %2961 = vmatpush.bf16.msra.mxu0 0
    %2962 = vmatpush.bf16.msra.mxu0 0
    %2963 = vmatpush.bf16.msra.mxu0 %v2652
    %2964 = vmatmul.bf16.gmra.mxu0 %v2954
    %v2965 = vpop.f32.mrf.mxu0
    %v2966 = vadd.f32 0.0, %v2965
    %v2967 = vpop.f32.mrf.mxu0
    %2968 = vdwg.mxu0
    %v2969 = vadd.f32 %v2893, %v2966
    %v2970 = vadd.f32 %v2248, %v2667
    %v2971 = vadd.f32 %v2249, %v2969
    %v2972 = vld [vmem:[%s45] sm:$0x1]
    %v2974 = vperm.slane %v2972, 0
    %v2976 = vadd.f32 %v2970, %v2974
    %v2977 = vadd.f32 %v2971, %v2974
    %v2978 = vld [vmem:[%s47] sm:$0x1]
    %v2979 = vld [vmem:[%s49] sm:$0x1]
    %v2980 = vsel %vm388, %v2976, 0.0
    %2981 = vadd.xlane.f32.xlu0 %v2980
    %v2982 = vpop.xlane.xlu0 %2981
    %v2983 = vsel %vm388, %v2977, 0.0
    %2984 = vadd.xlane.f32.xlu0 %v2983
    %v2985 = vpop.xlane.xlu0 %2984
    %v2986 = vmul.f32 %v2982, %v401
    %v2987 = vmul.f32 %v2985, %v401
    %v2988 = vsub.f32 %v2976, %v2986
    %v2989 = vsub.f32 %v2977, %v2987
    %v2990 = vmul.f32 %v2988, %v2988
    %v2991 = vmul.f32 %v2989, %v2989
    %v2992 = vsel %vm388, %v2990, 0.0
    %2993 = vadd.xlane.f32.xlu0 %v2992
    %v2994 = vpop.xlane.xlu0 %2993
    %v2995 = vsel %vm388, %v2991, 0.0
    %2996 = vadd.xlane.f32.xlu0 %v2995
    %v2997 = vpop.xlane.xlu0 %2996
    %v2998 = vmul.f32 %v2994, 0.032258064
    %v2999 = vmul.f32 %v2997, 0.032258064
    %v3000 = vrsqrt.pop %v2998
    %v3001 = vmul.f32 %v3000, %v2998
    %v3002 = vmul.f32 %v3001, %v3000
    %v3003 = vmul.f32 0.5, %v3002
    %v3004 = vsub.f32 1.5, %v3003
    %v3005 = vmul.f32 %v3000, %v3004
    %v3006 = vmul.f32 %v2998, %v3005
    %vm3007 = vcmp.eq.f32.partialorder %v2998, inf
    %v3008 = vsel %vm3007, %v2998, %v3006
    %vm3009 = vcmp.eq.f32.partialorder %v2998, 0.0
    %v3010 = vand.u32 %v2998, 2147483648
    %v3011 = vsel %vm3009, %v3010, %v3008
    %v3012 = vrsqrt.pop %v2999
    %v3013 = vmul.f32 %v3012, %v2999
    %v3014 = vmul.f32 %v3013, %v3012
    %v3015 = vmul.f32 0.5, %v3014
    %v3016 = vsub.f32 1.5, %v3015
    %v3017 = vmul.f32 %v3012, %v3016
    %v3018 = vmul.f32 %v2999, %v3017
    %vm3019 = vcmp.eq.f32.partialorder %v2999, inf
    %v3020 = vsel %vm3019, %v2999, %v3018
    %vm3021 = vcmp.eq.f32.partialorder %v2999, 0.0
    %v3022 = vand.u32 %v2999, 2147483648
    %v3023 = vsel %vm3021, %v3022, %v3020
    %v3024 = vadd.f32 %v3011, 1e-06
    %v3025 = vadd.f32 %v3023, 1e-06
    %v3026 = vrcp.pop %v3024
    %v3027 = vrcp.pop %v3025
    %v3028 = vmul.f32 %v2988, %v3026
    %v3029 = vmul.f32 %v2989, %v3027
    %v3031 = vperm.slane %v2978, 0
    %v3033 = vmul.f32 %v3031, %v3028
    %v3034 = vmul.f32 %v3031, %v3029
    %v3036 = vperm.slane %v2979, 0
    %v3038 = vadd.f32 %v3033, %v3036
    %v3039 = vadd.f32 %v3034, %v3036
    %v3040 = vld [vmem:[#allocation16] sm:$0xf]
    %v3041 = vld [vmem:[#allocation16 + $0x4] sm:$0xf]
    %v3042 = vld [vmem:[#allocation16 + $0x8] sm:$0xf]
    %v3043 = vld [vmem:[#allocation16 + $0xc] sm:$0xf]
    %v3044 = vld [vmem:[#allocation17] sm:$0x1]
    %v3045 = vpack.c.bf16 %v3039, %v3038
    %v3047 = vperm.slane %v3044, 0
    %v3053 = vunpack.c.l.b16 %v3040
    %v3054 = vunpack.c.l.b16 %v3041
    %v3055 = vunpack.c.l.b16 %v3042
    %v3056 = vunpack.c.l.b16 %v3043
    %v3057 = vpack.c.b16 %v3054, %v3053
    %v3058 = vpack.c.b16 %v3056, %v3055
    %v3062 = vsel %vm388, %v3045, 0
    %3064 = vmatpush.bf16.msra.mxu0 0
    %3065 = vmatpush.bf16.msra.mxu0 0
    %3066 = vmatpush.bf16.msra.mxu0 0
    %3067 = vmatpush.bf16.msra.mxu0 0
    %3068 = vmatpush.bf16.msra.mxu0 0
    %3069 = vmatpush.bf16.msra.mxu0 0
    %3070 = vmatpush.bf16.msra.mxu0 %v3058
    %3071 = vmatpush.bf16.msra.mxu0 %v3057
    %3072 = vmatmul.bf16.gmra.mxu0 %v3062
    %v3073 = vpop.f32.mrf.mxu0
    %v3074 = vadd.f32 %v3047, %v3073
    %v3075 = vpop.f32.mrf.mxu0
    %v3076 = vadd.f32 %v3047, %v3075
    %3077 = vdwg.mxu0
    %v3078 = vld [vmem:[#allocation19] sm:$0xf]
    %v3079 = vld [vmem:[#allocation19 + $0x4] sm:$0xf]
    %v3080 = vld [vmem:[#allocation19 + $0x8] sm:$0xf]
    %v3081 = vld [vmem:[#allocation19 + $0xc] sm:$0xf]
    %v3082 = vld [vmem:[%s57] sm:$0x1]
    %v3083 = vpack.c.bf16 %v2247, %v2246
    %v3085 = vperm.slane %v3082, 0
    %v3091 = vunpack.c.l.b16 %v3078
    %v3092 = vunpack.c.l.b16 %v3079
    %v3093 = vunpack.c.l.b16 %v3080
    %v3094 = vunpack.c.l.b16 %v3081
    %v3095 = vpack.c.b16 %v3092, %v3091
    %v3096 = vpack.c.b16 %v3094, %v3093
    %v3100 = vsel %vm388, %v3083, 0
    %3102 = vmatpush.bf16.msra.mxu0 0
    %3103 = vmatpush.bf16.msra.mxu0 0
    %3104 = vmatpush.bf16.msra.mxu0 0
    %3105 = vmatpush.bf16.msra.mxu0 0
    %3106 = vmatpush.bf16.msra.mxu0 0
    %3107 = vmatpush.bf16.msra.mxu0 0
    %3108 = vmatpush.bf16.msra.mxu0 %v3096
    %3109 = vmatpush.bf16.msra.mxu0 %v3095
    %3110 = vmatmul.bf16.gmra.mxu0 %v3100
    %v3111 = vpop.f32.mrf.mxu0
    %v3112 = vadd.f32 %v3085, %v3111
    %v3113 = vpop.f32.mrf.mxu0
    %v3114 = vadd.f32 %v3085, %v3113
    %3115 = vdwg.mxu0
    %v3116 = vld [vmem:[#allocation20] sm:$0xf]
    %v3117 = vld [vmem:[#allocation20 + $0x4] sm:$0xf]
    %v3118 = vld [vmem:[#allocation20 + $0x8] sm:$0xf]
    %v3119 = vld [vmem:[#allocation20 + $0xc] sm:$0xf]
    %v3120 = vpack.c.bf16 %v3074, %v3074
    %v3121 = vpack.c.bf16 %v3112, %v3112
    %v3123 = vsel %vm502, %v3120, 0
    %v3126 = vsel %vm502, %v3121, 0
    %3128 = vmatpush.bf16.xpose.msra.mxu0 0
    %3129 = vmatpush.bf16.xpose.msra.mxu0 0
    %3130 = vmatpush.bf16.xpose.msra.mxu0 0
    %3131 = vmatpush.bf16.xpose.msra.mxu0 0
    %3132 = vmatpush.bf16.xpose.msra.mxu0 0
    %3133 = vmatpush.bf16.xpose.msra.mxu0 0
    %3134 = vmatpush.bf16.xpose.msra.mxu0 0
    %3135 = vmatpush.bf16.xpose.msra.mxu0 %v3126
    %3136 = vmatmul.bf16.gmra.mxu0 %v3123
    %v3137 = vpop.f32.mrf.mxu0
    %v3138 = vadd.f32 0.0, %v3137
    %v3139 = vpop.f32.mrf.mxu0
    %3140 = vdwg.mxu0
    %v3141 = vmul.f32 %v3138, 0.35355338
    %v3142 = vsel %vm525, %v3141, -1e+09
    %v3143 = vsel %vm502, %v3142, -inf
    %3144 = vmax.xlane.f32.xlu0 %v3143
    %v3145 = vpop.xlane.xlu0 %3144
    %v3146 = vsub.f32 %v3142, %v3145
    %v3147 = vmul.f32 %v3146, 1.442695
    %v3148 = vpow.pop %v3147
    %v3149 = vsel %vm502, %v3148, 0.0
    %3150 = vadd.xlane.f32.xlu0 %v3149
    %v3151 = vpop.xlane.xlu0 %3150
    %v3152 = vrcp.pop %v3151
    %v3153 = vmul.f32 %v3148, %v3152
    %v3154 = vpack.c.bf16 %v3153, %v3153
    %3156 = vrot.lane.b32.xlu0 %v3121, 96
    %v3157 = vpop.permute.xlu0 %3156
    %v3159 = vsel %vm502, %v3154, 0
    %v3162 = vsel %vm544, %v3157, 0
    %3164 = vmatpush.bf16.msra.mxu0 0
    %3165 = vmatpush.bf16.msra.mxu0 0
    %3166 = vmatpush.bf16.msra.mxu0 0
    %3167 = vmatpush.bf16.msra.mxu0 0
    %3168 = vmatpush.bf16.msra.mxu0 0
    %3169 = vmatpush.bf16.msra.mxu0 0
    %3170 = vmatpush.bf16.msra.mxu0 0
    %3171 = vmatpush.bf16.msra.mxu0 %v3162
    %3172 = vmatmul.bf16.gmra.mxu0 %v3159
    %v3173 = vpop.f32.mrf.mxu0
    %v3174 = vadd.f32 0.0, %v3173
    %v3175 = vpop.f32.mrf.mxu0
    %3176 = vdwg.mxu0
    %v3177 = vpack.c.bf16 %v3174, %v3174
    %3179 = vrot.lane.b32.xlu0 %v3120, 120
    %v3180 = vpop.permute.xlu0 %3179
    %3181 = vrot.lane.b32.xlu0 %v3121, 120
    %v3182 = vpop.permute.xlu0 %3181
    %v3184 = vsel %vm502, %v3180, 0
    %v3187 = vsel %vm502, %v3182, 0
    %3189 = vmatpush.bf16.xpose.msra.mxu0 0
    %3190 = vmatpush.bf16.xpose.msra.mxu0 0
    %3191 = vmatpush.bf16.xpose.msra.mxu0 0
    %3192 = vmatpush.bf16.xpose.msra.mxu0 0
    %3193 = vmatpush.bf16.xpose.msra.mxu0 0
    %3194 = vmatpush.bf16.xpose.msra.mxu0 0
    %3195 = vmatpush.bf16.xpose.msra.mxu0 0
    %3196 = vmatpush.bf16.xpose.msra.mxu0 %v3187
    %3197 = vmatmul.bf16.gmra.mxu0 %v3184
    %v3198 = vpop.f32.mrf.mxu0
    %v3199 = vadd.f32 0.0, %v3198
    %v3200 = vpop.f32.mrf.mxu0
    %3201 = vdwg.mxu0
    %v3202 = vmul.f32 %v3199, 0.35355338
    %v3203 = vsel %vm525, %v3202, -1e+09
    %v3204 = vsel %vm502, %v3203, -inf
    %3205 = vmax.xlane.f32.xlu0 %v3204
    %v3206 = vpop.xlane.xlu0 %3205
    %v3207 = vsub.f32 %v3203, %v3206
    %v3208 = vmul.f32 %v3207, 1.442695
    %v3209 = vpow.pop %v3208
    %v3210 = vsel %vm502, %v3209, 0.0
    %3211 = vadd.xlane.f32.xlu0 %v3210
    %v3212 = vpop.xlane.xlu0 %3211
    %v3213 = vrcp.pop %v3212
    %v3214 = vmul.f32 %v3209, %v3213
    %v3215 = vpack.c.bf16 %v3214, %v3214
    %3216 = vrot.lane.b32.xlu0 %v3121, 88
    %v3217 = vpop.permute.xlu0 %3216
    %v3219 = vsel %vm502, %v3215, 0
    %v3222 = vsel %vm544, %v3217, 0
    %3224 = vmatpush.bf16.msra.mxu0 0
    %3225 = vmatpush.bf16.msra.mxu0 0
    %3226 = vmatpush.bf16.msra.mxu0 0
    %3227 = vmatpush.bf16.msra.mxu0 0
    %3228 = vmatpush.bf16.msra.mxu0 0
    %3229 = vmatpush.bf16.msra.mxu0 0
    %3230 = vmatpush.bf16.msra.mxu0 0
    %3231 = vmatpush.bf16.msra.mxu0 %v3222
    %3232 = vmatmul.bf16.gmra.mxu0 %v3219
    %v3233 = vpop.f32.mrf.mxu0
    %v3234 = vadd.f32 0.0, %v3233
    %v3235 = vpop.f32.mrf.mxu0
    %3236 = vdwg.mxu0
    %v3237 = vpack.c.bf16 %v3234, %v3234
    %v3239 = vsel %vm502, %v3237, 0
    %v3242 = vsel %vm544, %v3117, 0
    %3244 = vmatpush.bf16.msra.mxu0 0
    %3245 = vmatpush.bf16.msra.mxu0 0
    %3246 = vmatpush.bf16.msra.mxu0 0
    %3247 = vmatpush.bf16.msra.mxu0 0
    %3248 = vmatpush.bf16.msra.mxu0 0
    %3249 = vmatpush.bf16.msra.mxu0 0
    %3250 = vmatpush.bf16.msra.mxu0 0
    %3251 = vmatpush.bf16.msra.mxu0 %v3242
    %3252 = vmatmul.bf16.gmra.mxu0 %v3239
    %v3253 = vpop.f32.mrf.mxu0
    %v3254 = vadd.f32 0.0, %v3253
    %v3255 = vpop.f32.mrf.mxu0
    %3256 = vdwg.mxu0
    %v3258 = vsel %vm502, %v3177, 0
    %v3261 = vsel %vm544, %v3116, 0
    %3263 = vmatpush.bf16.msra.mxu0 0
    %3264 = vmatpush.bf16.msra.mxu0 0
    %3265 = vmatpush.bf16.msra.mxu0 0
    %3266 = vmatpush.bf16.msra.mxu0 0
    %3267 = vmatpush.bf16.msra.mxu0 0
    %3268 = vmatpush.bf16.msra.mxu0 0
    %3269 = vmatpush.bf16.msra.mxu0 0
    %3270 = vmatpush.bf16.msra.mxu0 %v3261
    %3271 = vmatmul.bf16.gmra.mxu0 %v3258
    %v3272 = vpop.f32.mrf.mxu0
    %v3273 = vadd.f32 %v3254, %v3272
    %v3274 = vpop.f32.mrf.mxu0
    %3275 = vdwg.mxu0
    %3276 = vrot.lane.b32.xlu0 %v3120, 112
    %v3277 = vpop.permute.xlu0 %3276
    %3278 = vrot.lane.b32.xlu0 %v3121, 112
    %v3279 = vpop.permute.xlu0 %3278
    %v3281 = vsel %vm502, %v3277, 0
    %v3284 = vsel %vm502, %v3279, 0
    %3286 = vmatpush.bf16.xpose.msra.mxu0 0
    %3287 = vmatpush.bf16.xpose.msra.mxu0 0
    %3288 = vmatpush.bf16.xpose.msra.mxu0 0
    %3289 = vmatpush.bf16.xpose.msra.mxu0 0
    %3290 = vmatpush.bf16.xpose.msra.mxu0 0
    %3291 = vmatpush.bf16.xpose.msra.mxu0 0
    %3292 = vmatpush.bf16.xpose.msra.mxu0 0
    %3293 = vmatpush.bf16.xpose.msra.mxu0 %v3284
    %3294 = vmatmul.bf16.gmra.mxu0 %v3281
    %v3295 = vpop.f32.mrf.mxu0
    %v3296 = vadd.f32 0.0, %v3295
    %v3297 = vpop.f32.mrf.mxu0
    %3298 = vdwg.mxu0
    %v3299 = vmul.f32 %v3296, 0.35355338
    %v3300 = vsel %vm525, %v3299, -1e+09
    %v3301 = vsel %vm502, %v3300, -inf
    %3302 = vmax.xlane.f32.xlu0 %v3301
    %v3303 = vpop.xlane.xlu0 %3302
    %v3304 = vsub.f32 %v3300, %v3303
    %v3305 = vmul.f32 %v3304, 1.442695
    %v3306 = vpow.pop %v3305
    %v3307 = vsel %vm502, %v3306, 0.0
    %3308 = vadd.xlane.f32.xlu0 %v3307
    %v3309 = vpop.xlane.xlu0 %3308
    %v3310 = vrcp.pop %v3309
    %v3311 = vmul.f32 %v3306, %v3310
    %v3312 = vpack.c.bf16 %v3311, %v3311
    %3313 = vrot.lane.b32.xlu0 %v3121, 80
    %v3314 = vpop.permute.xlu0 %3313
    %v3316 = vsel %vm502, %v3312, 0
    %v3319 = vsel %vm544, %v3314, 0
    %3321 = vmatpush.bf16.msra.mxu0 0
    %3322 = vmatpush.bf16.msra.mxu0 0
    %3323 = vmatpush.bf16.msra.mxu0 0
    %3324 = vmatpush.bf16.msra.mxu0 0
    %3325 = vmatpush.bf16.msra.mxu0 0
    %3326 = vmatpush.bf16.msra.mxu0 0
    %3327 = vmatpush.bf16.msra.mxu0 0
    %3328 = vmatpush.bf16.msra.mxu0 %v3319
    %3329 = vmatmul.bf16.gmra.mxu0 %v3316
    %v3330 = vpop.f32.mrf.mxu0
    %v3331 = vadd.f32 0.0, %v3330
    %v3332 = vpop.f32.mrf.mxu0
    %3333 = vdwg.mxu0
    %v3334 = vpack.c.bf16 %v3331, %v3331
    %v3336 = vsel %vm502, %v3334, 0
    %v3339 = vsel %vm544, %v3118, 0
    %3341 = vmatpush.bf16.msra.mxu0 0
    %3342 = vmatpush.bf16.msra.mxu0 0
    %3343 = vmatpush.bf16.msra.mxu0 0
    %3344 = vmatpush.bf16.msra.mxu0 0
    %3345 = vmatpush.bf16.msra.mxu0 0
    %3346 = vmatpush.bf16.msra.mxu0 0
    %3347 = vmatpush.bf16.msra.mxu0 0
    %3348 = vmatpush.bf16.msra.mxu0 %v3339
    %3349 = vmatmul.bf16.gmra.mxu0 %v3336
    %v3350 = vpop.f32.mrf.mxu0
    %v3351 = vadd.f32 0.0, %v3350
    %v3352 = vpop.f32.mrf.mxu0
    %3353 = vdwg.mxu0
    %v3354 = vadd.f32 %v3273, %v3351
    %3355 = vrot.lane.b32.xlu0 %v3120, 104
    %v3356 = vpop.permute.xlu0 %3355
    %3357 = vrot.lane.b32.xlu0 %v3121, 104
    %v3358 = vpop.permute.xlu0 %3357
    %v3360 = vsel %vm502, %v3356, 0
    %v3363 = vsel %vm502, %v3358, 0
    %3365 = vmatpush.bf16.xpose.msra.mxu0 0
    %3366 = vmatpush.bf16.xpose.msra.mxu0 0
    %3367 = vmatpush.bf16.xpose.msra.mxu0 0
    %3368 = vmatpush.bf16.xpose.msra.mxu0 0
    %3369 = vmatpush.bf16.xpose.msra.mxu0 0
    %3370 = vmatpush.bf16.xpose.msra.mxu0 0
    %3371 = vmatpush.bf16.xpose.msra.mxu0 0
    %3372 = vmatpush.bf16.xpose.msra.mxu0 %v3363
    %3373 = vmatmul.bf16.gmra.mxu0 %v3360
    %v3374 = vpop.f32.mrf.mxu0
    %v3375 = vadd.f32 0.0, %v3374
    %v3376 = vpop.f32.mrf.mxu0
    %3377 = vdwg.mxu0
    %v3378 = vmul.f32 %v3375, 0.35355338
    %v3379 = vsel %vm525, %v3378, -1e+09
    %v3380 = vsel %vm502, %v3379, -inf
    %3381 = vmax.xlane.f32.xlu0 %v3380
    %v3382 = vpop.xlane.xlu0 %3381
    %v3383 = vsub.f32 %v3379, %v3382
    %v3384 = vmul.f32 %v3383, 1.442695
    %v3385 = vpow.pop %v3384
    %v3386 = vsel %vm502, %v3385, 0.0
    %3387 = vadd.xlane.f32.xlu0 %v3386
    %v3388 = vpop.xlane.xlu0 %3387
    %v3389 = vrcp.pop %v3388
    %v3390 = vmul.f32 %v3385, %v3389
    %v3391 = vpack.c.bf16 %v3390, %v3390
    %3392 = vrot.lane.b32.xlu0 %v3121, 72
    %v3393 = vpop.permute.xlu0 %3392
    %v3395 = vsel %vm502, %v3391, 0
    %v3398 = vsel %vm544, %v3393, 0
    %3400 = vmatpush.bf16.msra.mxu0 0
    %3401 = vmatpush.bf16.msra.mxu0 0
    %3402 = vmatpush.bf16.msra.mxu0 0
    %3403 = vmatpush.bf16.msra.mxu0 0
    %3404 = vmatpush.bf16.msra.mxu0 0
    %3405 = vmatpush.bf16.msra.mxu0 0
    %3406 = vmatpush.bf16.msra.mxu0 0
    %3407 = vmatpush.bf16.msra.mxu0 %v3398
    %3408 = vmatmul.bf16.gmra.mxu0 %v3395
    %v3409 = vpop.f32.mrf.mxu0
    %v3410 = vadd.f32 0.0, %v3409
    %v3411 = vpop.f32.mrf.mxu0
    %3412 = vdwg.mxu0
    %v3413 = vpack.c.bf16 %v3410, %v3410
    %v3415 = vsel %vm502, %v3413, 0
    %v3418 = vsel %vm544, %v3119, 0
    %3420 = vmatpush.bf16.msra.mxu0 0
    %3421 = vmatpush.bf16.msra.mxu0 0
    %3422 = vmatpush.bf16.msra.mxu0 0
    %3423 = vmatpush.bf16.msra.mxu0 0
    %3424 = vmatpush.bf16.msra.mxu0 0
    %3425 = vmatpush.bf16.msra.mxu0 0
    %3426 = vmatpush.bf16.msra.mxu0 0
    %3427 = vmatpush.bf16.msra.mxu0 %v3418
    %3428 = vmatmul.bf16.gmra.mxu0 %v3415
    %v3429 = vpop.f32.mrf.mxu0
    %v3430 = vadd.f32 0.0, %v3429
    %v3431 = vpop.f32.mrf.mxu0
    %3432 = vdwg.mxu0
    %v3433 = vadd.f32 %v3354, %v3430
    %v3434 = vpack.c.bf16 %v3076, %v3076
    %v3435 = vpack.c.bf16 %v3114, %v3114
    %v3437 = vsel %vm502, %v3434, 0
    %v3440 = vsel %vm502, %v3435, 0
    %3442 = vmatpush.bf16.xpose.msra.mxu0 0
    %3443 = vmatpush.bf16.xpose.msra.mxu0 0
    %3444 = vmatpush.bf16.xpose.msra.mxu0 0
    %3445 = vmatpush.bf16.xpose.msra.mxu0 0
    %3446 = vmatpush.bf16.xpose.msra.mxu0 0
    %3447 = vmatpush.bf16.xpose.msra.mxu0 0
    %3448 = vmatpush.bf16.xpose.msra.mxu0 0
    %3449 = vmatpush.bf16.xpose.msra.mxu0 %v3440
    %3450 = vmatmul.bf16.gmra.mxu0 %v3437
    %v3451 = vpop.f32.mrf.mxu0
    %v3452 = vadd.f32 0.0, %v3451
    %v3453 = vpop.f32.mrf.mxu0
    %3454 = vdwg.mxu0
    %v3455 = vmul.f32 %v3452, 0.35355338
    %v3456 = vsel %vm842, %v3455, -1e+09
    %v3457 = vsel %vm502, %v3456, -inf
    %3458 = vmax.xlane.f32.xlu0 %v3457
    %v3459 = vpop.xlane.xlu0 %3458
    %v3460 = vsub.f32 %v3456, %v3459
    %v3461 = vmul.f32 %v3460, 1.442695
    %v3462 = vpow.pop %v3461
    %v3463 = vsel %vm502, %v3462, 0.0
    %3464 = vadd.xlane.f32.xlu0 %v3463
    %v3465 = vpop.xlane.xlu0 %3464
    %v3466 = vrcp.pop %v3465
    %v3467 = vmul.f32 %v3462, %v3466
    %v3468 = vpack.c.bf16 %v3467, %v3467
    %3470 = vrot.lane.b32.xlu0 %v3435, 96
    %v3471 = vpop.permute.xlu0 %3470
    %v3473 = vsel %vm502, %v3468, 0
    %v3476 = vsel %vm544, %v3471, 0
    %3478 = vmatpush.bf16.msra.mxu0 0
    %3479 = vmatpush.bf16.msra.mxu0 0
    %3480 = vmatpush.bf16.msra.mxu0 0
    %3481 = vmatpush.bf16.msra.mxu0 0
    %3482 = vmatpush.bf16.msra.mxu0 0
    %3483 = vmatpush.bf16.msra.mxu0 0
    %3484 = vmatpush.bf16.msra.mxu0 0
    %3485 = vmatpush.bf16.msra.mxu0 %v3476
    %3486 = vmatmul.bf16.gmra.mxu0 %v3473
    %v3487 = vpop.f32.mrf.mxu0
    %v3488 = vadd.f32 0.0, %v3487
    %v3489 = vpop.f32.mrf.mxu0
    %3490 = vdwg.mxu0
    %v3491 = vpack.c.bf16 %v3488, %v3488
    %3493 = vrot.lane.b32.xlu0 %v3434, 120
    %v3494 = vpop.permute.xlu0 %3493
    %3495 = vrot.lane.b32.xlu0 %v3435, 120
    %v3496 = vpop.permute.xlu0 %3495
    %v3498 = vsel %vm502, %v3494, 0
    %v3501 = vsel %vm502, %v3496, 0
    %3503 = vmatpush.bf16.xpose.msra.mxu0 0
    %3504 = vmatpush.bf16.xpose.msra.mxu0 0
    %3505 = vmatpush.bf16.xpose.msra.mxu0 0
    %3506 = vmatpush.bf16.xpose.msra.mxu0 0
    %3507 = vmatpush.bf16.xpose.msra.mxu0 0
    %3508 = vmatpush.bf16.xpose.msra.mxu0 0
    %3509 = vmatpush.bf16.xpose.msra.mxu0 0
    %3510 = vmatpush.bf16.xpose.msra.mxu0 %v3501
    %3511 = vmatmul.bf16.gmra.mxu0 %v3498
    %v3512 = vpop.f32.mrf.mxu0
    %v3513 = vadd.f32 0.0, %v3512
    %v3514 = vpop.f32.mrf.mxu0
    %3515 = vdwg.mxu0
    %v3516 = vmul.f32 %v3513, 0.35355338
    %v3517 = vsel %vm842, %v3516, -1e+09
    %v3518 = vsel %vm502, %v3517, -inf
    %3519 = vmax.xlane.f32.xlu0 %v3518
    %v3520 = vpop.xlane.xlu0 %3519
    %v3521 = vsub.f32 %v3517, %v3520
    %v3522 = vmul.f32 %v3521, 1.442695
    %v3523 = vpow.pop %v3522
    %v3524 = vsel %vm502, %v3523, 0.0
    %3525 = vadd.xlane.f32.xlu0 %v3524
    %v3526 = vpop.xlane.xlu0 %3525
    %v3527 = vrcp.pop %v3526
    %v3528 = vmul.f32 %v3523, %v3527
    %v3529 = vpack.c.bf16 %v3528, %v3528
    %3530 = vrot.lane.b32.xlu0 %v3435, 88
    %v3531 = vpop.permute.xlu0 %3530
    %v3533 = vsel %vm502, %v3529, 0
    %v3536 = vsel %vm544, %v3531, 0
    %3538 = vmatpush.bf16.msra.mxu0 0
    %3539 = vmatpush.bf16.msra.mxu0 0
    %3540 = vmatpush.bf16.msra.mxu0 0
    %3541 = vmatpush.bf16.msra.mxu0 0
    %3542 = vmatpush.bf16.msra.mxu0 0
    %3543 = vmatpush.bf16.msra.mxu0 0
    %3544 = vmatpush.bf16.msra.mxu0 0
    %3545 = vmatpush.bf16.msra.mxu0 %v3536
    %3546 = vmatmul.bf16.gmra.mxu0 %v3533
    %v3547 = vpop.f32.mrf.mxu0
    %v3548 = vadd.f32 0.0, %v3547
    %v3549 = vpop.f32.mrf.mxu0
    %3550 = vdwg.mxu0
    %v3551 = vpack.c.bf16 %v3548, %v3548
    %v3553 = vsel %vm502, %v3551, 0
    %3555 = vmatpush.bf16.msra.mxu0 0
    %3556 = vmatpush.bf16.msra.mxu0 0
    %3557 = vmatpush.bf16.msra.mxu0 0
    %3558 = vmatpush.bf16.msra.mxu0 0
    %3559 = vmatpush.bf16.msra.mxu0 0
    %3560 = vmatpush.bf16.msra.mxu0 0
    %3561 = vmatpush.bf16.msra.mxu0 0
    %3562 = vmatpush.bf16.msra.mxu0 %v3242
    %3563 = vmatmul.bf16.gmra.mxu0 %v3553
    %v3564 = vpop.f32.mrf.mxu0
    %v3565 = vadd.f32 0.0, %v3564
    %v3566 = vpop.f32.mrf.mxu0
    %3567 = vdwg.mxu0
    %v3569 = vsel %vm502, %v3491, 0
    %3571 = vmatpush.bf16.msra.mxu0 0
    %3572 = vmatpush.bf16.msra.mxu0 0
    %3573 = vmatpush.bf16.msra.mxu0 0
    %3574 = vmatpush.bf16.msra.mxu0 0
    %3575 = vmatpush.bf16.msra.mxu0 0
    %3576 = vmatpush.bf16.msra.mxu0 0
    %3577 = vmatpush.bf16.msra.mxu0 0
    %3578 = vmatpush.bf16.msra.mxu0 %v3261
    %3579 = vmatmul.bf16.gmra.mxu0 %v3569
    %v3580 = vpop.f32.mrf.mxu0
    %v3581 = vadd.f32 %v3565, %v3580
    %v3582 = vpop.f32.mrf.mxu0
    %3583 = vdwg.mxu0
    %3584 = vrot.lane.b32.xlu0 %v3434, 112
    %v3585 = vpop.permute.xlu0 %3584
    %3586 = vrot.lane.b32.xlu0 %v3435, 112
    %v3587 = vpop.permute.xlu0 %3586
    %v3589 = vsel %vm502, %v3585, 0
    %v3592 = vsel %vm502, %v3587, 0
    %3594 = vmatpush.bf16.xpose.msra.mxu0 0
    %3595 = vmatpush.bf16.xpose.msra.mxu0 0
    %3596 = vmatpush.bf16.xpose.msra.mxu0 0
    %3597 = vmatpush.bf16.xpose.msra.mxu0 0
    %3598 = vmatpush.bf16.xpose.msra.mxu0 0
    %3599 = vmatpush.bf16.xpose.msra.mxu0 0
    %3600 = vmatpush.bf16.xpose.msra.mxu0 0
    %3601 = vmatpush.bf16.xpose.msra.mxu0 %v3592
    %3602 = vmatmul.bf16.gmra.mxu0 %v3589
    %v3603 = vpop.f32.mrf.mxu0
    %v3604 = vadd.f32 0.0, %v3603
    %v3605 = vpop.f32.mrf.mxu0
    %3606 = vdwg.mxu0
    %v3607 = vmul.f32 %v3604, 0.35355338
    %v3608 = vsel %vm842, %v3607, -1e+09
    %v3609 = vsel %vm502, %v3608, -inf
    %3610 = vmax.xlane.f32.xlu0 %v3609
    %v3611 = vpop.xlane.xlu0 %3610
    %v3612 = vsub.f32 %v3608, %v3611
    %v3613 = vmul.f32 %v3612, 1.442695
    %v3614 = vpow.pop %v3613
    %v3615 = vsel %vm502, %v3614, 0.0
    %3616 = vadd.xlane.f32.xlu0 %v3615
    %v3617 = vpop.xlane.xlu0 %3616
    %v3618 = vrcp.pop %v3617
    %v3619 = vmul.f32 %v3614, %v3618
    %v3620 = vpack.c.bf16 %v3619, %v3619
    %3621 = vrot.lane.b32.xlu0 %v3435, 80
    %v3622 = vpop.permute.xlu0 %3621
    %v3624 = vsel %vm502, %v3620, 0
    %v3627 = vsel %vm544, %v3622, 0
    %3629 = vmatpush.bf16.msra.mxu0 0
    %3630 = vmatpush.bf16.msra.mxu0 0
    %3631 = vmatpush.bf16.msra.mxu0 0
    %3632 = vmatpush.bf16.msra.mxu0 0
    %3633 = vmatpush.bf16.msra.mxu0 0
    %3634 = vmatpush.bf16.msra.mxu0 0
    %3635 = vmatpush.bf16.msra.mxu0 0
    %3636 = vmatpush.bf16.msra.mxu0 %v3627
    %3637 = vmatmul.bf16.gmra.mxu0 %v3624
    %v3638 = vpop.f32.mrf.mxu0
    %v3639 = vadd.f32 0.0, %v3638
    %v3640 = vpop.f32.mrf.mxu0
    %3641 = vdwg.mxu0
    %v3642 = vpack.c.bf16 %v3639, %v3639
    %v3644 = vsel %vm502, %v3642, 0
    %3646 = vmatpush.bf16.msra.mxu0 0
    %3647 = vmatpush.bf16.msra.mxu0 0
    %3648 = vmatpush.bf16.msra.mxu0 0
    %3649 = vmatpush.bf16.msra.mxu0 0
    %3650 = vmatpush.bf16.msra.mxu0 0
    %3651 = vmatpush.bf16.msra.mxu0 0
    %3652 = vmatpush.bf16.msra.mxu0 0
    %3653 = vmatpush.bf16.msra.mxu0 %v3339
    %3654 = vmatmul.bf16.gmra.mxu0 %v3644
    %v3655 = vpop.f32.mrf.mxu0
    %v3656 = vadd.f32 0.0, %v3655
    %v3657 = vpop.f32.mrf.mxu0
    %3658 = vdwg.mxu0
    %v3659 = vadd.f32 %v3581, %v3656
    %3660 = vrot.lane.b32.xlu0 %v3434, 104
    %v3661 = vpop.permute.xlu0 %3660
    %3662 = vrot.lane.b32.xlu0 %v3435, 104
    %v3663 = vpop.permute.xlu0 %3662
    %v3665 = vsel %vm502, %v3661, 0
    %v3668 = vsel %vm502, %v3663, 0
    %3670 = vmatpush.bf16.xpose.msra.mxu0 0
    %3671 = vmatpush.bf16.xpose.msra.mxu0 0
    %3672 = vmatpush.bf16.xpose.msra.mxu0 0
    %3673 = vmatpush.bf16.xpose.msra.mxu0 0
    %3674 = vmatpush.bf16.xpose.msra.mxu0 0
    %3675 = vmatpush.bf16.xpose.msra.mxu0 0
    %3676 = vmatpush.bf16.xpose.msra.mxu0 0
    %3677 = vmatpush.bf16.xpose.msra.mxu0 %v3668
    %3678 = vmatmul.bf16.gmra.mxu0 %v3665
    %v3679 = vpop.f32.mrf.mxu0
    %v3680 = vadd.f32 0.0, %v3679
    %v3681 = vpop.f32.mrf.mxu0
    %3682 = vdwg.mxu0
    %v3683 = vmul.f32 %v3680, 0.35355338
    %v3684 = vsel %vm842, %v3683, -1e+09
    %v3685 = vsel %vm502, %v3684, -inf
    %3686 = vmax.xlane.f32.xlu0 %v3685
    %v3687 = vpop.xlane.xlu0 %3686
    %v3688 = vsub.f32 %v3684, %v3687
    %v3689 = vmul.f32 %v3688, 1.442695
    %v3690 = vpow.pop %v3689
    %v3691 = vsel %vm502, %v3690, 0.0
    %3692 = vadd.xlane.f32.xlu0 %v3691
    %v3693 = vpop.xlane.xlu0 %3692
    %v3694 = vrcp.pop %v3693
    %v3695 = vmul.f32 %v3690, %v3694
    %v3696 = vpack.c.bf16 %v3695, %v3695
    %3697 = vrot.lane.b32.xlu0 %v3435, 72
    %v3698 = vpop.permute.xlu0 %3697
    %v3700 = vsel %vm502, %v3696, 0
    %v3703 = vsel %vm544, %v3698, 0
    %3705 = vmatpush.bf16.msra.mxu0 0
    %3706 = vmatpush.bf16.msra.mxu0 0
    %3707 = vmatpush.bf16.msra.mxu0 0
    %3708 = vmatpush.bf16.msra.mxu0 0
    %3709 = vmatpush.bf16.msra.mxu0 0
    %3710 = vmatpush.bf16.msra.mxu0 0
    %3711 = vmatpush.bf16.msra.mxu0 0
    %3712 = vmatpush.bf16.msra.mxu0 %v3703
    %3713 = vmatmul.bf16.gmra.mxu0 %v3700
    %v3714 = vpop.f32.mrf.mxu0
    %v3715 = vadd.f32 0.0, %v3714
    %v3716 = vpop.f32.mrf.mxu0
    %3717 = vdwg.mxu0
    %v3718 = vpack.c.bf16 %v3715, %v3715
    %v3720 = vsel %vm502, %v3718, 0
    %3722 = vmatpush.bf16.msra.mxu0 0
    %3723 = vmatpush.bf16.msra.mxu0 0
    %3724 = vmatpush.bf16.msra.mxu0 0
    %3725 = vmatpush.bf16.msra.mxu0 0
    %3726 = vmatpush.bf16.msra.mxu0 0
    %3727 = vmatpush.bf16.msra.mxu0 0
    %3728 = vmatpush.bf16.msra.mxu0 0
    %3729 = vmatpush.bf16.msra.mxu0 %v3418
    %3730 = vmatmul.bf16.gmra.mxu0 %v3720
    %v3731 = vpop.f32.mrf.mxu0
    %v3732 = vadd.f32 0.0, %v3731
    %v3733 = vpop.f32.mrf.mxu0
    %3734 = vdwg.mxu0
    %v3735 = vadd.f32 %v3659, %v3732
    %v3736 = vadd.f32 %v2976, %v3433
    %v3737 = vadd.f32 %v2977, %v3735
    %v3738 = vld [vmem:[%s61] sm:$0x1]
    %v3740 = vperm.slane %v3738, 0
    %v3742 = vadd.f32 %v3736, %v3740
    %v3743 = vadd.f32 %v3737, %v3740
    %v3744 = vld [vmem:[%s63] sm:$0x1]
    %v3745 = vld [vmem:[#allocation22] sm:$0x1]
    %v3746 = vsel %vm388, %v3742, 0.0
    %3747 = vadd.xlane.f32.xlu0 %v3746
    %v3748 = vpop.xlane.xlu0 %3747
    %v3749 = vsel %vm388, %v3743, 0.0
    %3750 = vadd.xlane.f32.xlu0 %v3749
    %v3751 = vpop.xlane.xlu0 %3750
    %v3752 = vmul.f32 %v3748, %v401
    %v3753 = vmul.f32 %v3751, %v401
    %v3754 = vsub.f32 %v3742, %v3752
    %v3755 = vsub.f32 %v3743, %v3753
    %v3756 = vmul.f32 %v3754, %v3754
    %v3757 = vmul.f32 %v3755, %v3755
    %v3758 = vsel %vm388, %v3756, 0.0
    %3759 = vadd.xlane.f32.xlu0 %v3758
    %v3760 = vpop.xlane.xlu0 %3759
    %v3761 = vsel %vm388, %v3757, 0.0
    %3762 = vadd.xlane.f32.xlu0 %v3761
    %v3763 = vpop.xlane.xlu0 %3762
    %v3764 = vmul.f32 %v3760, 0.032258064
    %v3765 = vmul.f32 %v3763, 0.032258064
    %v3766 = vrsqrt.pop %v3764
    %v3767 = vmul.f32 %v3766, %v3764
    %v3768 = vmul.f32 %v3767, %v3766
    %v3769 = vmul.f32 0.5, %v3768
    %v3770 = vsub.f32 1.5, %v3769
    %v3771 = vmul.f32 %v3766, %v3770
    %v3772 = vmul.f32 %v3764, %v3771
    %vm3773 = vcmp.eq.f32.partialorder %v3764, inf
    %v3774 = vsel %vm3773, %v3764, %v3772
    %vm3775 = vcmp.eq.f32.partialorder %v3764, 0.0
    %v3776 = vand.u32 %v3764, 2147483648
    %v3777 = vsel %vm3775, %v3776, %v3774
    %v3778 = vrsqrt.pop %v3765
    %v3779 = vmul.f32 %v3778, %v3765
    %v3780 = vmul.f32 %v3779, %v3778
    %v3781 = vmul.f32 0.5, %v3780
    %v3782 = vsub.f32 1.5, %v3781
    %v3783 = vmul.f32 %v3778, %v3782
    %v3784 = vmul.f32 %v3765, %v3783
    %vm3785 = vcmp.eq.f32.partialorder %v3765, inf
    %v3786 = vsel %vm3785, %v3765, %v3784
    %vm3787 = vcmp.eq.f32.partialorder %v3765, 0.0
    %v3788 = vand.u32 %v3765, 2147483648
    %v3789 = vsel %vm3787, %v3788, %v3786
    %v3790 = vadd.f32 %v3777, 1e-06
    %v3791 = vadd.f32 %v3789, 1e-06
    %v3792 = vrcp.pop %v3790
    %v3793 = vrcp.pop %v3791
    %v3794 = vmul.f32 %v3754, %v3792
    %v3795 = vmul.f32 %v3755, %v3793
    %v3797 = vperm.slane %v3744, 0
    %v3799 = vmul.f32 %v3797, %v3794
    %v3800 = vmul.f32 %v3797, %v3795
    %v3802 = vperm.slane %v3745, 0
    %v3804 = vadd.f32 %v3799, %v3802
    %v3805 = vadd.f32 %v3800, %v3802
    %v3806 = vld [vmem:[#allocation23] sm:$0xf]
    %v3807 = vld [vmem:[#allocation23 + $0x4] sm:$0xf]
    %v3808 = vld [vmem:[#allocation23 + $0x8] sm:$0xf]
    %v3809 = vld [vmem:[#allocation23 + $0xc] sm:$0xf]
    %v3810 = vld [vmem:[%s69] sm:$0x1]
    %v3811 = vpack.c.bf16 %v3805, %v3804
    %v3813 = vperm.slane %v3810, 0
    %v3819 = vunpack.c.l.b16 %v3806
    %v3820 = vunpack.c.l.b16 %v3807
    %v3821 = vunpack.c.l.b16 %v3808
    %v3822 = vunpack.c.l.b16 %v3809
    %v3823 = vpack.c.b16 %v3820, %v3819
    %v3824 = vpack.c.b16 %v3822, %v3821
    %v3828 = vsel %vm388, %v3811, 0
    %3830 = vmatpush.bf16.msra.mxu0 0
    %3831 = vmatpush.bf16.msra.mxu0 0
    %3832 = vmatpush.bf16.msra.mxu0 0
    %3833 = vmatpush.bf16.msra.mxu0 0
    %3834 = vmatpush.bf16.msra.mxu0 0
    %3835 = vmatpush.bf16.msra.mxu0 0
    %3836 = vmatpush.bf16.msra.mxu0 %v3824
    %3837 = vmatpush.bf16.msra.mxu0 %v3823
    %3838 = vmatmul.bf16.gmra.mxu0 %v3828
    %v3839 = vpop.f32.mrf.mxu0
    %v3840 = vadd.f32 %v3813, %v3839
    %v3841 = vpop.f32.mrf.mxu0
    %v3842 = vadd.f32 %v3813, %v3841
    %3843 = vdwg.mxu0
    %v3844 = vmax.f32 %v3840, 0.0
    %v3845 = vmax.f32 %v3842, 0.0
    %v3846 = vld [vmem:[%s71] sm:$0xf]
    %v3847 = vld [vmem:[%s71 + $0x4] sm:$0xf]
    %v3848 = vld [vmem:[%s71 + $0x8] sm:$0xf]
    %v3849 = vld [vmem:[%s71 + $0xc] sm:$0xf]
    %v3850 = vld [vmem:[%s71 + $0x10] sm:$0xf]
    %v3851 = vld [vmem:[%s71 + $0x14] sm:$0xf]
    %v3852 = vld [vmem:[%s71 + $0x18] sm:$0xf]
    %v3853 = vld [vmem:[%s71 + $0x1c] sm:$0xf]
    %v3854 = vld [vmem:[%s73] sm:$0x1]
    %v3855 = vpack.c.bf16 %v3845, %v3844
    %v3857 = vperm.slane %v3854, 0
    %v3867 = vunpack.c.l.b16 %v3846
    %v3868 = vunpack.c.l.b16 %v3847
    %v3869 = vunpack.c.l.b16 %v3848
    %v3870 = vunpack.c.l.b16 %v3849
    %v3871 = vunpack.c.l.b16 %v3850
    %v3872 = vunpack.c.l.b16 %v3851
    %v3873 = vunpack.c.l.b16 %v3852
    %v3874 = vunpack.c.l.b16 %v3853
    %v3875 = vpack.c.b16 %v3868, %v3867
    %v3876 = vpack.c.b16 %v3870, %v3869
    %v3877 = vpack.c.b16 %v3872, %v3871
    %v3878 = vpack.c.b16 %v3874, %v3873
    %v3884 = vsel %vm1268, %v3855, 0
    %3886 = vmatpush.bf16.msra.mxu0 0
    %3887 = vmatpush.bf16.msra.mxu0 0
    %3888 = vmatpush.bf16.msra.mxu0 0
    %3889 = vmatpush.bf16.msra.mxu0 0
    %3890 = vmatpush.bf16.msra.mxu0 %v3878
    %3891 = vmatpush.bf16.msra.mxu0 %v3877
    %3892 = vmatpush.bf16.msra.mxu0 %v3876
    %3893 = vmatpush.bf16.msra.mxu0 %v3875
    %3894 = vmatmul.bf16.gmra.mxu0 %v3884
    %v3895 = vpop.f32.mrf.mxu0
    %v3896 = vadd.f32 %v3857, %v3895
    %v3897 = vpop.f32.mrf.mxu0
    %v3898 = vadd.f32 %v3857, %v3897
    %3899 = vdwg.mxu0
    %v3900 = vadd.f32 %v3742, %v3896
    %v3901 = vadd.f32 %v3743, %v3898
    %s3902 = scalar_lea.vmem %s35, 1
    %v3903 = vld [vmem:[%s3902] sm:$0x1]
    %s3904 = scalar_lea.vmem %s37, 1
    %v3905 = vld [vmem:[%s3904] sm:$0x1]
    %v3906 = vsel %vm388, %v3900, 0.0
    %3907 = vadd.xlane.f32.xlu0 %v3906
    %v3908 = vpop.xlane.xlu0 %3907
    %v3909 = vsel %vm388, %v3901, 0.0
    %3910 = vadd.xlane.f32.xlu0 %v3909
    %v3911 = vpop.xlane.xlu0 %3910
    %v3912 = vmul.f32 %v3908, %v401
    %v3913 = vmul.f32 %v3911, %v401
    %v3914 = vsub.f32 %v3900, %v3912
    %v3915 = vsub.f32 %v3901, %v3913
    %v3916 = vmul.f32 %v3914, %v3914
    %v3917 = vmul.f32 %v3915, %v3915
    %v3918 = vsel %vm388, %v3916, 0.0
    %3919 = vadd.xlane.f32.xlu0 %v3918
    %v3920 = vpop.xlane.xlu0 %3919
    %v3921 = vsel %vm388, %v3917, 0.0
    %3922 = vadd.xlane.f32.xlu0 %v3921
    %v3923 = vpop.xlane.xlu0 %3922
    %v3924 = vmul.f32 %v3920, 0.032258064
    %v3925 = vmul.f32 %v3923, 0.032258064
    %v3926 = vrsqrt.pop %v3924
    %v3927 = vmul.f32 %v3926, %v3924
    %v3928 = vmul.f32 %v3927, %v3926
    %v3929 = vmul.f32 0.5, %v3928
    %v3930 = vsub.f32 1.5, %v3929
    %v3931 = vmul.f32 %v3926, %v3930
    %v3932 = vmul.f32 %v3924, %v3931
    %vm3933 = vcmp.eq.f32.partialorder %v3924, inf
    %v3934 = vsel %vm3933, %v3924, %v3932
    %vm3935 = vcmp.eq.f32.partialorder %v3924, 0.0
    %v3936 = vand.u32 %v3924, 2147483648
    %v3937 = vsel %vm3935, %v3936, %v3934
    %v3938 = vrsqrt.pop %v3925
    %v3939 = vmul.f32 %v3938, %v3925
    %v3940 = vmul.f32 %v3939, %v3938
    %v3941 = vmul.f32 0.5, %v3940
    %v3942 = vsub.f32 1.5, %v3941
    %v3943 = vmul.f32 %v3938, %v3942
    %v3944 = vmul.f32 %v3925, %v3943
    %vm3945 = vcmp.eq.f32.partialorder %v3925, inf
    %v3946 = vsel %vm3945, %v3925, %v3944
    %vm3947 = vcmp.eq.f32.partialorder %v3925, 0.0
    %v3948 = vand.u32 %v3925, 2147483648
    %v3949 = vsel %vm3947, %v3948, %v3946
    %v3950 = vadd.f32 %v3937, 1e-06
    %v3951 = vadd.f32 %v3949, 1e-06
    %v3952 = vrcp.pop %v3950
    %v3953 = vrcp.pop %v3951
    %v3954 = vmul.f32 %v3914, %v3952
    %v3955 = vmul.f32 %v3915, %v3953
    %v3957 = vperm.slane %v3903, 0
    %v3959 = vmul.f32 %v3957, %v3954
    %v3960 = vmul.f32 %v3957, %v3955
    %v3962 = vperm.slane %v3905, 0
    %v3964 = vadd.f32 %v3959, %v3962
    %v3965 = vadd.f32 %v3960, %v3962
    %s3966 = scalar_lea.vmem %s39, 16
    %v3967 = vld [vmem:[%s3966] sm:$0xf]
    %v3968 = vld [vmem:[%s3966 + $0x4] sm:$0xf]
    %v3969 = vld [vmem:[%s3966 + $0x8] sm:$0xf]
    %v3970 = vld [vmem:[%s3966 + $0xc] sm:$0xf]
    %s3971 = scalar_lea.vmem %s41, 1
    %v3972 = vld [vmem:[%s3971] sm:$0x1]
    %v3973 = vpack.c.bf16 %v3965, %v3964
    %v3975 = vperm.slane %v3972, 0
    %v3981 = vunpack.c.l.b16 %v3967
    %v3982 = vunpack.c.l.b16 %v3968
    %v3983 = vunpack.c.l.b16 %v3969
    %v3984 = vunpack.c.l.b16 %v3970
    %v3985 = vpack.c.b16 %v3982, %v3981
    %v3986 = vpack.c.b16 %v3984, %v3983
    %v3990 = vsel %vm388, %v3973, 0
    %3992 = vmatpush.bf16.msra.mxu0 0
    %3993 = vmatpush.bf16.msra.mxu0 0
    %3994 = vmatpush.bf16.msra.mxu0 0
    %3995 = vmatpush.bf16.msra.mxu0 0
    %3996 = vmatpush.bf16.msra.mxu0 0
    %3997 = vmatpush.bf16.msra.mxu0 0
    %3998 = vmatpush.bf16.msra.mxu0 %v3986
    %3999 = vmatpush.bf16.msra.mxu0 %v3985
    %4000 = vmatmul.bf16.gmra.mxu0 %v3990
    %v4001 = vpop.f32.mrf.mxu0
    %v4002 = vadd.f32 %v3975, %v4001
    %v4003 = vpop.f32.mrf.mxu0
    %v4004 = vadd.f32 %v3975, %v4003
    %4005 = vdwg.mxu0
    %s4006 = scalar_lea.vmem %s43, 16
    %v4007 = vld [vmem:[%s4006] sm:$0xf]
    %v4008 = vld [vmem:[%s4006 + $0x4] sm:$0xf]
    %v4009 = vld [vmem:[%s4006 + $0x8] sm:$0xf]
    %v4010 = vld [vmem:[%s4006 + $0xc] sm:$0xf]
    %v4011 = vpack.c.bf16 %v4002, %v4002
    %4013 = vrot.lane.b32.xlu0 %v4011, 96
    %v4014 = vpop.permute.xlu0 %4013
    %v4016 = vsel %vm502, %v4011, 0
    %v4019 = vsel %vm502, %v4014, 0
    %4021 = vmatpush.bf16.xpose.msra.mxu0 0
    %4022 = vmatpush.bf16.xpose.msra.mxu0 0
    %4023 = vmatpush.bf16.xpose.msra.mxu0 0
    %4024 = vmatpush.bf16.xpose.msra.mxu0 0
    %4025 = vmatpush.bf16.xpose.msra.mxu0 0
    %4026 = vmatpush.bf16.xpose.msra.mxu0 0
    %4027 = vmatpush.bf16.xpose.msra.mxu0 0
    %4028 = vmatpush.bf16.xpose.msra.mxu0 %v4019
    %4029 = vmatmul.bf16.gmra.mxu0 %v4016
    %v4030 = vpop.f32.mrf.mxu0
    %v4031 = vadd.f32 0.0, %v4030
    %v4032 = vpop.f32.mrf.mxu0
    %4033 = vdwg.mxu0
    %v4034 = vmul.f32 %v4031, 0.35355338
    %v4035 = vsel %vm383, %v4034, -1e+09
    %v4036 = vsel %vm502, %v4035, -inf
    %4037 = vmax.xlane.f32.xlu0 %v4036
    %v4038 = vpop.xlane.xlu0 %4037
    %v4039 = vsub.f32 %v4035, %v4038
    %v4040 = vmul.f32 %v4039, 1.442695
    %v4041 = vpow.pop %v4040
    %v4042 = vsel %vm502, %v4041, 0.0
    %4043 = vadd.xlane.f32.xlu0 %v4042
    %v4044 = vpop.xlane.xlu0 %4043
    %v4045 = vrcp.pop %v4044
    %v4046 = vmul.f32 %v4041, %v4045
    %v4047 = vpack.c.bf16 %v4046, %v4046
    %4048 = vrot.lane.b32.xlu0 %v4011, 64
    %v4049 = vpop.permute.xlu0 %4048
    %v4051 = vsel %vm502, %v4047, 0
    %v4054 = vsel %vm544, %v4049, 0
    %4056 = vmatpush.bf16.msra.mxu0 0
    %4057 = vmatpush.bf16.msra.mxu0 0
    %4058 = vmatpush.bf16.msra.mxu0 0
    %4059 = vmatpush.bf16.msra.mxu0 0
    %4060 = vmatpush.bf16.msra.mxu0 0
    %4061 = vmatpush.bf16.msra.mxu0 0
    %4062 = vmatpush.bf16.msra.mxu0 0
    %4063 = vmatpush.bf16.msra.mxu0 %v4054
    %4064 = vmatmul.bf16.gmra.mxu0 %v4051
    %v4065 = vpop.f32.mrf.mxu0
    %v4066 = vadd.f32 0.0, %v4065
    %v4067 = vpop.f32.mrf.mxu0
    %4068 = vdwg.mxu0
    %v4069 = vpack.c.bf16 %v4066, %v4066
    %4070 = vrot.lane.b32.xlu0 %v4011, 120
    %v4071 = vpop.permute.xlu0 %4070
    %4072 = vrot.lane.b32.xlu0 %v4011, 88
    %v4073 = vpop.permute.xlu0 %4072
    %v4075 = vsel %vm502, %v4071, 0
    %v4078 = vsel %vm502, %v4073, 0
    %4080 = vmatpush.bf16.xpose.msra.mxu0 0
    %4081 = vmatpush.bf16.xpose.msra.mxu0 0
    %4082 = vmatpush.bf16.xpose.msra.mxu0 0
    %4083 = vmatpush.bf16.xpose.msra.mxu0 0
    %4084 = vmatpush.bf16.xpose.msra.mxu0 0
    %4085 = vmatpush.bf16.xpose.msra.mxu0 0
    %4086 = vmatpush.bf16.xpose.msra.mxu0 0
    %4087 = vmatpush.bf16.xpose.msra.mxu0 %v4078
    %4088 = vmatmul.bf16.gmra.mxu0 %v4075
    %v4089 = vpop.f32.mrf.mxu0
    %v4090 = vadd.f32 0.0, %v4089
    %v4091 = vpop.f32.mrf.mxu0
    %4092 = vdwg.mxu0
    %v4093 = vmul.f32 %v4090, 0.35355338
    %v4094 = vsel %vm383, %v4093, -1e+09
    %v4095 = vsel %vm502, %v4094, -inf
    %4096 = vmax.xlane.f32.xlu0 %v4095
    %v4097 = vpop.xlane.xlu0 %4096
    %v4098 = vsub.f32 %v4094, %v4097
    %v4099 = vmul.f32 %v4098, 1.442695
    %v4100 = vpow.pop %v4099
    %v4101 = vsel %vm502, %v4100, 0.0
    %4102 = vadd.xlane.f32.xlu0 %v4101
    %v4103 = vpop.xlane.xlu0 %4102
    %v4104 = vrcp.pop %v4103
    %v4105 = vmul.f32 %v4100, %v4104
    %v4106 = vpack.c.bf16 %v4105, %v4105
    %4107 = vrot.lane.b32.xlu0 %v4011, 56
    %v4108 = vpop.permute.xlu0 %4107
    %v4110 = vsel %vm502, %v4106, 0
    %v4113 = vsel %vm544, %v4108, 0
    %4115 = vmatpush.bf16.msra.mxu0 0
    %4116 = vmatpush.bf16.msra.mxu0 0
    %4117 = vmatpush.bf16.msra.mxu0 0
    %4118 = vmatpush.bf16.msra.mxu0 0
    %4119 = vmatpush.bf16.msra.mxu0 0
    %4120 = vmatpush.bf16.msra.mxu0 0
    %4121 = vmatpush.bf16.msra.mxu0 0
    %4122 = vmatpush.bf16.msra.mxu0 %v4113
    %4123 = vmatmul.bf16.gmra.mxu0 %v4110
    %v4124 = vpop.f32.mrf.mxu0
    %v4125 = vadd.f32 0.0, %v4124
    %v4126 = vpop.f32.mrf.mxu0
    %4127 = vdwg.mxu0
    %v4128 = vpack.c.bf16 %v4125, %v4125
    %v4130 = vsel %vm502, %v4128, 0
    %v4133 = vsel %vm544, %v4008, 0
    %4135 = vmatpush.bf16.msra.mxu0 0
    %4136 = vmatpush.bf16.msra.mxu0 0
    %4137 = vmatpush.bf16.msra.mxu0 0
    %4138 = vmatpush.bf16.msra.mxu0 0
    %4139 = vmatpush.bf16.msra.mxu0 0
    %4140 = vmatpush.bf16.msra.mxu0 0
    %4141 = vmatpush.bf16.msra.mxu0 0
    %4142 = vmatpush.bf16.msra.mxu0 %v4133
    %4143 = vmatmul.bf16.gmra.mxu0 %v4130
    %v4144 = vpop.f32.mrf.mxu0
    %v4145 = vadd.f32 0.0, %v4144
    %v4146 = vpop.f32.mrf.mxu0
    %4147 = vdwg.mxu0
    %v4149 = vsel %vm502, %v4069, 0
    %v4152 = vsel %vm544, %v4007, 0
    %4154 = vmatpush.bf16.msra.mxu0 0
    %4155 = vmatpush.bf16.msra.mxu0 0
    %4156 = vmatpush.bf16.msra.mxu0 0
    %4157 = vmatpush.bf16.msra.mxu0 0
    %4158 = vmatpush.bf16.msra.mxu0 0
    %4159 = vmatpush.bf16.msra.mxu0 0
    %4160 = vmatpush.bf16.msra.mxu0 0
    %4161 = vmatpush.bf16.msra.mxu0 %v4152
    %4162 = vmatmul.bf16.gmra.mxu0 %v4149
    %v4163 = vpop.f32.mrf.mxu0
    %v4164 = vadd.f32 %v4145, %v4163
    %v4165 = vpop.f32.mrf.mxu0
    %4166 = vdwg.mxu0
    %4167 = vrot.lane.b32.xlu0 %v4011, 112
    %v4168 = vpop.permute.xlu0 %4167
    %4169 = vrot.lane.b32.xlu0 %v4011, 80
    %v4170 = vpop.permute.xlu0 %4169
    %v4172 = vsel %vm502, %v4168, 0
    %v4175 = vsel %vm502, %v4170, 0
    %4177 = vmatpush.bf16.xpose.msra.mxu0 0
    %4178 = vmatpush.bf16.xpose.msra.mxu0 0
    %4179 = vmatpush.bf16.xpose.msra.mxu0 0
    %4180 = vmatpush.bf16.xpose.msra.mxu0 0
    %4181 = vmatpush.bf16.xpose.msra.mxu0 0
    %4182 = vmatpush.bf16.xpose.msra.mxu0 0
    %4183 = vmatpush.bf16.xpose.msra.mxu0 0
    %4184 = vmatpush.bf16.xpose.msra.mxu0 %v4175
    %4185 = vmatmul.bf16.gmra.mxu0 %v4172
    %v4186 = vpop.f32.mrf.mxu0
    %v4187 = vadd.f32 0.0, %v4186
    %v4188 = vpop.f32.mrf.mxu0
    %4189 = vdwg.mxu0
    %v4190 = vmul.f32 %v4187, 0.35355338
    %v4191 = vsel %vm383, %v4190, -1e+09
    %v4192 = vsel %vm502, %v4191, -inf
    %4193 = vmax.xlane.f32.xlu0 %v4192
    %v4194 = vpop.xlane.xlu0 %4193
    %v4195 = vsub.f32 %v4191, %v4194
    %v4196 = vmul.f32 %v4195, 1.442695
    %v4197 = vpow.pop %v4196
    %v4198 = vsel %vm502, %v4197, 0.0
    %4199 = vadd.xlane.f32.xlu0 %v4198
    %v4200 = vpop.xlane.xlu0 %4199
    %v4201 = vrcp.pop %v4200
    %v4202 = vmul.f32 %v4197, %v4201
    %v4203 = vpack.c.bf16 %v4202, %v4202
    %4204 = vrot.lane.b32.xlu0 %v4011, 48
    %v4205 = vpop.permute.xlu0 %4204
    %v4207 = vsel %vm502, %v4203, 0
    %v4210 = vsel %vm544, %v4205, 0
    %4212 = vmatpush.bf16.msra.mxu0 0
    %4213 = vmatpush.bf16.msra.mxu0 0
    %4214 = vmatpush.bf16.msra.mxu0 0
    %4215 = vmatpush.bf16.msra.mxu0 0
    %4216 = vmatpush.bf16.msra.mxu0 0
    %4217 = vmatpush.bf16.msra.mxu0 0
    %4218 = vmatpush.bf16.msra.mxu0 0
    %4219 = vmatpush.bf16.msra.mxu0 %v4210
    %4220 = vmatmul.bf16.gmra.mxu0 %v4207
    %v4221 = vpop.f32.mrf.mxu0
    %v4222 = vadd.f32 0.0, %v4221
    %v4223 = vpop.f32.mrf.mxu0
    %4224 = vdwg.mxu0
    %v4225 = vpack.c.bf16 %v4222, %v4222
    %v4227 = vsel %vm502, %v4225, 0
    %v4230 = vsel %vm544, %v4009, 0
    %4232 = vmatpush.bf16.msra.mxu0 0
    %4233 = vmatpush.bf16.msra.mxu0 0
    %4234 = vmatpush.bf16.msra.mxu0 0
    %4235 = vmatpush.bf16.msra.mxu0 0
    %4236 = vmatpush.bf16.msra.mxu0 0
    %4237 = vmatpush.bf16.msra.mxu0 0
    %4238 = vmatpush.bf16.msra.mxu0 0
    %4239 = vmatpush.bf16.msra.mxu0 %v4230
    %4240 = vmatmul.bf16.gmra.mxu0 %v4227
    %v4241 = vpop.f32.mrf.mxu0
    %v4242 = vadd.f32 0.0, %v4241
    %v4243 = vpop.f32.mrf.mxu0
    %4244 = vdwg.mxu0
    %v4245 = vadd.f32 %v4164, %v4242
    %4246 = vrot.lane.b32.xlu0 %v4011, 104
    %v4247 = vpop.permute.xlu0 %4246
    %4248 = vrot.lane.b32.xlu0 %v4011, 72
    %v4249 = vpop.permute.xlu0 %4248
    %v4251 = vsel %vm502, %v4247, 0
    %v4254 = vsel %vm502, %v4249, 0
    %4256 = vmatpush.bf16.xpose.msra.mxu0 0
    %4257 = vmatpush.bf16.xpose.msra.mxu0 0
    %4258 = vmatpush.bf16.xpose.msra.mxu0 0
    %4259 = vmatpush.bf16.xpose.msra.mxu0 0
    %4260 = vmatpush.bf16.xpose.msra.mxu0 0
    %4261 = vmatpush.bf16.xpose.msra.mxu0 0
    %4262 = vmatpush.bf16.xpose.msra.mxu0 0
    %4263 = vmatpush.bf16.xpose.msra.mxu0 %v4254
    %4264 = vmatmul.bf16.gmra.mxu0 %v4251
    %v4265 = vpop.f32.mrf.mxu0
    %v4266 = vadd.f32 0.0, %v4265
    %v4267 = vpop.f32.mrf.mxu0
    %4268 = vdwg.mxu0
    %v4269 = vmul.f32 %v4266, 0.35355338
    %v4270 = vsel %vm383, %v4269, -1e+09
    %v4271 = vsel %vm502, %v4270, -inf
    %4272 = vmax.xlane.f32.xlu0 %v4271
    %v4273 = vpop.xlane.xlu0 %4272
    %v4274 = vsub.f32 %v4270, %v4273
    %v4275 = vmul.f32 %v4274, 1.442695
    %v4276 = vpow.pop %v4275
    %v4277 = vsel %vm502, %v4276, 0.0
    %4278 = vadd.xlane.f32.xlu0 %v4277
    %v4279 = vpop.xlane.xlu0 %4278
    %v4280 = vrcp.pop %v4279
    %v4281 = vmul.f32 %v4276, %v4280
    %v4282 = vpack.c.bf16 %v4281, %v4281
    %4283 = vrot.lane.b32.xlu0 %v4011, 40
    %v4284 = vpop.permute.xlu0 %4283
    %v4286 = vsel %vm502, %v4282, 0
    %v4289 = vsel %vm544, %v4284, 0
    %4291 = vmatpush.bf16.msra.mxu0 0
    %4292 = vmatpush.bf16.msra.mxu0 0
    %4293 = vmatpush.bf16.msra.mxu0 0
    %4294 = vmatpush.bf16.msra.mxu0 0
    %4295 = vmatpush.bf16.msra.mxu0 0
    %4296 = vmatpush.bf16.msra.mxu0 0
    %4297 = vmatpush.bf16.msra.mxu0 0
    %4298 = vmatpush.bf16.msra.mxu0 %v4289
    %4299 = vmatmul.bf16.gmra.mxu0 %v4286
    %v4300 = vpop.f32.mrf.mxu0
    %v4301 = vadd.f32 0.0, %v4300
    %v4302 = vpop.f32.mrf.mxu0
    %4303 = vdwg.mxu0
    %v4304 = vpack.c.bf16 %v4301, %v4301
    %v4306 = vsel %vm502, %v4304, 0
    %v4309 = vsel %vm544, %v4010, 0
    %4311 = vmatpush.bf16.msra.mxu0 0
    %4312 = vmatpush.bf16.msra.mxu0 0
    %4313 = vmatpush.bf16.msra.mxu0 0
    %4314 = vmatpush.bf16.msra.mxu0 0
    %4315 = vmatpush.bf16.msra.mxu0 0
    %4316 = vmatpush.bf16.msra.mxu0 0
    %4317 = vmatpush.bf16.msra.mxu0 0
    %4318 = vmatpush.bf16.msra.mxu0 %v4309
    %4319 = vmatmul.bf16.gmra.mxu0 %v4306
    %v4320 = vpop.f32.mrf.mxu0
    %v4321 = vadd.f32 0.0, %v4320
    %v4322 = vpop.f32.mrf.mxu0
    %4323 = vdwg.mxu0
    %v4324 = vadd.f32 %v4245, %v4321
    %v4325 = vpack.c.bf16 %v4004, %v4004
    %4327 = vrot.lane.b32.xlu0 %v4325, 96
    %v4328 = vpop.permute.xlu0 %4327
    %v4330 = vsel %vm502, %v4325, 0
    %v4333 = vsel %vm502, %v4328, 0
    %4335 = vmatpush.bf16.xpose.msra.mxu0 0
    %4336 = vmatpush.bf16.xpose.msra.mxu0 0
    %4337 = vmatpush.bf16.xpose.msra.mxu0 0
    %4338 = vmatpush.bf16.xpose.msra.mxu0 0
    %4339 = vmatpush.bf16.xpose.msra.mxu0 0
    %4340 = vmatpush.bf16.xpose.msra.mxu0 0
    %4341 = vmatpush.bf16.xpose.msra.mxu0 0
    %4342 = vmatpush.bf16.xpose.msra.mxu0 %v4333
    %4343 = vmatmul.bf16.gmra.mxu0 %v4330
    %v4344 = vpop.f32.mrf.mxu0
    %v4345 = vadd.f32 0.0, %v4344
    %v4346 = vpop.f32.mrf.mxu0
    %4347 = vdwg.mxu0
    %v4348 = vmul.f32 %v4345, 0.35355338
    %v4349 = vsel %vm383, %v4348, -1e+09
    %v4350 = vsel %vm502, %v4349, -inf
    %4351 = vmax.xlane.f32.xlu0 %v4350
    %v4352 = vpop.xlane.xlu0 %4351
    %v4353 = vsub.f32 %v4349, %v4352
    %v4354 = vmul.f32 %v4353, 1.442695
    %v4355 = vpow.pop %v4354
    %v4356 = vsel %vm502, %v4355, 0.0
    %4357 = vadd.xlane.f32.xlu0 %v4356
    %v4358 = vpop.xlane.xlu0 %4357
    %v4359 = vrcp.pop %v4358
    %v4360 = vmul.f32 %v4355, %v4359
    %v4361 = vpack.c.bf16 %v4360, %v4360
    %4362 = vrot.lane.b32.xlu0 %v4325, 64
    %v4363 = vpop.permute.xlu0 %4362
    %v4365 = vsel %vm502, %v4361, 0
    %v4368 = vsel %vm544, %v4363, 0
    %4370 = vmatpush.bf16.msra.mxu0 0
    %4371 = vmatpush.bf16.msra.mxu0 0
    %4372 = vmatpush.bf16.msra.mxu0 0
    %4373 = vmatpush.bf16.msra.mxu0 0
    %4374 = vmatpush.bf16.msra.mxu0 0
    %4375 = vmatpush.bf16.msra.mxu0 0
    %4376 = vmatpush.bf16.msra.mxu0 0
    %4377 = vmatpush.bf16.msra.mxu0 %v4368
    %4378 = vmatmul.bf16.gmra.mxu0 %v4365
    %v4379 = vpop.f32.mrf.mxu0
    %v4380 = vadd.f32 0.0, %v4379
    %v4381 = vpop.f32.mrf.mxu0
    %4382 = vdwg.mxu0
    %v4383 = vpack.c.bf16 %v4380, %v4380
    %4384 = vrot.lane.b32.xlu0 %v4325, 120
    %v4385 = vpop.permute.xlu0 %4384
    %4386 = vrot.lane.b32.xlu0 %v4325, 88
    %v4387 = vpop.permute.xlu0 %4386
    %v4389 = vsel %vm502, %v4385, 0
    %v4392 = vsel %vm502, %v4387, 0
    %4394 = vmatpush.bf16.xpose.msra.mxu0 0
    %4395 = vmatpush.bf16.xpose.msra.mxu0 0
    %4396 = vmatpush.bf16.xpose.msra.mxu0 0
    %4397 = vmatpush.bf16.xpose.msra.mxu0 0
    %4398 = vmatpush.bf16.xpose.msra.mxu0 0
    %4399 = vmatpush.bf16.xpose.msra.mxu0 0
    %4400 = vmatpush.bf16.xpose.msra.mxu0 0
    %4401 = vmatpush.bf16.xpose.msra.mxu0 %v4392
    %4402 = vmatmul.bf16.gmra.mxu0 %v4389
    %v4403 = vpop.f32.mrf.mxu0
    %v4404 = vadd.f32 0.0, %v4403
    %v4405 = vpop.f32.mrf.mxu0
    %4406 = vdwg.mxu0
    %v4407 = vmul.f32 %v4404, 0.35355338
    %v4408 = vsel %vm383, %v4407, -1e+09
    %v4409 = vsel %vm502, %v4408, -inf
    %4410 = vmax.xlane.f32.xlu0 %v4409
    %v4411 = vpop.xlane.xlu0 %4410
    %v4412 = vsub.f32 %v4408, %v4411
    %v4413 = vmul.f32 %v4412, 1.442695
    %v4414 = vpow.pop %v4413
    %v4415 = vsel %vm502, %v4414, 0.0
    %4416 = vadd.xlane.f32.xlu0 %v4415
    %v4417 = vpop.xlane.xlu0 %4416
    %v4418 = vrcp.pop %v4417
    %v4419 = vmul.f32 %v4414, %v4418
    %v4420 = vpack.c.bf16 %v4419, %v4419
    %4421 = vrot.lane.b32.xlu0 %v4325, 56
    %v4422 = vpop.permute.xlu0 %4421
    %v4424 = vsel %vm502, %v4420, 0
    %v4427 = vsel %vm544, %v4422, 0
    %4429 = vmatpush.bf16.msra.mxu0 0
    %4430 = vmatpush.bf16.msra.mxu0 0
    %4431 = vmatpush.bf16.msra.mxu0 0
    %4432 = vmatpush.bf16.msra.mxu0 0
    %4433 = vmatpush.bf16.msra.mxu0 0
    %4434 = vmatpush.bf16.msra.mxu0 0
    %4435 = vmatpush.bf16.msra.mxu0 0
    %4436 = vmatpush.bf16.msra.mxu0 %v4427
    %4437 = vmatmul.bf16.gmra.mxu0 %v4424
    %v4438 = vpop.f32.mrf.mxu0
    %v4439 = vadd.f32 0.0, %v4438
    %v4440 = vpop.f32.mrf.mxu0
    %4441 = vdwg.mxu0
    %v4442 = vpack.c.bf16 %v4439, %v4439
    %v4444 = vsel %vm502, %v4442, 0
    %4446 = vmatpush.bf16.msra.mxu0 0
    %4447 = vmatpush.bf16.msra.mxu0 0
    %4448 = vmatpush.bf16.msra.mxu0 0
    %4449 = vmatpush.bf16.msra.mxu0 0
    %4450 = vmatpush.bf16.msra.mxu0 0
    %4451 = vmatpush.bf16.msra.mxu0 0
    %4452 = vmatpush.bf16.msra.mxu0 0
    %4453 = vmatpush.bf16.msra.mxu0 %v4133
    %4454 = vmatmul.bf16.gmra.mxu0 %v4444
    %v4455 = vpop.f32.mrf.mxu0
    %v4456 = vadd.f32 0.0, %v4455
    %v4457 = vpop.f32.mrf.mxu0
    %4458 = vdwg.mxu0
    %v4460 = vsel %vm502, %v4383, 0
    %4462 = vmatpush.bf16.msra.mxu0 0
    %4463 = vmatpush.bf16.msra.mxu0 0
    %4464 = vmatpush.bf16.msra.mxu0 0
    %4465 = vmatpush.bf16.msra.mxu0 0
    %4466 = vmatpush.bf16.msra.mxu0 0
    %4467 = vmatpush.bf16.msra.mxu0 0
    %4468 = vmatpush.bf16.msra.mxu0 0
    %4469 = vmatpush.bf16.msra.mxu0 %v4152
    %4470 = vmatmul.bf16.gmra.mxu0 %v4460
    %v4471 = vpop.f32.mrf.mxu0
    %v4472 = vadd.f32 %v4456, %v4471
    %v4473 = vpop.f32.mrf.mxu0
    %4474 = vdwg.mxu0
    %4475 = vrot.lane.b32.xlu0 %v4325, 112
    %v4476 = vpop.permute.xlu0 %4475
    %4477 = vrot.lane.b32.xlu0 %v4325, 80
    %v4478 = vpop.permute.xlu0 %4477
    %v4480 = vsel %vm502, %v4476, 0
    %v4483 = vsel %vm502, %v4478, 0
    %4485 = vmatpush.bf16.xpose.msra.mxu0 0
    %4486 = vmatpush.bf16.xpose.msra.mxu0 0
    %4487 = vmatpush.bf16.xpose.msra.mxu0 0
    %4488 = vmatpush.bf16.xpose.msra.mxu0 0
    %4489 = vmatpush.bf16.xpose.msra.mxu0 0
    %4490 = vmatpush.bf16.xpose.msra.mxu0 0
    %4491 = vmatpush.bf16.xpose.msra.mxu0 0
    %4492 = vmatpush.bf16.xpose.msra.mxu0 %v4483
    %4493 = vmatmul.bf16.gmra.mxu0 %v4480
    %v4494 = vpop.f32.mrf.mxu0
    %v4495 = vadd.f32 0.0, %v4494
    %v4496 = vpop.f32.mrf.mxu0
    %4497 = vdwg.mxu0
    %v4498 = vmul.f32 %v4495, 0.35355338
    %v4499 = vsel %vm383, %v4498, -1e+09
    %v4500 = vsel %vm502, %v4499, -inf
    %4501 = vmax.xlane.f32.xlu0 %v4500
    %v4502 = vpop.xlane.xlu0 %4501
    %v4503 = vsub.f32 %v4499, %v4502
    %v4504 = vmul.f32 %v4503, 1.442695
    %v4505 = vpow.pop %v4504
    %v4506 = vsel %vm502, %v4505, 0.0
    %4507 = vadd.xlane.f32.xlu0 %v4506
    %v4508 = vpop.xlane.xlu0 %4507
    %v4509 = vrcp.pop %v4508
    %v4510 = vmul.f32 %v4505, %v4509
    %v4511 = vpack.c.bf16 %v4510, %v4510
    %4512 = vrot.lane.b32.xlu0 %v4325, 48
    %v4513 = vpop.permute.xlu0 %4512
    %v4515 = vsel %vm502, %v4511, 0
    %v4518 = vsel %vm544, %v4513, 0
    %4520 = vmatpush.bf16.msra.mxu0 0
    %4521 = vmatpush.bf16.msra.mxu0 0
    %4522 = vmatpush.bf16.msra.mxu0 0
    %4523 = vmatpush.bf16.msra.mxu0 0
    %4524 = vmatpush.bf16.msra.mxu0 0
    %4525 = vmatpush.bf16.msra.mxu0 0
    %4526 = vmatpush.bf16.msra.mxu0 0
    %4527 = vmatpush.bf16.msra.mxu0 %v4518
    %4528 = vmatmul.bf16.gmra.mxu0 %v4515
    %v4529 = vpop.f32.mrf.mxu0
    %v4530 = vadd.f32 0.0, %v4529
    %v4531 = vpop.f32.mrf.mxu0
    %4532 = vdwg.mxu0
    %v4533 = vpack.c.bf16 %v4530, %v4530
    %v4535 = vsel %vm502, %v4533, 0
    %4537 = vmatpush.bf16.msra.mxu0 0
    %4538 = vmatpush.bf16.msra.mxu0 0
    %4539 = vmatpush.bf16.msra.mxu0 0
    %4540 = vmatpush.bf16.msra.mxu0 0
    %4541 = vmatpush.bf16.msra.mxu0 0
    %4542 = vmatpush.bf16.msra.mxu0 0
    %4543 = vmatpush.bf16.msra.mxu0 0
    %4544 = vmatpush.bf16.msra.mxu0 %v4230
    %4545 = vmatmul.bf16.gmra.mxu0 %v4535
    %v4546 = vpop.f32.mrf.mxu0
    %v4547 = vadd.f32 0.0, %v4546
    %v4548 = vpop.f32.mrf.mxu0
    %4549 = vdwg.mxu0
    %v4550 = vadd.f32 %v4472, %v4547
    %4551 = vrot.lane.b32.xlu0 %v4325, 104
    %v4552 = vpop.permute.xlu0 %4551
    %4553 = vrot.lane.b32.xlu0 %v4325, 72
    %v4554 = vpop.permute.xlu0 %4553
    %v4556 = vsel %vm502, %v4552, 0
    %v4559 = vsel %vm502, %v4554, 0
    %4561 = vmatpush.bf16.xpose.msra.mxu0 0
    %4562 = vmatpush.bf16.xpose.msra.mxu0 0
    %4563 = vmatpush.bf16.xpose.msra.mxu0 0
    %4564 = vmatpush.bf16.xpose.msra.mxu0 0
    %4565 = vmatpush.bf16.xpose.msra.mxu0 0
    %4566 = vmatpush.bf16.xpose.msra.mxu0 0
    %4567 = vmatpush.bf16.xpose.msra.mxu0 0
    %4568 = vmatpush.bf16.xpose.msra.mxu0 %v4559
    %4569 = vmatmul.bf16.gmra.mxu0 %v4556
    %v4570 = vpop.f32.mrf.mxu0
    %v4571 = vadd.f32 0.0, %v4570
    %v4572 = vpop.f32.mrf.mxu0
    %4573 = vdwg.mxu0
    %v4574 = vmul.f32 %v4571, 0.35355338
    %v4575 = vsel %vm383, %v4574, -1e+09
    %v4576 = vsel %vm502, %v4575, -inf
    %4577 = vmax.xlane.f32.xlu0 %v4576
    %v4578 = vpop.xlane.xlu0 %4577
    %v4579 = vsub.f32 %v4575, %v4578
    %v4580 = vmul.f32 %v4579, 1.442695
    %v4581 = vpow.pop %v4580
    %v4582 = vsel %vm502, %v4581, 0.0
    %4583 = vadd.xlane.f32.xlu0 %v4582
    %v4584 = vpop.xlane.xlu0 %4583
    %v4585 = vrcp.pop %v4584
    %v4586 = vmul.f32 %v4581, %v4585
    %v4587 = vpack.c.bf16 %v4586, %v4586
    %4588 = vrot.lane.b32.xlu0 %v4325, 40
    %v4589 = vpop.permute.xlu0 %4588
    %v4591 = vsel %vm502, %v4587, 0
    %v4594 = vsel %vm544, %v4589, 0
    %4596 = vmatpush.bf16.msra.mxu0 0
    %4597 = vmatpush.bf16.msra.mxu0 0
    %4598 = vmatpush.bf16.msra.mxu0 0
    %4599 = vmatpush.bf16.msra.mxu0 0
    %4600 = vmatpush.bf16.msra.mxu0 0
    %4601 = vmatpush.bf16.msra.mxu0 0
    %4602 = vmatpush.bf16.msra.mxu0 0
    %4603 = vmatpush.bf16.msra.mxu0 %v4594
    %4604 = vmatmul.bf16.gmra.mxu0 %v4591
    %v4605 = vpop.f32.mrf.mxu0
    %v4606 = vadd.f32 0.0, %v4605
    %v4607 = vpop.f32.mrf.mxu0
    %4608 = vdwg.mxu0
    %v4609 = vpack.c.bf16 %v4606, %v4606
    %v4611 = vsel %vm502, %v4609, 0
    %4613 = vmatpush.bf16.msra.mxu0 0
    %4614 = vmatpush.bf16.msra.mxu0 0
    %4615 = vmatpush.bf16.msra.mxu0 0
    %4616 = vmatpush.bf16.msra.mxu0 0
    %4617 = vmatpush.bf16.msra.mxu0 0
    %4618 = vmatpush.bf16.msra.mxu0 0
    %4619 = vmatpush.bf16.msra.mxu0 0
    %4620 = vmatpush.bf16.msra.mxu0 %v4309
    %4621 = vmatmul.bf16.gmra.mxu0 %v4611
    %v4622 = vpop.f32.mrf.mxu0
    %v4623 = vadd.f32 0.0, %v4622
    %v4624 = vpop.f32.mrf.mxu0
    %4625 = vdwg.mxu0
    %v4626 = vadd.f32 %v4550, %v4623
    %v4627 = vadd.f32 %v3900, %v4324
    %v4628 = vadd.f32 %v3901, %v4626
    %s4629 = scalar_lea.vmem %s45, 1
    %v4630 = vld [vmem:[%s4629] sm:$0x1]
    %v4632 = vperm.slane %v4630, 0
    %v4634 = vadd.f32 %v4627, %v4632
    %v4635 = vadd.f32 %v4628, %v4632
    %s4636 = scalar_lea.vmem %s47, 1
    %v4637 = vld [vmem:[%s4636] sm:$0x1]
    %s4638 = scalar_lea.vmem %s49, 1
    %v4639 = vld [vmem:[%s4638] sm:$0x1]
    %v4640 = vsel %vm388, %v4634, 0.0
    %4641 = vadd.xlane.f32.xlu0 %v4640
    %v4642 = vpop.xlane.xlu0 %4641
    %v4643 = vsel %vm388, %v4635, 0.0
    %4644 = vadd.xlane.f32.xlu0 %v4643
    %v4645 = vpop.xlane.xlu0 %4644
    %v4646 = vmul.f32 %v4642, %v401
    %v4647 = vmul.f32 %v4645, %v401
    %v4648 = vsub.f32 %v4634, %v4646
    %v4649 = vsub.f32 %v4635, %v4647
    %v4650 = vmul.f32 %v4648, %v4648
    %v4651 = vmul.f32 %v4649, %v4649
    %v4652 = vsel %vm388, %v4650, 0.0
    %4653 = vadd.xlane.f32.xlu0 %v4652
    %v4654 = vpop.xlane.xlu0 %4653
    %v4655 = vsel %vm388, %v4651, 0.0
    %4656 = vadd.xlane.f32.xlu0 %v4655
    %v4657 = vpop.xlane.xlu0 %4656
    %v4658 = vmul.f32 %v4654, 0.032258064
    %v4659 = vmul.f32 %v4657, 0.032258064
    %v4660 = vrsqrt.pop %v4658
    %v4661 = vmul.f32 %v4660, %v4658
    %v4662 = vmul.f32 %v4661, %v4660
    %v4663 = vmul.f32 0.5, %v4662
    %v4664 = vsub.f32 1.5, %v4663
    %v4665 = vmul.f32 %v4660, %v4664
    %v4666 = vmul.f32 %v4658, %v4665
    %vm4667 = vcmp.eq.f32.partialorder %v4658, inf
    %v4668 = vsel %vm4667, %v4658, %v4666
    %vm4669 = vcmp.eq.f32.partialorder %v4658, 0.0
    %v4670 = vand.u32 %v4658, 2147483648
    %v4671 = vsel %vm4669, %v4670, %v4668
    %v4672 = vrsqrt.pop %v4659
    %v4673 = vmul.f32 %v4672, %v4659
    %v4674 = vmul.f32 %v4673, %v4672
    %v4675 = vmul.f32 0.5, %v4674
    %v4676 = vsub.f32 1.5, %v4675
    %v4677 = vmul.f32 %v4672, %v4676
    %v4678 = vmul.f32 %v4659, %v4677
    %vm4679 = vcmp.eq.f32.partialorder %v4659, inf
    %v4680 = vsel %vm4679, %v4659, %v4678
    %vm4681 = vcmp.eq.f32.partialorder %v4659, 0.0
    %v4682 = vand.u32 %v4659, 2147483648
    %v4683 = vsel %vm4681, %v4682, %v4680
    %v4684 = vadd.f32 %v4671, 1e-06
    %v4685 = vadd.f32 %v4683, 1e-06
    %v4686 = vrcp.pop %v4684
    %v4687 = vrcp.pop %v4685
    %v4688 = vmul.f32 %v4648, %v4686
    %v4689 = vmul.f32 %v4649, %v4687
    %v4691 = vperm.slane %v4637, 0
    %v4693 = vmul.f32 %v4691, %v4688
    %v4694 = vmul.f32 %v4691, %v4689
    %v4696 = vperm.slane %v4639, 0
    %v4698 = vadd.f32 %v4693, %v4696
    %v4699 = vadd.f32 %v4694, %v4696
    %s4700 = scalar_lea.vmem [#allocation16], 16
    %v4701 = vld [vmem:[%s4700] sm:$0xf]
    %v4702 = vld [vmem:[%s4700 + $0x4] sm:$0xf]
    %v4703 = vld [vmem:[%s4700 + $0x8] sm:$0xf]
    %v4704 = vld [vmem:[%s4700 + $0xc] sm:$0xf]
    %s4705 = scalar_lea.vmem [#allocation17], 1
    %v4706 = vld [vmem:[%s4705] sm:$0x1]
    %v4707 = vpack.c.bf16 %v4699, %v4698
    %v4709 = vperm.slane %v4706, 0
    %v4715 = vunpack.c.l.b16 %v4701
    %v4716 = vunpack.c.l.b16 %v4702
    %v4717 = vunpack.c.l.b16 %v4703
    %v4718 = vunpack.c.l.b16 %v4704
    %v4719 = vpack.c.b16 %v4716, %v4715
    %v4720 = vpack.c.b16 %v4718, %v4717
    %v4724 = vsel %vm388, %v4707, 0
    %4726 = vmatpush.bf16.msra.mxu0 0
    %4727 = vmatpush.bf16.msra.mxu0 0
    %4728 = vmatpush.bf16.msra.mxu0 0
    %4729 = vmatpush.bf16.msra.mxu0 0
    %4730 = vmatpush.bf16.msra.mxu0 0
    %4731 = vmatpush.bf16.msra.mxu0 0
    %4732 = vmatpush.bf16.msra.mxu0 %v4720
    %4733 = vmatpush.bf16.msra.mxu0 %v4719
    %4734 = vmatmul.bf16.gmra.mxu0 %v4724
    %v4735 = vpop.f32.mrf.mxu0
    %v4736 = vadd.f32 %v4709, %v4735
    %v4737 = vpop.f32.mrf.mxu0
    %v4738 = vadd.f32 %v4709, %v4737
    %4739 = vdwg.mxu0
    %s4740 = scalar_lea.vmem [#allocation19], 16
    %v4741 = vld [vmem:[%s4740] sm:$0xf]
    %v4742 = vld [vmem:[%s4740 + $0x4] sm:$0xf]
    %v4743 = vld [vmem:[%s4740 + $0x8] sm:$0xf]
    %v4744 = vld [vmem:[%s4740 + $0xc] sm:$0xf]
    %s4745 = scalar_lea.vmem %s57, 1
    %v4746 = vld [vmem:[%s4745] sm:$0x1]
    %v4748 = vperm.slane %v4746, 0
    %v4754 = vunpack.c.l.b16 %v4741
    %v4755 = vunpack.c.l.b16 %v4742
    %v4756 = vunpack.c.l.b16 %v4743
    %v4757 = vunpack.c.l.b16 %v4744
    %v4758 = vpack.c.b16 %v4755, %v4754
    %v4759 = vpack.c.b16 %v4757, %v4756
    %4762 = vmatpush.bf16.msra.mxu0 0
    %4763 = vmatpush.bf16.msra.mxu0 0
    %4764 = vmatpush.bf16.msra.mxu0 0
    %4765 = vmatpush.bf16.msra.mxu0 0
    %4766 = vmatpush.bf16.msra.mxu0 0
    %4767 = vmatpush.bf16.msra.mxu0 0
    %4768 = vmatpush.bf16.msra.mxu0 %v4759
    %4769 = vmatpush.bf16.msra.mxu0 %v4758
    %4770 = vmatmul.bf16.gmra.mxu0 %v3100
    %v4771 = vpop.f32.mrf.mxu0
    %v4772 = vadd.f32 %v4748, %v4771
    %v4773 = vpop.f32.mrf.mxu0
    %v4774 = vadd.f32 %v4748, %v4773
    %4775 = vdwg.mxu0
    %s4776 = scalar_lea.vmem [#allocation20], 16
    %v4777 = vld [vmem:[%s4776] sm:$0xf]
    %v4778 = vld [vmem:[%s4776 + $0x4] sm:$0xf]
    %v4779 = vld [vmem:[%s4776 + $0x8] sm:$0xf]
    %v4780 = vld [vmem:[%s4776 + $0xc] sm:$0xf]
    %v4781 = vpack.c.bf16 %v4736, %v4736
    %v4782 = vpack.c.bf16 %v4772, %v4772
    %v4784 = vsel %vm502, %v4781, 0
    %v4787 = vsel %vm502, %v4782, 0
    %4789 = vmatpush.bf16.xpose.msra.mxu0 0
    %4790 = vmatpush.bf16.xpose.msra.mxu0 0
    %4791 = vmatpush.bf16.xpose.msra.mxu0 0
    %4792 = vmatpush.bf16.xpose.msra.mxu0 0
    %4793 = vmatpush.bf16.xpose.msra.mxu0 0
    %4794 = vmatpush.bf16.xpose.msra.mxu0 0
    %4795 = vmatpush.bf16.xpose.msra.mxu0 0
    %4796 = vmatpush.bf16.xpose.msra.mxu0 %v4787
    %4797 = vmatmul.bf16.gmra.mxu0 %v4784
    %v4798 = vpop.f32.mrf.mxu0
    %v4799 = vadd.f32 0.0, %v4798
    %v4800 = vpop.f32.mrf.mxu0
    %4801 = vdwg.mxu0
    %v4802 = vmul.f32 %v4799, 0.35355338
    %v4803 = vsel %vm525, %v4802, -1e+09
    %v4804 = vsel %vm502, %v4803, -inf
    %4805 = vmax.xlane.f32.xlu0 %v4804
    %v4806 = vpop.xlane.xlu0 %4805
    %v4807 = vsub.f32 %v4803, %v4806
    %v4808 = vmul.f32 %v4807, 1.442695
    %v4809 = vpow.pop %v4808
    %v4810 = vsel %vm502, %v4809, 0.0
    %4811 = vadd.xlane.f32.xlu0 %v4810
    %v4812 = vpop.xlane.xlu0 %4811
    %v4813 = vrcp.pop %v4812
    %v4814 = vmul.f32 %v4809, %v4813
    %v4815 = vpack.c.bf16 %v4814, %v4814
    %4817 = vrot.lane.b32.xlu0 %v4782, 96
    %v4818 = vpop.permute.xlu0 %4817
    %v4820 = vsel %vm502, %v4815, 0
    %v4823 = vsel %vm544, %v4818, 0
    %4825 = vmatpush.bf16.msra.mxu0 0
    %4826 = vmatpush.bf16.msra.mxu0 0
    %4827 = vmatpush.bf16.msra.mxu0 0
    %4828 = vmatpush.bf16.msra.mxu0 0
    %4829 = vmatpush.bf16.msra.mxu0 0
    %4830 = vmatpush.bf16.msra.mxu0 0
    %4831 = vmatpush.bf16.msra.mxu0 0
    %4832 = vmatpush.bf16.msra.mxu0 %v4823
    %4833 = vmatmul.bf16.gmra.mxu0 %v4820
    %v4834 = vpop.f32.mrf.mxu0
    %v4835 = vadd.f32 0.0, %v4834
    %v4836 = vpop.f32.mrf.mxu0
    %4837 = vdwg.mxu0
    %v4838 = vpack.c.bf16 %v4835, %v4835
    %4840 = vrot.lane.b32.xlu0 %v4781, 120
    %v4841 = vpop.permute.xlu0 %4840
    %4842 = vrot.lane.b32.xlu0 %v4782, 120
    %v4843 = vpop.permute.xlu0 %4842
    %v4845 = vsel %vm502, %v4841, 0
    %v4848 = vsel %vm502, %v4843, 0
    %4850 = vmatpush.bf16.xpose.msra.mxu0 0
    %4851 = vmatpush.bf16.xpose.msra.mxu0 0
    %4852 = vmatpush.bf16.xpose.msra.mxu0 0
    %4853 = vmatpush.bf16.xpose.msra.mxu0 0
    %4854 = vmatpush.bf16.xpose.msra.mxu0 0
    %4855 = vmatpush.bf16.xpose.msra.mxu0 0
    %4856 = vmatpush.bf16.xpose.msra.mxu0 0
    %4857 = vmatpush.bf16.xpose.msra.mxu0 %v4848
    %4858 = vmatmul.bf16.gmra.mxu0 %v4845
    %v4859 = vpop.f32.mrf.mxu0
    %v4860 = vadd.f32 0.0, %v4859
    %v4861 = vpop.f32.mrf.mxu0
    %4862 = vdwg.mxu0
    %v4863 = vmul.f32 %v4860, 0.35355338
    %v4864 = vsel %vm525, %v4863, -1e+09
    %v4865 = vsel %vm502, %v4864, -inf
    %4866 = vmax.xlane.f32.xlu0 %v4865
    %v4867 = vpop.xlane.xlu0 %4866
    %v4868 = vsub.f32 %v4864, %v4867
    %v4869 = vmul.f32 %v4868, 1.442695
    %v4870 = vpow.pop %v4869
    %v4871 = vsel %vm502, %v4870, 0.0
    %4872 = vadd.xlane.f32.xlu0 %v4871
    %v4873 = vpop.xlane.xlu0 %4872
    %v4874 = vrcp.pop %v4873
    %v4875 = vmul.f32 %v4870, %v4874
    %v4876 = vpack.c.bf16 %v4875, %v4875
    %4877 = vrot.lane.b32.xlu0 %v4782, 88
    %v4878 = vpop.permute.xlu0 %4877
    %v4880 = vsel %vm502, %v4876, 0
    %v4883 = vsel %vm544, %v4878, 0
    %4885 = vmatpush.bf16.msra.mxu0 0
    %4886 = vmatpush.bf16.msra.mxu0 0
    %4887 = vmatpush.bf16.msra.mxu0 0
    %4888 = vmatpush.bf16.msra.mxu0 0
    %4889 = vmatpush.bf16.msra.mxu0 0
    %4890 = vmatpush.bf16.msra.mxu0 0
    %4891 = vmatpush.bf16.msra.mxu0 0
    %4892 = vmatpush.bf16.msra.mxu0 %v4883
    %4893 = vmatmul.bf16.gmra.mxu0 %v4880
    %v4894 = vpop.f32.mrf.mxu0
    %v4895 = vadd.f32 0.0, %v4894
    %v4896 = vpop.f32.mrf.mxu0
    %4897 = vdwg.mxu0
    %v4898 = vpack.c.bf16 %v4895, %v4895
    %v4900 = vsel %vm502, %v4898, 0
    %v4903 = vsel %vm544, %v4778, 0
    %4905 = vmatpush.bf16.msra.mxu0 0
    %4906 = vmatpush.bf16.msra.mxu0 0
    %4907 = vmatpush.bf16.msra.mxu0 0
    %4908 = vmatpush.bf16.msra.mxu0 0
    %4909 = vmatpush.bf16.msra.mxu0 0
    %4910 = vmatpush.bf16.msra.mxu0 0
    %4911 = vmatpush.bf16.msra.mxu0 0
    %4912 = vmatpush.bf16.msra.mxu0 %v4903
    %4913 = vmatmul.bf16.gmra.mxu0 %v4900
    %v4914 = vpop.f32.mrf.mxu0
    %v4915 = vadd.f32 0.0, %v4914
    %v4916 = vpop.f32.mrf.mxu0
    %4917 = vdwg.mxu0
    %v4919 = vsel %vm502, %v4838, 0
    %v4922 = vsel %vm544, %v4777, 0
    %4924 = vmatpush.bf16.msra.mxu0 0
    %4925 = vmatpush.bf16.msra.mxu0 0
    %4926 = vmatpush.bf16.msra.mxu0 0
    %4927 = vmatpush.bf16.msra.mxu0 0
    %4928 = vmatpush.bf16.msra.mxu0 0
    %4929 = vmatpush.bf16.msra.mxu0 0
    %4930 = vmatpush.bf16.msra.mxu0 0
    %4931 = vmatpush.bf16.msra.mxu0 %v4922
    %4932 = vmatmul.bf16.gmra.mxu0 %v4919
    %v4933 = vpop.f32.mrf.mxu0
    %v4934 = vadd.f32 %v4915, %v4933
    %v4935 = vpop.f32.mrf.mxu0
    %4936 = vdwg.mxu0
    %4937 = vrot.lane.b32.xlu0 %v4781, 112
    %v4938 = vpop.permute.xlu0 %4937
    %4939 = vrot.lane.b32.xlu0 %v4782, 112
    %v4940 = vpop.permute.xlu0 %4939
    %v4942 = vsel %vm502, %v4938, 0
    %v4945 = vsel %vm502, %v4940, 0
    %4947 = vmatpush.bf16.xpose.msra.mxu0 0
    %4948 = vmatpush.bf16.xpose.msra.mxu0 0
    %4949 = vmatpush.bf16.xpose.msra.mxu0 0
    %4950 = vmatpush.bf16.xpose.msra.mxu0 0
    %4951 = vmatpush.bf16.xpose.msra.mxu0 0
    %4952 = vmatpush.bf16.xpose.msra.mxu0 0
    %4953 = vmatpush.bf16.xpose.msra.mxu0 0
    %4954 = vmatpush.bf16.xpose.msra.mxu0 %v4945
    %4955 = vmatmul.bf16.gmra.mxu0 %v4942
    %v4956 = vpop.f32.mrf.mxu0
    %v4957 = vadd.f32 0.0, %v4956
    %v4958 = vpop.f32.mrf.mxu0
    %4959 = vdwg.mxu0
    %v4960 = vmul.f32 %v4957, 0.35355338
    %v4961 = vsel %vm525, %v4960, -1e+09
    %v4962 = vsel %vm502, %v4961, -inf
    %4963 = vmax.xlane.f32.xlu0 %v4962
    %v4964 = vpop.xlane.xlu0 %4963
    %v4965 = vsub.f32 %v4961, %v4964
    %v4966 = vmul.f32 %v4965, 1.442695
    %v4967 = vpow.pop %v4966
    %v4968 = vsel %vm502, %v4967, 0.0
    %4969 = vadd.xlane.f32.xlu0 %v4968
    %v4970 = vpop.xlane.xlu0 %4969
    %v4971 = vrcp.pop %v4970
    %v4972 = vmul.f32 %v4967, %v4971
    %v4973 = vpack.c.bf16 %v4972, %v4972
    %4974 = vrot.lane.b32.xlu0 %v4782, 80
    %v4975 = vpop.permute.xlu0 %4974
    %v4977 = vsel %vm502, %v4973, 0
    %v4980 = vsel %vm544, %v4975, 0
    %4982 = vmatpush.bf16.msra.mxu0 0
    %4983 = vmatpush.bf16.msra.mxu0 0
    %4984 = vmatpush.bf16.msra.mxu0 0
    %4985 = vmatpush.bf16.msra.mxu0 0
    %4986 = vmatpush.bf16.msra.mxu0 0
    %4987 = vmatpush.bf16.msra.mxu0 0
    %4988 = vmatpush.bf16.msra.mxu0 0
    %4989 = vmatpush.bf16.msra.mxu0 %v4980
    %4990 = vmatmul.bf16.gmra.mxu0 %v4977
    %v4991 = vpop.f32.mrf.mxu0
    %v4992 = vadd.f32 0.0, %v4991
    %v4993 = vpop.f32.mrf.mxu0
    %4994 = vdwg.mxu0
    %v4995 = vpack.c.bf16 %v4992, %v4992
    %v4997 = vsel %vm502, %v4995, 0
    %v5000 = vsel %vm544, %v4779, 0
    %5002 = vmatpush.bf16.msra.mxu0 0
    %5003 = vmatpush.bf16.msra.mxu0 0
    %5004 = vmatpush.bf16.msra.mxu0 0
    %5005 = vmatpush.bf16.msra.mxu0 0
    %5006 = vmatpush.bf16.msra.mxu0 0
    %5007 = vmatpush.bf16.msra.mxu0 0
    %5008 = vmatpush.bf16.msra.mxu0 0
    %5009 = vmatpush.bf16.msra.mxu0 %v5000
    %5010 = vmatmul.bf16.gmra.mxu0 %v4997
    %v5011 = vpop.f32.mrf.mxu0
    %v5012 = vadd.f32 0.0, %v5011
    %v5013 = vpop.f32.mrf.mxu0
    %5014 = vdwg.mxu0
    %v5015 = vadd.f32 %v4934, %v5012
    %5016 = vrot.lane.b32.xlu0 %v4781, 104
    %v5017 = vpop.permute.xlu0 %5016
    %5018 = vrot.lane.b32.xlu0 %v4782, 104
    %v5019 = vpop.permute.xlu0 %5018
    %v5021 = vsel %vm502, %v5017, 0
    %v5024 = vsel %vm502, %v5019, 0
    %5026 = vmatpush.bf16.xpose.msra.mxu0 0
    %5027 = vmatpush.bf16.xpose.msra.mxu0 0
    %5028 = vmatpush.bf16.xpose.msra.mxu0 0
    %5029 = vmatpush.bf16.xpose.msra.mxu0 0
    %5030 = vmatpush.bf16.xpose.msra.mxu0 0
    %5031 = vmatpush.bf16.xpose.msra.mxu0 0
    %5032 = vmatpush.bf16.xpose.msra.mxu0 0
    %5033 = vmatpush.bf16.xpose.msra.mxu0 %v5024
    %5034 = vmatmul.bf16.gmra.mxu0 %v5021
    %v5035 = vpop.f32.mrf.mxu0
    %v5036 = vadd.f32 0.0, %v5035
    %v5037 = vpop.f32.mrf.mxu0
    %5038 = vdwg.mxu0
    %v5039 = vmul.f32 %v5036, 0.35355338
    %v5040 = vsel %vm525, %v5039, -1e+09
    %v5041 = vsel %vm502, %v5040, -inf
    %5042 = vmax.xlane.f32.xlu0 %v5041
    %v5043 = vpop.xlane.xlu0 %5042
    %v5044 = vsub.f32 %v5040, %v5043
    %v5045 = vmul.f32 %v5044, 1.442695
    %v5046 = vpow.pop %v5045
    %v5047 = vsel %vm502, %v5046, 0.0
    %5048 = vadd.xlane.f32.xlu0 %v5047
    %v5049 = vpop.xlane.xlu0 %5048
    %v5050 = vrcp.pop %v5049
    %v5051 = vmul.f32 %v5046, %v5050
    %v5052 = vpack.c.bf16 %v5051, %v5051
    %5053 = vrot.lane.b32.xlu0 %v4782, 72
    %v5054 = vpop.permute.xlu0 %5053
    %v5056 = vsel %vm502, %v5052, 0
    %v5059 = vsel %vm544, %v5054, 0
    %5061 = vmatpush.bf16.msra.mxu0 0
    %5062 = vmatpush.bf16.msra.mxu0 0
    %5063 = vmatpush.bf16.msra.mxu0 0
    %5064 = vmatpush.bf16.msra.mxu0 0
    %5065 = vmatpush.bf16.msra.mxu0 0
    %5066 = vmatpush.bf16.msra.mxu0 0
    %5067 = vmatpush.bf16.msra.mxu0 0
    %5068 = vmatpush.bf16.msra.mxu0 %v5059
    %5069 = vmatmul.bf16.gmra.mxu0 %v5056
    %v5070 = vpop.f32.mrf.mxu0
    %v5071 = vadd.f32 0.0, %v5070
    %v5072 = vpop.f32.mrf.mxu0
    %5073 = vdwg.mxu0
    %v5074 = vpack.c.bf16 %v5071, %v5071
    %v5076 = vsel %vm502, %v5074, 0
    %v5079 = vsel %vm544, %v4780, 0
    %5081 = vmatpush.bf16.msra.mxu0 0
    %5082 = vmatpush.bf16.msra.mxu0 0
    %5083 = vmatpush.bf16.msra.mxu0 0
    %5084 = vmatpush.bf16.msra.mxu0 0
    %5085 = vmatpush.bf16.msra.mxu0 0
    %5086 = vmatpush.bf16.msra.mxu0 0
    %5087 = vmatpush.bf16.msra.mxu0 0
    %5088 = vmatpush.bf16.msra.mxu0 %v5079
    %5089 = vmatmul.bf16.gmra.mxu0 %v5076
    %v5090 = vpop.f32.mrf.mxu0
    %v5091 = vadd.f32 0.0, %v5090
    %v5092 = vpop.f32.mrf.mxu0
    %5093 = vdwg.mxu0
    %v5094 = vadd.f32 %v5015, %v5091
    %v5095 = vpack.c.bf16 %v4738, %v4738
    %v5096 = vpack.c.bf16 %v4774, %v4774
    %v5098 = vsel %vm502, %v5095, 0
    %v5101 = vsel %vm502, %v5096, 0
    %5103 = vmatpush.bf16.xpose.msra.mxu0 0
    %5104 = vmatpush.bf16.xpose.msra.mxu0 0
    %5105 = vmatpush.bf16.xpose.msra.mxu0 0
    %5106 = vmatpush.bf16.xpose.msra.mxu0 0
    %5107 = vmatpush.bf16.xpose.msra.mxu0 0
    %5108 = vmatpush.bf16.xpose.msra.mxu0 0
    %5109 = vmatpush.bf16.xpose.msra.mxu0 0
    %5110 = vmatpush.bf16.xpose.msra.mxu0 %v5101
    %5111 = vmatmul.bf16.gmra.mxu0 %v5098
    %v5112 = vpop.f32.mrf.mxu0
    %v5113 = vadd.f32 0.0, %v5112
    %v5114 = vpop.f32.mrf.mxu0
    %5115 = vdwg.mxu0
    %v5116 = vmul.f32 %v5113, 0.35355338
    %v5117 = vsel %vm842, %v5116, -1e+09
    %v5118 = vsel %vm502, %v5117, -inf
    %5119 = vmax.xlane.f32.xlu0 %v5118
    %v5120 = vpop.xlane.xlu0 %5119
    %v5121 = vsub.f32 %v5117, %v5120
    %v5122 = vmul.f32 %v5121, 1.442695
    %v5123 = vpow.pop %v5122
    %v5124 = vsel %vm502, %v5123, 0.0
    %5125 = vadd.xlane.f32.xlu0 %v5124
    %v5126 = vpop.xlane.xlu0 %5125
    %v5127 = vrcp.pop %v5126
    %v5128 = vmul.f32 %v5123, %v5127
    %v5129 = vpack.c.bf16 %v5128, %v5128
    %5131 = vrot.lane.b32.xlu0 %v5096, 96
    %v5132 = vpop.permute.xlu0 %5131
    %v5134 = vsel %vm502, %v5129, 0
    %v5137 = vsel %vm544, %v5132, 0
    %5139 = vmatpush.bf16.msra.mxu0 0
    %5140 = vmatpush.bf16.msra.mxu0 0
    %5141 = vmatpush.bf16.msra.mxu0 0
    %5142 = vmatpush.bf16.msra.mxu0 0
    %5143 = vmatpush.bf16.msra.mxu0 0
    %5144 = vmatpush.bf16.msra.mxu0 0
    %5145 = vmatpush.bf16.msra.mxu0 0
    %5146 = vmatpush.bf16.msra.mxu0 %v5137
    %5147 = vmatmul.bf16.gmra.mxu0 %v5134
    %v5148 = vpop.f32.mrf.mxu0
    %v5149 = vadd.f32 0.0, %v5148
    %v5150 = vpop.f32.mrf.mxu0
    %5151 = vdwg.mxu0
    %v5152 = vpack.c.bf16 %v5149, %v5149
    %5154 = vrot.lane.b32.xlu0 %v5095, 120
    %v5155 = vpop.permute.xlu0 %5154
    %5156 = vrot.lane.b32.xlu0 %v5096, 120
    %v5157 = vpop.permute.xlu0 %5156
    %v5159 = vsel %vm502, %v5155, 0
    %v5162 = vsel %vm502, %v5157, 0
    %5164 = vmatpush.bf16.xpose.msra.mxu0 0
    %5165 = vmatpush.bf16.xpose.msra.mxu0 0
    %5166 = vmatpush.bf16.xpose.msra.mxu0 0
    %5167 = vmatpush.bf16.xpose.msra.mxu0 0
    %5168 = vmatpush.bf16.xpose.msra.mxu0 0
    %5169 = vmatpush.bf16.xpose.msra.mxu0 0
    %5170 = vmatpush.bf16.xpose.msra.mxu0 0
    %5171 = vmatpush.bf16.xpose.msra.mxu0 %v5162
    %5172 = vmatmul.bf16.gmra.mxu0 %v5159
    %v5173 = vpop.f32.mrf.mxu0
    %v5174 = vadd.f32 0.0, %v5173
    %v5175 = vpop.f32.mrf.mxu0
    %5176 = vdwg.mxu0
    %v5177 = vmul.f32 %v5174, 0.35355338
    %v5178 = vsel %vm842, %v5177, -1e+09
    %v5179 = vsel %vm502, %v5178, -inf
    %5180 = vmax.xlane.f32.xlu0 %v5179
    %v5181 = vpop.xlane.xlu0 %5180
    %v5182 = vsub.f32 %v5178, %v5181
    %v5183 = vmul.f32 %v5182, 1.442695
    %v5184 = vpow.pop %v5183
    %v5185 = vsel %vm502, %v5184, 0.0
    %5186 = vadd.xlane.f32.xlu0 %v5185
    %v5187 = vpop.xlane.xlu0 %5186
    %v5188 = vrcp.pop %v5187
    %v5189 = vmul.f32 %v5184, %v5188
    %v5190 = vpack.c.bf16 %v5189, %v5189
    %5191 = vrot.lane.b32.xlu0 %v5096, 88
    %v5192 = vpop.permute.xlu0 %5191
    %v5194 = vsel %vm502, %v5190, 0
    %v5197 = vsel %vm544, %v5192, 0
    %5199 = vmatpush.bf16.msra.mxu0 0
    %5200 = vmatpush.bf16.msra.mxu0 0
    %5201 = vmatpush.bf16.msra.mxu0 0
    %5202 = vmatpush.bf16.msra.mxu0 0
    %5203 = vmatpush.bf16.msra.mxu0 0
    %5204 = vmatpush.bf16.msra.mxu0 0
    %5205 = vmatpush.bf16.msra.mxu0 0
    %5206 = vmatpush.bf16.msra.mxu0 %v5197
    %5207 = vmatmul.bf16.gmra.mxu0 %v5194
    %v5208 = vpop.f32.mrf.mxu0
    %v5209 = vadd.f32 0.0, %v5208
    %v5210 = vpop.f32.mrf.mxu0
    %5211 = vdwg.mxu0
    %v5212 = vpack.c.bf16 %v5209, %v5209
    %v5214 = vsel %vm502, %v5212, 0
    %5216 = vmatpush.bf16.msra.mxu0 0
    %5217 = vmatpush.bf16.msra.mxu0 0
    %5218 = vmatpush.bf16.msra.mxu0 0
    %5219 = vmatpush.bf16.msra.mxu0 0
    %5220 = vmatpush.bf16.msra.mxu0 0
    %5221 = vmatpush.bf16.msra.mxu0 0
    %5222 = vmatpush.bf16.msra.mxu0 0
    %5223 = vmatpush.bf16.msra.mxu0 %v4903
    %5224 = vmatmul.bf16.gmra.mxu0 %v5214
    %v5225 = vpop.f32.mrf.mxu0
    %v5226 = vadd.f32 0.0, %v5225
    %v5227 = vpop.f32.mrf.mxu0
    %5228 = vdwg.mxu0
    %v5230 = vsel %vm502, %v5152, 0
    %5232 = vmatpush.bf16.msra.mxu0 0
    %5233 = vmatpush.bf16.msra.mxu0 0
    %5234 = vmatpush.bf16.msra.mxu0 0
    %5235 = vmatpush.bf16.msra.mxu0 0
    %5236 = vmatpush.bf16.msra.mxu0 0
    %5237 = vmatpush.bf16.msra.mxu0 0
    %5238 = vmatpush.bf16.msra.mxu0 0
    %5239 = vmatpush.bf16.msra.mxu0 %v4922
    %5240 = vmatmul.bf16.gmra.mxu0 %v5230
    %v5241 = vpop.f32.mrf.mxu0
    %v5242 = vadd.f32 %v5226, %v5241
    %v5243 = vpop.f32.mrf.mxu0
    %5244 = vdwg.mxu0
    %5245 = vrot.lane.b32.xlu0 %v5095, 112
    %v5246 = vpop.permute.xlu0 %5245
    %5247 = vrot.lane.b32.xlu0 %v5096, 112
    %v5248 = vpop.permute.xlu0 %5247
    %v5250 = vsel %vm502, %v5246, 0
    %v5253 = vsel %vm502, %v5248, 0
    %5255 = vmatpush.bf16.xpose.msra.mxu0 0
    %5256 = vmatpush.bf16.xpose.msra.mxu0 0
    %5257 = vmatpush.bf16.xpose.msra.mxu0 0
    %5258 = vmatpush.bf16.xpose.msra.mxu0 0
    %5259 = vmatpush.bf16.xpose.msra.mxu0 0
    %5260 = vmatpush.bf16.xpose.msra.mxu0 0
    %5261 = vmatpush.bf16.xpose.msra.mxu0 0
    %5262 = vmatpush.bf16.xpose.msra.mxu0 %v5253
    %5263 = vmatmul.bf16.gmra.mxu0 %v5250
    %v5264 = vpop.f32.mrf.mxu0
    %v5265 = vadd.f32 0.0, %v5264
    %v5266 = vpop.f32.mrf.mxu0
    %5267 = vdwg.mxu0
    %v5268 = vmul.f32 %v5265, 0.35355338
    %v5269 = vsel %vm842, %v5268, -1e+09
    %v5270 = vsel %vm502, %v5269, -inf
    %5271 = vmax.xlane.f32.xlu0 %v5270
    %v5272 = vpop.xlane.xlu0 %5271
    %v5273 = vsub.f32 %v5269, %v5272
    %v5274 = vmul.f32 %v5273, 1.442695
    %v5275 = vpow.pop %v5274
    %v5276 = vsel %vm502, %v5275, 0.0
    %5277 = vadd.xlane.f32.xlu0 %v5276
    %v5278 = vpop.xlane.xlu0 %5277
    %v5279 = vrcp.pop %v5278
    %v5280 = vmul.f32 %v5275, %v5279
    %v5281 = vpack.c.bf16 %v5280, %v5280
    %5282 = vrot.lane.b32.xlu0 %v5096, 80
    %v5283 = vpop.permute.xlu0 %5282
    %v5285 = vsel %vm502, %v5281, 0
    %v5288 = vsel %vm544, %v5283, 0
    %5290 = vmatpush.bf16.msra.mxu0 0
    %5291 = vmatpush.bf16.msra.mxu0 0
    %5292 = vmatpush.bf16.msra.mxu0 0
    %5293 = vmatpush.bf16.msra.mxu0 0
    %5294 = vmatpush.bf16.msra.mxu0 0
    %5295 = vmatpush.bf16.msra.mxu0 0
    %5296 = vmatpush.bf16.msra.mxu0 0
    %5297 = vmatpush.bf16.msra.mxu0 %v5288
    %5298 = vmatmul.bf16.gmra.mxu0 %v5285
    %v5299 = vpop.f32.mrf.mxu0
    %v5300 = vadd.f32 0.0, %v5299
    %v5301 = vpop.f32.mrf.mxu0
    %5302 = vdwg.mxu0
    %v5303 = vpack.c.bf16 %v5300, %v5300
    %v5305 = vsel %vm502, %v5303, 0
    %5307 = vmatpush.bf16.msra.mxu0 0
    %5308 = vmatpush.bf16.msra.mxu0 0
    %5309 = vmatpush.bf16.msra.mxu0 0
    %5310 = vmatpush.bf16.msra.mxu0 0
    %5311 = vmatpush.bf16.msra.mxu0 0
    %5312 = vmatpush.bf16.msra.mxu0 0
    %5313 = vmatpush.bf16.msra.mxu0 0
    %5314 = vmatpush.bf16.msra.mxu0 %v5000
    %5315 = vmatmul.bf16.gmra.mxu0 %v5305
    %v5316 = vpop.f32.mrf.mxu0
    %v5317 = vadd.f32 0.0, %v5316
    %v5318 = vpop.f32.mrf.mxu0
    %5319 = vdwg.mxu0
    %v5320 = vadd.f32 %v5242, %v5317
    %5321 = vrot.lane.b32.xlu0 %v5095, 104
    %v5322 = vpop.permute.xlu0 %5321
    %5323 = vrot.lane.b32.xlu0 %v5096, 104
    %v5324 = vpop.permute.xlu0 %5323
    %v5326 = vsel %vm502, %v5322, 0
    %v5329 = vsel %vm502, %v5324, 0
    %5331 = vmatpush.bf16.xpose.msra.mxu0 0
    %5332 = vmatpush.bf16.xpose.msra.mxu0 0
    %5333 = vmatpush.bf16.xpose.msra.mxu0 0
    %5334 = vmatpush.bf16.xpose.msra.mxu0 0
    %5335 = vmatpush.bf16.xpose.msra.mxu0 0
    %5336 = vmatpush.bf16.xpose.msra.mxu0 0
    %5337 = vmatpush.bf16.xpose.msra.mxu0 0
    %5338 = vmatpush.bf16.xpose.msra.mxu0 %v5329
    %5339 = vmatmul.bf16.gmra.mxu0 %v5326
    %v5340 = vpop.f32.mrf.mxu0
    %v5341 = vadd.f32 0.0, %v5340
    %v5342 = vpop.f32.mrf.mxu0
    %5343 = vdwg.mxu0
    %v5344 = vmul.f32 %v5341, 0.35355338
    %v5345 = vsel %vm842, %v5344, -1e+09
    %v5346 = vsel %vm502, %v5345, -inf
    %5347 = vmax.xlane.f32.xlu0 %v5346
    %v5348 = vpop.xlane.xlu0 %5347
    %v5349 = vsub.f32 %v5345, %v5348
    %v5350 = vmul.f32 %v5349, 1.442695
    %v5351 = vpow.pop %v5350
    %v5352 = vsel %vm502, %v5351, 0.0
    %5353 = vadd.xlane.f32.xlu0 %v5352
    %v5354 = vpop.xlane.xlu0 %5353
    %v5355 = vrcp.pop %v5354
    %v5356 = vmul.f32 %v5351, %v5355
    %v5357 = vpack.c.bf16 %v5356, %v5356
    %5358 = vrot.lane.b32.xlu0 %v5096, 72
    %v5359 = vpop.permute.xlu0 %5358
    %v5361 = vsel %vm502, %v5357, 0
    %v5364 = vsel %vm544, %v5359, 0
    %5366 = vmatpush.bf16.msra.mxu0 0
    %5367 = vmatpush.bf16.msra.mxu0 0
    %5368 = vmatpush.bf16.msra.mxu0 0
    %5369 = vmatpush.bf16.msra.mxu0 0
    %5370 = vmatpush.bf16.msra.mxu0 0
    %5371 = vmatpush.bf16.msra.mxu0 0
    %5372 = vmatpush.bf16.msra.mxu0 0
    %5373 = vmatpush.bf16.msra.mxu0 %v5364
    %5374 = vmatmul.bf16.gmra.mxu0 %v5361
    %v5375 = vpop.f32.mrf.mxu0
    %v5376 = vadd.f32 0.0, %v5375
    %v5377 = vpop.f32.mrf.mxu0
    %5378 = vdwg.mxu0
    %v5379 = vpack.c.bf16 %v5376, %v5376
    %v5381 = vsel %vm502, %v5379, 0
    %5383 = vmatpush.bf16.msra.mxu0 0
    %5384 = vmatpush.bf16.msra.mxu0 0
    %5385 = vmatpush.bf16.msra.mxu0 0
    %5386 = vmatpush.bf16.msra.mxu0 0
    %5387 = vmatpush.bf16.msra.mxu0 0
    %5388 = vmatpush.bf16.msra.mxu0 0
    %5389 = vmatpush.bf16.msra.mxu0 0
    %5390 = vmatpush.bf16.msra.mxu0 %v5079
    %5391 = vmatmul.bf16.gmra.mxu0 %v5381
    %v5392 = vpop.f32.mrf.mxu0
    %v5393 = vadd.f32 0.0, %v5392
    %v5394 = vpop.f32.mrf.mxu0
    %5395 = vdwg.mxu0
    %v5396 = vadd.f32 %v5320, %v5393
    %v5397 = vadd.f32 %v4634, %v5094
    %v5398 = vadd.f32 %v4635, %v5396
    %s5399 = scalar_lea.vmem %s61, 1
    %v5400 = vld [vmem:[%s5399] sm:$0x1]
    %v5402 = vperm.slane %v5400, 0
    %v5404 = vadd.f32 %v5397, %v5402
    %v5405 = vadd.f32 %v5398, %v5402
    %s5406 = scalar_lea.vmem %s63, 1
    %v5407 = vld [vmem:[%s5406] sm:$0x1]
    %s5408 = scalar_lea.vmem [#allocation22], 1
    %v5409 = vld [vmem:[%s5408] sm:$0x1]
    %v5410 = vsel %vm388, %v5404, 0.0
    %5411 = vadd.xlane.f32.xlu0 %v5410
    %v5412 = vpop.xlane.xlu0 %5411
    %v5413 = vsel %vm388, %v5405, 0.0
    %5414 = vadd.xlane.f32.xlu0 %v5413
    %v5415 = vpop.xlane.xlu0 %5414
    %v5416 = vmul.f32 %v5412, %v401
    %v5417 = vmul.f32 %v5415, %v401
    %v5418 = vsub.f32 %v5404, %v5416
    %v5419 = vsub.f32 %v5405, %v5417
    %v5420 = vmul.f32 %v5418, %v5418
    %v5421 = vmul.f32 %v5419, %v5419
    %v5422 = vsel %vm388, %v5420, 0.0
    %5423 = vadd.xlane.f32.xlu0 %v5422
    %v5424 = vpop.xlane.xlu0 %5423
    %v5425 = vsel %vm388, %v5421, 0.0
    %5426 = vadd.xlane.f32.xlu0 %v5425
    %v5427 = vpop.xlane.xlu0 %5426
    %v5428 = vmul.f32 %v5424, 0.032258064
    %v5429 = vmul.f32 %v5427, 0.032258064
    %v5430 = vrsqrt.pop %v5428
    %v5431 = vmul.f32 %v5430, %v5428
    %v5432 = vmul.f32 %v5431, %v5430
    %v5433 = vmul.f32 0.5, %v5432
    %v5434 = vsub.f32 1.5, %v5433
    %v5435 = vmul.f32 %v5430, %v5434
    %v5436 = vmul.f32 %v5428, %v5435
    %vm5437 = vcmp.eq.f32.partialorder %v5428, inf
    %v5438 = vsel %vm5437, %v5428, %v5436
    %vm5439 = vcmp.eq.f32.partialorder %v5428, 0.0
    %v5440 = vand.u32 %v5428, 2147483648
    %v5441 = vsel %vm5439, %v5440, %v5438
    %v5442 = vrsqrt.pop %v5429
    %v5443 = vmul.f32 %v5442, %v5429
    %v5444 = vmul.f32 %v5443, %v5442
    %v5445 = vmul.f32 0.5, %v5444
    %v5446 = vsub.f32 1.5, %v5445
    %v5447 = vmul.f32 %v5442, %v5446
    %v5448 = vmul.f32 %v5429, %v5447
    %vm5449 = vcmp.eq.f32.partialorder %v5429, inf
    %v5450 = vsel %vm5449, %v5429, %v5448
    %vm5451 = vcmp.eq.f32.partialorder %v5429, 0.0
    %v5452 = vand.u32 %v5429, 2147483648
    %v5453 = vsel %vm5451, %v5452, %v5450
    %v5454 = vadd.f32 %v5441, 1e-06
    %v5455 = vadd.f32 %v5453, 1e-06
    %v5456 = vrcp.pop %v5454
    %v5457 = vrcp.pop %v5455
    %v5458 = vmul.f32 %v5418, %v5456
    %v5459 = vmul.f32 %v5419, %v5457
    %v5461 = vperm.slane %v5407, 0
    %v5463 = vmul.f32 %v5461, %v5458
    %v5464 = vmul.f32 %v5461, %v5459
    %v5466 = vperm.slane %v5409, 0
    %v5468 = vadd.f32 %v5463, %v5466
    %v5469 = vadd.f32 %v5464, %v5466
    %s5470 = scalar_lea.vmem [#allocation23], 16
    %v5471 = vld [vmem:[%s5470] sm:$0xf]
    %v5472 = vld [vmem:[%s5470 + $0x4] sm:$0xf]
    %v5473 = vld [vmem:[%s5470 + $0x8] sm:$0xf]
    %v5474 = vld [vmem:[%s5470 + $0xc] sm:$0xf]
    %s5475 = scalar_lea.vmem %s69, 1
    %v5476 = vld [vmem:[%s5475] sm:$0x1]
    %v5477 = vpack.c.bf16 %v5469, %v5468
    %v5479 = vperm.slane %v5476, 0
    %v5485 = vunpack.c.l.b16 %v5471
    %v5486 = vunpack.c.l.b16 %v5472
    %v5487 = vunpack.c.l.b16 %v5473
    %v5488 = vunpack.c.l.b16 %v5474
    %v5489 = vpack.c.b16 %v5486, %v5485
    %v5490 = vpack.c.b16 %v5488, %v5487
    %v5494 = vsel %vm388, %v5477, 0
    %5496 = vmatpush.bf16.msra.mxu0 0
    %5497 = vmatpush.bf16.msra.mxu0 0
    %5498 = vmatpush.bf16.msra.mxu0 0
    %5499 = vmatpush.bf16.msra.mxu0 0
    %5500 = vmatpush.bf16.msra.mxu0 0
    %5501 = vmatpush.bf16.msra.mxu0 0
    %5502 = vmatpush.bf16.msra.mxu0 %v5490
    %5503 = vmatpush.bf16.msra.mxu0 %v5489
    %5504 = vmatmul.bf16.gmra.mxu0 %v5494
    %v5505 = vpop.f32.mrf.mxu0
    %v5506 = vadd.f32 %v5479, %v5505
    %v5507 = vpop.f32.mrf.mxu0
    %v5508 = vadd.f32 %v5479, %v5507
    %5509 = vdwg.mxu0
    %v5510 = vmax.f32 %v5506, 0.0
    %v5511 = vmax.f32 %v5508, 0.0
    %s5512 = scalar_lea.vmem %s71, 32
    %v5513 = vld [vmem:[%s5512] sm:$0xf]
    %v5514 = vld [vmem:[%s5512 + $0x4] sm:$0xf]
    %v5515 = vld [vmem:[%s5512 + $0x8] sm:$0xf]
    %v5516 = vld [vmem:[%s5512 + $0xc] sm:$0xf]
    %v5517 = vld [vmem:[%s5512 + $0x10] sm:$0xf]
    %v5518 = vld [vmem:[%s5512 + $0x14] sm:$0xf]
    %v5519 = vld [vmem:[%s5512 + $0x18] sm:$0xf]
    %v5520 = vld [vmem:[%s5512 + $0x1c] sm:$0xf]
    %s5521 = scalar_lea.vmem %s73, 1
    %v5522 = vld [vmem:[%s5521] sm:$0x1]
    %v5523 = vpack.c.bf16 %v5511, %v5510
    %v5525 = vperm.slane %v5522, 0
    %v5535 = vunpack.c.l.b16 %v5513
    %v5536 = vunpack.c.l.b16 %v5514
    %v5537 = vunpack.c.l.b16 %v5515
    %v5538 = vunpack.c.l.b16 %v5516
    %v5539 = vunpack.c.l.b16 %v5517
    %v5540 = vunpack.c.l.b16 %v5518
    %v5541 = vunpack.c.l.b16 %v5519
    %v5542 = vunpack.c.l.b16 %v5520
    %v5543 = vpack.c.b16 %v5536, %v5535
    %v5544 = vpack.c.b16 %v5538, %v5537
    %v5545 = vpack.c.b16 %v5540, %v5539
    %v5546 = vpack.c.b16 %v5542, %v5541
    %v5552 = vsel %vm1268, %v5523, 0
    %5554 = vmatpush.bf16.msra.mxu0 0
    %5555 = vmatpush.bf16.msra.mxu0 0
    %5556 = vmatpush.bf16.msra.mxu0 0
    %5557 = vmatpush.bf16.msra.mxu0 0
    %5558 = vmatpush.bf16.msra.mxu0 %v5546
    %5559 = vmatpush.bf16.msra.mxu0 %v5545
    %5560 = vmatpush.bf16.msra.mxu0 %v5544
    %5561 = vmatpush.bf16.msra.mxu0 %v5543
    %5562 = vmatmul.bf16.gmra.mxu0 %v5552
    %v5563 = vpop.f32.mrf.mxu0
    %v5564 = vadd.f32 %v5525, %v5563
    %v5565 = vpop.f32.mrf.mxu0
    %v5566 = vadd.f32 %v5525, %v5565
    %5567 = vdwg.mxu0
    %v5568 = vadd.f32 %v5404, %v5564
    %v5569 = vadd.f32 %v5405, %v5566
    %v5570 = vld [vmem:[%s75] sm:$0x1]
    %v5571 = vld [vmem:[%s77] sm:$0x1]
    %v5572 = vsel %vm388, %v5568, 0.0
    %5573 = vadd.xlane.f32.xlu0 %v5572
    %v5574 = vpop.xlane.xlu0 %5573
    %v5575 = vsel %vm388, %v5569, 0.0
    %5576 = vadd.xlane.f32.xlu0 %v5575
    %v5577 = vpop.xlane.xlu0 %5576
    %v5578 = vmul.f32 %v5574, %v401
    %v5579 = vmul.f32 %v5577, %v401
    %v5580 = vsub.f32 %v5568, %v5578
    %v5581 = vsub.f32 %v5569, %v5579
    %v5582 = vmul.f32 %v5580, %v5580
    %v5583 = vmul.f32 %v5581, %v5581
    %v5584 = vsel %vm388, %v5582, 0.0
    %5585 = vadd.xlane.f32.xlu0 %v5584
    %v5586 = vpop.xlane.xlu0 %5585
    %v5587 = vsel %vm388, %v5583, 0.0
    %5588 = vadd.xlane.f32.xlu0 %v5587
    %v5589 = vpop.xlane.xlu0 %5588
    %v5590 = vmul.f32 %v5586, 0.032258064
    %v5591 = vmul.f32 %v5589, 0.032258064
    %v5592 = vrsqrt.pop %v5590
    %v5593 = vmul.f32 %v5592, %v5590
    %v5594 = vmul.f32 %v5593, %v5592
    %v5595 = vmul.f32 0.5, %v5594
    %v5596 = vsub.f32 1.5, %v5595
    %v5597 = vmul.f32 %v5592, %v5596
    %v5598 = vmul.f32 %v5590, %v5597
    %vm5599 = vcmp.eq.f32.partialorder %v5590, inf
    %v5600 = vsel %vm5599, %v5590, %v5598
    %vm5601 = vcmp.eq.f32.partialorder %v5590, 0.0
    %v5602 = vand.u32 %v5590, 2147483648
    %v5603 = vsel %vm5601, %v5602, %v5600
    %v5604 = vrsqrt.pop %v5591
    %v5605 = vmul.f32 %v5604, %v5591
    %v5606 = vmul.f32 %v5605, %v5604
    %v5607 = vmul.f32 0.5, %v5606
    %v5608 = vsub.f32 1.5, %v5607
    %v5609 = vmul.f32 %v5604, %v5608
    %v5610 = vmul.f32 %v5591, %v5609
    %vm5611 = vcmp.eq.f32.partialorder %v5591, inf
    %v5612 = vsel %vm5611, %v5591, %v5610
    %vm5613 = vcmp.eq.f32.partialorder %v5591, 0.0
    %v5614 = vand.u32 %v5591, 2147483648
    %v5615 = vsel %vm5613, %v5614, %v5612
    %v5616 = vadd.f32 %v5603, 1e-06
    %v5617 = vadd.f32 %v5615, 1e-06
    %v5618 = vrcp.pop %v5616
    %v5619 = vrcp.pop %v5617
    %v5620 = vmul.f32 %v5580, %v5618
    %v5621 = vmul.f32 %v5581, %v5619
    %v5623 = vperm.slane %v5570, 0
    %v5625 = vmul.f32 %v5623, %v5620
    %v5626 = vmul.f32 %v5623, %v5621
    %v5628 = vperm.slane %v5571, 0
    %v5630 = vadd.f32 %v5625, %v5628
    %v5631 = vadd.f32 %v5626, %v5628
    %5632 = vst.msk [vmem:[#allocation25] sm:$0xff] %vm388, %v5630
    %5633 = vst.msk [vmem:[#allocation25 + $0x8] sm:$0xff] %vm388, %v5631
    // Predicated region
    $region214: #{tpu_custom_call.1} parent=1 // pred_check
      _
    $region215: #{tpu_custom_call.1} parent=1 // pred_check_branch
      %5635 = sbr.rel (0) target = $region217
    $region216: #{tpu_custom_call.1} parent=1 // pred_region
      %5637 = vsyncadd [#allocation4], 0
      %s5638 = sshll.u32 [#allocation25], 4
      %s5639 = int_to_ptr.vmem [resolvable:$true] %s5638
      %s5640 = sshll.u32 %s79, 4
      %s5641 = int_to_ptr.hbm [resolvable:$true] %s5640
      %5646 = dma.vmem_to_hbm [thread:$0]  %s5639, 256, %s5641, [#allocation4], 128, 128, 8
    $region217: #{tpu_custom_call.1} parent=1 // pred_fallthru
      _
    // Predicated region
    $region218: #{tpu_custom_call.1} parent=1 // pred_check
      _
    $region219: #{tpu_custom_call.1} parent=1 // pred_check_branch
      %5648 = sbr.rel (0) target = $region221
    $region220: #{tpu_custom_call.1} parent=1 // pred_region
      %5650 = dma.done [#allocation4], 256
    $region221: #{tpu_custom_call.1} parent=1 // pred_fallthru
      _
    %5651 = vsyncpa [#allocation3], 1
    %5652 = vsyncpa [#allocation6], 1
    %5653 = vsyncpa [#allocation9], 1
    %5654 = vsyncpa [#allocation12], 1
    %5655 = vsyncpa [#allocation15], 1
    %5656 = vsyncpa [#allocation18], 1
    %5657 = vsyncpa [#allocation21], 1
    %5658 = vsyncpa [#allocation24], 1
    %5659 = vsyncpa [#allocation4], 1

</llo_original>
